<compile_context>
chip_gen: v7x
topology: tpu7x:2x2x1
jax: 0.10.0
libtpu: 0.0.40
codegen_flags: <defaults>
</compile_context>

<pallas_src>
import functools

import jax
import jax.numpy as jnp
from jax import lax
from jax.experimental import pallas as pl
from jax.experimental.pallas import tpu as pltpu


# ------------------------------ fused kernel ---------------------------------
def _down_block_kernel(
    x_ref, temb_ref, gmat_ref,
    g1_ref, b1_ref, w1_ref, cb1_ref, tw_ref, tb_ref,
    g2_ref, b2_ref, w2_ref, cb2_ref,
    wd_ref, cbd_ref,
    o_ref,
    pad_ref,
    *, H, W, C, eps, mxu_dtype,
):
    HW = H * W
    Ho, Wo = H // 2, W // 2

    # Zero only the 1-pixel border of the padded scratch; the interior is fully
    # rewritten by every conv stage.  (Unconditional each grid step on purpose.)
    zrow = jnp.zeros((1, W + 2, C), jnp.float32)
    zcol = jnp.zeros((H, 1, C), jnp.float32)
    pad_ref[0:1, :, :] = zrow
    pad_ref[H + 1:H + 2, :, :] = zrow
    pad_ref[1:H + 1, 0:1, :] = zcol
    pad_ref[1:H + 1, W + 1:W + 2, :] = zcol

    gmat = gmat_ref[...]                                   # (C, C) group-average matrix

    def gn_silu(v, gamma, beta):
        # Two-pass GroupNorm (numerically robust) + SiLU, all in f32.
        s = jnp.sum(v, axis=0, keepdims=True)              # per-channel sum (1, C)
        mean = jnp.dot(s, gmat, preferred_element_type=jnp.float32)       # group mean
        d = v - mean
        var = jnp.dot(jnp.sum(d * d, axis=0, keepdims=True), gmat,
                      preferred_element_type=jnp.float32)                 # group var
        y = d * lax.rsqrt(var + eps) * gamma + beta
        return y * jax.nn.sigmoid(y)                       # SiLU

    def conv3x3(v, w_ref, bias, *, stride):
        # 'same' 3x3 conv as 3 row-band matmuls with K = 3*C.
        # The padded-activation interior lives in the VMEM scratch; the 1-pixel
        # border stays zero from the border-zeroing above.
        pad_ref[1:H + 1, 1:W + 1, :] = v.reshape(H, W, C)

        if stride == 1:
            rows = HW

            def band(ky):
                ps = [pad_ref[ky:ky + H, kx:kx + W, :].reshape(rows, C)
                      for kx in range(3)]
                return jnp.concatenate(ps, axis=-1).astype(mxu_dtype)     # (HW, 3C)
        else:
            rows = Ho * Wo

            def band(ky):
                # Read the 9 taps directly at the stride-2 output positions.
                ps = [pad_ref[pl.ds(ky, Ho, 2), pl.ds(kx, Wo, 2), :].reshape(rows, C)
                      for kx in range(3)]
                return jnp.concatenate(ps, axis=-1).astype(mxu_dtype)     # (Ho*Wo, 3C)

        # Accumulator initialized by the first band matmul (no zeros + add).
        acc = jnp.dot(band(0), w_ref[0], preferred_element_type=jnp.float32)
        acc = acc + jnp.dot(band(1), w_ref[1], preferred_element_type=jnp.float32)
        acc = acc + jnp.dot(band(2), w_ref[2], preferred_element_type=jnp.float32)
        return acc + bias

    # NCHW block -> (HW, C) inside the kernel (XLU transpose; no wrapper transpose).
    x = jnp.transpose(x_ref[0].astype(jnp.float32))        # (HW, C), residual input

    # Time-embedding projection for this sample: Linear(SiLU(temb)) -> (1, C),
    # folded with the conv1 channel bias into a single bias vector.
    t = temb_ref[0].astype(jnp.float32)                    # (1, Tc)
    t = t * jax.nn.sigmoid(t)
    tproj = jnp.dot(t, tw_ref[...], preferred_element_type=jnp.float32) + tb_ref[...]
    bias1 = cb1_ref[...] + tproj

    # --- ResnetBlock2D ---
    h = gn_silu(x, g1_ref[...], b1_ref[...])
    h = conv3x3(h, w1_ref, bias1, stride=1)                # conv1 + (bias + temb proj)
    h = gn_silu(h, g2_ref[...], b2_ref[...])
    h = conv3x3(h, w2_ref, cb2_ref[...], stride=1) + x     # conv2 + residual (dropout=id)

    # --- Downsample2D (3x3, stride 2, pad 1): only even positions are computed ---
    out = conv3x3(h, wd_ref, cbd_ref[...], stride=2)       # (Ho*Wo, C)

    # NCHW-native store: (C, Ho*Wo).
    o_ref[0] = jnp.transpose(out).astype(o_ref.dtype)


# ----------------------- one-time parameter preparation ----------------------
def prepare_params(raw, *, height, width, groups, mxu_dtype=jnp.bfloat16):
    """Hoisted weight preprocessing (done once, outside the forward pass)."""
    c_out, c_in = raw["conv1_w"].shape[:2]
    assert c_in == c_out, "conv_shortcut path not implemented"
    # TODO(synk): add the 1x1 conv_shortcut path for in_channels != out_channels.
    C = c_out
    cg = C // groups
    ch = jnp.arange(C)
    same_group = (ch[:, None] // cg) == (ch[None, :] // cg)
    gmat = same_group.astype(jnp.float32) / float(height * width * cg)

    def wband(w_oihw):
        # OIHW -> (ky, kx, Cin, Cout) -> (3, 3*Cin, Cout): K=3C row-band im2col,
        # matching the kx-major channel concatenation done in the kernel.
        return jnp.transpose(w_oihw, (2, 3, 1, 0)).reshape(3, 3 * C, C).astype(mxu_dtype)

    def row(v):
        return v.reshape(1, -1).astype(jnp.float32)

    return {
        "gmat": gmat,
        "g1": row(raw["norm1_w"]), "b1": row(raw["norm1_b"]),
        "w1": wband(raw["conv1_w"]), "cb1": row(raw["conv1_b"]),
        "tw": jnp.transpose(raw["time_w"]).astype(jnp.float32),
        "tb": row(raw["time_b"]),
        "g2": row(raw["norm2_w"]), "b2": row(raw["norm2_b"]),
        "w2": wband(raw["conv2_w"]), "cb2": row(raw["conv2_b"]),
        "wd": wband(raw["down_w"]), "cbd": row(raw["down_b"]),
        "mxu_dtype": mxu_dtype,
    }


# --------------------------- DownBlock2DMobile forward -----------------------
def down_block_2d_mobile_forward(prepared, hidden_nchw, temb, *, eps):
    N, C, H, W = hidden_nchw.shape
    Ho, Wo = H // 2, W // 2
    Tc = temb.shape[-1]
    mxu_dtype = prepared["mxu_dtype"]

    # Free reshapes only (NCHW is contiguous) -- no XLA transposes around the kernel.
    x = hidden_nchw.reshape(N, C, H * W)
    temb3 = temb.reshape(N, 1, Tc)

    kern = functools.partial(_down_block_kernel, H=H, W=W, C=C, eps=eps,
                             mxu_dtype=mxu_dtype)

    def full(shape):
        return pl.BlockSpec(shape, lambda n, _s=shape: (0,) * len(_s))

    out = pl.pallas_call(
        kern,
        out_shape=jax.ShapeDtypeStruct((N, C, Ho * Wo), hidden_nchw.dtype),
        grid=(N,),
        in_specs=[
            pl.BlockSpec((1, C, H * W), lambda n: (n, 0, 0)),     # x (per sample, NCHW)
            pl.BlockSpec((1, 1, Tc), lambda n: (n, 0, 0)),        # temb (per sample)
            full((C, C)),                                         # gmat
            full((1, C)), full((1, C)),                           # norm1 gamma/beta
            full((3, 3 * C, C)), full((1, C)),                    # conv1 w / b
            full((Tc, C)), full((1, C)),                          # time proj w / b
            full((1, C)), full((1, C)),                           # norm2 gamma/beta
            full((3, 3 * C, C)), full((1, C)),                    # conv2 w / b
            full((3, 3 * C, C)), full((1, C)),                    # downsample w / b
        ],
        out_specs=pl.BlockSpec((1, C, Ho * Wo), lambda n: (n, 0, 0)),
        scratch_shapes=[pltpu.VMEM((H + 2, W + 2, C), jnp.float32)],
        compiler_params=pltpu.CompilerParams(
            dimension_semantics=("parallel",),
            vmem_limit_bytes=48 * 1024 * 1024),
    )(x, temb3, prepared["gmat"],
      prepared["g1"], prepared["b1"], prepared["w1"], prepared["cb1"],
      prepared["tw"], prepared["tb"],
      prepared["g2"], prepared["b2"], prepared["w2"], prepared["cb2"],
      prepared["wd"], prepared["cbd"])

    return out.reshape(N, C, Ho, Wo)                       # free reshape, still NCHW


# ------------------------------------ main ------------------------------------
if __name__ == "__main__":
    N, C_IN, C_OUT, H, W, T_C, GROUPS = 2, 32, 32, 16, 16, 32, 8
    EPS = 1e-6

    key = jax.random.PRNGKey(0)
    ks = jax.random.split(key, 16)

    def winit(k, shape, scale=0.05):
        return jax.random.normal(k, shape, jnp.float32) * scale

    raw_params = {
        "norm1_w": 1.0 + winit(ks[0], (C_IN,), 0.1),
        "norm1_b": winit(ks[1], (C_IN,), 0.1),
        "conv1_w": winit(ks[2], (C_OUT, C_IN, 3, 3)),
        "conv1_b": winit(ks[3], (C_OUT,)),
        "time_w": winit(ks[4], (C_OUT, T_C)),
        "time_b": winit(ks[5], (C_OUT,)),
        "norm2_w": 1.0 + winit(ks[6], (C_OUT,), 0.1),
        "norm2_b": winit(ks[7], (C_OUT,), 0.1),
        "conv2_w": winit(ks[8], (C_OUT, C_OUT, 3, 3)),
        "conv2_b": winit(ks[9], (C_OUT,)),
        "down_w": winit(ks[10], (C_OUT, C_OUT, 3, 3)),
        "down_b": winit(ks[11], (C_OUT,)),
    }

    prepared = prepare_params(raw_params, height=H, width=W, groups=GROUPS,
                              mxu_dtype=jnp.bfloat16)

    hidden_states = jax.random.normal(ks[12], (N, C_IN, H, W), jnp.float32)   # NCHW
    temb = jax.random.normal(ks[13], (N, T_C), jnp.float32)

    out = down_block_2d_mobile_forward(prepared, hidden_states, temb, eps=EPS)
    out = jax.block_until_ready(out)
    assert out.shape == (N, C_OUT, H // 2, W // 2), out.shape
    assert bool(jnp.all(jnp.isfinite(out)))
    print("KERNEL_OK")
</pallas_src>

<mosaic_0001>
module attributes {stable_mosaic.version = 11 : i64} {
  func.func @_down_block_kernel(%arg0: i32, %arg1: memref<1x32x256xf32, #tpu.memory_space<vmem>>, %arg2: memref<1x1x32xf32, #tpu.memory_space<vmem>>, %arg3: memref<32x32xf32, #tpu.memory_space<vmem>>, %arg4: memref<1x32xf32, #tpu.memory_space<vmem>>, %arg5: memref<1x32xf32, #tpu.memory_space<vmem>>, %arg6: memref<3x96x32xbf16, #tpu.memory_space<vmem>>, %arg7: memref<1x32xf32, #tpu.memory_space<vmem>>, %arg8: memref<32x32xf32, #tpu.memory_space<vmem>>, %arg9: memref<1x32xf32, #tpu.memory_space<vmem>>, %arg10: memref<1x32xf32, #tpu.memory_space<vmem>>, %arg11: memref<1x32xf32, #tpu.memory_space<vmem>>, %arg12: memref<3x96x32xbf16, #tpu.memory_space<vmem>>, %arg13: memref<1x32xf32, #tpu.memory_space<vmem>>, %arg14: memref<3x96x32xbf16, #tpu.memory_space<vmem>>, %arg15: memref<1x32xf32, #tpu.memory_space<vmem>>, %arg16: memref<1x32x64xf32, #tpu.memory_space<vmem>>, %arg17: memref<18x18x32xf32, #tpu.memory_space<vmem>>) attributes {dimension_semantics = [#tpu.dimension_semantics<parallel>], iteration_bounds = array<i64: 2>, scalar_prefetch = 0 : i64, scratch_operands = 1 : i64, tpu.core_type = #tpu.core_type<tc>, window_params = [{transform_indices = @transform_0, window_bounds = array<i64: 1, 32, 256>}, {transform_indices = @transform_1, window_bounds = array<i64: 1, 1, 32>}, {pipeline_mode = #tpu.pipeline_mode<synchronous>, transform_indices = @transform_2, window_bounds = array<i64: 32, 32>}, {pipeline_mode = #tpu.pipeline_mode<synchronous>, transform_indices = @transform_3, window_bounds = array<i64: 1, 32>}, {pipeline_mode = #tpu.pipeline_mode<synchronous>, transform_indices = @transform_4, window_bounds = array<i64: 1, 32>}, {pipeline_mode = #tpu.pipeline_mode<synchronous>, transform_indices = @transform_5, window_bounds = array<i64: 3, 96, 32>}, {pipeline_mode = #tpu.pipeline_mode<synchronous>, transform_indices = @transform_6, window_bounds = array<i64: 1, 32>}, {pipeline_mode = #tpu.pipeline_mode<synchronous>, transform_indices = @transform_7, window_bounds = array<i64: 32, 32>}, {pipeline_mode = #tpu.pipeline_mode<synchronous>, transform_indices = @transform_8, window_bounds = array<i64: 1, 32>}, {pipeline_mode = #tpu.pipeline_mode<synchronous>, transform_indices = @transform_9, window_bounds = array<i64: 1, 32>}, {pipeline_mode = #tpu.pipeline_mode<synchronous>, transform_indices = @transform_10, window_bounds = array<i64: 1, 32>}, {pipeline_mode = #tpu.pipeline_mode<synchronous>, transform_indices = @transform_11, window_bounds = array<i64: 3, 96, 32>}, {pipeline_mode = #tpu.pipeline_mode<synchronous>, transform_indices = @transform_12, window_bounds = array<i64: 1, 32>}, {pipeline_mode = #tpu.pipeline_mode<synchronous>, transform_indices = @transform_13, window_bounds = array<i64: 3, 96, 32>}, {pipeline_mode = #tpu.pipeline_mode<synchronous>, transform_indices = @transform_14, window_bounds = array<i64: 1, 32>}, {transform_indices = @transform_15, window_bounds = array<i64: 1, 32, 64>}]} {
    %cst = arith.constant 0.000000e+00 : f32
    %0 = vector.broadcast %cst : f32 to vector<1x18x32xf32>
    %cst_0 = arith.constant 0.000000e+00 : f32
    %1 = vector.broadcast %cst_0 : f32 to vector<16x1x32xf32>
    %c0 = arith.constant 0 : index
    %c0_1 = arith.constant 0 : index
    %c0_2 = arith.constant 0 : index
    %2 = vector.load %arg17[%c0, %c0_1, %c0_2] : memref<18x18x32xf32, #tpu.memory_space<vmem>>, vector<1x18x32xf32>
    tpu.vector_store %arg17[%c0, %c0_1, %c0_2], %0 {strides = array<i32>} : memref<18x18x32xf32, #tpu.memory_space<vmem>>, vector<1x18x32xf32>,
    %c17 = arith.constant 17 : index
    %c0_3 = arith.constant 0 : index
    %c0_4 = arith.constant 0 : index
    %3 = vector.load %arg17[%c17, %c0_3, %c0_4] : memref<18x18x32xf32, #tpu.memory_space<vmem>>, vector<1x18x32xf32>
    tpu.vector_store %arg17[%c17, %c0_3, %c0_4], %0 {strides = array<i32>} : memref<18x18x32xf32, #tpu.memory_space<vmem>>, vector<1x18x32xf32>,
    %c1 = arith.constant 1 : index
    %c0_5 = arith.constant 0 : index
    %c0_6 = arith.constant 0 : index
    %4 = vector.load %arg17[%c1, %c0_5, %c0_6] : memref<18x18x32xf32, #tpu.memory_space<vmem>>, vector<16x1x32xf32>
    tpu.vector_store %arg17[%c1, %c0_5, %c0_6], %1 {strides = array<i32>} : memref<18x18x32xf32, #tpu.memory_space<vmem>>, vector<16x1x32xf32>,
    %c1_7 = arith.constant 1 : index
    %c17_8 = arith.constant 17 : index
    %c0_9 = arith.constant 0 : index
    %5 = vector.load %arg17[%c1_7, %c17_8, %c0_9] : memref<18x18x32xf32, #tpu.memory_space<vmem>>, vector<16x1x32xf32>
    tpu.vector_store %arg17[%c1_7, %c17_8, %c0_9], %1 {strides = array<i32>} : memref<18x18x32xf32, #tpu.memory_space<vmem>>, vector<16x1x32xf32>,
    %c0_10 = arith.constant 0 : index
    %c0_11 = arith.constant 0 : index
    %6 = vector.load %arg3[%c0_10, %c0_11] : memref<32x32xf32, #tpu.memory_space<vmem>>, vector<32x32xf32>
    %c0_12 = arith.constant 0 : index
    %c0_13 = arith.constant 0 : index
    %c0_14 = arith.constant 0 : index
    %7 = vector.load %arg1[%c0_12, %c0_13, %c0_14] : memref<1x32x256xf32, #tpu.memory_space<vmem>>, vector<1x32x256xf32>
    %8 = vector.shape_cast %7 : vector<1x32x256xf32> to vector<32x256xf32>
    %9 = tpu.transpose %8, [1, 0] : vector<32x256xf32> -> vector<256x32xf32>
    %c0_15 = arith.constant 0 : index
    %c0_16 = arith.constant 0 : index
    %c0_17 = arith.constant 0 : index
    %10 = vector.load %arg2[%c0_15, %c0_16, %c0_17] : memref<1x1x32xf32, #tpu.memory_space<vmem>>, vector<1x1x32xf32>
    %11 = vector.shape_cast %10 : vector<1x1x32xf32> to vector<1x32xf32>
    %12 = arith.negf %11 : vector<1x32xf32>
    %13 = math.exp %12 : vector<1x32xf32>
    %cst_18 = arith.constant 1.000000e+00 : f32
    %14 = vector.broadcast %cst_18 : f32 to vector<1x32xf32>
    %15 = arith.addf %14, %13 : vector<1x32xf32>
    %16 = arith.divf %14, %15 : vector<1x32xf32>
    %17 = arith.mulf %11, %16 : vector<1x32xf32>
    %c0_19 = arith.constant 0 : index
    %c0_20 = arith.constant 0 : index
    %18 = vector.load %arg8[%c0_19, %c0_20] : memref<32x32xf32, #tpu.memory_space<vmem>>, vector<32x32xf32>
    %cst_21 = arith.constant dense<0.000000e+00> : vector<1x32xf32>
    %19 = tpu.matmul %17, %18, %cst_21 {dimension_numbers = #tpu.dot_dimension_numbers<[1], [0], [0], [1], [0, 0, 1, 1], [], []>} : vector<1x32xf32>, vector<32x32xf32>, vector<1x32xf32> -> vector<1x32xf32>
    %c0_22 = arith.constant 0 : index
    %c0_23 = arith.constant 0 : index
    %20 = vector.load %arg9[%c0_22, %c0_23] : memref<1x32xf32, #tpu.memory_space<vmem>>, vector<1x32xf32>
    %21 = arith.addf %19, %20 : vector<1x32xf32>
    %c0_24 = arith.constant 0 : index
    %c0_25 = arith.constant 0 : index
    %22 = vector.load %arg7[%c0_24, %c0_25] : memref<1x32xf32, #tpu.memory_space<vmem>>, vector<1x32xf32>
    %23 = arith.addf %22, %21 : vector<1x32xf32>
    %c0_26 = arith.constant 0 : index
    %c0_27 = arith.constant 0 : index
    %24 = vector.load %arg4[%c0_26, %c0_27] : memref<1x32xf32, #tpu.memory_space<vmem>>, vector<1x32xf32>
    %c0_28 = arith.constant 0 : index
    %c0_29 = arith.constant 0 : index
    %25 = vector.load %arg5[%c0_28, %c0_29] : memref<1x32xf32, #tpu.memory_space<vmem>>, vector<1x32xf32>
    %cst_30 = arith.constant dense<0.000000e+00> : vector<32xf32>
    %26 = vector.multi_reduction <add>, %9, %cst_30 [0] : vector<256x32xf32> to vector<32xf32>
    %27 = vector.shape_cast %26 : vector<32xf32> to vector<1x32xf32>
    %cst_31 = arith.constant dense<0.000000e+00> : vector<1x32xf32>
    %28 = tpu.matmul %27, %6, %cst_31 {dimension_numbers = #tpu.dot_dimension_numbers<[1], [0], [0], [1], [0, 0, 1, 1], [], []>} : vector<1x32xf32>, vector<32x32xf32>, vector<1x32xf32> -> vector<1x32xf32>
    %29 = vector.broadcast %28 : vector<1x32xf32> to vector<256x32xf32>
    %30 = arith.subf %9, %29 : vector<256x32xf32>
    %31 = arith.mulf %30, %30 : vector<256x32xf32>
    %cst_32 = arith.constant dense<0.000000e+00> : vector<32xf32>
    %32 = vector.multi_reduction <add>, %31, %cst_32 [0] : vector<256x32xf32> to vector<32xf32>
    %33 = vector.shape_cast %32 : vector<32xf32> to vector<1x32xf32>
    %cst_33 = arith.constant dense<0.000000e+00> : vector<1x32xf32>
    %34 = tpu.matmul %33, %6, %cst_33 {dimension_numbers = #tpu.dot_dimension_numbers<[1], [0], [0], [1], [0, 0, 1, 1], [], []>} : vector<1x32xf32>, vector<32x32xf32>, vector<1x32xf32> -> vector<1x32xf32>
    %cst_34 = arith.constant 9.99999997E-7 : f32
    %35 = vector.broadcast %cst_34 : f32 to vector<1x32xf32>
    %36 = arith.addf %34, %35 : vector<1x32xf32>
    %37 = math.rsqrt %36 : vector<1x32xf32>
    %38 = vector.broadcast %37 : vector<1x32xf32> to vector<256x32xf32>
    %39 = arith.mulf %30, %38 : vector<256x32xf32>
    %40 = vector.broadcast %24 : vector<1x32xf32> to vector<256x32xf32>
    %41 = arith.mulf %39, %40 : vector<256x32xf32>
    %42 = vector.broadcast %25 : vector<1x32xf32> to vector<256x32xf32>
    %43 = arith.addf %41, %42 : vector<256x32xf32>
    %44 = arith.negf %43 : vector<256x32xf32>
    %45 = math.exp %44 : vector<256x32xf32>
    %cst_35 = arith.constant 1.000000e+00 : f32
    %46 = vector.broadcast %cst_35 : f32 to vector<256x32xf32>
    %47 = arith.addf %46, %45 : vector<256x32xf32>
    %48 = arith.divf %46, %47 : vector<256x32xf32>
    %49 = arith.mulf %43, %48 : vector<256x32xf32>
    %50 = vector.shape_cast %49 : vector<256x32xf32> to vector<16x16x32xf32>
    %c1_36 = arith.constant 1 : index
    %c1_37 = arith.constant 1 : index
    %c0_38 = arith.constant 0 : index
    %51 = vector.load %arg17[%c1_36, %c1_37, %c0_38] : memref<18x18x32xf32, #tpu.memory_space<vmem>>, vector<16x16x32xf32>
    tpu.vector_store %arg17[%c1_36, %c1_37, %c0_38], %50 {strides = array<i32>} : memref<18x18x32xf32, #tpu.memory_space<vmem>>, vector<16x16x32xf32>,
    %c0_39 = arith.constant 0 : index
    %c0_40 = arith.constant 0 : index
    %c0_41 = arith.constant 0 : index
    %52 = vector.load %arg17[%c0_39, %c0_40, %c0_41] : memref<18x18x32xf32, #tpu.memory_space<vmem>>, vector<16x16x32xf32>
    %53 = vector.shape_cast %52 : vector<16x16x32xf32> to vector<256x32xf32>
    %c0_42 = arith.constant 0 : index
    %c1_43 = arith.constant 1 : index
    %c0_44 = arith.constant 0 : index
    %54 = vector.load %arg17[%c0_42, %c1_43, %c0_44] : memref<18x18x32xf32, #tpu.memory_space<vmem>>, vector<16x16x32xf32>
    %55 = vector.shape_cast %54 : vector<16x16x32xf32> to vector<256x32xf32>
    %c0_45 = arith.constant 0 : index
    %c2 = arith.constant 2 : index
    %c0_46 = arith.constant 0 : index
    %56 = vector.load %arg17[%c0_45, %c2, %c0_46] : memref<18x18x32xf32, #tpu.memory_space<vmem>>, vector<16x16x32xf32>
    %57 = vector.shape_cast %56 : vector<16x16x32xf32> to vector<256x32xf32>
    %58 = tpu.concatenate %53, %55, %57 in 1 : vector<256x32xf32>, vector<256x32xf32>, vector<256x32xf32> -> vector<256x96xf32>
    %59 = arith.truncf %58 : vector<256x96xf32> to vector<256x96xbf16>
    %c0_47 = arith.constant 0 : index
    %c0_48 = arith.constant 0 : index
    %c0_49 = arith.constant 0 : index
    %60 = vector.load %arg6[%c0_47, %c0_48, %c0_49] : memref<3x96x32xbf16, #tpu.memory_space<vmem>>, vector<1x96x32xbf16>
    %61 = vector.shape_cast %60 : vector<1x96x32xbf16> to vector<96x32xbf16>
    %cst_50 = arith.constant dense<0.000000e+00> : vector<256x32xf32>
    %62 = tpu.matmul %59, %61, %cst_50 {dimension_numbers = #tpu.dot_dimension_numbers<[1], [0], [0], [1], [0, 0, 1, 1], [], []>} : vector<256x96xbf16>, vector<96x32xbf16>, vector<256x32xf32> -> vector<256x32xf32>
    %c1_51 = arith.constant 1 : index
    %c0_52 = arith.constant 0 : index
    %c0_53 = arith.constant 0 : index
    %63 = vector.load %arg17[%c1_51, %c0_52, %c0_53] : memref<18x18x32xf32, #tpu.memory_space<vmem>>, vector<16x16x32xf32>
    %64 = vector.shape_cast %63 : vector<16x16x32xf32> to vector<256x32xf32>
    %c1_54 = arith.constant 1 : index
    %c1_55 = arith.constant 1 : index
    %c0_56 = arith.constant 0 : index
    %65 = vector.load %arg17[%c1_54, %c1_55, %c0_56] : memref<18x18x32xf32, #tpu.memory_space<vmem>>, vector<16x16x32xf32>
    %66 = vector.shape_cast %65 : vector<16x16x32xf32> to vector<256x32xf32>
    %c1_57 = arith.constant 1 : index
    %c2_58 = arith.constant 2 : index
    %c0_59 = arith.constant 0 : index
    %67 = vector.load %arg17[%c1_57, %c2_58, %c0_59] : memref<18x18x32xf32, #tpu.memory_space<vmem>>, vector<16x16x32xf32>
    %68 = vector.shape_cast %67 : vector<16x16x32xf32> to vector<256x32xf32>
    %69 = tpu.concatenate %64, %66, %68 in 1 : vector<256x32xf32>, vector<256x32xf32>, vector<256x32xf32> -> vector<256x96xf32>
    %70 = arith.truncf %69 : vector<256x96xf32> to vector<256x96xbf16>
    %c1_60 = arith.constant 1 : index
    %c0_61 = arith.constant 0 : index
    %c0_62 = arith.constant 0 : index
    %71 = vector.load %arg6[%c1_60, %c0_61, %c0_62] : memref<3x96x32xbf16, #tpu.memory_space<vmem>>, vector<1x96x32xbf16>
    %72 = vector.shape_cast %71 : vector<1x96x32xbf16> to vector<96x32xbf16>
    %cst_63 = arith.constant dense<0.000000e+00> : vector<256x32xf32>
    %73 = tpu.matmul %70, %72, %cst_63 {dimension_numbers = #tpu.dot_dimension_numbers<[1], [0], [0], [1], [0, 0, 1, 1], [], []>} : vector<256x96xbf16>, vector<96x32xbf16>, vector<256x32xf32> -> vector<256x32xf32>
    %74 = arith.addf %62, %73 : vector<256x32xf32>
    %c2_64 = arith.constant 2 : index
    %c0_65 = arith.constant 0 : index
    %c0_66 = arith.constant 0 : index
    %75 = vector.load %arg17[%c2_64, %c0_65, %c0_66] : memref<18x18x32xf32, #tpu.memory_space<vmem>>, vector<16x16x32xf32>
    %76 = vector.shape_cast %75 : vector<16x16x32xf32> to vector<256x32xf32>
    %c2_67 = arith.constant 2 : index
    %c1_68 = arith.constant 1 : index
    %c0_69 = arith.constant 0 : index
    %77 = vector.load %arg17[%c2_67, %c1_68, %c0_69] : memref<18x18x32xf32, #tpu.memory_space<vmem>>, vector<16x16x32xf32>
    %78 = vector.shape_cast %77 : vector<16x16x32xf32> to vector<256x32xf32>
    %c2_70 = arith.constant 2 : index
    %c2_71 = arith.constant 2 : index
    %c0_72 = arith.constant 0 : index
    %79 = vector.load %arg17[%c2_70, %c2_71, %c0_72] : memref<18x18x32xf32, #tpu.memory_space<vmem>>, vector<16x16x32xf32>
    %80 = vector.shape_cast %79 : vector<16x16x32xf32> to vector<256x32xf32>
    %81 = tpu.concatenate %76, %78, %80 in 1 : vector<256x32xf32>, vector<256x32xf32>, vector<256x32xf32> -> vector<256x96xf32>
    %82 = arith.truncf %81 : vector<256x96xf32> to vector<256x96xbf16>
    %c2_73 = arith.constant 2 : index
    %c0_74 = arith.constant 0 : index
    %c0_75 = arith.constant 0 : index
    %83 = vector.load %arg6[%c2_73, %c0_74, %c0_75] : memref<3x96x32xbf16, #tpu.memory_space<vmem>>, vector<1x96x32xbf16>
    %84 = vector.shape_cast %83 : vector<1x96x32xbf16> to vector<96x32xbf16>
    %cst_76 = arith.constant dense<0.000000e+00> : vector<256x32xf32>
    %85 = tpu.matmul %82, %84, %cst_76 {dimension_numbers = #tpu.dot_dimension_numbers<[1], [0], [0], [1], [0, 0, 1, 1], [], []>} : vector<256x96xbf16>, vector<96x32xbf16>, vector<256x32xf32> -> vector<256x32xf32>
    %86 = arith.addf %74, %85 : vector<256x32xf32>
    %87 = vector.broadcast %23 : vector<1x32xf32> to vector<256x32xf32>
    %88 = arith.addf %86, %87 : vector<256x32xf32>
    %c0_77 = arith.constant 0 : index
    %c0_78 = arith.constant 0 : index
    %89 = vector.load %arg10[%c0_77, %c0_78] : memref<1x32xf32, #tpu.memory_space<vmem>>, vector<1x32xf32>
    %c0_79 = arith.constant 0 : index
    %c0_80 = arith.constant 0 : index
    %90 = vector.load %arg11[%c0_79, %c0_80] : memref<1x32xf32, #tpu.memory_space<vmem>>, vector<1x32xf32>
    %cst_81 = arith.constant dense<0.000000e+00> : vector<32xf32>
    %91 = vector.multi_reduction <add>, %88, %cst_81 [0] : vector<256x32xf32> to vector<32xf32>
    %92 = vector.shape_cast %91 : vector<32xf32> to vector<1x32xf32>
    %cst_82 = arith.constant dense<0.000000e+00> : vector<1x32xf32>
    %93 = tpu.matmul %92, %6, %cst_82 {dimension_numbers = #tpu.dot_dimension_numbers<[1], [0], [0], [1], [0, 0, 1, 1], [], []>} : vector<1x32xf32>, vector<32x32xf32>, vector<1x32xf32> -> vector<1x32xf32>
    %94 = vector.broadcast %93 : vector<1x32xf32> to vector<256x32xf32>
    %95 = arith.subf %88, %94 : vector<256x32xf32>
    %96 = arith.mulf %95, %95 : vector<256x32xf32>
    %cst_83 = arith.constant dense<0.000000e+00> : vector<32xf32>
    %97 = vector.multi_reduction <add>, %96, %cst_83 [0] : vector<256x32xf32> to vector<32xf32>
    %98 = vector.shape_cast %97 : vector<32xf32> to vector<1x32xf32>
    %cst_84 = arith.constant dense<0.000000e+00> : vector<1x32xf32>
    %99 = tpu.matmul %98, %6, %cst_84 {dimension_numbers = #tpu.dot_dimension_numbers<[1], [0], [0], [1], [0, 0, 1, 1], [], []>} : vector<1x32xf32>, vector<32x32xf32>, vector<1x32xf32> -> vector<1x32xf32>
    %cst_85 = arith.constant 9.99999997E-7 : f32
    %100 = vector.broadcast %cst_85 : f32 to vector<1x32xf32>
    %101 = arith.addf %99, %100 : vector<1x32xf32>
    %102 = math.rsqrt %101 : vector<1x32xf32>
    %103 = vector.broadcast %102 : vector<1x32xf32> to vector<256x32xf32>
    %104 = arith.mulf %95, %103 : vector<256x32xf32>
    %105 = vector.broadcast %89 : vector<1x32xf32> to vector<256x32xf32>
    %106 = arith.mulf %104, %105 : vector<256x32xf32>
    %107 = vector.broadcast %90 : vector<1x32xf32> to vector<256x32xf32>
    %108 = arith.addf %106, %107 : vector<256x32xf32>
    %109 = arith.negf %108 : vector<256x32xf32>
    %110 = math.exp %109 : vector<256x32xf32>
    %cst_86 = arith.constant 1.000000e+00 : f32
    %111 = vector.broadcast %cst_86 : f32 to vector<256x32xf32>
    %112 = arith.addf %111, %110 : vector<256x32xf32>
    %113 = arith.divf %111, %112 : vector<256x32xf32>
    %114 = arith.mulf %108, %113 : vector<256x32xf32>
    %c0_87 = arith.constant 0 : index
    %c0_88 = arith.constant 0 : index
    %115 = vector.load %arg13[%c0_87, %c0_88] : memref<1x32xf32, #tpu.memory_space<vmem>>, vector<1x32xf32>
    %116 = vector.shape_cast %114 : vector<256x32xf32> to vector<16x16x32xf32>
    %c1_89 = arith.constant 1 : index
    %c1_90 = arith.constant 1 : index
    %c0_91 = arith.constant 0 : index
    %117 = vector.load %arg17[%c1_89, %c1_90, %c0_91] : memref<18x18x32xf32, #tpu.memory_space<vmem>>, vector<16x16x32xf32>
    tpu.vector_store %arg17[%c1_89, %c1_90, %c0_91], %116 {strides = array<i32>} : memref<18x18x32xf32, #tpu.memory_space<vmem>>, vector<16x16x32xf32>,
    %c0_92 = arith.constant 0 : index
    %c0_93 = arith.constant 0 : index
    %c0_94 = arith.constant 0 : index
    %118 = vector.load %arg17[%c0_92, %c0_93, %c0_94] : memref<18x18x32xf32, #tpu.memory_space<vmem>>, vector<16x16x32xf32>
    %119 = vector.shape_cast %118 : vector<16x16x32xf32> to vector<256x32xf32>
    %c0_95 = arith.constant 0 : index
    %c1_96 = arith.constant 1 : index
    %c0_97 = arith.constant 0 : index
    %120 = vector.load %arg17[%c0_95, %c1_96, %c0_97] : memref<18x18x32xf32, #tpu.memory_space<vmem>>, vector<16x16x32xf32>
    %121 = vector.shape_cast %120 : vector<16x16x32xf32> to vector<256x32xf32>
    %c0_98 = arith.constant 0 : index
    %c2_99 = arith.constant 2 : index
    %c0_100 = arith.constant 0 : index
    %122 = vector.load %arg17[%c0_98, %c2_99, %c0_100] : memref<18x18x32xf32, #tpu.memory_space<vmem>>, vector<16x16x32xf32>
    %123 = vector.shape_cast %122 : vector<16x16x32xf32> to vector<256x32xf32>
    %124 = tpu.concatenate %119, %121, %123 in 1 : vector<256x32xf32>, vector<256x32xf32>, vector<256x32xf32> -> vector<256x96xf32>
    %125 = arith.truncf %124 : vector<256x96xf32> to vector<256x96xbf16>
    %c0_101 = arith.constant 0 : index
    %c0_102 = arith.constant 0 : index
    %c0_103 = arith.constant 0 : index
    %126 = vector.load %arg12[%c0_101, %c0_102, %c0_103] : memref<3x96x32xbf16, #tpu.memory_space<vmem>>, vector<1x96x32xbf16>
    %127 = vector.shape_cast %126 : vector<1x96x32xbf16> to vector<96x32xbf16>
    %cst_104 = arith.constant dense<0.000000e+00> : vector<256x32xf32>
    %128 = tpu.matmul %125, %127, %cst_104 {dimension_numbers = #tpu.dot_dimension_numbers<[1], [0], [0], [1], [0, 0, 1, 1], [], []>} : vector<256x96xbf16>, vector<96x32xbf16>, vector<256x32xf32> -> vector<256x32xf32>
    %c1_105 = arith.constant 1 : index
    %c0_106 = arith.constant 0 : index
    %c0_107 = arith.constant 0 : index
    %129 = vector.load %arg17[%c1_105, %c0_106, %c0_107] : memref<18x18x32xf32, #tpu.memory_space<vmem>>, vector<16x16x32xf32>
    %130 = vector.shape_cast %129 : vector<16x16x32xf32> to vector<256x32xf32>
    %c1_108 = arith.constant 1 : index
    %c1_109 = arith.constant 1 : index
    %c0_110 = arith.constant 0 : index
    %131 = vector.load %arg17[%c1_108, %c1_109, %c0_110] : memref<18x18x32xf32, #tpu.memory_space<vmem>>, vector<16x16x32xf32>
    %132 = vector.shape_cast %131 : vector<16x16x32xf32> to vector<256x32xf32>
    %c1_111 = arith.constant 1 : index
    %c2_112 = arith.constant 2 : index
    %c0_113 = arith.constant 0 : index
    %133 = vector.load %arg17[%c1_111, %c2_112, %c0_113] : memref<18x18x32xf32, #tpu.memory_space<vmem>>, vector<16x16x32xf32>
    %134 = vector.shape_cast %133 : vector<16x16x32xf32> to vector<256x32xf32>
    %135 = tpu.concatenate %130, %132, %134 in 1 : vector<256x32xf32>, vector<256x32xf32>, vector<256x32xf32> -> vector<256x96xf32>
    %136 = arith.truncf %135 : vector<256x96xf32> to vector<256x96xbf16>
    %c1_114 = arith.constant 1 : index
    %c0_115 = arith.constant 0 : index
    %c0_116 = arith.constant 0 : index
    %137 = vector.load %arg12[%c1_114, %c0_115, %c0_116] : memref<3x96x32xbf16, #tpu.memory_space<vmem>>, vector<1x96x32xbf16>
    %138 = vector.shape_cast %137 : vector<1x96x32xbf16> to vector<96x32xbf16>
    %cst_117 = arith.constant dense<0.000000e+00> : vector<256x32xf32>
    %139 = tpu.matmul %136, %138, %cst_117 {dimension_numbers = #tpu.dot_dimension_numbers<[1], [0], [0], [1], [0, 0, 1, 1], [], []>} : vector<256x96xbf16>, vector<96x32xbf16>, vector<256x32xf32> -> vector<256x32xf32>
    %140 = arith.addf %128, %139 : vector<256x32xf32>
    %c2_118 = arith.constant 2 : index
    %c0_119 = arith.constant 0 : index
    %c0_120 = arith.constant 0 : index
    %141 = vector.load %arg17[%c2_118, %c0_119, %c0_120] : memref<18x18x32xf32, #tpu.memory_space<vmem>>, vector<16x16x32xf32>
    %142 = vector.shape_cast %141 : vector<16x16x32xf32> to vector<256x32xf32>
    %c2_121 = arith.constant 2 : index
    %c1_122 = arith.constant 1 : index
    %c0_123 = arith.constant 0 : index
    %143 = vector.load %arg17[%c2_121, %c1_122, %c0_123] : memref<18x18x32xf32, #tpu.memory_space<vmem>>, vector<16x16x32xf32>
    %144 = vector.shape_cast %143 : vector<16x16x32xf32> to vector<256x32xf32>
    %c2_124 = arith.constant 2 : index
    %c2_125 = arith.constant 2 : index
    %c0_126 = arith.constant 0 : index
    %145 = vector.load %arg17[%c2_124, %c2_125, %c0_126] : memref<18x18x32xf32, #tpu.memory_space<vmem>>, vector<16x16x32xf32>
    %146 = vector.shape_cast %145 : vector<16x16x32xf32> to vector<256x32xf32>
    %147 = tpu.concatenate %142, %144, %146 in 1 : vector<256x32xf32>, vector<256x32xf32>, vector<256x32xf32> -> vector<256x96xf32>
    %148 = arith.truncf %147 : vector<256x96xf32> to vector<256x96xbf16>
    %c2_127 = arith.constant 2 : index
    %c0_128 = arith.constant 0 : index
    %c0_129 = arith.constant 0 : index
    %149 = vector.load %arg12[%c2_127, %c0_128, %c0_129] : memref<3x96x32xbf16, #tpu.memory_space<vmem>>, vector<1x96x32xbf16>
    %150 = vector.shape_cast %149 : vector<1x96x32xbf16> to vector<96x32xbf16>
    %cst_130 = arith.constant dense<0.000000e+00> : vector<256x32xf32>
    %151 = tpu.matmul %148, %150, %cst_130 {dimension_numbers = #tpu.dot_dimension_numbers<[1], [0], [0], [1], [0, 0, 1, 1], [], []>} : vector<256x96xbf16>, vector<96x32xbf16>, vector<256x32xf32> -> vector<256x32xf32>
    %152 = arith.addf %140, %151 : vector<256x32xf32>
    %153 = vector.broadcast %115 : vector<1x32xf32> to vector<256x32xf32>
    %154 = arith.addf %152, %153 : vector<256x32xf32>
    %155 = arith.addf %154, %9 : vector<256x32xf32>
    %c0_131 = arith.constant 0 : index
    %c0_132 = arith.constant 0 : index
    %156 = vector.load %arg15[%c0_131, %c0_132] : memref<1x32xf32, #tpu.memory_space<vmem>>, vector<1x32xf32>
    %157 = vector.shape_cast %155 : vector<256x32xf32> to vector<16x16x32xf32>
    %c1_133 = arith.constant 1 : index
    %c1_134 = arith.constant 1 : index
    %c0_135 = arith.constant 0 : index
    %158 = vector.load %arg17[%c1_133, %c1_134, %c0_135] : memref<18x18x32xf32, #tpu.memory_space<vmem>>, vector<16x16x32xf32>
    tpu.vector_store %arg17[%c1_133, %c1_134, %c0_135], %157 {strides = array<i32>} : memref<18x18x32xf32, #tpu.memory_space<vmem>>, vector<16x16x32xf32>,
    %c0_136 = arith.constant 0 : index
    %c0_137 = arith.constant 0 : index
    %c0_138 = arith.constant 0 : index
    %159 = tpu.strided_load %arg17[%c0_136, %c0_137, %c0_138] {strides = array<i32: 2, 2, 1>} : memref<18x18x32xf32, #tpu.memory_space<vmem>>, vector<8x8x32xf32>
    %160 = vector.shape_cast %159 : vector<8x8x32xf32> to vector<64x32xf32>
    %c0_139 = arith.constant 0 : index
    %c1_140 = arith.constant 1 : index
    %c0_141 = arith.constant 0 : index
    %161 = tpu.strided_load %arg17[%c0_139, %c1_140, %c0_141] {strides = array<i32: 2, 2, 1>} : memref<18x18x32xf32, #tpu.memory_space<vmem>>, vector<8x8x32xf32>
    %162 = vector.shape_cast %161 : vector<8x8x32xf32> to vector<64x32xf32>
    %c0_142 = arith.constant 0 : index
    %c2_143 = arith.constant 2 : index
    %c0_144 = arith.constant 0 : index
    %163 = tpu.strided_load %arg17[%c0_142, %c2_143, %c0_144] {strides = array<i32: 2, 2, 1>} : memref<18x18x32xf32, #tpu.memory_space<vmem>>, vector<8x8x32xf32>
    %164 = vector.shape_cast %163 : vector<8x8x32xf32> to vector<64x32xf32>
    %165 = tpu.concatenate %160, %162, %164 in 1 : vector<64x32xf32>, vector<64x32xf32>, vector<64x32xf32> -> vector<64x96xf32>
    %166 = arith.truncf %165 : vector<64x96xf32> to vector<64x96xbf16>
    %c0_145 = arith.constant 0 : index
    %c0_146 = arith.constant 0 : index
    %c0_147 = arith.constant 0 : index
    %167 = vector.load %arg14[%c0_145, %c0_146, %c0_147] : memref<3x96x32xbf16, #tpu.memory_space<vmem>>, vector<1x96x32xbf16>
    %168 = vector.shape_cast %167 : vector<1x96x32xbf16> to vector<96x32xbf16>
    %cst_148 = arith.constant dense<0.000000e+00> : vector<64x32xf32>
    %169 = tpu.matmul %166, %168, %cst_148 {dimension_numbers = #tpu.dot_dimension_numbers<[1], [0], [0], [1], [0, 0, 1, 1], [], []>} : vector<64x96xbf16>, vector<96x32xbf16>, vector<64x32xf32> -> vector<64x32xf32>
    %c1_149 = arith.constant 1 : index
    %c0_150 = arith.constant 0 : index
    %c0_151 = arith.constant 0 : index
    %170 = tpu.strided_load %arg17[%c1_149, %c0_150, %c0_151] {strides = array<i32: 2, 2, 1>} : memref<18x18x32xf32, #tpu.memory_space<vmem>>, vector<8x8x32xf32>
    %171 = vector.shape_cast %170 : vector<8x8x32xf32> to vector<64x32xf32>
    %c1_152 = arith.constant 1 : index
    %c1_153 = arith.constant 1 : index
    %c0_154 = arith.constant 0 : index
    %172 = tpu.strided_load %arg17[%c1_152, %c1_153, %c0_154] {strides = array<i32: 2, 2, 1>} : memref<18x18x32xf32, #tpu.memory_space<vmem>>, vector<8x8x32xf32>
    %173 = vector.shape_cast %172 : vector<8x8x32xf32> to vector<64x32xf32>
    %c1_155 = arith.constant 1 : index
    %c2_156 = arith.constant 2 : index
    %c0_157 = arith.constant 0 : index
    %174 = tpu.strided_load %arg17[%c1_155, %c2_156, %c0_157] {strides = array<i32: 2, 2, 1>} : memref<18x18x32xf32, #tpu.memory_space<vmem>>, vector<8x8x32xf32>
    %175 = vector.shape_cast %174 : vector<8x8x32xf32> to vector<64x32xf32>
    %176 = tpu.concatenate %171, %173, %175 in 1 : vector<64x32xf32>, vector<64x32xf32>, vector<64x32xf32> -> vector<64x96xf32>
    %177 = arith.truncf %176 : vector<64x96xf32> to vector<64x96xbf16>
    %c1_158 = arith.constant 1 : index
    %c0_159 = arith.constant 0 : index
    %c0_160 = arith.constant 0 : index
    %178 = vector.load %arg14[%c1_158, %c0_159, %c0_160] : memref<3x96x32xbf16, #tpu.memory_space<vmem>>, vector<1x96x32xbf16>
    %179 = vector.shape_cast %178 : vector<1x96x32xbf16> to vector<96x32xbf16>
    %cst_161 = arith.constant dense<0.000000e+00> : vector<64x32xf32>
    %180 = tpu.matmul %177, %179, %cst_161 {dimension_numbers = #tpu.dot_dimension_numbers<[1], [0], [0], [1], [0, 0, 1, 1], [], []>} : vector<64x96xbf16>, vector<96x32xbf16>, vector<64x32xf32> -> vector<64x32xf32>
    %181 = arith.addf %169, %180 : vector<64x32xf32>
    %c2_162 = arith.constant 2 : index
    %c0_163 = arith.constant 0 : index
    %c0_164 = arith.constant 0 : index
    %182 = tpu.strided_load %arg17[%c2_162, %c0_163, %c0_164] {strides = array<i32: 2, 2, 1>} : memref<18x18x32xf32, #tpu.memory_space<vmem>>, vector<8x8x32xf32>
    %183 = vector.shape_cast %182 : vector<8x8x32xf32> to vector<64x32xf32>
    %c2_165 = arith.constant 2 : index
    %c1_166 = arith.constant 1 : index
    %c0_167 = arith.constant 0 : index
    %184 = tpu.strided_load %arg17[%c2_165, %c1_166, %c0_167] {strides = array<i32: 2, 2, 1>} : memref<18x18x32xf32, #tpu.memory_space<vmem>>, vector<8x8x32xf32>
    %185 = vector.shape_cast %184 : vector<8x8x32xf32> to vector<64x32xf32>
    %c2_168 = arith.constant 2 : index
    %c2_169 = arith.constant 2 : index
    %c0_170 = arith.constant 0 : index
    %186 = tpu.strided_load %arg17[%c2_168, %c2_169, %c0_170] {strides = array<i32: 2, 2, 1>} : memref<18x18x32xf32, #tpu.memory_space<vmem>>, vector<8x8x32xf32>
    %187 = vector.shape_cast %186 : vector<8x8x32xf32> to vector<64x32xf32>
    %188 = tpu.concatenate %183, %185, %187 in 1 : vector<64x32xf32>, vector<64x32xf32>, vector<64x32xf32> -> vector<64x96xf32>
    %189 = arith.truncf %188 : vector<64x96xf32> to vector<64x96xbf16>
    %c2_171 = arith.constant 2 : index
    %c0_172 = arith.constant 0 : index
    %c0_173 = arith.constant 0 : index
    %190 = vector.load %arg14[%c2_171, %c0_172, %c0_173] : memref<3x96x32xbf16, #tpu.memory_space<vmem>>, vector<1x96x32xbf16>
    %191 = vector.shape_cast %190 : vector<1x96x32xbf16> to vector<96x32xbf16>
    %cst_174 = arith.constant dense<0.000000e+00> : vector<64x32xf32>
    %192 = tpu.matmul %189, %191, %cst_174 {dimension_numbers = #tpu.dot_dimension_numbers<[1], [0], [0], [1], [0, 0, 1, 1], [], []>} : vector<64x96xbf16>, vector<96x32xbf16>, vector<64x32xf32> -> vector<64x32xf32>
    %193 = arith.addf %181, %192 : vector<64x32xf32>
    %194 = vector.broadcast %156 : vector<1x32xf32> to vector<64x32xf32>
    %195 = arith.addf %193, %194 : vector<64x32xf32>
    %196 = tpu.transpose %195, [1, 0] : vector<64x32xf32> -> vector<32x64xf32>
    %c0_175 = arith.constant 0 : index
    %c0_176 = arith.constant 0 : index
    %c0_177 = arith.constant 0 : index
    %197 = vector.load %arg16[%c0_175, %c0_176, %c0_177] : memref<1x32x64xf32, #tpu.memory_space<vmem>>, vector<1x32x64xf32>
    %198 = vector.shape_cast %197 : vector<1x32x64xf32> to vector<32x64xf32>
    %199 = vector.shape_cast %196 : vector<32x64xf32> to vector<1x32x64xf32>
    tpu.vector_store %arg16[%c0_175, %c0_176, %c0_177], %199 {strides = array<i32>} : memref<1x32x64xf32, #tpu.memory_space<vmem>>, vector<1x32x64xf32>,
    return
  }
  func.func @transform_0(%arg0: i32) -> (i32, i32, i32) {
    %c0_i32 = arith.constant 0 : i32
    %c0_i32_0 = arith.constant 0 : i32
    %c0_i32_1 = arith.constant 0 : i32
    return %arg0, %c0_i32, %c0_i32_0 : i32, i32, i32
  }
  func.func @transform_1(%arg0: i32) -> (i32, i32, i32) {
    %c0_i32 = arith.constant 0 : i32
    %c0_i32_0 = arith.constant 0 : i32
    %c0_i32_1 = arith.constant 0 : i32
    return %arg0, %c0_i32, %c0_i32_0 : i32, i32, i32
  }
  func.func @transform_2(%arg0: i32) -> (i32, i32) {
    %c0_i32 = arith.constant 0 : i32
    %c0_i32_0 = arith.constant 0 : i32
    %c0_i32_1 = arith.constant 0 : i32
    return %c0_i32, %c0_i32_0 : i32, i32
  }
  func.func @transform_3(%arg0: i32) -> (i32, i32) {
    %c0_i32 = arith.constant 0 : i32
    %c0_i32_0 = arith.constant 0 : i32
    %c0_i32_1 = arith.constant 0 : i32
    return %c0_i32, %c0_i32_0 : i32, i32
  }
  func.func @transform_4(%arg0: i32) -> (i32, i32) {
    %c0_i32 = arith.constant 0 : i32
    %c0_i32_0 = arith.constant 0 : i32
    %c0_i32_1 = arith.constant 0 : i32
    return %c0_i32, %c0_i32_0 : i32, i32
  }
  func.func @transform_5(%arg0: i32) -> (i32, i32, i32) {
    %c0_i32 = arith.constant 0 : i32
    %c0_i32_0 = arith.constant 0 : i32
    %c0_i32_1 = arith.constant 0 : i32
    %c0_i32_2 = arith.constant 0 : i32
    return %c0_i32, %c0_i32_0, %c0_i32_1 : i32, i32, i32
  }
  func.func @transform_6(%arg0: i32) -> (i32, i32) {
    %c0_i32 = arith.constant 0 : i32
    %c0_i32_0 = arith.constant 0 : i32
    %c0_i32_1 = arith.constant 0 : i32
    return %c0_i32, %c0_i32_0 : i32, i32
  }
  func.func @transform_7(%arg0: i32) -> (i32, i32) {
    %c0_i32 = arith.constant 0 : i32
    %c0_i32_0 = arith.constant 0 : i32
    %c0_i32_1 = arith.constant 0 : i32
    return %c0_i32, %c0_i32_0 : i32, i32
  }
  func.func @transform_8(%arg0: i32) -> (i32, i32) {
    %c0_i32 = arith.constant 0 : i32
    %c0_i32_0 = arith.constant 0 : i32
    %c0_i32_1 = arith.constant 0 : i32
    return %c0_i32, %c0_i32_0 : i32, i32
  }
  func.func @transform_9(%arg0: i32) -> (i32, i32) {
    %c0_i32 = arith.constant 0 : i32
    %c0_i32_0 = arith.constant 0 : i32
    %c0_i32_1 = arith.constant 0 : i32
    return %c0_i32, %c0_i32_0 : i32, i32
  }
  func.func @transform_10(%arg0: i32) -> (i32, i32) {
    %c0_i32 = arith.constant 0 : i32
    %c0_i32_0 = arith.constant 0 : i32
    %c0_i32_1 = arith.constant 0 : i32
    return %c0_i32, %c0_i32_0 : i32, i32
  }
  func.func @transform_11(%arg0: i32) -> (i32, i32, i32) {
    %c0_i32 = arith.constant 0 : i32
    %c0_i32_0 = arith.constant 0 : i32
    %c0_i32_1 = arith.constant 0 : i32
    %c0_i32_2 = arith.constant 0 : i32
    return %c0_i32, %c0_i32_0, %c0_i32_1 : i32, i32, i32
  }
  func.func @transform_12(%arg0: i32) -> (i32, i32) {
    %c0_i32 = arith.constant 0 : i32
    %c0_i32_0 = arith.constant 0 : i32
    %c0_i32_1 = arith.constant 0 : i32
    return %c0_i32, %c0_i32_0 : i32, i32
  }
  func.func @transform_13(%arg0: i32) -> (i32, i32, i32) {
    %c0_i32 = arith.constant 0 : i32
    %c0_i32_0 = arith.constant 0 : i32
    %c0_i32_1 = arith.constant 0 : i32
    %c0_i32_2 = arith.constant 0 : i32
    return %c0_i32, %c0_i32_0, %c0_i32_1 : i32, i32, i32
  }
  func.func @transform_14(%arg0: i32) -> (i32, i32) {
    %c0_i32 = arith.constant 0 : i32
    %c0_i32_0 = arith.constant 0 : i32
    %c0_i32_1 = arith.constant 0 : i32
    return %c0_i32, %c0_i32_0 : i32, i32
  }
  func.func @transform_15(%arg0: i32) -> (i32, i32, i32) {
    %c0_i32 = arith.constant 0 : i32
    %c0_i32_0 = arith.constant 0 : i32
    %c0_i32_1 = arith.constant 0 : i32
    return %arg0, %c0_i32, %c0_i32_0 : i32, i32, i32
  }
}

</mosaic_0001>

<llo_original>
// kernel: tpu_custom_call.1
$region0: #{tpu_custom_call.1}
  #allocation0 [shape = 'u32[]', space=smem, size = 0x4, offset = 0x4, fixed_abs, tag = 'smem constant byte address 0x4 - core index']
  #allocation1 [shape = 'u32[144,128]{1,0:T(1,128)}', space=vmem, size = 0x12000, scoped, tag = 'internal scratch']
  #allocation2 [shape = 'f32[18,18,32]{2,1,0:T(8,128)}', space=vmem, size = 0x36000, scoped, tag = 'scratch operand']
  %s0 = inlined_call_operand.vmem [shape: f32[2,32,256], index: 0, kind: input, shape index: {}]
  %s1 = inlined_call_operand.vmem [shape: f32[2,1,32], index: 1, kind: input, shape index: {}]
  %s2 = inlined_call_operand.vmem [shape: f32[32,32], index: 2, kind: input, shape index: {}]
  %s3 = inlined_call_operand.vmem [shape: f32[1,32], index: 3, kind: input, shape index: {}]
  %s4 = inlined_call_operand.vmem [shape: f32[1,32], index: 4, kind: input, shape index: {}]
  %s5 = inlined_call_operand.vmem [shape: bf16[3,96,32], index: 5, kind: input, shape index: {}]
  %s6 = inlined_call_operand.vmem [shape: f32[1,32], index: 6, kind: input, shape index: {}]
  %s7 = inlined_call_operand.vmem [shape: f32[32,32], index: 7, kind: input, shape index: {}]
  %s8 = inlined_call_operand.vmem [shape: f32[1,32], index: 8, kind: input, shape index: {}]
  %s9 = inlined_call_operand.vmem [shape: f32[1,32], index: 9, kind: input, shape index: {}]
  %s10 = inlined_call_operand.vmem [shape: f32[1,32], index: 10, kind: input, shape index: {}]
  %s11 = inlined_call_operand.vmem [shape: bf16[3,96,32], index: 11, kind: input, shape index: {}]
  %s12 = inlined_call_operand.vmem [shape: f32[1,32], index: 12, kind: input, shape index: {}]
  %s13 = inlined_call_operand.vmem [shape: bf16[3,96,32], index: 13, kind: input, shape index: {}]
  %s14 = inlined_call_operand.vmem [shape: f32[1,32], index: 14, kind: input, shape index: {}]
  %s15 = inlined_call_operand.hbm [shape: f32[2,32,64], index: 15, kind: output, shape index: {}]
  %s16 = sld [smem:[#allocation0]]
  $region93: #{tpu_custom_call.1} parent=0
    _
  %s18 = ssub.s32 1, %s16
  %s19 = scalar_select 0, %s18, %s16
  $region1: #{tpu_custom_call.1} parent=0
    #allocation3 [shape = 'u8[32768]{0}', space=vmem, size = 0x8000, scoped, tag = 'output window, operand 0']
    #allocation4 [shape = 's32[2]{0}', space=sflag, size = 0x8, scoped, tag = 'scoped memory for tpu_custom_call.1']
    %20 = vsyncpa [#allocation4], 0
    %s21 = scalar_lea.sflag [#allocation4], 1
    %22 = vsyncpa %s21, 0
    loop: start=0, step=1, limit=4
    $region2: #{tpu_custom_call.1} parent=1 // loop_pre_header
      _
    $region3: #{tpu_custom_call.1} parent=1 // loop_header
      %s24 = sphi 0, %s28
      %p25 = scmp.ge.s32.totalorder %s24, 4
      %s34 = sphi 0, %s36
      %s37 = sphi 0, %s34
      %s38 = sphi 0, %s37
      %s54 = sphi 0, %s38
      %s60 = sphi 0, %s62
      %s63 = sphi 0, %s60
      %s64 = sphi 0, %s63
      %s80 = sphi 0, %s64
      %s84 = sphi 0, %s84
      %s86 = sphi 0, %s84
      %s87 = sphi 0, %s86
      %s101 = sphi 0, %s87
      %s105 = sphi 0, %s105
      %s107 = sphi 0, %s105
      %s108 = sphi 0, %s107
      %s122 = sphi 0, %s108
      %s126 = sphi 0, %s126
      %s128 = sphi 0, %s126
      %s129 = sphi 0, %s128
      %s143 = sphi 0, %s129
      %s147 = sphi 0, %s147
      %s149 = sphi 0, %s147
      %s150 = sphi 0, %s149
      %s164 = sphi 0, %s150
      %s168 = sphi 0, %s168
      %s170 = sphi 0, %s168
      %s171 = sphi 0, %s170
      %s185 = sphi 0, %s171
      %s189 = sphi 0, %s189
      %s191 = sphi 0, %s189
      %s192 = sphi 0, %s191
      %s206 = sphi 0, %s192
      %s210 = sphi 0, %s210
      %s212 = sphi 0, %s210
      %s213 = sphi 0, %s212
      %s227 = sphi 0, %s213
      %s231 = sphi 0, %s231
      %s233 = sphi 0, %s231
      %s234 = sphi 0, %s233
      %s248 = sphi 0, %s234
      %s252 = sphi 0, %s252
      %s254 = sphi 0, %s252
      %s255 = sphi 0, %s254
      %s269 = sphi 0, %s255
      %s273 = sphi 0, %s273
      %s275 = sphi 0, %s273
      %s276 = sphi 0, %s275
      %s290 = sphi 0, %s276
      %s294 = sphi 0, %s294
      %s296 = sphi 0, %s294
      %s297 = sphi 0, %s296
      %s311 = sphi 0, %s297
      %s315 = sphi 0, %s315
      %s317 = sphi 0, %s315
      %s318 = sphi 0, %s317
      %s332 = sphi 0, %s318
      %s336 = sphi 0, %s336
      %s338 = sphi 0, %s336
      %s339 = sphi 0, %s338
      %s353 = sphi 0, %s339
      %s359 = sphi 0, %s361
      %s362 = sphi 0, %s359
      %s363 = sphi 0, %s362
      %s379 = sphi 0, %s363
    $region4: #{tpu_custom_call.1} parent=1 // loop_header_branch
      %27 = sbr.rel (%p25) target = $region8
    $region5: #{tpu_custom_call.1} parent=1 // loop_body
      %s29 = ssub.s32 %s24, 1
      %s30 = ssub.s32 %s24, 2
      %s31 = sadd.s32 %s24, 1
      %s32 = ssub.s32 %s24, %s31
      %p33 = scmp.eq.s32.totalorder %s32, 0
      %s35 = sadd.s32 %s34, 1
      %s36 = scalar_select %p33, %s34, %s35
      %p39 = pneg %p33
      %p40 = scmp.eq.s32.totalorder %s24, 1
      %p41 = por %p39, %p40
      %p42 = scmp.ne.s32.totalorder %s34, %s37
      %p43 = scmp.eq.s32.totalorder %s24, 0
      %p44 = por %p42, %p43
      %p45 = scmp.ne.s32.totalorder %s34, %s37
      %p46 = scmp.eq.s32.totalorder %s29, 1
      %p47 = por %p45, %p46
      %p48 = scmp.ne.s32.totalorder %s37, %s38
      %p49 = scmp.eq.s32.totalorder %s29, 0
      %p50 = por %p48, %p49
      %p51 = scmp.ne.s32.totalorder %s37, %s38
      %p52 = scmp.eq.s32.totalorder %s30, 1
      %p53 = por %p51, %p52
      %p55 = scmp.ne.s32.totalorder %s38, %s54
      %p56 = scmp.eq.s32.totalorder %s30, 0
      %p57 = por %p55, %p56
      %s58 = ssub.s32 %s24, %s31
      %p59 = scmp.eq.s32.totalorder %s58, 0
      %s61 = sadd.s32 %s60, 1
      %s62 = scalar_select %p59, %s60, %s61
      %p65 = pneg %p59
      %p66 = scmp.eq.s32.totalorder %s24, 1
      %p67 = por %p65, %p66
      %p68 = scmp.ne.s32.totalorder %s60, %s63
      %p69 = scmp.eq.s32.totalorder %s24, 0
      %p70 = por %p68, %p69
      %p71 = scmp.ne.s32.totalorder %s60, %s63
      %p72 = scmp.eq.s32.totalorder %s29, 1
      %p73 = por %p71, %p72
      %p74 = scmp.ne.s32.totalorder %s63, %s64
      %p75 = scmp.eq.s32.totalorder %s29, 0
      %p76 = por %p74, %p75
      %p77 = scmp.ne.s32.totalorder %s63, %s64
      %p78 = scmp.eq.s32.totalorder %s30, 1
      %p79 = por %p77, %p78
      %p81 = scmp.ne.s32.totalorder %s64, %s80
      %p82 = scmp.eq.s32.totalorder %s30, 0
      %p83 = por %p81, %p82
      %s85 = sadd.s32 %s84, 1
      %p88 = scmp.eq.s32.totalorder %s24, 1
      %p89 = scmp.ne.s32.totalorder %s84, %s86
      %p90 = scmp.eq.s32.totalorder %s24, 0
      %p91 = por %p89, %p90
      %p92 = scmp.ne.s32.totalorder %s84, %s86
      %p93 = scmp.eq.s32.totalorder %s29, 1
      %p94 = por %p92, %p93
      %p95 = scmp.ne.s32.totalorder %s86, %s87
      %p96 = scmp.eq.s32.totalorder %s29, 0
      %p97 = por %p95, %p96
      %p98 = scmp.ne.s32.totalorder %s86, %s87
      %p99 = scmp.eq.s32.totalorder %s30, 1
      %p100 = por %p98, %p99
      %p102 = scmp.ne.s32.totalorder %s87, %s101
      %p103 = scmp.eq.s32.totalorder %s30, 0
      %p104 = por %p102, %p103
      %s106 = sadd.s32 %s105, 1
      %p109 = scmp.eq.s32.totalorder %s24, 1
      %p110 = scmp.ne.s32.totalorder %s105, %s107
      %p111 = scmp.eq.s32.totalorder %s24, 0
      %p112 = por %p110, %p111
      %p113 = scmp.ne.s32.totalorder %s105, %s107
      %p114 = scmp.eq.s32.totalorder %s29, 1
      %p115 = por %p113, %p114
      %p116 = scmp.ne.s32.totalorder %s107, %s108
      %p117 = scmp.eq.s32.totalorder %s29, 0
      %p118 = por %p116, %p117
      %p119 = scmp.ne.s32.totalorder %s107, %s108
      %p120 = scmp.eq.s32.totalorder %s30, 1
      %p121 = por %p119, %p120
      %p123 = scmp.ne.s32.totalorder %s108, %s122
      %p124 = scmp.eq.s32.totalorder %s30, 0
      %p125 = por %p123, %p124
      %s127 = sadd.s32 %s126, 1
      %p130 = scmp.eq.s32.totalorder %s24, 1
      %p131 = scmp.ne.s32.totalorder %s126, %s128
      %p132 = scmp.eq.s32.totalorder %s24, 0
      %p133 = por %p131, %p132
      %p134 = scmp.ne.s32.totalorder %s126, %s128
      %p135 = scmp.eq.s32.totalorder %s29, 1
      %p136 = por %p134, %p135
      %p137 = scmp.ne.s32.totalorder %s128, %s129
      %p138 = scmp.eq.s32.totalorder %s29, 0
      %p139 = por %p137, %p138
      %p140 = scmp.ne.s32.totalorder %s128, %s129
      %p141 = scmp.eq.s32.totalorder %s30, 1
      %p142 = por %p140, %p141
      %p144 = scmp.ne.s32.totalorder %s129, %s143
      %p145 = scmp.eq.s32.totalorder %s30, 0
      %p146 = por %p144, %p145
      %s148 = sadd.s32 %s147, 1
      %p151 = scmp.eq.s32.totalorder %s24, 1
      %p152 = scmp.ne.s32.totalorder %s147, %s149
      %p153 = scmp.eq.s32.totalorder %s24, 0
      %p154 = por %p152, %p153
      %p155 = scmp.ne.s32.totalorder %s147, %s149
      %p156 = scmp.eq.s32.totalorder %s29, 1
      %p157 = por %p155, %p156
      %p158 = scmp.ne.s32.totalorder %s149, %s150
      %p159 = scmp.eq.s32.totalorder %s29, 0
      %p160 = por %p158, %p159
      %p161 = scmp.ne.s32.totalorder %s149, %s150
      %p162 = scmp.eq.s32.totalorder %s30, 1
      %p163 = por %p161, %p162
      %p165 = scmp.ne.s32.totalorder %s150, %s164
      %p166 = scmp.eq.s32.totalorder %s30, 0
      %p167 = por %p165, %p166
      %s169 = sadd.s32 %s168, 1
      %p172 = scmp.eq.s32.totalorder %s24, 1
      %p173 = scmp.ne.s32.totalorder %s168, %s170
      %p174 = scmp.eq.s32.totalorder %s24, 0
      %p175 = por %p173, %p174
      %p176 = scmp.ne.s32.totalorder %s168, %s170
      %p177 = scmp.eq.s32.totalorder %s29, 1
      %p178 = por %p176, %p177
      %p179 = scmp.ne.s32.totalorder %s170, %s171
      %p180 = scmp.eq.s32.totalorder %s29, 0
      %p181 = por %p179, %p180
      %p182 = scmp.ne.s32.totalorder %s170, %s171
      %p183 = scmp.eq.s32.totalorder %s30, 1
      %p184 = por %p182, %p183
      %p186 = scmp.ne.s32.totalorder %s171, %s185
      %p187 = scmp.eq.s32.totalorder %s30, 0
      %p188 = por %p186, %p187
      %s190 = sadd.s32 %s189, 1
      %p193 = scmp.eq.s32.totalorder %s24, 1
      %p194 = scmp.ne.s32.totalorder %s189, %s191
      %p195 = scmp.eq.s32.totalorder %s24, 0
      %p196 = por %p194, %p195
      %p197 = scmp.ne.s32.totalorder %s189, %s191
      %p198 = scmp.eq.s32.totalorder %s29, 1
      %p199 = por %p197, %p198
      %p200 = scmp.ne.s32.totalorder %s191, %s192
      %p201 = scmp.eq.s32.totalorder %s29, 0
      %p202 = por %p200, %p201
      %p203 = scmp.ne.s32.totalorder %s191, %s192
      %p204 = scmp.eq.s32.totalorder %s30, 1
      %p205 = por %p203, %p204
      %p207 = scmp.ne.s32.totalorder %s192, %s206
      %p208 = scmp.eq.s32.totalorder %s30, 0
      %p209 = por %p207, %p208
      %s211 = sadd.s32 %s210, 1
      %p214 = scmp.eq.s32.totalorder %s24, 1
      %p215 = scmp.ne.s32.totalorder %s210, %s212
      %p216 = scmp.eq.s32.totalorder %s24, 0
      %p217 = por %p215, %p216
      %p218 = scmp.ne.s32.totalorder %s210, %s212
      %p219 = scmp.eq.s32.totalorder %s29, 1
      %p220 = por %p218, %p219
      %p221 = scmp.ne.s32.totalorder %s212, %s213
      %p222 = scmp.eq.s32.totalorder %s29, 0
      %p223 = por %p221, %p222
      %p224 = scmp.ne.s32.totalorder %s212, %s213
      %p225 = scmp.eq.s32.totalorder %s30, 1
      %p226 = por %p224, %p225
      %p228 = scmp.ne.s32.totalorder %s213, %s227
      %p229 = scmp.eq.s32.totalorder %s30, 0
      %p230 = por %p228, %p229
      %s232 = sadd.s32 %s231, 1
      %p235 = scmp.eq.s32.totalorder %s24, 1
      %p236 = scmp.ne.s32.totalorder %s231, %s233
      %p237 = scmp.eq.s32.totalorder %s24, 0
      %p238 = por %p236, %p237
      %p239 = scmp.ne.s32.totalorder %s231, %s233
      %p240 = scmp.eq.s32.totalorder %s29, 1
      %p241 = por %p239, %p240
      %p242 = scmp.ne.s32.totalorder %s233, %s234
      %p243 = scmp.eq.s32.totalorder %s29, 0
      %p244 = por %p242, %p243
      %p245 = scmp.ne.s32.totalorder %s233, %s234
      %p246 = scmp.eq.s32.totalorder %s30, 1
      %p247 = por %p245, %p246
      %p249 = scmp.ne.s32.totalorder %s234, %s248
      %p250 = scmp.eq.s32.totalorder %s30, 0
      %p251 = por %p249, %p250
      %s253 = sadd.s32 %s252, 1
      %p256 = scmp.eq.s32.totalorder %s24, 1
      %p257 = scmp.ne.s32.totalorder %s252, %s254
      %p258 = scmp.eq.s32.totalorder %s24, 0
      %p259 = por %p257, %p258
      %p260 = scmp.ne.s32.totalorder %s252, %s254
      %p261 = scmp.eq.s32.totalorder %s29, 1
      %p262 = por %p260, %p261
      %p263 = scmp.ne.s32.totalorder %s254, %s255
      %p264 = scmp.eq.s32.totalorder %s29, 0
      %p265 = por %p263, %p264
      %p266 = scmp.ne.s32.totalorder %s254, %s255
      %p267 = scmp.eq.s32.totalorder %s30, 1
      %p268 = por %p266, %p267
      %p270 = scmp.ne.s32.totalorder %s255, %s269
      %p271 = scmp.eq.s32.totalorder %s30, 0
      %p272 = por %p270, %p271
      %s274 = sadd.s32 %s273, 1
      %p277 = scmp.eq.s32.totalorder %s24, 1
      %p278 = scmp.ne.s32.totalorder %s273, %s275
      %p279 = scmp.eq.s32.totalorder %s24, 0
      %p280 = por %p278, %p279
      %p281 = scmp.ne.s32.totalorder %s273, %s275
      %p282 = scmp.eq.s32.totalorder %s29, 1
      %p283 = por %p281, %p282
      %p284 = scmp.ne.s32.totalorder %s275, %s276
      %p285 = scmp.eq.s32.totalorder %s29, 0
      %p286 = por %p284, %p285
      %p287 = scmp.ne.s32.totalorder %s275, %s276
      %p288 = scmp.eq.s32.totalorder %s30, 1
      %p289 = por %p287, %p288
      %p291 = scmp.ne.s32.totalorder %s276, %s290
      %p292 = scmp.eq.s32.totalorder %s30, 0
      %p293 = por %p291, %p292
      %s295 = sadd.s32 %s294, 1
      %p298 = scmp.eq.s32.totalorder %s24, 1
      %p299 = scmp.ne.s32.totalorder %s294, %s296
      %p300 = scmp.eq.s32.totalorder %s24, 0
      %p301 = por %p299, %p300
      %p302 = scmp.ne.s32.totalorder %s294, %s296
      %p303 = scmp.eq.s32.totalorder %s29, 1
      %p304 = por %p302, %p303
      %p305 = scmp.ne.s32.totalorder %s296, %s297
      %p306 = scmp.eq.s32.totalorder %s29, 0
      %p307 = por %p305, %p306
      %p308 = scmp.ne.s32.totalorder %s296, %s297
      %p309 = scmp.eq.s32.totalorder %s30, 1
      %p310 = por %p308, %p309
      %p312 = scmp.ne.s32.totalorder %s297, %s311
      %p313 = scmp.eq.s32.totalorder %s30, 0
      %p314 = por %p312, %p313
      %s316 = sadd.s32 %s315, 1
      %p319 = scmp.eq.s32.totalorder %s24, 1
      %p320 = scmp.ne.s32.totalorder %s315, %s317
      %p321 = scmp.eq.s32.totalorder %s24, 0
      %p322 = por %p320, %p321
      %p323 = scmp.ne.s32.totalorder %s315, %s317
      %p324 = scmp.eq.s32.totalorder %s29, 1
      %p325 = por %p323, %p324
      %p326 = scmp.ne.s32.totalorder %s317, %s318
      %p327 = scmp.eq.s32.totalorder %s29, 0
      %p328 = por %p326, %p327
      %p329 = scmp.ne.s32.totalorder %s317, %s318
      %p330 = scmp.eq.s32.totalorder %s30, 1
      %p331 = por %p329, %p330
      %p333 = scmp.ne.s32.totalorder %s318, %s332
      %p334 = scmp.eq.s32.totalorder %s30, 0
      %p335 = por %p333, %p334
      %s337 = sadd.s32 %s336, 1
      %p340 = scmp.eq.s32.totalorder %s24, 1
      %p341 = scmp.ne.s32.totalorder %s336, %s338
      %p342 = scmp.eq.s32.totalorder %s24, 0
      %p343 = por %p341, %p342
      %p344 = scmp.ne.s32.totalorder %s336, %s338
      %p345 = scmp.eq.s32.totalorder %s29, 1
      %p346 = por %p344, %p345
      %p347 = scmp.ne.s32.totalorder %s338, %s339
      %p348 = scmp.eq.s32.totalorder %s29, 0
      %p349 = por %p347, %p348
      %p350 = scmp.ne.s32.totalorder %s338, %s339
      %p351 = scmp.eq.s32.totalorder %s30, 1
      %p352 = por %p350, %p351
      %p354 = scmp.ne.s32.totalorder %s339, %s353
      %p355 = scmp.eq.s32.totalorder %s30, 0
      %p356 = por %p354, %p355
      %s357 = ssub.s32 %s24, %s31
      %p358 = scmp.eq.s32.totalorder %s357, 0
      %s360 = sadd.s32 %s359, 1
      %s361 = scalar_select %p358, %s359, %s360
      %p364 = pneg %p358
      %p365 = scmp.eq.s32.totalorder %s24, 1
      %p366 = por %p364, %p365
      %p367 = scmp.ne.s32.totalorder %s359, %s362
      %p368 = scmp.eq.s32.totalorder %s24, 0
      %p369 = por %p367, %p368
      %p370 = scmp.ne.s32.totalorder %s359, %s362
      %p371 = scmp.eq.s32.totalorder %s29, 1
      %p372 = por %p370, %p371
      %p373 = scmp.ne.s32.totalorder %s362, %s363
      %p374 = scmp.eq.s32.totalorder %s29, 0
      %p375 = por %p373, %p374
      %p376 = scmp.ne.s32.totalorder %s362, %s363
      %p377 = scmp.eq.s32.totalorder %s30, 1
      %p378 = por %p376, %p377
      %p380 = scmp.ne.s32.totalorder %s363, %s379
      %p381 = scmp.eq.s32.totalorder %s30, 0
      %p382 = por %p380, %p381
      %p383 = scmp.le.s32.totalorder 1, %s24
      %p384 = scmp.lt.s32.totalorder %s24, 3
      %p385 = pnand %p383, %p384
      %p386 = pneg %p385
      // Predicated region
      $region9: #{tpu_custom_call.1} parent=5 // pred_check
        _
      $region10: #{tpu_custom_call.1} parent=5 // pred_check_branch
        %388 = sbr.rel (%p385) target = $region12
      $region11: #{tpu_custom_call.1} parent=5 // pred_region
        %s389 = ssub.s32 %s24, 1
        // Predicated region
        $region13: #{tpu_custom_call.1} parent=11 // pred_check
          %p390 = pneg %p97
        $region14: #{tpu_custom_call.1} parent=11 // pred_check_branch
          %392 = sbr.rel (%p390) target = $region16
        $region15: #{tpu_custom_call.1} parent=11 // pred_region
          _
        $region16: #{tpu_custom_call.1} parent=11 // pred_fallthru
          _
        // Predicated region
        $region17: #{tpu_custom_call.1} parent=11 // pred_check
          %p393 = pneg %p118
        $region18: #{tpu_custom_call.1} parent=11 // pred_check_branch
          %395 = sbr.rel (%p393) target = $region20
        $region19: #{tpu_custom_call.1} parent=11 // pred_region
          _
        $region20: #{tpu_custom_call.1} parent=11 // pred_fallthru
          _
        // Predicated region
        $region21: #{tpu_custom_call.1} parent=11 // pred_check
          %p396 = pneg %p139
        $region22: #{tpu_custom_call.1} parent=11 // pred_check_branch
          %398 = sbr.rel (%p396) target = $region24
        $region23: #{tpu_custom_call.1} parent=11 // pred_region
          _
        $region24: #{tpu_custom_call.1} parent=11 // pred_fallthru
          _
        // Predicated region
        $region25: #{tpu_custom_call.1} parent=11 // pred_check
          %p399 = pneg %p160
        $region26: #{tpu_custom_call.1} parent=11 // pred_check_branch
          %401 = sbr.rel (%p399) target = $region28
        $region27: #{tpu_custom_call.1} parent=11 // pred_region
          _
        $region28: #{tpu_custom_call.1} parent=11 // pred_fallthru
          _
        // Predicated region
        $region29: #{tpu_custom_call.1} parent=11 // pred_check
          %p402 = pneg %p181
        $region30: #{tpu_custom_call.1} parent=11 // pred_check_branch
          %404 = sbr.rel (%p402) target = $region32
        $region31: #{tpu_custom_call.1} parent=11 // pred_region
          _
        $region32: #{tpu_custom_call.1} parent=11 // pred_fallthru
          _
        // Predicated region
        $region33: #{tpu_custom_call.1} parent=11 // pred_check
          %p405 = pneg %p202
        $region34: #{tpu_custom_call.1} parent=11 // pred_check_branch
          %407 = sbr.rel (%p405) target = $region36
        $region35: #{tpu_custom_call.1} parent=11 // pred_region
          _
        $region36: #{tpu_custom_call.1} parent=11 // pred_fallthru
          _
        // Predicated region
        $region37: #{tpu_custom_call.1} parent=11 // pred_check
          %p408 = pneg %p223
        $region38: #{tpu_custom_call.1} parent=11 // pred_check_branch
          %410 = sbr.rel (%p408) target = $region40
        $region39: #{tpu_custom_call.1} parent=11 // pred_region
          _
        $region40: #{tpu_custom_call.1} parent=11 // pred_fallthru
          _
        // Predicated region
        $region41: #{tpu_custom_call.1} parent=11 // pred_check
          %p411 = pneg %p244
        $region42: #{tpu_custom_call.1} parent=11 // pred_check_branch
          %413 = sbr.rel (%p411) target = $region44
        $region43: #{tpu_custom_call.1} parent=11 // pred_region
          _
        $region44: #{tpu_custom_call.1} parent=11 // pred_fallthru
          _
        // Predicated region
        $region45: #{tpu_custom_call.1} parent=11 // pred_check
          %p414 = pneg %p265
        $region46: #{tpu_custom_call.1} parent=11 // pred_check_branch
          %416 = sbr.rel (%p414) target = $region48
        $region47: #{tpu_custom_call.1} parent=11 // pred_region
          _
        $region48: #{tpu_custom_call.1} parent=11 // pred_fallthru
          _
        // Predicated region
        $region49: #{tpu_custom_call.1} parent=11 // pred_check
          %p417 = pneg %p286
        $region50: #{tpu_custom_call.1} parent=11 // pred_check_branch
          %419 = sbr.rel (%p417) target = $region52
        $region51: #{tpu_custom_call.1} parent=11 // pred_region
          _
        $region52: #{tpu_custom_call.1} parent=11 // pred_fallthru
          _
        // Predicated region
        $region53: #{tpu_custom_call.1} parent=11 // pred_check
          %p420 = pneg %p307
        $region54: #{tpu_custom_call.1} parent=11 // pred_check_branch
          %422 = sbr.rel (%p420) target = $region56
        $region55: #{tpu_custom_call.1} parent=11 // pred_region
          _
        $region56: #{tpu_custom_call.1} parent=11 // pred_fallthru
          _
        // Predicated region
        $region57: #{tpu_custom_call.1} parent=11 // pred_check
          %p423 = pneg %p328
        $region58: #{tpu_custom_call.1} parent=11 // pred_check_branch
          %425 = sbr.rel (%p423) target = $region60
        $region59: #{tpu_custom_call.1} parent=11 // pred_region
          _
        $region60: #{tpu_custom_call.1} parent=11 // pred_fallthru
          _
        // Predicated region
        $region61: #{tpu_custom_call.1} parent=11 // pred_check
          %p426 = pneg %p349
        $region62: #{tpu_custom_call.1} parent=11 // pred_check_branch
          %428 = sbr.rel (%p426) target = $region64
        $region63: #{tpu_custom_call.1} parent=11 // pred_region
          _
        $region64: #{tpu_custom_call.1} parent=11 // pred_fallthru
          _
      $region12: #{tpu_custom_call.1} parent=5 // pred_fallthru
        _
      %p429 = scmp.lt.s32.totalorder %s24, 2
      // Predicated region
      $region65: #{tpu_custom_call.1} parent=5 // pred_check
        %p430 = pneg %p429
      $region66: #{tpu_custom_call.1} parent=5 // pred_check_branch
        %432 = sbr.rel (%p430) target = $region68
      $region67: #{tpu_custom_call.1} parent=5 // pred_region
        // Predicated region
        $region69: #{tpu_custom_call.1} parent=67 // pred_check
          %p433 = pneg %p44
        $region70: #{tpu_custom_call.1} parent=67 // pred_check_branch
          %435 = sbr.rel (%p433) target = $region72
        $region71: #{tpu_custom_call.1} parent=67 // pred_region
          %p436 = scmp.lt.s32.totalorder %s24, 1
          %s437 = scalar_select %p436, %s24, 1
          %s438 = smul.addr %s437, 8
          %s439 = smul.addr %s438, 8
          %s440 = scalar_lea.vmem %s0, %s439
        $region72: #{tpu_custom_call.1} parent=67 // pred_fallthru
          _
        // Predicated region
        $region73: #{tpu_custom_call.1} parent=67 // pred_check
          %p441 = pneg %p70
        $region74: #{tpu_custom_call.1} parent=67 // pred_check_branch
          %443 = sbr.rel (%p441) target = $region76
        $region75: #{tpu_custom_call.1} parent=67 // pred_region
          %p444 = scmp.lt.s32.totalorder %s24, 1
          %s445 = scalar_select %p444, %s24, 1
          %s446 = scalar_lea.vmem %s1, %s445
        $region76: #{tpu_custom_call.1} parent=67 // pred_fallthru
          _
      $region68: #{tpu_custom_call.1} parent=5 // pred_fallthru
        _
      %p447 = scmp.le.s32.totalorder 1, %s24
      %p448 = scmp.lt.s32.totalorder %s24, 3
      %p449 = pnand %p447, %p448
      %p450 = pneg %p449
      // Predicated region
      $region77: #{tpu_custom_call.1} parent=5 // pred_check
        _
      $region78: #{tpu_custom_call.1} parent=5 // pred_check_branch
        %452 = sbr.rel (%p449) target = $region80
      $region79: #{tpu_custom_call.1} parent=5 // pred_region
        %s453 = ssub.s32 %s24, 1
        %p454 = scmp.lt.s32.totalorder %s29, 1
        %s455 = scalar_select %p454, %s29, 1
        %s456 = smul.addr %s455, 8
        %s457 = smul.addr %s456, 8
        %s458 = scalar_lea.vmem %s0, %s457
        %p459 = pneg %p50
        %p460 = pneg %p47
        %p461 = scmp.lt.s32.totalorder %s29, 1
        %s462 = scalar_select %p461, %s29, 1
        %s463 = scalar_lea.vmem %s1, %s462
        %p464 = pneg %p76
        %p465 = pneg %p73
        %p466 = pneg %p97
        %p467 = pneg %p94
        %p468 = pneg %p118
        %p469 = pneg %p115
        %p470 = pneg %p139
        %p471 = pneg %p136
        %p472 = pneg %p160
        %p473 = pneg %p157
        %p474 = pneg %p181
        %p475 = pneg %p178
        %p476 = pneg %p202
        %p477 = pneg %p199
        %p478 = pneg %p223
        %p479 = pneg %p220
        %p480 = pneg %p244
        %p481 = pneg %p241
        %p482 = pneg %p265
        %p483 = pneg %p262
        %p484 = pneg %p286
        %p485 = pneg %p283
        %p486 = pneg %p307
        %p487 = pneg %p304
        %p488 = pneg %p328
        %p489 = pneg %p325
        %p490 = pneg %p349
        %p491 = pneg %p346
        %p492 = pneg %p375
        %p493 = pneg %p372
        %s494 = sand.u32 %s362, 1
        %s495 = scalar_lea.sflag [#allocation4], %s494
        %s496 = sand.u32 %s362, 1
        %s497 = smul.addr %s496, 32
        %s498 = scalar_lea.vmem [#allocation3], %s497
        %p499 = scmp.lt.s32.totalorder %s29, 1
        %s500 = scalar_select %p499, %s29, 1
        %s501 = smul.addr %s500, 8
        %s502 = smul.addr %s501, 8
        %s503 = scalar_lea.vmem %s0, %s502
        %p504 = scmp.lt.s32.totalorder %s29, 1
        %s505 = scalar_select %p504, %s29, 1
        %s506 = scalar_lea.vmem %s1, %s505
        %vm508 = vcmask 261120
        %509 = vst.msk [vmem:[#allocation2] sm:$0xff] %vm508, 0.0
        %510 = vst.msk [vmem:[#allocation2 + $0x8] sm:$0xff] %vm508, 0.0
        %vm511 = vcmask 254976
        %512 = vst.msk [vmem:[#allocation2 + $0x10] sm:$0x3] %vm511, 0.0
        %s513 = scalar_lea.vmem [#allocation2], 408
        %514 = vst.msk [vmem:[%s513] sm:$0xff] %vm508, 0.0
        %515 = vst.msk [vmem:[%s513 + $0x8] sm:$0xff] %vm508, 0.0
        %516 = vst.msk [vmem:[%s513 + $0x10] sm:$0x3] %vm511, 0.0
        %s517 = scalar_lea.vmem [#allocation2], 24
        %vm518 = vcmask 253952
        %519 = vst.msk [vmem:[%s517] sm:$0x1] %vm518, 0.0
        %520 = vst.msk [vmem:[%s517 + $0x18] sm:$0x1] %vm518, 0.0
        %521 = vst.msk [vmem:[%s517 + $0x30] sm:$0x1] %vm518, 0.0
        %522 = vst.msk [vmem:[%s517 + $0x48] sm:$0x1] %vm518, 0.0
        %523 = vst.msk [vmem:[%s517 + $0x60] sm:$0x1] %vm518, 0.0
        %524 = vst.msk [vmem:[%s517 + $0x78] sm:$0x1] %vm518, 0.0
        %525 = vst.msk [vmem:[%s517 + $0x90] sm:$0x1] %vm518, 0.0
        %526 = vst.msk [vmem:[%s517 + $0xa8] sm:$0x1] %vm518, 0.0
        %527 = vst.msk [vmem:[%s517 + $0xc0] sm:$0x1] %vm518, 0.0
        %528 = vst.msk [vmem:[%s517 + $0xd8] sm:$0x1] %vm518, 0.0
        %529 = vst.msk [vmem:[%s517 + $0xf0] sm:$0x1] %vm518, 0.0
        %530 = vst.msk [vmem:[%s517 + $0x108] sm:$0x1] %vm518, 0.0
        %531 = vst.msk [vmem:[%s517 + $0x120] sm:$0x1] %vm518, 0.0
        %532 = vst.msk [vmem:[%s517 + $0x138] sm:$0x1] %vm518, 0.0
        %533 = vst.msk [vmem:[%s517 + $0x150] sm:$0x1] %vm518, 0.0
        %534 = vst.msk [vmem:[%s517 + $0x168] sm:$0x1] %vm518, 0.0
        %535 = vst.msk [vmem:[%s517 + $0x11] sm:$0x1] %vm518, 0.0
        %536 = vst.msk [vmem:[%s517 + $0x29] sm:$0x1] %vm518, 0.0
        %537 = vst.msk [vmem:[%s517 + $0x41] sm:$0x1] %vm518, 0.0
        %538 = vst.msk [vmem:[%s517 + $0x59] sm:$0x1] %vm518, 0.0
        %539 = vst.msk [vmem:[%s517 + $0x71] sm:$0x1] %vm518, 0.0
        %540 = vst.msk [vmem:[%s517 + $0x89] sm:$0x1] %vm518, 0.0
        %541 = vst.msk [vmem:[%s517 + $0xa1] sm:$0x1] %vm518, 0.0
        %542 = vst.msk [vmem:[%s517 + $0xb9] sm:$0x1] %vm518, 0.0
        %543 = vst.msk [vmem:[%s517 + $0xd1] sm:$0x1] %vm518, 0.0
        %544 = vst.msk [vmem:[%s517 + $0xe9] sm:$0x1] %vm518, 0.0
        %545 = vst.msk [vmem:[%s517 + $0x101] sm:$0x1] %vm518, 0.0
        %546 = vst.msk [vmem:[%s517 + $0x119] sm:$0x1] %vm518, 0.0
        %547 = vst.msk [vmem:[%s517 + $0x131] sm:$0x1] %vm518, 0.0
        %548 = vst.msk [vmem:[%s517 + $0x149] sm:$0x1] %vm518, 0.0
        %549 = vst.msk [vmem:[%s517 + $0x161] sm:$0x1] %vm518, 0.0
        %550 = vst.msk [vmem:[%s517 + $0x179] sm:$0x1] %vm518, 0.0
        %v551 = vld [vmem:[%s2] sm:$0xff]
        %v552 = vld [vmem:[%s2 + $0x8] sm:$0xff]
        %v553 = vld [vmem:[%s2 + $0x10] sm:$0xff]
        %v554 = vld [vmem:[%s2 + $0x18] sm:$0xff]
        %v555 = vld [vmem:[%s503] sm:$0xff]
        %v556 = vld [vmem:[%s503 + $0x8] sm:$0xff]
        %v557 = vld [vmem:[%s503 + $0x10] sm:$0xff]
        %v558 = vld [vmem:[%s503 + $0x18] sm:$0xff]
        %v559 = vld [vmem:[%s503 + $0x20] sm:$0xff]
        %v560 = vld [vmem:[%s503 + $0x28] sm:$0xff]
        %v561 = vld [vmem:[%s503 + $0x30] sm:$0xff]
        %v562 = vld [vmem:[%s503 + $0x38] sm:$0xff]
        %563 = vxpose.xlu0.b32.start [1/16] %v555, 128
        %564 = vxpose.xlu0.b32.cont [2/16] %v557, 128
        %565 = vxpose.xlu0.b32.cont [3/16] %v559, 128
        %566 = vxpose.xlu0.b32.cont [4/16] %v561, 128
        %567 = vxpose.xlu0.b32.cont [5/16] 0.0, 128
        %568 = vxpose.xlu0.b32.cont [6/16] 0.0, 128
        %569 = vxpose.xlu0.b32.cont [7/16] 0.0, 128
        %570 = vxpose.xlu0.b32.cont [8/16] 0.0, 128
        %571 = vxpose.xlu0.b32.cont [9/16] 0.0, 128
        %572 = vxpose.xlu0.b32.cont [10/16] 0.0, 128
        %573 = vxpose.xlu0.b32.cont [11/16] 0.0, 128
        %574 = vxpose.xlu0.b32.cont [12/16] 0.0, 128
        %575 = vxpose.xlu0.b32.cont [13/16] 0.0, 128
        %576 = vxpose.xlu0.b32.cont [14/16] 0.0, 128
        %577 = vxpose.xlu0.b32.cont [15/16] 0.0, 128
        %578 = vxpose.xlu0.b32.end [16/16] 0.0, 128
        %v579 = vpop.trf.xlu0
        %v580 = vpop.trf.xlu0
        %v581 = vpop.trf.xlu0
        %v582 = vpop.trf.xlu0
        %v583 = vpop.trf.xlu0
        %v584 = vpop.trf.xlu0
        %v585 = vpop.trf.xlu0
        %v586 = vpop.trf.xlu0
        %v587 = vpop.trf.xlu0
        %v588 = vpop.trf.xlu0
        %v589 = vpop.trf.xlu0
        %v590 = vpop.trf.xlu0
        %v591 = vpop.trf.xlu0
        %v592 = vpop.trf.xlu0
        %v593 = vpop.trf.xlu0
        %v594 = vpop.trf.xlu0
        %595 = vxpose.xlu0.b32.start [1/16] %v556, 128
        %596 = vxpose.xlu0.b32.cont [2/16] %v558, 128
        %597 = vxpose.xlu0.b32.cont [3/16] %v560, 128
        %598 = vxpose.xlu0.b32.cont [4/16] %v562, 128
        %599 = vxpose.xlu0.b32.cont [5/16] 0.0, 128
        %600 = vxpose.xlu0.b32.cont [6/16] 0.0, 128
        %601 = vxpose.xlu0.b32.cont [7/16] 0.0, 128
        %602 = vxpose.xlu0.b32.cont [8/16] 0.0, 128
        %603 = vxpose.xlu0.b32.cont [9/16] 0.0, 128
        %604 = vxpose.xlu0.b32.cont [10/16] 0.0, 128
        %605 = vxpose.xlu0.b32.cont [11/16] 0.0, 128
        %606 = vxpose.xlu0.b32.cont [12/16] 0.0, 128
        %607 = vxpose.xlu0.b32.cont [13/16] 0.0, 128
        %608 = vxpose.xlu0.b32.cont [14/16] 0.0, 128
        %609 = vxpose.xlu0.b32.cont [15/16] 0.0, 128
        %610 = vxpose.xlu0.b32.end [16/16] 0.0, 128
        %v611 = vpop.trf.xlu0
        %v612 = vpop.trf.xlu0
        %v613 = vpop.trf.xlu0
        %v614 = vpop.trf.xlu0
        %v615 = vpop.trf.xlu0
        %v616 = vpop.trf.xlu0
        %v617 = vpop.trf.xlu0
        %v618 = vpop.trf.xlu0
        %v619 = vpop.trf.xlu0
        %v620 = vpop.trf.xlu0
        %v621 = vpop.trf.xlu0
        %v622 = vpop.trf.xlu0
        %v623 = vpop.trf.xlu0
        %v624 = vpop.trf.xlu0
        %v625 = vpop.trf.xlu0
        %v626 = vpop.trf.xlu0
        %v627 = vld [vmem:[%s506] sm:$0x1]
        %v628 = vxor.u32 %v627, 2147483648
        %v629 = vmul.f32 %v628, 1.442695
        %v630 = vpow.pop %v629
        %v631 = vadd.f32 %v630, 1.0
        %v632 = vrcp.pop %v631
        %v633 = vmul.f32 1.0, %v632
        %v634 = vmul.f32 %v627, %v633
        %v635 = vld [vmem:[%s7] sm:$0xff]
        %v636 = vld [vmem:[%s7 + $0x8] sm:$0xff]
        %v637 = vld [vmem:[%s7 + $0x10] sm:$0xff]
        %v638 = vld [vmem:[%s7 + $0x18] sm:$0xff]
        %v639 = vld [vmem:[%s8] sm:$0x1]
        %v641 = vsel %vm508, %v634, 0
        %643 = vmatprep.subr.mxu0 0.0
        %644 = vmatpush1.msra.mxu0 %v635
        %645 = vmatprep.subr.mxu0 0.0
        %646 = vmatpush1.msra.mxu0 %v636
        %647 = vmatprep.subr.mxu0 0.0
        %648 = vmatpush1.msra.mxu0 %v637
        %649 = vmatprep.subr.mxu0 0.0
        %650 = vmatpush1.msra.mxu0 %v638
        %651 = vmatprep.subr.mxu0 0.0
        %652 = vmatpush1.msra.mxu0 0.0
        %653 = vmatprep.subr.mxu0 0.0
        %654 = vmatpush1.msra.mxu0 0.0
        %655 = vmatprep.subr.mxu0 0.0
        %656 = vmatpush1.msra.mxu0 0.0
        %657 = vmatprep.subr.mxu0 0.0
        %658 = vmatpush1.msra.mxu0 0.0
        %659 = vmatprep.subr.mxu0 0.0
        %660 = vmatpush1.msra.mxu0 0.0
        %661 = vmatprep.subr.mxu0 0.0
        %662 = vmatpush1.msra.mxu0 0.0
        %663 = vmatprep.subr.mxu0 0.0
        %664 = vmatpush1.msra.mxu0 0.0
        %665 = vmatprep.subr.mxu0 0.0
        %666 = vmatpush1.msra.mxu0 0.0
        %667 = vmatprep.subr.mxu0 0.0
        %668 = vmatpush1.msra.mxu0 0.0
        %669 = vmatprep.subr.mxu0 0.0
        %670 = vmatpush1.msra.mxu0 0.0
        %671 = vmatprep.subr.mxu0 0.0
        %672 = vmatpush1.msra.mxu0 0.0
        %673 = vmatprep.subr.mxu0 0.0
        %674 = vmatpush1.msra.mxu0 0.0
        %675 = vmatprep.subr.mxu0 0.0
        %676 = vmatpush1.msra.mxu0 0.0
        %677 = vmatprep.subr.mxu0 0.0
        %678 = vmatpush1.msra.mxu0 0.0
        %679 = vmatprep.subr.mxu0 0.0
        %680 = vmatpush1.msra.mxu0 0.0
        %681 = vmatprep.subr.mxu0 0.0
        %682 = vmatpush1.msra.mxu0 0.0
        %683 = vmatprep.subr.mxu0 0.0
        %684 = vmatpush1.msra.mxu0 0.0
        %685 = vmatprep.subr.mxu0 0.0
        %686 = vmatpush1.msra.mxu0 0.0
        %687 = vmatprep.subr.mxu0 0.0
        %688 = vmatpush1.msra.mxu0 0.0
        %689 = vmatprep.subr.mxu0 0.0
        %690 = vmatpush1.msra.mxu0 0.0
        %691 = vmatprep.subr.mxu0 0.0
        %692 = vmatpush1.msra.mxu0 0.0
        %693 = vmatprep.subr.mxu0 0.0
        %694 = vmatpush1.msra.mxu0 0.0
        %695 = vmatprep.subr.mxu0 0.0
        %696 = vmatpush1.msra.mxu0 0.0
        %697 = vmatprep.subr.mxu0 0.0
        %698 = vmatpush1.msra.mxu0 0.0
        %699 = vmatprep.subr.mxu0 0.0
        %700 = vmatpush1.msra.mxu0 0.0
        %701 = vmatprep.subr.mxu0 0.0
        %702 = vmatpush1.msra.mxu0 0.0
        %703 = vmatprep.subr.mxu0 0.0
        %704 = vmatpush1.msra.mxu0 0.0
        %705 = vmatprep.subr.mxu0 0.0
        %706 = vmatpush1.msra.mxu0 0.0
        %707 = vmatprep.mubr.f32.mxu0 0.0
        %708 = vmatmul.mubr.f32.gmra.mrb[0].mxu0 %v641
        %v709 = vpop.f32.mrb[0].mxu0
        %v710 = vadd.f32 %v639, %v709
        %v711 = vpop.f32.mrb[0].mxu0
        %712 = vdwg.mxu0
        %v713 = vld [vmem:[%s6] sm:$0x1]
        %v714 = vadd.f32 %v713, %v710
        %v715 = vld [vmem:[%s3] sm:$0x1]
        %v716 = vld [vmem:[%s4] sm:$0x1]
        %v717 = vsel %vm508, %v579, 0.0
        %v718 = vsel %vm508, %v580, 0.0
        %v719 = vadd.f32 %v717, %v718
        %v720 = vsel %vm508, %v581, 0.0
        %v721 = vadd.f32 %v719, %v720
        %v722 = vsel %vm508, %v582, 0.0
        %v723 = vadd.f32 %v721, %v722
        %v724 = vsel %vm508, %v583, 0.0
        %v725 = vadd.f32 %v723, %v724
        %v726 = vsel %vm508, %v584, 0.0
        %v727 = vadd.f32 %v725, %v726
        %v728 = vsel %vm508, %v585, 0.0
        %v729 = vadd.f32 %v727, %v728
        %v730 = vsel %vm508, %v586, 0.0
        %v731 = vadd.f32 %v729, %v730
        %v732 = vsel %vm508, %v587, 0.0
        %v733 = vadd.f32 %v731, %v732
        %v734 = vsel %vm508, %v588, 0.0
        %v735 = vadd.f32 %v733, %v734
        %v736 = vsel %vm508, %v589, 0.0
        %v737 = vadd.f32 %v735, %v736
        %v738 = vsel %vm508, %v590, 0.0
        %v739 = vadd.f32 %v737, %v738
        %v740 = vsel %vm508, %v591, 0.0
        %v741 = vadd.f32 %v739, %v740
        %v742 = vsel %vm508, %v592, 0.0
        %v743 = vadd.f32 %v741, %v742
        %v744 = vsel %vm508, %v593, 0.0
        %v745 = vadd.f32 %v743, %v744
        %v746 = vsel %vm508, %v594, 0.0
        %v747 = vadd.f32 %v745, %v746
        %v748 = vsel %vm508, %v611, 0.0
        %v749 = vadd.f32 %v747, %v748
        %v750 = vsel %vm508, %v612, 0.0
        %v751 = vadd.f32 %v749, %v750
        %v752 = vsel %vm508, %v613, 0.0
        %v753 = vadd.f32 %v751, %v752
        %v754 = vsel %vm508, %v614, 0.0
        %v755 = vadd.f32 %v753, %v754
        %v756 = vsel %vm508, %v615, 0.0
        %v757 = vadd.f32 %v755, %v756
        %v758 = vsel %vm508, %v616, 0.0
        %v759 = vadd.f32 %v757, %v758
        %v760 = vsel %vm508, %v617, 0.0
        %v761 = vadd.f32 %v759, %v760
        %v762 = vsel %vm508, %v618, 0.0
        %v763 = vadd.f32 %v761, %v762
        %v764 = vsel %vm508, %v619, 0.0
        %v765 = vadd.f32 %v763, %v764
        %v766 = vsel %vm508, %v620, 0.0
        %v767 = vadd.f32 %v765, %v766
        %v768 = vsel %vm508, %v621, 0.0
        %v769 = vadd.f32 %v767, %v768
        %v770 = vsel %vm508, %v622, 0.0
        %v771 = vadd.f32 %v769, %v770
        %v772 = vsel %vm508, %v623, 0.0
        %v773 = vadd.f32 %v771, %v772
        %v774 = vsel %vm508, %v624, 0.0
        %v775 = vadd.f32 %v773, %v774
        %v776 = vsel %vm508, %v625, 0.0
        %v777 = vadd.f32 %v775, %v776
        %v778 = vsel %vm508, %v626, 0.0
        %v779 = vadd.f32 %v777, %v778
        %v780 = vrot.slane %v779, 4
        %v781 = vadd.f32 %v779, %v780
        %v782 = vrot.slane %v781, 2
        %v783 = vadd.f32 %v781, %v782
        %v784 = vrot.slane %v783, 1
        %v785 = vadd.f32 %v783, %v784
        %v787 = vsel %vm508, %v785, 0
        %789 = vmatprep.subr.mxu0 0.0
        %790 = vmatpush1.msra.mxu0 %v551
        %791 = vmatprep.subr.mxu0 0.0
        %792 = vmatpush1.msra.mxu0 %v552
        %793 = vmatprep.subr.mxu0 0.0
        %794 = vmatpush1.msra.mxu0 %v553
        %795 = vmatprep.subr.mxu0 0.0
        %796 = vmatpush1.msra.mxu0 %v554
        %797 = vmatprep.subr.mxu0 0.0
        %798 = vmatpush1.msra.mxu0 0.0
        %799 = vmatprep.subr.mxu0 0.0
        %800 = vmatpush1.msra.mxu0 0.0
        %801 = vmatprep.subr.mxu0 0.0
        %802 = vmatpush1.msra.mxu0 0.0
        %803 = vmatprep.subr.mxu0 0.0
        %804 = vmatpush1.msra.mxu0 0.0
        %805 = vmatprep.subr.mxu0 0.0
        %806 = vmatpush1.msra.mxu0 0.0
        %807 = vmatprep.subr.mxu0 0.0
        %808 = vmatpush1.msra.mxu0 0.0
        %809 = vmatprep.subr.mxu0 0.0
        %810 = vmatpush1.msra.mxu0 0.0
        %811 = vmatprep.subr.mxu0 0.0
        %812 = vmatpush1.msra.mxu0 0.0
        %813 = vmatprep.subr.mxu0 0.0
        %814 = vmatpush1.msra.mxu0 0.0
        %815 = vmatprep.subr.mxu0 0.0
        %816 = vmatpush1.msra.mxu0 0.0
        %817 = vmatprep.subr.mxu0 0.0
        %818 = vmatpush1.msra.mxu0 0.0
        %819 = vmatprep.subr.mxu0 0.0
        %820 = vmatpush1.msra.mxu0 0.0
        %821 = vmatprep.subr.mxu0 0.0
        %822 = vmatpush1.msra.mxu0 0.0
        %823 = vmatprep.subr.mxu0 0.0
        %824 = vmatpush1.msra.mxu0 0.0
        %825 = vmatprep.subr.mxu0 0.0
        %826 = vmatpush1.msra.mxu0 0.0
        %827 = vmatprep.subr.mxu0 0.0
        %828 = vmatpush1.msra.mxu0 0.0
        %829 = vmatprep.subr.mxu0 0.0
        %830 = vmatpush1.msra.mxu0 0.0
        %831 = vmatprep.subr.mxu0 0.0
        %832 = vmatpush1.msra.mxu0 0.0
        %833 = vmatprep.subr.mxu0 0.0
        %834 = vmatpush1.msra.mxu0 0.0
        %835 = vmatprep.subr.mxu0 0.0
        %836 = vmatpush1.msra.mxu0 0.0
        %837 = vmatprep.subr.mxu0 0.0
        %838 = vmatpush1.msra.mxu0 0.0
        %839 = vmatprep.subr.mxu0 0.0
        %840 = vmatpush1.msra.mxu0 0.0
        %841 = vmatprep.subr.mxu0 0.0
        %842 = vmatpush1.msra.mxu0 0.0
        %843 = vmatprep.subr.mxu0 0.0
        %844 = vmatpush1.msra.mxu0 0.0
        %845 = vmatprep.subr.mxu0 0.0
        %846 = vmatpush1.msra.mxu0 0.0
        %847 = vmatprep.subr.mxu0 0.0
        %848 = vmatpush1.msra.mxu0 0.0
        %849 = vmatprep.subr.mxu0 0.0
        %850 = vmatpush1.msra.mxu0 0.0
        %851 = vmatprep.subr.mxu0 0.0
        %852 = vmatpush1.msra.mxu0 0.0
        %853 = vmatprep.mubr.f32.mxu0 0.0
        %854 = vmatmul.mubr.f32.gmra.mrb[0].mxu0 %v787
        %v855 = vpop.f32.mrb[0].mxu0
        %v856 = vadd.f32 0.0, %v855
        %v857 = vpop.f32.mrb[0].mxu0
        %858 = vdwg.mxu0
        %v859 = vlaneseq
        %v860 = vshrl.u32 %v859, 7
        %v861 = vsub.s32 0, %v860
        %v862 = vrot.slane %v856, %v861
        %v863 = vsub.f32 %v579, %v862
        %v864 = vsub.f32 %v580, %v862
        %v865 = vsub.f32 %v581, %v862
        %v866 = vsub.f32 %v582, %v862
        %v867 = vsub.f32 %v583, %v862
        %v868 = vsub.f32 %v584, %v862
        %v869 = vsub.f32 %v585, %v862
        %v870 = vsub.f32 %v586, %v862
        %v871 = vsub.f32 %v587, %v862
        %v872 = vsub.f32 %v588, %v862
        %v873 = vsub.f32 %v589, %v862
        %v874 = vsub.f32 %v590, %v862
        %v875 = vsub.f32 %v591, %v862
        %v876 = vsub.f32 %v592, %v862
        %v877 = vsub.f32 %v593, %v862
        %v878 = vsub.f32 %v594, %v862
        %v879 = vsub.f32 %v611, %v862
        %v880 = vsub.f32 %v612, %v862
        %v881 = vsub.f32 %v613, %v862
        %v882 = vsub.f32 %v614, %v862
        %v883 = vsub.f32 %v615, %v862
        %v884 = vsub.f32 %v616, %v862
        %v885 = vsub.f32 %v617, %v862
        %v886 = vsub.f32 %v618, %v862
        %v887 = vsub.f32 %v619, %v862
        %v888 = vsub.f32 %v620, %v862
        %v889 = vsub.f32 %v621, %v862
        %v890 = vsub.f32 %v622, %v862
        %v891 = vsub.f32 %v623, %v862
        %v892 = vsub.f32 %v624, %v862
        %v893 = vsub.f32 %v625, %v862
        %v894 = vsub.f32 %v626, %v862
        %v895 = vmul.f32 %v863, %v863
        %v896 = vmul.f32 %v864, %v864
        %v897 = vmul.f32 %v865, %v865
        %v898 = vmul.f32 %v866, %v866
        %v899 = vmul.f32 %v867, %v867
        %v900 = vmul.f32 %v868, %v868
        %v901 = vmul.f32 %v869, %v869
        %v902 = vmul.f32 %v870, %v870
        %v903 = vmul.f32 %v871, %v871
        %v904 = vmul.f32 %v872, %v872
        %v905 = vmul.f32 %v873, %v873
        %v906 = vmul.f32 %v874, %v874
        %v907 = vmul.f32 %v875, %v875
        %v908 = vmul.f32 %v876, %v876
        %v909 = vmul.f32 %v877, %v877
        %v910 = vmul.f32 %v878, %v878
        %v911 = vmul.f32 %v879, %v879
        %v912 = vmul.f32 %v880, %v880
        %v913 = vmul.f32 %v881, %v881
        %v914 = vmul.f32 %v882, %v882
        %v915 = vmul.f32 %v883, %v883
        %v916 = vmul.f32 %v884, %v884
        %v917 = vmul.f32 %v885, %v885
        %v918 = vmul.f32 %v886, %v886
        %v919 = vmul.f32 %v887, %v887
        %v920 = vmul.f32 %v888, %v888
        %v921 = vmul.f32 %v889, %v889
        %v922 = vmul.f32 %v890, %v890
        %v923 = vmul.f32 %v891, %v891
        %v924 = vmul.f32 %v892, %v892
        %v925 = vmul.f32 %v893, %v893
        %v926 = vmul.f32 %v894, %v894
        %v927 = vsel %vm508, %v895, 0.0
        %v928 = vsel %vm508, %v896, 0.0
        %v929 = vadd.f32 %v927, %v928
        %v930 = vsel %vm508, %v897, 0.0
        %v931 = vadd.f32 %v929, %v930
        %v932 = vsel %vm508, %v898, 0.0
        %v933 = vadd.f32 %v931, %v932
        %v934 = vsel %vm508, %v899, 0.0
        %v935 = vadd.f32 %v933, %v934
        %v936 = vsel %vm508, %v900, 0.0
        %v937 = vadd.f32 %v935, %v936
        %v938 = vsel %vm508, %v901, 0.0
        %v939 = vadd.f32 %v937, %v938
        %v940 = vsel %vm508, %v902, 0.0
        %v941 = vadd.f32 %v939, %v940
        %v942 = vsel %vm508, %v903, 0.0
        %v943 = vadd.f32 %v941, %v942
        %v944 = vsel %vm508, %v904, 0.0
        %v945 = vadd.f32 %v943, %v944
        %v946 = vsel %vm508, %v905, 0.0
        %v947 = vadd.f32 %v945, %v946
        %v948 = vsel %vm508, %v906, 0.0
        %v949 = vadd.f32 %v947, %v948
        %v950 = vsel %vm508, %v907, 0.0
        %v951 = vadd.f32 %v949, %v950
        %v952 = vsel %vm508, %v908, 0.0
        %v953 = vadd.f32 %v951, %v952
        %v954 = vsel %vm508, %v909, 0.0
        %v955 = vadd.f32 %v953, %v954
        %v956 = vsel %vm508, %v910, 0.0
        %v957 = vadd.f32 %v955, %v956
        %v958 = vsel %vm508, %v911, 0.0
        %v959 = vadd.f32 %v957, %v958
        %v960 = vsel %vm508, %v912, 0.0
        %v961 = vadd.f32 %v959, %v960
        %v962 = vsel %vm508, %v913, 0.0
        %v963 = vadd.f32 %v961, %v962
        %v964 = vsel %vm508, %v914, 0.0
        %v965 = vadd.f32 %v963, %v964
        %v966 = vsel %vm508, %v915, 0.0
        %v967 = vadd.f32 %v965, %v966
        %v968 = vsel %vm508, %v916, 0.0
        %v969 = vadd.f32 %v967, %v968
        %v970 = vsel %vm508, %v917, 0.0
        %v971 = vadd.f32 %v969, %v970
        %v972 = vsel %vm508, %v918, 0.0
        %v973 = vadd.f32 %v971, %v972
        %v974 = vsel %vm508, %v919, 0.0
        %v975 = vadd.f32 %v973, %v974
        %v976 = vsel %vm508, %v920, 0.0
        %v977 = vadd.f32 %v975, %v976
        %v978 = vsel %vm508, %v921, 0.0
        %v979 = vadd.f32 %v977, %v978
        %v980 = vsel %vm508, %v922, 0.0
        %v981 = vadd.f32 %v979, %v980
        %v982 = vsel %vm508, %v923, 0.0
        %v983 = vadd.f32 %v981, %v982
        %v984 = vsel %vm508, %v924, 0.0
        %v985 = vadd.f32 %v983, %v984
        %v986 = vsel %vm508, %v925, 0.0
        %v987 = vadd.f32 %v985, %v986
        %v988 = vsel %vm508, %v926, 0.0
        %v989 = vadd.f32 %v987, %v988
        %v990 = vrot.slane %v989, 4
        %v991 = vadd.f32 %v989, %v990
        %v992 = vrot.slane %v991, 2
        %v993 = vadd.f32 %v991, %v992
        %v994 = vrot.slane %v993, 1
        %v995 = vadd.f32 %v993, %v994
        %v997 = vsel %vm508, %v995, 0
        %999 = vmatprep.subr.mxu0 0.0
        %1000 = vmatpush1.msra.mxu0 %v551
        %1001 = vmatprep.subr.mxu0 0.0
        %1002 = vmatpush1.msra.mxu0 %v552
        %1003 = vmatprep.subr.mxu0 0.0
        %1004 = vmatpush1.msra.mxu0 %v553
        %1005 = vmatprep.subr.mxu0 0.0
        %1006 = vmatpush1.msra.mxu0 %v554
        %1007 = vmatprep.subr.mxu0 0.0
        %1008 = vmatpush1.msra.mxu0 0.0
        %1009 = vmatprep.subr.mxu0 0.0
        %1010 = vmatpush1.msra.mxu0 0.0
        %1011 = vmatprep.subr.mxu0 0.0
        %1012 = vmatpush1.msra.mxu0 0.0
        %1013 = vmatprep.subr.mxu0 0.0
        %1014 = vmatpush1.msra.mxu0 0.0
        %1015 = vmatprep.subr.mxu0 0.0
        %1016 = vmatpush1.msra.mxu0 0.0
        %1017 = vmatprep.subr.mxu0 0.0
        %1018 = vmatpush1.msra.mxu0 0.0
        %1019 = vmatprep.subr.mxu0 0.0
        %1020 = vmatpush1.msra.mxu0 0.0
        %1021 = vmatprep.subr.mxu0 0.0
        %1022 = vmatpush1.msra.mxu0 0.0
        %1023 = vmatprep.subr.mxu0 0.0
        %1024 = vmatpush1.msra.mxu0 0.0
        %1025 = vmatprep.subr.mxu0 0.0
        %1026 = vmatpush1.msra.mxu0 0.0
        %1027 = vmatprep.subr.mxu0 0.0
        %1028 = vmatpush1.msra.mxu0 0.0
        %1029 = vmatprep.subr.mxu0 0.0
        %1030 = vmatpush1.msra.mxu0 0.0
        %1031 = vmatprep.subr.mxu0 0.0
        %1032 = vmatpush1.msra.mxu0 0.0
        %1033 = vmatprep.subr.mxu0 0.0
        %1034 = vmatpush1.msra.mxu0 0.0
        %1035 = vmatprep.subr.mxu0 0.0
        %1036 = vmatpush1.msra.mxu0 0.0
        %1037 = vmatprep.subr.mxu0 0.0
        %1038 = vmatpush1.msra.mxu0 0.0
        %1039 = vmatprep.subr.mxu0 0.0
        %1040 = vmatpush1.msra.mxu0 0.0
        %1041 = vmatprep.subr.mxu0 0.0
        %1042 = vmatpush1.msra.mxu0 0.0
        %1043 = vmatprep.subr.mxu0 0.0
        %1044 = vmatpush1.msra.mxu0 0.0
        %1045 = vmatprep.subr.mxu0 0.0
        %1046 = vmatpush1.msra.mxu0 0.0
        %1047 = vmatprep.subr.mxu0 0.0
        %1048 = vmatpush1.msra.mxu0 0.0
        %1049 = vmatprep.subr.mxu0 0.0
        %1050 = vmatpush1.msra.mxu0 0.0
        %1051 = vmatprep.subr.mxu0 0.0
        %1052 = vmatpush1.msra.mxu0 0.0
        %1053 = vmatprep.subr.mxu0 0.0
        %1054 = vmatpush1.msra.mxu0 0.0
        %1055 = vmatprep.subr.mxu0 0.0
        %1056 = vmatpush1.msra.mxu0 0.0
        %1057 = vmatprep.subr.mxu0 0.0
        %1058 = vmatpush1.msra.mxu0 0.0
        %1059 = vmatprep.subr.mxu0 0.0
        %1060 = vmatpush1.msra.mxu0 0.0
        %1061 = vmatprep.subr.mxu0 0.0
        %1062 = vmatpush1.msra.mxu0 0.0
        %1063 = vmatprep.mubr.f32.mxu0 0.0
        %1064 = vmatmul.mubr.f32.gmra.mrb[0].mxu0 %v997
        %v1065 = vpop.f32.mrb[0].mxu0
        %v1066 = vadd.f32 1e-06, %v1065
        %v1067 = vpop.f32.mrb[0].mxu0
        %1068 = vdwg.mxu0
        %v1069 = vrsqrt.pop %v1066
        %v1070 = vlaneseq
        %v1071 = vshrl.u32 %v1070, 7
        %v1072 = vsub.s32 0, %v1071
        %v1073 = vrot.slane %v1069, %v1072
        %v1074 = vmul.f32 %v863, %v1073
        %v1075 = vmul.f32 %v864, %v1073
        %v1076 = vmul.f32 %v865, %v1073
        %v1077 = vmul.f32 %v866, %v1073
        %v1078 = vmul.f32 %v867, %v1073
        %v1079 = vmul.f32 %v868, %v1073
        %v1080 = vmul.f32 %v869, %v1073
        %v1081 = vmul.f32 %v870, %v1073
        %v1082 = vmul.f32 %v871, %v1073
        %v1083 = vmul.f32 %v872, %v1073
        %v1084 = vmul.f32 %v873, %v1073
        %v1085 = vmul.f32 %v874, %v1073
        %v1086 = vmul.f32 %v875, %v1073
        %v1087 = vmul.f32 %v876, %v1073
        %v1088 = vmul.f32 %v877, %v1073
        %v1089 = vmul.f32 %v878, %v1073
        %v1090 = vmul.f32 %v879, %v1073
        %v1091 = vmul.f32 %v880, %v1073
        %v1092 = vmul.f32 %v881, %v1073
        %v1093 = vmul.f32 %v882, %v1073
        %v1094 = vmul.f32 %v883, %v1073
        %v1095 = vmul.f32 %v884, %v1073
        %v1096 = vmul.f32 %v885, %v1073
        %v1097 = vmul.f32 %v886, %v1073
        %v1098 = vmul.f32 %v887, %v1073
        %v1099 = vmul.f32 %v888, %v1073
        %v1100 = vmul.f32 %v889, %v1073
        %v1101 = vmul.f32 %v890, %v1073
        %v1102 = vmul.f32 %v891, %v1073
        %v1103 = vmul.f32 %v892, %v1073
        %v1104 = vmul.f32 %v893, %v1073
        %v1105 = vmul.f32 %v894, %v1073
        %v1107 = vlaneseq
        %v1108 = vshrl.u32 %v1107, 7
        %v1109 = vsub.s32 0, %v1108
        %v1110 = vrot.slane %v715, %v1109
        %v1112 = vmul.f32 %v1074, %v1110
        %v1113 = vmul.f32 %v1075, %v1110
        %v1114 = vmul.f32 %v1076, %v1110
        %v1115 = vmul.f32 %v1077, %v1110
        %v1116 = vmul.f32 %v1078, %v1110
        %v1117 = vmul.f32 %v1079, %v1110
        %v1118 = vmul.f32 %v1080, %v1110
        %v1119 = vmul.f32 %v1081, %v1110
        %v1120 = vmul.f32 %v1082, %v1110
        %v1121 = vmul.f32 %v1083, %v1110
        %v1122 = vmul.f32 %v1084, %v1110
        %v1123 = vmul.f32 %v1085, %v1110
        %v1124 = vmul.f32 %v1086, %v1110
        %v1125 = vmul.f32 %v1087, %v1110
        %v1126 = vmul.f32 %v1088, %v1110
        %v1127 = vmul.f32 %v1089, %v1110
        %v1128 = vmul.f32 %v1090, %v1110
        %v1129 = vmul.f32 %v1091, %v1110
        %v1130 = vmul.f32 %v1092, %v1110
        %v1131 = vmul.f32 %v1093, %v1110
        %v1132 = vmul.f32 %v1094, %v1110
        %v1133 = vmul.f32 %v1095, %v1110
        %v1134 = vmul.f32 %v1096, %v1110
        %v1135 = vmul.f32 %v1097, %v1110
        %v1136 = vmul.f32 %v1098, %v1110
        %v1137 = vmul.f32 %v1099, %v1110
        %v1138 = vmul.f32 %v1100, %v1110
        %v1139 = vmul.f32 %v1101, %v1110
        %v1140 = vmul.f32 %v1102, %v1110
        %v1141 = vmul.f32 %v1103, %v1110
        %v1142 = vmul.f32 %v1104, %v1110
        %v1143 = vmul.f32 %v1105, %v1110
        %v1145 = vlaneseq
        %v1146 = vshrl.u32 %v1145, 7
        %v1147 = vsub.s32 0, %v1146
        %v1148 = vrot.slane %v716, %v1147
        %v1150 = vadd.f32 %v1112, %v1148
        %v1151 = vadd.f32 %v1113, %v1148
        %v1152 = vadd.f32 %v1114, %v1148
        %v1153 = vadd.f32 %v1115, %v1148
        %v1154 = vadd.f32 %v1116, %v1148
        %v1155 = vadd.f32 %v1117, %v1148
        %v1156 = vadd.f32 %v1118, %v1148
        %v1157 = vadd.f32 %v1119, %v1148
        %v1158 = vadd.f32 %v1120, %v1148
        %v1159 = vadd.f32 %v1121, %v1148
        %v1160 = vadd.f32 %v1122, %v1148
        %v1161 = vadd.f32 %v1123, %v1148
        %v1162 = vadd.f32 %v1124, %v1148
        %v1163 = vadd.f32 %v1125, %v1148
        %v1164 = vadd.f32 %v1126, %v1148
        %v1165 = vadd.f32 %v1127, %v1148
        %v1166 = vadd.f32 %v1128, %v1148
        %v1167 = vadd.f32 %v1129, %v1148
        %v1168 = vadd.f32 %v1130, %v1148
        %v1169 = vadd.f32 %v1131, %v1148
        %v1170 = vadd.f32 %v1132, %v1148
        %v1171 = vadd.f32 %v1133, %v1148
        %v1172 = vadd.f32 %v1134, %v1148
        %v1173 = vadd.f32 %v1135, %v1148
        %v1174 = vadd.f32 %v1136, %v1148
        %v1175 = vadd.f32 %v1137, %v1148
        %v1176 = vadd.f32 %v1138, %v1148
        %v1177 = vadd.f32 %v1139, %v1148
        %v1178 = vadd.f32 %v1140, %v1148
        %v1179 = vadd.f32 %v1141, %v1148
        %v1180 = vadd.f32 %v1142, %v1148
        %v1181 = vadd.f32 %v1143, %v1148
        %v1182 = vxor.u32 %v1150, 2147483648
        %v1183 = vxor.u32 %v1151, 2147483648
        %v1184 = vxor.u32 %v1152, 2147483648
        %v1185 = vxor.u32 %v1153, 2147483648
        %v1186 = vxor.u32 %v1154, 2147483648
        %v1187 = vxor.u32 %v1155, 2147483648
        %v1188 = vxor.u32 %v1156, 2147483648
        %v1189 = vxor.u32 %v1157, 2147483648
        %v1190 = vxor.u32 %v1158, 2147483648
        %v1191 = vxor.u32 %v1159, 2147483648
        %v1192 = vxor.u32 %v1160, 2147483648
        %v1193 = vxor.u32 %v1161, 2147483648
        %v1194 = vxor.u32 %v1162, 2147483648
        %v1195 = vxor.u32 %v1163, 2147483648
        %v1196 = vxor.u32 %v1164, 2147483648
        %v1197 = vxor.u32 %v1165, 2147483648
        %v1198 = vxor.u32 %v1166, 2147483648
        %v1199 = vxor.u32 %v1167, 2147483648
        %v1200 = vxor.u32 %v1168, 2147483648
        %v1201 = vxor.u32 %v1169, 2147483648
        %v1202 = vxor.u32 %v1170, 2147483648
        %v1203 = vxor.u32 %v1171, 2147483648
        %v1204 = vxor.u32 %v1172, 2147483648
        %v1205 = vxor.u32 %v1173, 2147483648
        %v1206 = vxor.u32 %v1174, 2147483648
        %v1207 = vxor.u32 %v1175, 2147483648
        %v1208 = vxor.u32 %v1176, 2147483648
        %v1209 = vxor.u32 %v1177, 2147483648
        %v1210 = vxor.u32 %v1178, 2147483648
        %v1211 = vxor.u32 %v1179, 2147483648
        %v1212 = vxor.u32 %v1180, 2147483648
        %v1213 = vxor.u32 %v1181, 2147483648
        %v1214 = vmul.f32 %v1182, 1.442695
        %v1215 = vpow.pop %v1214
        %v1216 = vmul.f32 %v1183, 1.442695
        %v1217 = vpow.pop %v1216
        %v1218 = vmul.f32 %v1184, 1.442695
        %v1219 = vpow.pop %v1218
        %v1220 = vmul.f32 %v1185, 1.442695
        %v1221 = vpow.pop %v1220
        %v1222 = vmul.f32 %v1186, 1.442695
        %v1223 = vpow.pop %v1222
        %v1224 = vmul.f32 %v1187, 1.442695
        %v1225 = vpow.pop %v1224
        %v1226 = vmul.f32 %v1188, 1.442695
        %v1227 = vpow.pop %v1226
        %v1228 = vmul.f32 %v1189, 1.442695
        %v1229 = vpow.pop %v1228
        %v1230 = vmul.f32 %v1190, 1.442695
        %v1231 = vpow.pop %v1230
        %v1232 = vmul.f32 %v1191, 1.442695
        %v1233 = vpow.pop %v1232
        %v1234 = vmul.f32 %v1192, 1.442695
        %v1235 = vpow.pop %v1234
        %v1236 = vmul.f32 %v1193, 1.442695
        %v1237 = vpow.pop %v1236
        %v1238 = vmul.f32 %v1194, 1.442695
        %v1239 = vpow.pop %v1238
        %v1240 = vmul.f32 %v1195, 1.442695
        %v1241 = vpow.pop %v1240
        %v1242 = vmul.f32 %v1196, 1.442695
        %v1243 = vpow.pop %v1242
        %v1244 = vmul.f32 %v1197, 1.442695
        %v1245 = vpow.pop %v1244
        %v1246 = vmul.f32 %v1198, 1.442695
        %v1247 = vpow.pop %v1246
        %v1248 = vmul.f32 %v1199, 1.442695
        %v1249 = vpow.pop %v1248
        %v1250 = vmul.f32 %v1200, 1.442695
        %v1251 = vpow.pop %v1250
        %v1252 = vmul.f32 %v1201, 1.442695
        %v1253 = vpow.pop %v1252
        %v1254 = vmul.f32 %v1202, 1.442695
        %v1255 = vpow.pop %v1254
        %v1256 = vmul.f32 %v1203, 1.442695
        %v1257 = vpow.pop %v1256
        %v1258 = vmul.f32 %v1204, 1.442695
        %v1259 = vpow.pop %v1258
        %v1260 = vmul.f32 %v1205, 1.442695
        %v1261 = vpow.pop %v1260
        %v1262 = vmul.f32 %v1206, 1.442695
        %v1263 = vpow.pop %v1262
        %v1264 = vmul.f32 %v1207, 1.442695
        %v1265 = vpow.pop %v1264
        %v1266 = vmul.f32 %v1208, 1.442695
        %v1267 = vpow.pop %v1266
        %v1268 = vmul.f32 %v1209, 1.442695
        %v1269 = vpow.pop %v1268
        %v1270 = vmul.f32 %v1210, 1.442695
        %v1271 = vpow.pop %v1270
        %v1272 = vmul.f32 %v1211, 1.442695
        %v1273 = vpow.pop %v1272
        %v1274 = vmul.f32 %v1212, 1.442695
        %v1275 = vpow.pop %v1274
        %v1276 = vmul.f32 %v1213, 1.442695
        %v1277 = vpow.pop %v1276
        %v1278 = vadd.f32 %v1215, 1.0
        %v1279 = vadd.f32 %v1217, 1.0
        %v1280 = vadd.f32 %v1219, 1.0
        %v1281 = vadd.f32 %v1221, 1.0
        %v1282 = vadd.f32 %v1223, 1.0
        %v1283 = vadd.f32 %v1225, 1.0
        %v1284 = vadd.f32 %v1227, 1.0
        %v1285 = vadd.f32 %v1229, 1.0
        %v1286 = vadd.f32 %v1231, 1.0
        %v1287 = vadd.f32 %v1233, 1.0
        %v1288 = vadd.f32 %v1235, 1.0
        %v1289 = vadd.f32 %v1237, 1.0
        %v1290 = vadd.f32 %v1239, 1.0
        %v1291 = vadd.f32 %v1241, 1.0
        %v1292 = vadd.f32 %v1243, 1.0
        %v1293 = vadd.f32 %v1245, 1.0
        %v1294 = vadd.f32 %v1247, 1.0
        %v1295 = vadd.f32 %v1249, 1.0
        %v1296 = vadd.f32 %v1251, 1.0
        %v1297 = vadd.f32 %v1253, 1.0
        %v1298 = vadd.f32 %v1255, 1.0
        %v1299 = vadd.f32 %v1257, 1.0
        %v1300 = vadd.f32 %v1259, 1.0
        %v1301 = vadd.f32 %v1261, 1.0
        %v1302 = vadd.f32 %v1263, 1.0
        %v1303 = vadd.f32 %v1265, 1.0
        %v1304 = vadd.f32 %v1267, 1.0
        %v1305 = vadd.f32 %v1269, 1.0
        %v1306 = vadd.f32 %v1271, 1.0
        %v1307 = vadd.f32 %v1273, 1.0
        %v1308 = vadd.f32 %v1275, 1.0
        %v1309 = vadd.f32 %v1277, 1.0
        %v1310 = vrcp.pop %v1278
        %v1311 = vmul.f32 1.0, %v1310
        %v1312 = vrcp.pop %v1279
        %v1313 = vmul.f32 1.0, %v1312
        %v1314 = vrcp.pop %v1280
        %v1315 = vmul.f32 1.0, %v1314
        %v1316 = vrcp.pop %v1281
        %v1317 = vmul.f32 1.0, %v1316
        %v1318 = vrcp.pop %v1282
        %v1319 = vmul.f32 1.0, %v1318
        %v1320 = vrcp.pop %v1283
        %v1321 = vmul.f32 1.0, %v1320
        %v1322 = vrcp.pop %v1284
        %v1323 = vmul.f32 1.0, %v1322
        %v1324 = vrcp.pop %v1285
        %v1325 = vmul.f32 1.0, %v1324
        %v1326 = vrcp.pop %v1286
        %v1327 = vmul.f32 1.0, %v1326
        %v1328 = vrcp.pop %v1287
        %v1329 = vmul.f32 1.0, %v1328
        %v1330 = vrcp.pop %v1288
        %v1331 = vmul.f32 1.0, %v1330
        %v1332 = vrcp.pop %v1289
        %v1333 = vmul.f32 1.0, %v1332
        %v1334 = vrcp.pop %v1290
        %v1335 = vmul.f32 1.0, %v1334
        %v1336 = vrcp.pop %v1291
        %v1337 = vmul.f32 1.0, %v1336
        %v1338 = vrcp.pop %v1292
        %v1339 = vmul.f32 1.0, %v1338
        %v1340 = vrcp.pop %v1293
        %v1341 = vmul.f32 1.0, %v1340
        %v1342 = vrcp.pop %v1294
        %v1343 = vmul.f32 1.0, %v1342
        %v1344 = vrcp.pop %v1295
        %v1345 = vmul.f32 1.0, %v1344
        %v1346 = vrcp.pop %v1296
        %v1347 = vmul.f32 1.0, %v1346
        %v1348 = vrcp.pop %v1297
        %v1349 = vmul.f32 1.0, %v1348
        %v1350 = vrcp.pop %v1298
        %v1351 = vmul.f32 1.0, %v1350
        %v1352 = vrcp.pop %v1299
        %v1353 = vmul.f32 1.0, %v1352
        %v1354 = vrcp.pop %v1300
        %v1355 = vmul.f32 1.0, %v1354
        %v1356 = vrcp.pop %v1301
        %v1357 = vmul.f32 1.0, %v1356
        %v1358 = vrcp.pop %v1302
        %v1359 = vmul.f32 1.0, %v1358
        %v1360 = vrcp.pop %v1303
        %v1361 = vmul.f32 1.0, %v1360
        %v1362 = vrcp.pop %v1304
        %v1363 = vmul.f32 1.0, %v1362
        %v1364 = vrcp.pop %v1305
        %v1365 = vmul.f32 1.0, %v1364
        %v1366 = vrcp.pop %v1306
        %v1367 = vmul.f32 1.0, %v1366
        %v1368 = vrcp.pop %v1307
        %v1369 = vmul.f32 1.0, %v1368
        %v1370 = vrcp.pop %v1308
        %v1371 = vmul.f32 1.0, %v1370
        %v1372 = vrcp.pop %v1309
        %v1373 = vmul.f32 1.0, %v1372
        %v1374 = vmul.f32 %v1150, %v1311
        %v1375 = vmul.f32 %v1151, %v1313
        %v1376 = vmul.f32 %v1152, %v1315
        %v1377 = vmul.f32 %v1153, %v1317
        %v1378 = vmul.f32 %v1154, %v1319
        %v1379 = vmul.f32 %v1155, %v1321
        %v1380 = vmul.f32 %v1156, %v1323
        %v1381 = vmul.f32 %v1157, %v1325
        %v1382 = vmul.f32 %v1158, %v1327
        %v1383 = vmul.f32 %v1159, %v1329
        %v1384 = vmul.f32 %v1160, %v1331
        %v1385 = vmul.f32 %v1161, %v1333
        %v1386 = vmul.f32 %v1162, %v1335
        %v1387 = vmul.f32 %v1163, %v1337
        %v1388 = vmul.f32 %v1164, %v1339
        %v1389 = vmul.f32 %v1165, %v1341
        %v1390 = vmul.f32 %v1166, %v1343
        %v1391 = vmul.f32 %v1167, %v1345
        %v1392 = vmul.f32 %v1168, %v1347
        %v1393 = vmul.f32 %v1169, %v1349
        %v1394 = vmul.f32 %v1170, %v1351
        %v1395 = vmul.f32 %v1171, %v1353
        %v1396 = vmul.f32 %v1172, %v1355
        %v1397 = vmul.f32 %v1173, %v1357
        %v1398 = vmul.f32 %v1174, %v1359
        %v1399 = vmul.f32 %v1175, %v1361
        %v1400 = vmul.f32 %v1176, %v1363
        %v1401 = vmul.f32 %v1177, %v1365
        %v1402 = vmul.f32 %v1178, %v1367
        %v1403 = vmul.f32 %v1179, %v1369
        %v1404 = vmul.f32 %v1180, %v1371
        %v1405 = vmul.f32 %v1181, %v1373
        %1406 = vst.msk [vmem:[%s517 + $0x1] sm:$0xff] %vm508, %v1374
        %1407 = vst.msk [vmem:[%s517 + $0x9] sm:$0xff] %vm508, %v1375
        %1408 = vst.msk [vmem:[%s517 + $0x19] sm:$0xff] %vm508, %v1376
        %1409 = vst.msk [vmem:[%s517 + $0x21] sm:$0xff] %vm508, %v1377
        %1410 = vst.msk [vmem:[%s517 + $0x31] sm:$0xff] %vm508, %v1378
        %1411 = vst.msk [vmem:[%s517 + $0x39] sm:$0xff] %vm508, %v1379
        %1412 = vst.msk [vmem:[%s517 + $0x49] sm:$0xff] %vm508, %v1380
        %1413 = vst.msk [vmem:[%s517 + $0x51] sm:$0xff] %vm508, %v1381
        %1414 = vst.msk [vmem:[%s517 + $0x61] sm:$0xff] %vm508, %v1382
        %1415 = vst.msk [vmem:[%s517 + $0x69] sm:$0xff] %vm508, %v1383
        %1416 = vst.msk [vmem:[%s517 + $0x79] sm:$0xff] %vm508, %v1384
        %1417 = vst.msk [vmem:[%s517 + $0x81] sm:$0xff] %vm508, %v1385
        %1418 = vst.msk [vmem:[%s517 + $0x91] sm:$0xff] %vm508, %v1386
        %1419 = vst.msk [vmem:[%s517 + $0x99] sm:$0xff] %vm508, %v1387
        %1420 = vst.msk [vmem:[%s517 + $0xa9] sm:$0xff] %vm508, %v1388
        %1421 = vst.msk [vmem:[%s517 + $0xb1] sm:$0xff] %vm508, %v1389
        %1422 = vst.msk [vmem:[%s517 + $0xc1] sm:$0xff] %vm508, %v1390
        %1423 = vst.msk [vmem:[%s517 + $0xc9] sm:$0xff] %vm508, %v1391
        %1424 = vst.msk [vmem:[%s517 + $0xd9] sm:$0xff] %vm508, %v1392
        %1425 = vst.msk [vmem:[%s517 + $0xe1] sm:$0xff] %vm508, %v1393
        %1426 = vst.msk [vmem:[%s517 + $0xf1] sm:$0xff] %vm508, %v1394
        %1427 = vst.msk [vmem:[%s517 + $0xf9] sm:$0xff] %vm508, %v1395
        %1428 = vst.msk [vmem:[%s517 + $0x109] sm:$0xff] %vm508, %v1396
        %1429 = vst.msk [vmem:[%s517 + $0x111] sm:$0xff] %vm508, %v1397
        %1430 = vst.msk [vmem:[%s517 + $0x121] sm:$0xff] %vm508, %v1398
        %1431 = vst.msk [vmem:[%s517 + $0x129] sm:$0xff] %vm508, %v1399
        %1432 = vst.msk [vmem:[%s517 + $0x139] sm:$0xff] %vm508, %v1400
        %1433 = vst.msk [vmem:[%s517 + $0x141] sm:$0xff] %vm508, %v1401
        %1434 = vst.msk [vmem:[%s517 + $0x151] sm:$0xff] %vm508, %v1402
        %1435 = vst.msk [vmem:[%s517 + $0x159] sm:$0xff] %vm508, %v1403
        %1436 = vst.msk [vmem:[%s517 + $0x169] sm:$0xff] %vm508, %v1404
        %1437 = vst.msk [vmem:[%s517 + $0x171] sm:$0xff] %vm508, %v1405
        %v1438 = vld [vmem:[#allocation2] sm:$0xff]
        %v1439 = vld [vmem:[#allocation2 + $0x8] sm:$0xff]
        %v1440 = vld [vmem:[#allocation2 + $0x18] sm:$0xff]
        %v1441 = vld [vmem:[#allocation2 + $0x20] sm:$0xff]
        %v1442 = vld [vmem:[#allocation2 + $0x30] sm:$0xff]
        %v1443 = vld [vmem:[#allocation2 + $0x38] sm:$0xff]
        %v1444 = vld [vmem:[#allocation2 + $0x48] sm:$0xff]
        %v1445 = vld [vmem:[#allocation2 + $0x50] sm:$0xff]
        %v1446 = vld [vmem:[#allocation2 + $0x60] sm:$0xff]
        %v1447 = vld [vmem:[#allocation2 + $0x68] sm:$0xff]
        %v1448 = vld [vmem:[#allocation2 + $0x78] sm:$0xff]
        %v1449 = vld [vmem:[#allocation2 + $0x80] sm:$0xff]
        %v1450 = vld [vmem:[#allocation2 + $0x90] sm:$0xff]
        %v1451 = vld [vmem:[#allocation2 + $0x98] sm:$0xff]
        %v1452 = vld [vmem:[#allocation2 + $0xa8] sm:$0xff]
        %v1453 = vld [vmem:[#allocation2 + $0xb0] sm:$0xff]
        %v1454 = vld [vmem:[#allocation2 + $0xc0] sm:$0xff]
        %v1455 = vld [vmem:[#allocation2 + $0xc8] sm:$0xff]
        %v1456 = vld [vmem:[#allocation2 + $0xd8] sm:$0xff]
        %v1457 = vld [vmem:[#allocation2 + $0xe0] sm:$0xff]
        %v1458 = vld [vmem:[#allocation2 + $0xf0] sm:$0xff]
        %v1459 = vld [vmem:[#allocation2 + $0xf8] sm:$0xff]
        %v1460 = vld [vmem:[#allocation2 + $0x108] sm:$0xff]
        %v1461 = vld [vmem:[#allocation2 + $0x110] sm:$0xff]
        %v1462 = vld [vmem:[#allocation2 + $0x120] sm:$0xff]
        %v1463 = vld [vmem:[#allocation2 + $0x128] sm:$0xff]
        %v1464 = vld [vmem:[#allocation2 + $0x138] sm:$0xff]
        %v1465 = vld [vmem:[#allocation2 + $0x140] sm:$0xff]
        %v1466 = vld [vmem:[#allocation2 + $0x150] sm:$0xff]
        %v1467 = vld [vmem:[#allocation2 + $0x158] sm:$0xff]
        %v1468 = vld [vmem:[#allocation2 + $0x168] sm:$0xff]
        %v1469 = vld [vmem:[#allocation2 + $0x170] sm:$0xff]
        %v1470 = vld [vmem:[#allocation2 + $0x1] sm:$0xff]
        %v1471 = vld [vmem:[#allocation2 + $0x9] sm:$0xff]
        %v1472 = vld [vmem:[#allocation2 + $0x19] sm:$0xff]
        %v1473 = vld [vmem:[#allocation2 + $0x21] sm:$0xff]
        %v1474 = vld [vmem:[#allocation2 + $0x31] sm:$0xff]
        %v1475 = vld [vmem:[#allocation2 + $0x39] sm:$0xff]
        %v1476 = vld [vmem:[#allocation2 + $0x49] sm:$0xff]
        %v1477 = vld [vmem:[#allocation2 + $0x51] sm:$0xff]
        %v1478 = vld [vmem:[#allocation2 + $0x61] sm:$0xff]
        %v1479 = vld [vmem:[#allocation2 + $0x69] sm:$0xff]
        %v1480 = vld [vmem:[#allocation2 + $0x79] sm:$0xff]
        %v1481 = vld [vmem:[#allocation2 + $0x81] sm:$0xff]
        %v1482 = vld [vmem:[#allocation2 + $0x91] sm:$0xff]
        %v1483 = vld [vmem:[#allocation2 + $0x99] sm:$0xff]
        %v1484 = vld [vmem:[#allocation2 + $0xa9] sm:$0xff]
        %v1485 = vld [vmem:[#allocation2 + $0xb1] sm:$0xff]
        %v1486 = vld [vmem:[#allocation2 + $0xc1] sm:$0xff]
        %v1487 = vld [vmem:[#allocation2 + $0xc9] sm:$0xff]
        %v1488 = vld [vmem:[#allocation2 + $0xd9] sm:$0xff]
        %v1489 = vld [vmem:[#allocation2 + $0xe1] sm:$0xff]
        %v1490 = vld [vmem:[#allocation2 + $0xf1] sm:$0xff]
        %v1491 = vld [vmem:[#allocation2 + $0xf9] sm:$0xff]
        %v1492 = vld [vmem:[#allocation2 + $0x109] sm:$0xff]
        %v1493 = vld [vmem:[#allocation2 + $0x111] sm:$0xff]
        %v1494 = vld [vmem:[#allocation2 + $0x121] sm:$0xff]
        %v1495 = vld [vmem:[#allocation2 + $0x129] sm:$0xff]
        %v1496 = vld [vmem:[#allocation2 + $0x139] sm:$0xff]
        %v1497 = vld [vmem:[#allocation2 + $0x141] sm:$0xff]
        %v1498 = vld [vmem:[#allocation2 + $0x151] sm:$0xff]
        %v1499 = vld [vmem:[#allocation2 + $0x159] sm:$0xff]
        %v1500 = vld [vmem:[#allocation2 + $0x169] sm:$0xff]
        %v1501 = vld [vmem:[#allocation2 + $0x171] sm:$0xff]
        %v1502 = vld [vmem:[#allocation2 + $0x2] sm:$0xff]
        %v1503 = vld [vmem:[#allocation2 + $0xa] sm:$0xff]
        %v1504 = vld [vmem:[#allocation2 + $0x1a] sm:$0xff]
        %v1505 = vld [vmem:[#allocation2 + $0x22] sm:$0xff]
        %v1506 = vld [vmem:[#allocation2 + $0x32] sm:$0xff]
        %v1507 = vld [vmem:[#allocation2 + $0x3a] sm:$0xff]
        %v1508 = vld [vmem:[#allocation2 + $0x4a] sm:$0xff]
        %v1509 = vld [vmem:[#allocation2 + $0x52] sm:$0xff]
        %v1510 = vld [vmem:[#allocation2 + $0x62] sm:$0xff]
        %v1511 = vld [vmem:[#allocation2 + $0x6a] sm:$0xff]
        %v1512 = vld [vmem:[#allocation2 + $0x7a] sm:$0xff]
        %v1513 = vld [vmem:[#allocation2 + $0x82] sm:$0xff]
        %v1514 = vld [vmem:[#allocation2 + $0x92] sm:$0xff]
        %v1515 = vld [vmem:[#allocation2 + $0x9a] sm:$0xff]
        %v1516 = vld [vmem:[#allocation2 + $0xaa] sm:$0xff]
        %v1517 = vld [vmem:[#allocation2 + $0xb2] sm:$0xff]
        %v1518 = vld [vmem:[#allocation2 + $0xc2] sm:$0xff]
        %v1519 = vld [vmem:[#allocation2 + $0xca] sm:$0xff]
        %v1520 = vld [vmem:[#allocation2 + $0xda] sm:$0xff]
        %v1521 = vld [vmem:[#allocation2 + $0xe2] sm:$0xff]
        %v1522 = vld [vmem:[#allocation2 + $0xf2] sm:$0xff]
        %v1523 = vld [vmem:[#allocation2 + $0xfa] sm:$0xff]
        %v1524 = vld [vmem:[#allocation2 + $0x10a] sm:$0xff]
        %v1525 = vld [vmem:[#allocation2 + $0x112] sm:$0xff]
        %v1526 = vld [vmem:[#allocation2 + $0x122] sm:$0xff]
        %v1527 = vld [vmem:[#allocation2 + $0x12a] sm:$0xff]
        %v1528 = vld [vmem:[#allocation2 + $0x13a] sm:$0xff]
        %v1529 = vld [vmem:[#allocation2 + $0x142] sm:$0xff]
        %v1530 = vld [vmem:[#allocation2 + $0x152] sm:$0xff]
        %v1531 = vld [vmem:[#allocation2 + $0x15a] sm:$0xff]
        %v1532 = vld [vmem:[#allocation2 + $0x16a] sm:$0xff]
        %v1533 = vld [vmem:[#allocation2 + $0x172] sm:$0xff]
        %1566 = vrot.lane.b32.xlu0 %v1470, 32
        %v1567 = vpop.permute.xlu0 %1566
        %1568 = vrot.lane.b32.xlu0 %v1471, 32
        %v1569 = vpop.permute.xlu0 %1568
        %1570 = vrot.lane.b32.xlu0 %v1472, 32
        %v1571 = vpop.permute.xlu0 %1570
        %1572 = vrot.lane.b32.xlu0 %v1473, 32
        %v1573 = vpop.permute.xlu0 %1572
        %1574 = vrot.lane.b32.xlu0 %v1474, 32
        %v1575 = vpop.permute.xlu0 %1574
        %1576 = vrot.lane.b32.xlu0 %v1475, 32
        %v1577 = vpop.permute.xlu0 %1576
        %1578 = vrot.lane.b32.xlu0 %v1476, 32
        %v1579 = vpop.permute.xlu0 %1578
        %1580 = vrot.lane.b32.xlu0 %v1477, 32
        %v1581 = vpop.permute.xlu0 %1580
        %1582 = vrot.lane.b32.xlu0 %v1478, 32
        %v1583 = vpop.permute.xlu0 %1582
        %1584 = vrot.lane.b32.xlu0 %v1479, 32
        %v1585 = vpop.permute.xlu0 %1584
        %1586 = vrot.lane.b32.xlu0 %v1480, 32
        %v1587 = vpop.permute.xlu0 %1586
        %1588 = vrot.lane.b32.xlu0 %v1481, 32
        %v1589 = vpop.permute.xlu0 %1588
        %1590 = vrot.lane.b32.xlu0 %v1482, 32
        %v1591 = vpop.permute.xlu0 %1590
        %1592 = vrot.lane.b32.xlu0 %v1483, 32
        %v1593 = vpop.permute.xlu0 %1592
        %1594 = vrot.lane.b32.xlu0 %v1484, 32
        %v1595 = vpop.permute.xlu0 %1594
        %1596 = vrot.lane.b32.xlu0 %v1485, 32
        %v1597 = vpop.permute.xlu0 %1596
        %1598 = vrot.lane.b32.xlu0 %v1486, 32
        %v1599 = vpop.permute.xlu0 %1598
        %1600 = vrot.lane.b32.xlu0 %v1487, 32
        %v1601 = vpop.permute.xlu0 %1600
        %1602 = vrot.lane.b32.xlu0 %v1488, 32
        %v1603 = vpop.permute.xlu0 %1602
        %1604 = vrot.lane.b32.xlu0 %v1489, 32
        %v1605 = vpop.permute.xlu0 %1604
        %1606 = vrot.lane.b32.xlu0 %v1490, 32
        %v1607 = vpop.permute.xlu0 %1606
        %1608 = vrot.lane.b32.xlu0 %v1491, 32
        %v1609 = vpop.permute.xlu0 %1608
        %1610 = vrot.lane.b32.xlu0 %v1492, 32
        %v1611 = vpop.permute.xlu0 %1610
        %1612 = vrot.lane.b32.xlu0 %v1493, 32
        %v1613 = vpop.permute.xlu0 %1612
        %1614 = vrot.lane.b32.xlu0 %v1494, 32
        %v1615 = vpop.permute.xlu0 %1614
        %1616 = vrot.lane.b32.xlu0 %v1495, 32
        %v1617 = vpop.permute.xlu0 %1616
        %1618 = vrot.lane.b32.xlu0 %v1496, 32
        %v1619 = vpop.permute.xlu0 %1618
        %1620 = vrot.lane.b32.xlu0 %v1497, 32
        %v1621 = vpop.permute.xlu0 %1620
        %1622 = vrot.lane.b32.xlu0 %v1498, 32
        %v1623 = vpop.permute.xlu0 %1622
        %1624 = vrot.lane.b32.xlu0 %v1499, 32
        %v1625 = vpop.permute.xlu0 %1624
        %1626 = vrot.lane.b32.xlu0 %v1500, 32
        %v1627 = vpop.permute.xlu0 %1626
        %1628 = vrot.lane.b32.xlu0 %v1501, 32
        %v1629 = vpop.permute.xlu0 %1628
        %1694 = vrot.lane.b32.xlu0 %v1502, 64
        %v1695 = vpop.permute.xlu0 %1694
        %1696 = vrot.lane.b32.xlu0 %v1503, 64
        %v1697 = vpop.permute.xlu0 %1696
        %1698 = vrot.lane.b32.xlu0 %v1504, 64
        %v1699 = vpop.permute.xlu0 %1698
        %1700 = vrot.lane.b32.xlu0 %v1505, 64
        %v1701 = vpop.permute.xlu0 %1700
        %1702 = vrot.lane.b32.xlu0 %v1506, 64
        %v1703 = vpop.permute.xlu0 %1702
        %1704 = vrot.lane.b32.xlu0 %v1507, 64
        %v1705 = vpop.permute.xlu0 %1704
        %1706 = vrot.lane.b32.xlu0 %v1508, 64
        %v1707 = vpop.permute.xlu0 %1706
        %1708 = vrot.lane.b32.xlu0 %v1509, 64
        %v1709 = vpop.permute.xlu0 %1708
        %1710 = vrot.lane.b32.xlu0 %v1510, 64
        %v1711 = vpop.permute.xlu0 %1710
        %1712 = vrot.lane.b32.xlu0 %v1511, 64
        %v1713 = vpop.permute.xlu0 %1712
        %1714 = vrot.lane.b32.xlu0 %v1512, 64
        %v1715 = vpop.permute.xlu0 %1714
        %1716 = vrot.lane.b32.xlu0 %v1513, 64
        %v1717 = vpop.permute.xlu0 %1716
        %1718 = vrot.lane.b32.xlu0 %v1514, 64
        %v1719 = vpop.permute.xlu0 %1718
        %1720 = vrot.lane.b32.xlu0 %v1515, 64
        %v1721 = vpop.permute.xlu0 %1720
        %1722 = vrot.lane.b32.xlu0 %v1516, 64
        %v1723 = vpop.permute.xlu0 %1722
        %1724 = vrot.lane.b32.xlu0 %v1517, 64
        %v1725 = vpop.permute.xlu0 %1724
        %1726 = vrot.lane.b32.xlu0 %v1518, 64
        %v1727 = vpop.permute.xlu0 %1726
        %1728 = vrot.lane.b32.xlu0 %v1519, 64
        %v1729 = vpop.permute.xlu0 %1728
        %1730 = vrot.lane.b32.xlu0 %v1520, 64
        %v1731 = vpop.permute.xlu0 %1730
        %1732 = vrot.lane.b32.xlu0 %v1521, 64
        %v1733 = vpop.permute.xlu0 %1732
        %1734 = vrot.lane.b32.xlu0 %v1522, 64
        %v1735 = vpop.permute.xlu0 %1734
        %1736 = vrot.lane.b32.xlu0 %v1523, 64
        %v1737 = vpop.permute.xlu0 %1736
        %1738 = vrot.lane.b32.xlu0 %v1524, 64
        %v1739 = vpop.permute.xlu0 %1738
        %1740 = vrot.lane.b32.xlu0 %v1525, 64
        %v1741 = vpop.permute.xlu0 %1740
        %1742 = vrot.lane.b32.xlu0 %v1526, 64
        %v1743 = vpop.permute.xlu0 %1742
        %1744 = vrot.lane.b32.xlu0 %v1527, 64
        %v1745 = vpop.permute.xlu0 %1744
        %1746 = vrot.lane.b32.xlu0 %v1528, 64
        %v1747 = vpop.permute.xlu0 %1746
        %1748 = vrot.lane.b32.xlu0 %v1529, 64
        %v1749 = vpop.permute.xlu0 %1748
        %1750 = vrot.lane.b32.xlu0 %v1530, 64
        %v1751 = vpop.permute.xlu0 %1750
        %1752 = vrot.lane.b32.xlu0 %v1531, 64
        %v1753 = vpop.permute.xlu0 %1752
        %1754 = vrot.lane.b32.xlu0 %v1532, 64
        %v1755 = vpop.permute.xlu0 %1754
        %1756 = vrot.lane.b32.xlu0 %v1533, 64
        %v1757 = vpop.permute.xlu0 %1756
        %v1790 = vsel %vm508, %v1438, %v1567
        %v1791 = vsel %vm508, %v1439, %v1569
        %v1792 = vsel %vm508, %v1440, %v1571
        %v1793 = vsel %vm508, %v1441, %v1573
        %v1794 = vsel %vm508, %v1442, %v1575
        %v1795 = vsel %vm508, %v1443, %v1577
        %v1796 = vsel %vm508, %v1444, %v1579
        %v1797 = vsel %vm508, %v1445, %v1581
        %v1798 = vsel %vm508, %v1446, %v1583
        %v1799 = vsel %vm508, %v1447, %v1585
        %v1800 = vsel %vm508, %v1448, %v1587
        %v1801 = vsel %vm508, %v1449, %v1589
        %v1802 = vsel %vm508, %v1450, %v1591
        %v1803 = vsel %vm508, %v1451, %v1593
        %v1804 = vsel %vm508, %v1452, %v1595
        %v1805 = vsel %vm508, %v1453, %v1597
        %v1806 = vsel %vm508, %v1454, %v1599
        %v1807 = vsel %vm508, %v1455, %v1601
        %v1808 = vsel %vm508, %v1456, %v1603
        %v1809 = vsel %vm508, %v1457, %v1605
        %v1810 = vsel %vm508, %v1458, %v1607
        %v1811 = vsel %vm508, %v1459, %v1609
        %v1812 = vsel %vm508, %v1460, %v1611
        %v1813 = vsel %vm508, %v1461, %v1613
        %v1814 = vsel %vm508, %v1462, %v1615
        %v1815 = vsel %vm508, %v1463, %v1617
        %v1816 = vsel %vm508, %v1464, %v1619
        %v1817 = vsel %vm508, %v1465, %v1621
        %v1818 = vsel %vm508, %v1466, %v1623
        %v1819 = vsel %vm508, %v1467, %v1625
        %v1820 = vsel %vm508, %v1468, %v1627
        %v1821 = vsel %vm508, %v1469, %v1629
        %vm1822 = vcmask 523264
        %v1823 = vsel %vm1822, %v1790, %v1695
        %v1824 = vsel %vm1822, %v1791, %v1697
        %v1825 = vsel %vm1822, %v1792, %v1699
        %v1826 = vsel %vm1822, %v1793, %v1701
        %v1827 = vsel %vm1822, %v1794, %v1703
        %v1828 = vsel %vm1822, %v1795, %v1705
        %v1829 = vsel %vm1822, %v1796, %v1707
        %v1830 = vsel %vm1822, %v1797, %v1709
        %v1831 = vsel %vm1822, %v1798, %v1711
        %v1832 = vsel %vm1822, %v1799, %v1713
        %v1833 = vsel %vm1822, %v1800, %v1715
        %v1834 = vsel %vm1822, %v1801, %v1717
        %v1835 = vsel %vm1822, %v1802, %v1719
        %v1836 = vsel %vm1822, %v1803, %v1721
        %v1837 = vsel %vm1822, %v1804, %v1723
        %v1838 = vsel %vm1822, %v1805, %v1725
        %v1839 = vsel %vm1822, %v1806, %v1727
        %v1840 = vsel %vm1822, %v1807, %v1729
        %v1841 = vsel %vm1822, %v1808, %v1731
        %v1842 = vsel %vm1822, %v1809, %v1733
        %v1843 = vsel %vm1822, %v1810, %v1735
        %v1844 = vsel %vm1822, %v1811, %v1737
        %v1845 = vsel %vm1822, %v1812, %v1739
        %v1846 = vsel %vm1822, %v1813, %v1741
        %v1847 = vsel %vm1822, %v1814, %v1743
        %v1848 = vsel %vm1822, %v1815, %v1745
        %v1849 = vsel %vm1822, %v1816, %v1747
        %v1850 = vsel %vm1822, %v1817, %v1749
        %v1851 = vsel %vm1822, %v1818, %v1751
        %v1852 = vsel %vm1822, %v1819, %v1753
        %v1853 = vsel %vm1822, %v1820, %v1755
        %v1854 = vsel %vm1822, %v1821, %v1757
        %v1855 = vpack.c.bf16 %v1824, %v1823
        %v1856 = vpack.c.bf16 %v1826, %v1825
        %v1857 = vpack.c.bf16 %v1828, %v1827
        %v1858 = vpack.c.bf16 %v1830, %v1829
        %v1859 = vpack.c.bf16 %v1832, %v1831
        %v1860 = vpack.c.bf16 %v1834, %v1833
        %v1861 = vpack.c.bf16 %v1836, %v1835
        %v1862 = vpack.c.bf16 %v1838, %v1837
        %v1863 = vpack.c.bf16 %v1840, %v1839
        %v1864 = vpack.c.bf16 %v1842, %v1841
        %v1865 = vpack.c.bf16 %v1844, %v1843
        %v1866 = vpack.c.bf16 %v1846, %v1845
        %v1867 = vpack.c.bf16 %v1848, %v1847
        %v1868 = vpack.c.bf16 %v1850, %v1849
        %v1869 = vpack.c.bf16 %v1852, %v1851
        %v1870 = vpack.c.bf16 %v1854, %v1853
        %v1871 = vld [vmem:[%s5] sm:$0xf]
        %v1872 = vld [vmem:[%s5 + $0x4] sm:$0xf]
        %v1873 = vld [vmem:[%s5 + $0x8] sm:$0xf]
        %v1874 = vld [vmem:[%s5 + $0xc] sm:$0xf]
        %v1875 = vld [vmem:[%s5 + $0x10] sm:$0xf]
        %v1876 = vld [vmem:[%s5 + $0x14] sm:$0xf]
        %v1877 = vld [vmem:[%s5 + $0x18] sm:$0xf]
        %v1878 = vld [vmem:[%s5 + $0x1c] sm:$0xf]
        %v1879 = vld [vmem:[%s5 + $0x20] sm:$0xf]
        %v1880 = vld [vmem:[%s5 + $0x24] sm:$0xf]
        %v1881 = vld [vmem:[%s5 + $0x28] sm:$0xf]
        %v1882 = vld [vmem:[%s5 + $0x2c] sm:$0xf]
        %v1883 = vld [vmem:[%s517] sm:$0xff]
        %v1884 = vld [vmem:[%s517 + $0x8] sm:$0xff]
        %v1885 = vld [vmem:[%s517 + $0x18] sm:$0xff]
        %v1886 = vld [vmem:[%s517 + $0x20] sm:$0xff]
        %v1887 = vld [vmem:[%s517 + $0x30] sm:$0xff]
        %v1888 = vld [vmem:[%s517 + $0x38] sm:$0xff]
        %v1889 = vld [vmem:[%s517 + $0x48] sm:$0xff]
        %v1890 = vld [vmem:[%s517 + $0x50] sm:$0xff]
        %v1891 = vld [vmem:[%s517 + $0x60] sm:$0xff]
        %v1892 = vld [vmem:[%s517 + $0x68] sm:$0xff]
        %v1893 = vld [vmem:[%s517 + $0x78] sm:$0xff]
        %v1894 = vld [vmem:[%s517 + $0x80] sm:$0xff]
        %v1895 = vld [vmem:[%s517 + $0x90] sm:$0xff]
        %v1896 = vld [vmem:[%s517 + $0x98] sm:$0xff]
        %v1897 = vld [vmem:[%s517 + $0xa8] sm:$0xff]
        %v1898 = vld [vmem:[%s517 + $0xb0] sm:$0xff]
        %v1899 = vld [vmem:[%s517 + $0xc0] sm:$0xff]
        %v1900 = vld [vmem:[%s517 + $0xc8] sm:$0xff]
        %v1901 = vld [vmem:[%s517 + $0xd8] sm:$0xff]
        %v1902 = vld [vmem:[%s517 + $0xe0] sm:$0xff]
        %v1903 = vld [vmem:[%s517 + $0xf0] sm:$0xff]
        %v1904 = vld [vmem:[%s517 + $0xf8] sm:$0xff]
        %v1905 = vld [vmem:[%s517 + $0x108] sm:$0xff]
        %v1906 = vld [vmem:[%s517 + $0x110] sm:$0xff]
        %v1907 = vld [vmem:[%s517 + $0x120] sm:$0xff]
        %v1908 = vld [vmem:[%s517 + $0x128] sm:$0xff]
        %v1909 = vld [vmem:[%s517 + $0x138] sm:$0xff]
        %v1910 = vld [vmem:[%s517 + $0x140] sm:$0xff]
        %v1911 = vld [vmem:[%s517 + $0x150] sm:$0xff]
        %v1912 = vld [vmem:[%s517 + $0x158] sm:$0xff]
        %v1913 = vld [vmem:[%s517 + $0x168] sm:$0xff]
        %v1914 = vld [vmem:[%s517 + $0x170] sm:$0xff]
        %v1915 = vld [vmem:[%s517 + $0x1] sm:$0xff]
        %v1916 = vld [vmem:[%s517 + $0x9] sm:$0xff]
        %v1917 = vld [vmem:[%s517 + $0x19] sm:$0xff]
        %v1918 = vld [vmem:[%s517 + $0x21] sm:$0xff]
        %v1919 = vld [vmem:[%s517 + $0x31] sm:$0xff]
        %v1920 = vld [vmem:[%s517 + $0x39] sm:$0xff]
        %v1921 = vld [vmem:[%s517 + $0x49] sm:$0xff]
        %v1922 = vld [vmem:[%s517 + $0x51] sm:$0xff]
        %v1923 = vld [vmem:[%s517 + $0x61] sm:$0xff]
        %v1924 = vld [vmem:[%s517 + $0x69] sm:$0xff]
        %v1925 = vld [vmem:[%s517 + $0x79] sm:$0xff]
        %v1926 = vld [vmem:[%s517 + $0x81] sm:$0xff]
        %v1927 = vld [vmem:[%s517 + $0x91] sm:$0xff]
        %v1928 = vld [vmem:[%s517 + $0x99] sm:$0xff]
        %v1929 = vld [vmem:[%s517 + $0xa9] sm:$0xff]
        %v1930 = vld [vmem:[%s517 + $0xb1] sm:$0xff]
        %v1931 = vld [vmem:[%s517 + $0xc1] sm:$0xff]
        %v1932 = vld [vmem:[%s517 + $0xc9] sm:$0xff]
        %v1933 = vld [vmem:[%s517 + $0xd9] sm:$0xff]
        %v1934 = vld [vmem:[%s517 + $0xe1] sm:$0xff]
        %v1935 = vld [vmem:[%s517 + $0xf1] sm:$0xff]
        %v1936 = vld [vmem:[%s517 + $0xf9] sm:$0xff]
        %v1937 = vld [vmem:[%s517 + $0x109] sm:$0xff]
        %v1938 = vld [vmem:[%s517 + $0x111] sm:$0xff]
        %v1939 = vld [vmem:[%s517 + $0x121] sm:$0xff]
        %v1940 = vld [vmem:[%s517 + $0x129] sm:$0xff]
        %v1941 = vld [vmem:[%s517 + $0x139] sm:$0xff]
        %v1942 = vld [vmem:[%s517 + $0x141] sm:$0xff]
        %v1943 = vld [vmem:[%s517 + $0x151] sm:$0xff]
        %v1944 = vld [vmem:[%s517 + $0x159] sm:$0xff]
        %v1945 = vld [vmem:[%s517 + $0x169] sm:$0xff]
        %v1946 = vld [vmem:[%s517 + $0x171] sm:$0xff]
        %v1947 = vld [vmem:[%s517 + $0x2] sm:$0xff]
        %v1948 = vld [vmem:[%s517 + $0xa] sm:$0xff]
        %v1949 = vld [vmem:[%s517 + $0x1a] sm:$0xff]
        %v1950 = vld [vmem:[%s517 + $0x22] sm:$0xff]
        %v1951 = vld [vmem:[%s517 + $0x32] sm:$0xff]
        %v1952 = vld [vmem:[%s517 + $0x3a] sm:$0xff]
        %v1953 = vld [vmem:[%s517 + $0x4a] sm:$0xff]
        %v1954 = vld [vmem:[%s517 + $0x52] sm:$0xff]
        %v1955 = vld [vmem:[%s517 + $0x62] sm:$0xff]
        %v1956 = vld [vmem:[%s517 + $0x6a] sm:$0xff]
        %v1957 = vld [vmem:[%s517 + $0x7a] sm:$0xff]
        %v1958 = vld [vmem:[%s517 + $0x82] sm:$0xff]
        %v1959 = vld [vmem:[%s517 + $0x92] sm:$0xff]
        %v1960 = vld [vmem:[%s517 + $0x9a] sm:$0xff]
        %v1961 = vld [vmem:[%s517 + $0xaa] sm:$0xff]
        %v1962 = vld [vmem:[%s517 + $0xb2] sm:$0xff]
        %v1963 = vld [vmem:[%s517 + $0xc2] sm:$0xff]
        %v1964 = vld [vmem:[%s517 + $0xca] sm:$0xff]
        %v1965 = vld [vmem:[%s517 + $0xda] sm:$0xff]
        %v1966 = vld [vmem:[%s517 + $0xe2] sm:$0xff]
        %v1967 = vld [vmem:[%s517 + $0xf2] sm:$0xff]
        %v1968 = vld [vmem:[%s517 + $0xfa] sm:$0xff]
        %v1969 = vld [vmem:[%s517 + $0x10a] sm:$0xff]
        %v1970 = vld [vmem:[%s517 + $0x112] sm:$0xff]
        %v1971 = vld [vmem:[%s517 + $0x122] sm:$0xff]
        %v1972 = vld [vmem:[%s517 + $0x12a] sm:$0xff]
        %v1973 = vld [vmem:[%s517 + $0x13a] sm:$0xff]
        %v1974 = vld [vmem:[%s517 + $0x142] sm:$0xff]
        %v1975 = vld [vmem:[%s517 + $0x152] sm:$0xff]
        %v1976 = vld [vmem:[%s517 + $0x15a] sm:$0xff]
        %v1977 = vld [vmem:[%s517 + $0x16a] sm:$0xff]
        %v1978 = vld [vmem:[%s517 + $0x172] sm:$0xff]
        %2011 = vrot.lane.b32.xlu0 %v1915, 32
        %v2012 = vpop.permute.xlu0 %2011
        %2013 = vrot.lane.b32.xlu0 %v1916, 32
        %v2014 = vpop.permute.xlu0 %2013
        %2015 = vrot.lane.b32.xlu0 %v1917, 32
        %v2016 = vpop.permute.xlu0 %2015
        %2017 = vrot.lane.b32.xlu0 %v1918, 32
        %v2018 = vpop.permute.xlu0 %2017
        %2019 = vrot.lane.b32.xlu0 %v1919, 32
        %v2020 = vpop.permute.xlu0 %2019
        %2021 = vrot.lane.b32.xlu0 %v1920, 32
        %v2022 = vpop.permute.xlu0 %2021
        %2023 = vrot.lane.b32.xlu0 %v1921, 32
        %v2024 = vpop.permute.xlu0 %2023
        %2025 = vrot.lane.b32.xlu0 %v1922, 32
        %v2026 = vpop.permute.xlu0 %2025
        %2027 = vrot.lane.b32.xlu0 %v1923, 32
        %v2028 = vpop.permute.xlu0 %2027
        %2029 = vrot.lane.b32.xlu0 %v1924, 32
        %v2030 = vpop.permute.xlu0 %2029
        %2031 = vrot.lane.b32.xlu0 %v1925, 32
        %v2032 = vpop.permute.xlu0 %2031
        %2033 = vrot.lane.b32.xlu0 %v1926, 32
        %v2034 = vpop.permute.xlu0 %2033
        %2035 = vrot.lane.b32.xlu0 %v1927, 32
        %v2036 = vpop.permute.xlu0 %2035
        %2037 = vrot.lane.b32.xlu0 %v1928, 32
        %v2038 = vpop.permute.xlu0 %2037
        %2039 = vrot.lane.b32.xlu0 %v1929, 32
        %v2040 = vpop.permute.xlu0 %2039
        %2041 = vrot.lane.b32.xlu0 %v1930, 32
        %v2042 = vpop.permute.xlu0 %2041
        %2043 = vrot.lane.b32.xlu0 %v1931, 32
        %v2044 = vpop.permute.xlu0 %2043
        %2045 = vrot.lane.b32.xlu0 %v1932, 32
        %v2046 = vpop.permute.xlu0 %2045
        %2047 = vrot.lane.b32.xlu0 %v1933, 32
        %v2048 = vpop.permute.xlu0 %2047
        %2049 = vrot.lane.b32.xlu0 %v1934, 32
        %v2050 = vpop.permute.xlu0 %2049
        %2051 = vrot.lane.b32.xlu0 %v1935, 32
        %v2052 = vpop.permute.xlu0 %2051
        %2053 = vrot.lane.b32.xlu0 %v1936, 32
        %v2054 = vpop.permute.xlu0 %2053
        %2055 = vrot.lane.b32.xlu0 %v1937, 32
        %v2056 = vpop.permute.xlu0 %2055
        %2057 = vrot.lane.b32.xlu0 %v1938, 32
        %v2058 = vpop.permute.xlu0 %2057
        %2059 = vrot.lane.b32.xlu0 %v1939, 32
        %v2060 = vpop.permute.xlu0 %2059
        %2061 = vrot.lane.b32.xlu0 %v1940, 32
        %v2062 = vpop.permute.xlu0 %2061
        %2063 = vrot.lane.b32.xlu0 %v1941, 32
        %v2064 = vpop.permute.xlu0 %2063
        %2065 = vrot.lane.b32.xlu0 %v1942, 32
        %v2066 = vpop.permute.xlu0 %2065
        %2067 = vrot.lane.b32.xlu0 %v1943, 32
        %v2068 = vpop.permute.xlu0 %2067
        %2069 = vrot.lane.b32.xlu0 %v1944, 32
        %v2070 = vpop.permute.xlu0 %2069
        %2071 = vrot.lane.b32.xlu0 %v1945, 32
        %v2072 = vpop.permute.xlu0 %2071
        %2073 = vrot.lane.b32.xlu0 %v1946, 32
        %v2074 = vpop.permute.xlu0 %2073
        %2139 = vrot.lane.b32.xlu0 %v1947, 64
        %v2140 = vpop.permute.xlu0 %2139
        %2141 = vrot.lane.b32.xlu0 %v1948, 64
        %v2142 = vpop.permute.xlu0 %2141
        %2143 = vrot.lane.b32.xlu0 %v1949, 64
        %v2144 = vpop.permute.xlu0 %2143
        %2145 = vrot.lane.b32.xlu0 %v1950, 64
        %v2146 = vpop.permute.xlu0 %2145
        %2147 = vrot.lane.b32.xlu0 %v1951, 64
        %v2148 = vpop.permute.xlu0 %2147
        %2149 = vrot.lane.b32.xlu0 %v1952, 64
        %v2150 = vpop.permute.xlu0 %2149
        %2151 = vrot.lane.b32.xlu0 %v1953, 64
        %v2152 = vpop.permute.xlu0 %2151
        %2153 = vrot.lane.b32.xlu0 %v1954, 64
        %v2154 = vpop.permute.xlu0 %2153
        %2155 = vrot.lane.b32.xlu0 %v1955, 64
        %v2156 = vpop.permute.xlu0 %2155
        %2157 = vrot.lane.b32.xlu0 %v1956, 64
        %v2158 = vpop.permute.xlu0 %2157
        %2159 = vrot.lane.b32.xlu0 %v1957, 64
        %v2160 = vpop.permute.xlu0 %2159
        %2161 = vrot.lane.b32.xlu0 %v1958, 64
        %v2162 = vpop.permute.xlu0 %2161
        %2163 = vrot.lane.b32.xlu0 %v1959, 64
        %v2164 = vpop.permute.xlu0 %2163
        %2165 = vrot.lane.b32.xlu0 %v1960, 64
        %v2166 = vpop.permute.xlu0 %2165
        %2167 = vrot.lane.b32.xlu0 %v1961, 64
        %v2168 = vpop.permute.xlu0 %2167
        %2169 = vrot.lane.b32.xlu0 %v1962, 64
        %v2170 = vpop.permute.xlu0 %2169
        %2171 = vrot.lane.b32.xlu0 %v1963, 64
        %v2172 = vpop.permute.xlu0 %2171
        %2173 = vrot.lane.b32.xlu0 %v1964, 64
        %v2174 = vpop.permute.xlu0 %2173
        %2175 = vrot.lane.b32.xlu0 %v1965, 64
        %v2176 = vpop.permute.xlu0 %2175
        %2177 = vrot.lane.b32.xlu0 %v1966, 64
        %v2178 = vpop.permute.xlu0 %2177
        %2179 = vrot.lane.b32.xlu0 %v1967, 64
        %v2180 = vpop.permute.xlu0 %2179
        %2181 = vrot.lane.b32.xlu0 %v1968, 64
        %v2182 = vpop.permute.xlu0 %2181
        %2183 = vrot.lane.b32.xlu0 %v1969, 64
        %v2184 = vpop.permute.xlu0 %2183
        %2185 = vrot.lane.b32.xlu0 %v1970, 64
        %v2186 = vpop.permute.xlu0 %2185
        %2187 = vrot.lane.b32.xlu0 %v1971, 64
        %v2188 = vpop.permute.xlu0 %2187
        %2189 = vrot.lane.b32.xlu0 %v1972, 64
        %v2190 = vpop.permute.xlu0 %2189
        %2191 = vrot.lane.b32.xlu0 %v1973, 64
        %v2192 = vpop.permute.xlu0 %2191
        %2193 = vrot.lane.b32.xlu0 %v1974, 64
        %v2194 = vpop.permute.xlu0 %2193
        %2195 = vrot.lane.b32.xlu0 %v1975, 64
        %v2196 = vpop.permute.xlu0 %2195
        %2197 = vrot.lane.b32.xlu0 %v1976, 64
        %v2198 = vpop.permute.xlu0 %2197
        %2199 = vrot.lane.b32.xlu0 %v1977, 64
        %v2200 = vpop.permute.xlu0 %2199
        %2201 = vrot.lane.b32.xlu0 %v1978, 64
        %v2202 = vpop.permute.xlu0 %2201
        %v2235 = vsel %vm508, %v1883, %v2012
        %v2236 = vsel %vm508, %v1884, %v2014
        %v2237 = vsel %vm508, %v1885, %v2016
        %v2238 = vsel %vm508, %v1886, %v2018
        %v2239 = vsel %vm508, %v1887, %v2020
        %v2240 = vsel %vm508, %v1888, %v2022
        %v2241 = vsel %vm508, %v1889, %v2024
        %v2242 = vsel %vm508, %v1890, %v2026
        %v2243 = vsel %vm508, %v1891, %v2028
        %v2244 = vsel %vm508, %v1892, %v2030
        %v2245 = vsel %vm508, %v1893, %v2032
        %v2246 = vsel %vm508, %v1894, %v2034
        %v2247 = vsel %vm508, %v1895, %v2036
        %v2248 = vsel %vm508, %v1896, %v2038
        %v2249 = vsel %vm508, %v1897, %v2040
        %v2250 = vsel %vm508, %v1898, %v2042
        %v2251 = vsel %vm508, %v1899, %v2044
        %v2252 = vsel %vm508, %v1900, %v2046
        %v2253 = vsel %vm508, %v1901, %v2048
        %v2254 = vsel %vm508, %v1902, %v2050
        %v2255 = vsel %vm508, %v1903, %v2052
        %v2256 = vsel %vm508, %v1904, %v2054
        %v2257 = vsel %vm508, %v1905, %v2056
        %v2258 = vsel %vm508, %v1906, %v2058
        %v2259 = vsel %vm508, %v1907, %v2060
        %v2260 = vsel %vm508, %v1908, %v2062
        %v2261 = vsel %vm508, %v1909, %v2064
        %v2262 = vsel %vm508, %v1910, %v2066
        %v2263 = vsel %vm508, %v1911, %v2068
        %v2264 = vsel %vm508, %v1912, %v2070
        %v2265 = vsel %vm508, %v1913, %v2072
        %v2266 = vsel %vm508, %v1914, %v2074
        %v2267 = vsel %vm1822, %v2235, %v2140
        %v2268 = vsel %vm1822, %v2236, %v2142
        %v2269 = vsel %vm1822, %v2237, %v2144
        %v2270 = vsel %vm1822, %v2238, %v2146
        %v2271 = vsel %vm1822, %v2239, %v2148
        %v2272 = vsel %vm1822, %v2240, %v2150
        %v2273 = vsel %vm1822, %v2241, %v2152
        %v2274 = vsel %vm1822, %v2242, %v2154
        %v2275 = vsel %vm1822, %v2243, %v2156
        %v2276 = vsel %vm1822, %v2244, %v2158
        %v2277 = vsel %vm1822, %v2245, %v2160
        %v2278 = vsel %vm1822, %v2246, %v2162
        %v2279 = vsel %vm1822, %v2247, %v2164
        %v2280 = vsel %vm1822, %v2248, %v2166
        %v2281 = vsel %vm1822, %v2249, %v2168
        %v2282 = vsel %vm1822, %v2250, %v2170
        %v2283 = vsel %vm1822, %v2251, %v2172
        %v2284 = vsel %vm1822, %v2252, %v2174
        %v2285 = vsel %vm1822, %v2253, %v2176
        %v2286 = vsel %vm1822, %v2254, %v2178
        %v2287 = vsel %vm1822, %v2255, %v2180
        %v2288 = vsel %vm1822, %v2256, %v2182
        %v2289 = vsel %vm1822, %v2257, %v2184
        %v2290 = vsel %vm1822, %v2258, %v2186
        %v2291 = vsel %vm1822, %v2259, %v2188
        %v2292 = vsel %vm1822, %v2260, %v2190
        %v2293 = vsel %vm1822, %v2261, %v2192
        %v2294 = vsel %vm1822, %v2262, %v2194
        %v2295 = vsel %vm1822, %v2263, %v2196
        %v2296 = vsel %vm1822, %v2264, %v2198
        %v2297 = vsel %vm1822, %v2265, %v2200
        %v2298 = vsel %vm1822, %v2266, %v2202
        %v2299 = vpack.c.bf16 %v2268, %v2267
        %v2300 = vpack.c.bf16 %v2270, %v2269
        %v2301 = vpack.c.bf16 %v2272, %v2271
        %v2302 = vpack.c.bf16 %v2274, %v2273
        %v2303 = vpack.c.bf16 %v2276, %v2275
        %v2304 = vpack.c.bf16 %v2278, %v2277
        %v2305 = vpack.c.bf16 %v2280, %v2279
        %v2306 = vpack.c.bf16 %v2282, %v2281
        %v2307 = vpack.c.bf16 %v2284, %v2283
        %v2308 = vpack.c.bf16 %v2286, %v2285
        %v2309 = vpack.c.bf16 %v2288, %v2287
        %v2310 = vpack.c.bf16 %v2290, %v2289
        %v2311 = vpack.c.bf16 %v2292, %v2291
        %v2312 = vpack.c.bf16 %v2294, %v2293
        %v2313 = vpack.c.bf16 %v2296, %v2295
        %v2314 = vpack.c.bf16 %v2298, %v2297
        %s2315 = scalar_lea.vmem %s5, 48
        %v2316 = vld [vmem:[%s2315] sm:$0xf]
        %v2317 = vld [vmem:[%s2315 + $0x4] sm:$0xf]
        %v2318 = vld [vmem:[%s2315 + $0x8] sm:$0xf]
        %v2319 = vld [vmem:[%s2315 + $0xc] sm:$0xf]
        %v2320 = vld [vmem:[%s2315 + $0x10] sm:$0xf]
        %v2321 = vld [vmem:[%s2315 + $0x14] sm:$0xf]
        %v2322 = vld [vmem:[%s2315 + $0x18] sm:$0xf]
        %v2323 = vld [vmem:[%s2315 + $0x1c] sm:$0xf]
        %v2324 = vld [vmem:[%s2315 + $0x20] sm:$0xf]
        %v2325 = vld [vmem:[%s2315 + $0x24] sm:$0xf]
        %v2326 = vld [vmem:[%s2315 + $0x28] sm:$0xf]
        %v2327 = vld [vmem:[%s2315 + $0x2c] sm:$0xf]
        %v2340 = vunpack.c.l.b16 %v2316
        %v2341 = vunpack.c.l.b16 %v2317
        %v2342 = vunpack.c.l.b16 %v2318
        %v2343 = vunpack.c.l.b16 %v2319
        %v2344 = vunpack.c.l.b16 %v2320
        %v2345 = vunpack.c.l.b16 %v2321
        %v2346 = vunpack.c.l.b16 %v2322
        %v2347 = vunpack.c.l.b16 %v2323
        %v2348 = vunpack.c.l.b16 %v2324
        %v2349 = vunpack.c.l.b16 %v2325
        %v2350 = vunpack.c.l.b16 %v2326
        %v2351 = vunpack.c.l.b16 %v2327
        %v2352 = vpack.c.b16 %v2341, %v2340
        %v2353 = vpack.c.b16 %v2343, %v2342
        %v2354 = vpack.c.b16 %v2345, %v2344
        %v2355 = vpack.c.b16 %v2347, %v2346
        %v2356 = vpack.c.b16 %v2349, %v2348
        %v2357 = vpack.c.b16 %v2351, %v2350
        %vm2364 = vcmask 785408
        %v2366 = vsel %vm2364, %v2299, 0
        %v2369 = vsel %vm2364, %v2300, 0
        %v2372 = vsel %vm2364, %v2301, 0
        %v2375 = vsel %vm2364, %v2302, 0
        %v2378 = vsel %vm2364, %v2303, 0
        %v2381 = vsel %vm2364, %v2304, 0
        %v2384 = vsel %vm2364, %v2305, 0
        %v2387 = vsel %vm2364, %v2306, 0
        %v2390 = vsel %vm2364, %v2307, 0
        %v2393 = vsel %vm2364, %v2308, 0
        %v2396 = vsel %vm2364, %v2309, 0
        %v2399 = vsel %vm2364, %v2310, 0
        %v2402 = vsel %vm2364, %v2311, 0
        %v2405 = vsel %vm2364, %v2312, 0
        %v2408 = vsel %vm2364, %v2313, 0
        %v2411 = vsel %vm2364, %v2314, 0
        %2413 = vmatprep.subr.bf16.mxu0 0
        %2414 = vmatpush1.bf16.msra.mxu0 %v2352
        %2415 = vmatprep.subr.bf16.mxu0 0
        %2416 = vmatpush1.bf16.msra.mxu0 %v2353
        %2417 = vmatprep.subr.bf16.mxu0 0
        %2418 = vmatpush1.bf16.msra.mxu0 %v2354
        %2419 = vmatprep.subr.bf16.mxu0 0
        %2420 = vmatpush1.bf16.msra.mxu0 %v2355
        %2421 = vmatprep.subr.bf16.mxu0 0
        %2422 = vmatpush1.bf16.msra.mxu0 %v2356
        %2423 = vmatprep.subr.bf16.mxu0 0
        %2424 = vmatpush1.bf16.msra.mxu0 %v2357
        %2425 = vmatprep.subr.bf16.mxu0 0
        %2426 = vmatpush1.bf16.msra.mxu0 0
        %2427 = vmatprep.subr.bf16.mxu0 0
        %2428 = vmatpush1.bf16.msra.mxu0 0
        %2429 = vmatprep.subr.bf16.mxu0 0
        %2430 = vmatpush1.bf16.msra.mxu0 0
        %2431 = vmatprep.subr.bf16.mxu0 0
        %2432 = vmatpush1.bf16.msra.mxu0 0
        %2433 = vmatprep.subr.bf16.mxu0 0
        %2434 = vmatpush1.bf16.msra.mxu0 0
        %2435 = vmatprep.subr.bf16.mxu0 0
        %2436 = vmatpush1.bf16.msra.mxu0 0
        %2437 = vmatprep.subr.bf16.mxu0 0
        %2438 = vmatpush1.bf16.msra.mxu0 0
        %2439 = vmatprep.subr.bf16.mxu0 0
        %2440 = vmatpush1.bf16.msra.mxu0 0
        %2441 = vmatprep.subr.bf16.mxu0 0
        %2442 = vmatpush1.bf16.msra.mxu0 0
        %2443 = vmatprep.subr.bf16.mxu0 0
        %2444 = vmatpush1.bf16.msra.mxu0 0
        %2445 = vmatprep.mubr.bf16.mxu0 0
        %2446 = vmatmul.mubr.bf16.gmra.mrb[0].mxu0 %v2366
        %v2447 = vpop.f32.mrb[0].mxu0
        %v2448 = vadd.f32 0.0, %v2447
        %v2449 = vpop.f32.mrb[0].mxu0
        %v2450 = vpop.f32.mrb[0].mxu0
        %v2451 = vadd.f32 0.0, %v2450
        %v2452 = vpop.f32.mrb[0].mxu0
        %2453 = vmatprep.mubr.bf16.mxu0 0
        %2454 = vmatmul.mubr.bf16.gmra.mrb[0].mxu0 %v2369
        %v2455 = vpop.f32.mrb[0].mxu0
        %v2456 = vadd.f32 0.0, %v2455
        %v2457 = vpop.f32.mrb[0].mxu0
        %v2458 = vpop.f32.mrb[0].mxu0
        %v2459 = vadd.f32 0.0, %v2458
        %v2460 = vpop.f32.mrb[0].mxu0
        %2461 = vmatprep.mubr.bf16.mxu0 0
        %2462 = vmatmul.mubr.bf16.gmra.mrb[0].mxu0 %v2372
        %v2463 = vpop.f32.mrb[0].mxu0
        %v2464 = vadd.f32 0.0, %v2463
        %v2465 = vpop.f32.mrb[0].mxu0
        %v2466 = vpop.f32.mrb[0].mxu0
        %v2467 = vadd.f32 0.0, %v2466
        %v2468 = vpop.f32.mrb[0].mxu0
        %2469 = vmatprep.mubr.bf16.mxu0 0
        %2470 = vmatmul.mubr.bf16.gmra.mrb[0].mxu0 %v2375
        %v2471 = vpop.f32.mrb[0].mxu0
        %v2472 = vadd.f32 0.0, %v2471
        %v2473 = vpop.f32.mrb[0].mxu0
        %v2474 = vpop.f32.mrb[0].mxu0
        %v2475 = vadd.f32 0.0, %v2474
        %v2476 = vpop.f32.mrb[0].mxu0
        %2477 = vmatprep.mubr.bf16.mxu0 0
        %2478 = vmatmul.mubr.bf16.gmra.mrb[0].mxu0 %v2378
        %v2479 = vpop.f32.mrb[0].mxu0
        %v2480 = vadd.f32 0.0, %v2479
        %v2481 = vpop.f32.mrb[0].mxu0
        %v2482 = vpop.f32.mrb[0].mxu0
        %v2483 = vadd.f32 0.0, %v2482
        %v2484 = vpop.f32.mrb[0].mxu0
        %2485 = vmatprep.mubr.bf16.mxu0 0
        %2486 = vmatmul.mubr.bf16.gmra.mrb[0].mxu0 %v2381
        %v2487 = vpop.f32.mrb[0].mxu0
        %v2488 = vadd.f32 0.0, %v2487
        %v2489 = vpop.f32.mrb[0].mxu0
        %v2490 = vpop.f32.mrb[0].mxu0
        %v2491 = vadd.f32 0.0, %v2490
        %v2492 = vpop.f32.mrb[0].mxu0
        %2493 = vmatprep.mubr.bf16.mxu0 0
        %2494 = vmatmul.mubr.bf16.gmra.mrb[0].mxu0 %v2384
        %v2495 = vpop.f32.mrb[0].mxu0
        %v2496 = vadd.f32 0.0, %v2495
        %v2497 = vpop.f32.mrb[0].mxu0
        %v2498 = vpop.f32.mrb[0].mxu0
        %v2499 = vadd.f32 0.0, %v2498
        %v2500 = vpop.f32.mrb[0].mxu0
        %2501 = vmatprep.mubr.bf16.mxu0 0
        %2502 = vmatmul.mubr.bf16.gmra.mrb[0].mxu0 %v2387
        %v2503 = vpop.f32.mrb[0].mxu0
        %v2504 = vadd.f32 0.0, %v2503
        %v2505 = vpop.f32.mrb[0].mxu0
        %v2506 = vpop.f32.mrb[0].mxu0
        %v2507 = vadd.f32 0.0, %v2506
        %v2508 = vpop.f32.mrb[0].mxu0
        %2509 = vmatprep.mubr.bf16.mxu0 0
        %2510 = vmatmul.mubr.bf16.gmra.mrb[0].mxu0 %v2390
        %v2511 = vpop.f32.mrb[0].mxu0
        %v2512 = vadd.f32 0.0, %v2511
        %v2513 = vpop.f32.mrb[0].mxu0
        %v2514 = vpop.f32.mrb[0].mxu0
        %v2515 = vadd.f32 0.0, %v2514
        %v2516 = vpop.f32.mrb[0].mxu0
        %2517 = vmatprep.mubr.bf16.mxu0 0
        %2518 = vmatmul.mubr.bf16.gmra.mrb[0].mxu0 %v2393
        %v2519 = vpop.f32.mrb[0].mxu0
        %v2520 = vadd.f32 0.0, %v2519
        %v2521 = vpop.f32.mrb[0].mxu0
        %v2522 = vpop.f32.mrb[0].mxu0
        %v2523 = vadd.f32 0.0, %v2522
        %v2524 = vpop.f32.mrb[0].mxu0
        %2525 = vmatprep.mubr.bf16.mxu0 0
        %2526 = vmatmul.mubr.bf16.gmra.mrb[0].mxu0 %v2396
        %v2527 = vpop.f32.mrb[0].mxu0
        %v2528 = vadd.f32 0.0, %v2527
        %v2529 = vpop.f32.mrb[0].mxu0
        %v2530 = vpop.f32.mrb[0].mxu0
        %v2531 = vadd.f32 0.0, %v2530
        %v2532 = vpop.f32.mrb[0].mxu0
        %2533 = vmatprep.mubr.bf16.mxu0 0
        %2534 = vmatmul.mubr.bf16.gmra.mrb[0].mxu0 %v2399
        %v2535 = vpop.f32.mrb[0].mxu0
        %v2536 = vadd.f32 0.0, %v2535
        %v2537 = vpop.f32.mrb[0].mxu0
        %v2538 = vpop.f32.mrb[0].mxu0
        %v2539 = vadd.f32 0.0, %v2538
        %v2540 = vpop.f32.mrb[0].mxu0
        %2541 = vmatprep.mubr.bf16.mxu0 0
        %2542 = vmatmul.mubr.bf16.gmra.mrb[0].mxu0 %v2402
        %v2543 = vpop.f32.mrb[0].mxu0
        %v2544 = vadd.f32 0.0, %v2543
        %v2545 = vpop.f32.mrb[0].mxu0
        %v2546 = vpop.f32.mrb[0].mxu0
        %v2547 = vadd.f32 0.0, %v2546
        %v2548 = vpop.f32.mrb[0].mxu0
        %2549 = vmatprep.mubr.bf16.mxu0 0
        %2550 = vmatmul.mubr.bf16.gmra.mrb[0].mxu0 %v2405
        %v2551 = vpop.f32.mrb[0].mxu0
        %v2552 = vadd.f32 0.0, %v2551
        %v2553 = vpop.f32.mrb[0].mxu0
        %v2554 = vpop.f32.mrb[0].mxu0
        %v2555 = vadd.f32 0.0, %v2554
        %v2556 = vpop.f32.mrb[0].mxu0
        %2557 = vmatprep.mubr.bf16.mxu0 0
        %2558 = vmatmul.mubr.bf16.gmra.mrb[0].mxu0 %v2408
        %v2559 = vpop.f32.mrb[0].mxu0
        %v2560 = vadd.f32 0.0, %v2559
        %v2561 = vpop.f32.mrb[0].mxu0
        %v2562 = vpop.f32.mrb[0].mxu0
        %v2563 = vadd.f32 0.0, %v2562
        %v2564 = vpop.f32.mrb[0].mxu0
        %2565 = vmatprep.mubr.bf16.mxu0 0
        %2566 = vmatmul.mubr.bf16.gmra.mrb[0].mxu0 %v2411
        %v2567 = vpop.f32.mrb[0].mxu0
        %v2568 = vadd.f32 0.0, %v2567
        %v2569 = vpop.f32.mrb[0].mxu0
        %v2570 = vpop.f32.mrb[0].mxu0
        %v2571 = vadd.f32 0.0, %v2570
        %v2572 = vpop.f32.mrb[0].mxu0
        %2573 = vdwg.mxu0
        %v2586 = vunpack.c.l.b16 %v1871
        %v2587 = vunpack.c.l.b16 %v1872
        %v2588 = vunpack.c.l.b16 %v1873
        %v2589 = vunpack.c.l.b16 %v1874
        %v2590 = vunpack.c.l.b16 %v1875
        %v2591 = vunpack.c.l.b16 %v1876
        %v2592 = vunpack.c.l.b16 %v1877
        %v2593 = vunpack.c.l.b16 %v1878
        %v2594 = vunpack.c.l.b16 %v1879
        %v2595 = vunpack.c.l.b16 %v1880
        %v2596 = vunpack.c.l.b16 %v1881
        %v2597 = vunpack.c.l.b16 %v1882
        %v2598 = vpack.c.b16 %v2587, %v2586
        %v2599 = vpack.c.b16 %v2589, %v2588
        %v2600 = vpack.c.b16 %v2591, %v2590
        %v2601 = vpack.c.b16 %v2593, %v2592
        %v2602 = vpack.c.b16 %v2595, %v2594
        %v2603 = vpack.c.b16 %v2597, %v2596
        %v2611 = vsel %vm2364, %v1855, 0
        %v2614 = vsel %vm2364, %v1856, 0
        %v2617 = vsel %vm2364, %v1857, 0
        %v2620 = vsel %vm2364, %v1858, 0
        %v2623 = vsel %vm2364, %v1859, 0
        %v2626 = vsel %vm2364, %v1860, 0
        %v2629 = vsel %vm2364, %v1861, 0
        %v2632 = vsel %vm2364, %v1862, 0
        %v2635 = vsel %vm2364, %v1863, 0
        %v2638 = vsel %vm2364, %v1864, 0
        %v2641 = vsel %vm2364, %v1865, 0
        %v2644 = vsel %vm2364, %v1866, 0
        %v2647 = vsel %vm2364, %v1867, 0
        %v2650 = vsel %vm2364, %v1868, 0
        %v2653 = vsel %vm2364, %v1869, 0
        %v2656 = vsel %vm2364, %v1870, 0
        %2658 = vmatprep.subr.bf16.mxu0 0
        %2659 = vmatpush1.bf16.msra.mxu0 %v2598
        %2660 = vmatprep.subr.bf16.mxu0 0
        %2661 = vmatpush1.bf16.msra.mxu0 %v2599
        %2662 = vmatprep.subr.bf16.mxu0 0
        %2663 = vmatpush1.bf16.msra.mxu0 %v2600
        %2664 = vmatprep.subr.bf16.mxu0 0
        %2665 = vmatpush1.bf16.msra.mxu0 %v2601
        %2666 = vmatprep.subr.bf16.mxu0 0
        %2667 = vmatpush1.bf16.msra.mxu0 %v2602
        %2668 = vmatprep.subr.bf16.mxu0 0
        %2669 = vmatpush1.bf16.msra.mxu0 %v2603
        %2670 = vmatprep.subr.bf16.mxu0 0
        %2671 = vmatpush1.bf16.msra.mxu0 0
        %2672 = vmatprep.subr.bf16.mxu0 0
        %2673 = vmatpush1.bf16.msra.mxu0 0
        %2674 = vmatprep.subr.bf16.mxu0 0
        %2675 = vmatpush1.bf16.msra.mxu0 0
        %2676 = vmatprep.subr.bf16.mxu0 0
        %2677 = vmatpush1.bf16.msra.mxu0 0
        %2678 = vmatprep.subr.bf16.mxu0 0
        %2679 = vmatpush1.bf16.msra.mxu0 0
        %2680 = vmatprep.subr.bf16.mxu0 0
        %2681 = vmatpush1.bf16.msra.mxu0 0
        %2682 = vmatprep.subr.bf16.mxu0 0
        %2683 = vmatpush1.bf16.msra.mxu0 0
        %2684 = vmatprep.subr.bf16.mxu0 0
        %2685 = vmatpush1.bf16.msra.mxu0 0
        %2686 = vmatprep.subr.bf16.mxu0 0
        %2687 = vmatpush1.bf16.msra.mxu0 0
        %2688 = vmatprep.subr.bf16.mxu0 0
        %2689 = vmatpush1.bf16.msra.mxu0 0
        %2690 = vmatprep.mubr.bf16.mxu0 0
        %2691 = vmatmul.mubr.bf16.gmra.mrb[0].mxu0 %v2611
        %v2692 = vpop.f32.mrb[0].mxu0
        %v2693 = vadd.f32 %v2448, %v2692
        %v2694 = vpop.f32.mrb[0].mxu0
        %v2695 = vpop.f32.mrb[0].mxu0
        %v2696 = vadd.f32 %v2451, %v2695
        %v2697 = vpop.f32.mrb[0].mxu0
        %2698 = vmatprep.mubr.bf16.mxu0 0
        %2699 = vmatmul.mubr.bf16.gmra.mrb[0].mxu0 %v2614
        %v2700 = vpop.f32.mrb[0].mxu0
        %v2701 = vadd.f32 %v2456, %v2700
        %v2702 = vpop.f32.mrb[0].mxu0
        %v2703 = vpop.f32.mrb[0].mxu0
        %v2704 = vadd.f32 %v2459, %v2703
        %v2705 = vpop.f32.mrb[0].mxu0
        %2706 = vmatprep.mubr.bf16.mxu0 0
        %2707 = vmatmul.mubr.bf16.gmra.mrb[0].mxu0 %v2617
        %v2708 = vpop.f32.mrb[0].mxu0
        %v2709 = vadd.f32 %v2464, %v2708
        %v2710 = vpop.f32.mrb[0].mxu0
        %v2711 = vpop.f32.mrb[0].mxu0
        %v2712 = vadd.f32 %v2467, %v2711
        %v2713 = vpop.f32.mrb[0].mxu0
        %2714 = vmatprep.mubr.bf16.mxu0 0
        %2715 = vmatmul.mubr.bf16.gmra.mrb[0].mxu0 %v2620
        %v2716 = vpop.f32.mrb[0].mxu0
        %v2717 = vadd.f32 %v2472, %v2716
        %v2718 = vpop.f32.mrb[0].mxu0
        %v2719 = vpop.f32.mrb[0].mxu0
        %v2720 = vadd.f32 %v2475, %v2719
        %v2721 = vpop.f32.mrb[0].mxu0
        %2722 = vmatprep.mubr.bf16.mxu0 0
        %2723 = vmatmul.mubr.bf16.gmra.mrb[0].mxu0 %v2623
        %v2724 = vpop.f32.mrb[0].mxu0
        %v2725 = vadd.f32 %v2480, %v2724
        %v2726 = vpop.f32.mrb[0].mxu0
        %v2727 = vpop.f32.mrb[0].mxu0
        %v2728 = vadd.f32 %v2483, %v2727
        %v2729 = vpop.f32.mrb[0].mxu0
        %2730 = vmatprep.mubr.bf16.mxu0 0
        %2731 = vmatmul.mubr.bf16.gmra.mrb[0].mxu0 %v2626
        %v2732 = vpop.f32.mrb[0].mxu0
        %v2733 = vadd.f32 %v2488, %v2732
        %v2734 = vpop.f32.mrb[0].mxu0
        %v2735 = vpop.f32.mrb[0].mxu0
        %v2736 = vadd.f32 %v2491, %v2735
        %v2737 = vpop.f32.mrb[0].mxu0
        %2738 = vmatprep.mubr.bf16.mxu0 0
        %2739 = vmatmul.mubr.bf16.gmra.mrb[0].mxu0 %v2629
        %v2740 = vpop.f32.mrb[0].mxu0
        %v2741 = vadd.f32 %v2496, %v2740
        %v2742 = vpop.f32.mrb[0].mxu0
        %v2743 = vpop.f32.mrb[0].mxu0
        %v2744 = vadd.f32 %v2499, %v2743
        %v2745 = vpop.f32.mrb[0].mxu0
        %2746 = vmatprep.mubr.bf16.mxu0 0
        %2747 = vmatmul.mubr.bf16.gmra.mrb[0].mxu0 %v2632
        %v2748 = vpop.f32.mrb[0].mxu0
        %v2749 = vadd.f32 %v2504, %v2748
        %v2750 = vpop.f32.mrb[0].mxu0
        %v2751 = vpop.f32.mrb[0].mxu0
        %v2752 = vadd.f32 %v2507, %v2751
        %v2753 = vpop.f32.mrb[0].mxu0
        %2754 = vmatprep.mubr.bf16.mxu0 0
        %2755 = vmatmul.mubr.bf16.gmra.mrb[0].mxu0 %v2635
        %v2756 = vpop.f32.mrb[0].mxu0
        %v2757 = vadd.f32 %v2512, %v2756
        %v2758 = vpop.f32.mrb[0].mxu0
        %v2759 = vpop.f32.mrb[0].mxu0
        %v2760 = vadd.f32 %v2515, %v2759
        %v2761 = vpop.f32.mrb[0].mxu0
        %2762 = vmatprep.mubr.bf16.mxu0 0
        %2763 = vmatmul.mubr.bf16.gmra.mrb[0].mxu0 %v2638
        %v2764 = vpop.f32.mrb[0].mxu0
        %v2765 = vadd.f32 %v2520, %v2764
        %v2766 = vpop.f32.mrb[0].mxu0
        %v2767 = vpop.f32.mrb[0].mxu0
        %v2768 = vadd.f32 %v2523, %v2767
        %v2769 = vpop.f32.mrb[0].mxu0
        %2770 = vmatprep.mubr.bf16.mxu0 0
        %2771 = vmatmul.mubr.bf16.gmra.mrb[0].mxu0 %v2641
        %v2772 = vpop.f32.mrb[0].mxu0
        %v2773 = vadd.f32 %v2528, %v2772
        %v2774 = vpop.f32.mrb[0].mxu0
        %v2775 = vpop.f32.mrb[0].mxu0
        %v2776 = vadd.f32 %v2531, %v2775
        %v2777 = vpop.f32.mrb[0].mxu0
        %2778 = vmatprep.mubr.bf16.mxu0 0
        %2779 = vmatmul.mubr.bf16.gmra.mrb[0].mxu0 %v2644
        %v2780 = vpop.f32.mrb[0].mxu0
        %v2781 = vadd.f32 %v2536, %v2780
        %v2782 = vpop.f32.mrb[0].mxu0
        %v2783 = vpop.f32.mrb[0].mxu0
        %v2784 = vadd.f32 %v2539, %v2783
        %v2785 = vpop.f32.mrb[0].mxu0
        %2786 = vmatprep.mubr.bf16.mxu0 0
        %2787 = vmatmul.mubr.bf16.gmra.mrb[0].mxu0 %v2647
        %v2788 = vpop.f32.mrb[0].mxu0
        %v2789 = vadd.f32 %v2544, %v2788
        %v2790 = vpop.f32.mrb[0].mxu0
        %v2791 = vpop.f32.mrb[0].mxu0
        %v2792 = vadd.f32 %v2547, %v2791
        %v2793 = vpop.f32.mrb[0].mxu0
        %2794 = vmatprep.mubr.bf16.mxu0 0
        %2795 = vmatmul.mubr.bf16.gmra.mrb[0].mxu0 %v2650
        %v2796 = vpop.f32.mrb[0].mxu0
        %v2797 = vadd.f32 %v2552, %v2796
        %v2798 = vpop.f32.mrb[0].mxu0
        %v2799 = vpop.f32.mrb[0].mxu0
        %v2800 = vadd.f32 %v2555, %v2799
        %v2801 = vpop.f32.mrb[0].mxu0
        %2802 = vmatprep.mubr.bf16.mxu0 0
        %2803 = vmatmul.mubr.bf16.gmra.mrb[0].mxu0 %v2653
        %v2804 = vpop.f32.mrb[0].mxu0
        %v2805 = vadd.f32 %v2560, %v2804
        %v2806 = vpop.f32.mrb[0].mxu0
        %v2807 = vpop.f32.mrb[0].mxu0
        %v2808 = vadd.f32 %v2563, %v2807
        %v2809 = vpop.f32.mrb[0].mxu0
        %2810 = vmatprep.mubr.bf16.mxu0 0
        %2811 = vmatmul.mubr.bf16.gmra.mrb[0].mxu0 %v2656
        %v2812 = vpop.f32.mrb[0].mxu0
        %v2813 = vadd.f32 %v2568, %v2812
        %v2814 = vpop.f32.mrb[0].mxu0
        %v2815 = vpop.f32.mrb[0].mxu0
        %v2816 = vadd.f32 %v2571, %v2815
        %v2817 = vpop.f32.mrb[0].mxu0
        %2818 = vdwg.mxu0
        %s2819 = scalar_lea.vmem [#allocation2], 48
        %v2820 = vld [vmem:[%s2819] sm:$0xff]
        %v2821 = vld [vmem:[%s2819 + $0x8] sm:$0xff]
        %v2822 = vld [vmem:[%s2819 + $0x18] sm:$0xff]
        %v2823 = vld [vmem:[%s2819 + $0x20] sm:$0xff]
        %v2824 = vld [vmem:[%s2819 + $0x30] sm:$0xff]
        %v2825 = vld [vmem:[%s2819 + $0x38] sm:$0xff]
        %v2826 = vld [vmem:[%s2819 + $0x48] sm:$0xff]
        %v2827 = vld [vmem:[%s2819 + $0x50] sm:$0xff]
        %v2828 = vld [vmem:[%s2819 + $0x60] sm:$0xff]
        %v2829 = vld [vmem:[%s2819 + $0x68] sm:$0xff]
        %v2830 = vld [vmem:[%s2819 + $0x78] sm:$0xff]
        %v2831 = vld [vmem:[%s2819 + $0x80] sm:$0xff]
        %v2832 = vld [vmem:[%s2819 + $0x90] sm:$0xff]
        %v2833 = vld [vmem:[%s2819 + $0x98] sm:$0xff]
        %v2834 = vld [vmem:[%s2819 + $0xa8] sm:$0xff]
        %v2835 = vld [vmem:[%s2819 + $0xb0] sm:$0xff]
        %v2836 = vld [vmem:[%s2819 + $0xc0] sm:$0xff]
        %v2837 = vld [vmem:[%s2819 + $0xc8] sm:$0xff]
        %v2838 = vld [vmem:[%s2819 + $0xd8] sm:$0xff]
        %v2839 = vld [vmem:[%s2819 + $0xe0] sm:$0xff]
        %v2840 = vld [vmem:[%s2819 + $0xf0] sm:$0xff]
        %v2841 = vld [vmem:[%s2819 + $0xf8] sm:$0xff]
        %v2842 = vld [vmem:[%s2819 + $0x108] sm:$0xff]
        %v2843 = vld [vmem:[%s2819 + $0x110] sm:$0xff]
        %v2844 = vld [vmem:[%s2819 + $0x120] sm:$0xff]
        %v2845 = vld [vmem:[%s2819 + $0x128] sm:$0xff]
        %v2846 = vld [vmem:[%s2819 + $0x138] sm:$0xff]
        %v2847 = vld [vmem:[%s2819 + $0x140] sm:$0xff]
        %v2848 = vld [vmem:[%s2819 + $0x150] sm:$0xff]
        %v2849 = vld [vmem:[%s2819 + $0x158] sm:$0xff]
        %v2850 = vld [vmem:[%s2819 + $0x168] sm:$0xff]
        %v2851 = vld [vmem:[%s2819 + $0x170] sm:$0xff]
        %v2852 = vld [vmem:[%s2819 + $0x1] sm:$0xff]
        %v2853 = vld [vmem:[%s2819 + $0x9] sm:$0xff]
        %v2854 = vld [vmem:[%s2819 + $0x19] sm:$0xff]
        %v2855 = vld [vmem:[%s2819 + $0x21] sm:$0xff]
        %v2856 = vld [vmem:[%s2819 + $0x31] sm:$0xff]
        %v2857 = vld [vmem:[%s2819 + $0x39] sm:$0xff]
        %v2858 = vld [vmem:[%s2819 + $0x49] sm:$0xff]
        %v2859 = vld [vmem:[%s2819 + $0x51] sm:$0xff]
        %v2860 = vld [vmem:[%s2819 + $0x61] sm:$0xff]
        %v2861 = vld [vmem:[%s2819 + $0x69] sm:$0xff]
        %v2862 = vld [vmem:[%s2819 + $0x79] sm:$0xff]
        %v2863 = vld [vmem:[%s2819 + $0x81] sm:$0xff]
        %v2864 = vld [vmem:[%s2819 + $0x91] sm:$0xff]
        %v2865 = vld [vmem:[%s2819 + $0x99] sm:$0xff]
        %v2866 = vld [vmem:[%s2819 + $0xa9] sm:$0xff]
        %v2867 = vld [vmem:[%s2819 + $0xb1] sm:$0xff]
        %v2868 = vld [vmem:[%s2819 + $0xc1] sm:$0xff]
        %v2869 = vld [vmem:[%s2819 + $0xc9] sm:$0xff]
        %v2870 = vld [vmem:[%s2819 + $0xd9] sm:$0xff]
        %v2871 = vld [vmem:[%s2819 + $0xe1] sm:$0xff]
        %v2872 = vld [vmem:[%s2819 + $0xf1] sm:$0xff]
        %v2873 = vld [vmem:[%s2819 + $0xf9] sm:$0xff]
        %v2874 = vld [vmem:[%s2819 + $0x109] sm:$0xff]
        %v2875 = vld [vmem:[%s2819 + $0x111] sm:$0xff]
        %v2876 = vld [vmem:[%s2819 + $0x121] sm:$0xff]
        %v2877 = vld [vmem:[%s2819 + $0x129] sm:$0xff]
        %v2878 = vld [vmem:[%s2819 + $0x139] sm:$0xff]
        %v2879 = vld [vmem:[%s2819 + $0x141] sm:$0xff]
        %v2880 = vld [vmem:[%s2819 + $0x151] sm:$0xff]
        %v2881 = vld [vmem:[%s2819 + $0x159] sm:$0xff]
        %v2882 = vld [vmem:[%s2819 + $0x169] sm:$0xff]
        %v2883 = vld [vmem:[%s2819 + $0x171] sm:$0xff]
        %v2884 = vld [vmem:[%s2819 + $0x2] sm:$0xff]
        %v2885 = vld [vmem:[%s2819 + $0xa] sm:$0xff]
        %v2886 = vld [vmem:[%s2819 + $0x1a] sm:$0xff]
        %v2887 = vld [vmem:[%s2819 + $0x22] sm:$0xff]
        %v2888 = vld [vmem:[%s2819 + $0x32] sm:$0xff]
        %v2889 = vld [vmem:[%s2819 + $0x3a] sm:$0xff]
        %v2890 = vld [vmem:[%s2819 + $0x4a] sm:$0xff]
        %v2891 = vld [vmem:[%s2819 + $0x52] sm:$0xff]
        %v2892 = vld [vmem:[%s2819 + $0x62] sm:$0xff]
        %v2893 = vld [vmem:[%s2819 + $0x6a] sm:$0xff]
        %v2894 = vld [vmem:[%s2819 + $0x7a] sm:$0xff]
        %v2895 = vld [vmem:[%s2819 + $0x82] sm:$0xff]
        %v2896 = vld [vmem:[%s2819 + $0x92] sm:$0xff]
        %v2897 = vld [vmem:[%s2819 + $0x9a] sm:$0xff]
        %v2898 = vld [vmem:[%s2819 + $0xaa] sm:$0xff]
        %v2899 = vld [vmem:[%s2819 + $0xb2] sm:$0xff]
        %v2900 = vld [vmem:[%s2819 + $0xc2] sm:$0xff]
        %v2901 = vld [vmem:[%s2819 + $0xca] sm:$0xff]
        %v2902 = vld [vmem:[%s2819 + $0xda] sm:$0xff]
        %v2903 = vld [vmem:[%s2819 + $0xe2] sm:$0xff]
        %v2904 = vld [vmem:[%s2819 + $0xf2] sm:$0xff]
        %v2905 = vld [vmem:[%s2819 + $0xfa] sm:$0xff]
        %v2906 = vld [vmem:[%s2819 + $0x10a] sm:$0xff]
        %v2907 = vld [vmem:[%s2819 + $0x112] sm:$0xff]
        %v2908 = vld [vmem:[%s2819 + $0x122] sm:$0xff]
        %v2909 = vld [vmem:[%s2819 + $0x12a] sm:$0xff]
        %v2910 = vld [vmem:[%s2819 + $0x13a] sm:$0xff]
        %v2911 = vld [vmem:[%s2819 + $0x142] sm:$0xff]
        %v2912 = vld [vmem:[%s2819 + $0x152] sm:$0xff]
        %v2913 = vld [vmem:[%s2819 + $0x15a] sm:$0xff]
        %v2914 = vld [vmem:[%s2819 + $0x16a] sm:$0xff]
        %v2915 = vld [vmem:[%s2819 + $0x172] sm:$0xff]
        %2948 = vrot.lane.b32.xlu0 %v2852, 32
        %v2949 = vpop.permute.xlu0 %2948
        %2950 = vrot.lane.b32.xlu0 %v2853, 32
        %v2951 = vpop.permute.xlu0 %2950
        %2952 = vrot.lane.b32.xlu0 %v2854, 32
        %v2953 = vpop.permute.xlu0 %2952
        %2954 = vrot.lane.b32.xlu0 %v2855, 32
        %v2955 = vpop.permute.xlu0 %2954
        %2956 = vrot.lane.b32.xlu0 %v2856, 32
        %v2957 = vpop.permute.xlu0 %2956
        %2958 = vrot.lane.b32.xlu0 %v2857, 32
        %v2959 = vpop.permute.xlu0 %2958
        %2960 = vrot.lane.b32.xlu0 %v2858, 32
        %v2961 = vpop.permute.xlu0 %2960
        %2962 = vrot.lane.b32.xlu0 %v2859, 32
        %v2963 = vpop.permute.xlu0 %2962
        %2964 = vrot.lane.b32.xlu0 %v2860, 32
        %v2965 = vpop.permute.xlu0 %2964
        %2966 = vrot.lane.b32.xlu0 %v2861, 32
        %v2967 = vpop.permute.xlu0 %2966
        %2968 = vrot.lane.b32.xlu0 %v2862, 32
        %v2969 = vpop.permute.xlu0 %2968
        %2970 = vrot.lane.b32.xlu0 %v2863, 32
        %v2971 = vpop.permute.xlu0 %2970
        %2972 = vrot.lane.b32.xlu0 %v2864, 32
        %v2973 = vpop.permute.xlu0 %2972
        %2974 = vrot.lane.b32.xlu0 %v2865, 32
        %v2975 = vpop.permute.xlu0 %2974
        %2976 = vrot.lane.b32.xlu0 %v2866, 32
        %v2977 = vpop.permute.xlu0 %2976
        %2978 = vrot.lane.b32.xlu0 %v2867, 32
        %v2979 = vpop.permute.xlu0 %2978
        %2980 = vrot.lane.b32.xlu0 %v2868, 32
        %v2981 = vpop.permute.xlu0 %2980
        %2982 = vrot.lane.b32.xlu0 %v2869, 32
        %v2983 = vpop.permute.xlu0 %2982
        %2984 = vrot.lane.b32.xlu0 %v2870, 32
        %v2985 = vpop.permute.xlu0 %2984
        %2986 = vrot.lane.b32.xlu0 %v2871, 32
        %v2987 = vpop.permute.xlu0 %2986
        %2988 = vrot.lane.b32.xlu0 %v2872, 32
        %v2989 = vpop.permute.xlu0 %2988
        %2990 = vrot.lane.b32.xlu0 %v2873, 32
        %v2991 = vpop.permute.xlu0 %2990
        %2992 = vrot.lane.b32.xlu0 %v2874, 32
        %v2993 = vpop.permute.xlu0 %2992
        %2994 = vrot.lane.b32.xlu0 %v2875, 32
        %v2995 = vpop.permute.xlu0 %2994
        %2996 = vrot.lane.b32.xlu0 %v2876, 32
        %v2997 = vpop.permute.xlu0 %2996
        %2998 = vrot.lane.b32.xlu0 %v2877, 32
        %v2999 = vpop.permute.xlu0 %2998
        %3000 = vrot.lane.b32.xlu0 %v2878, 32
        %v3001 = vpop.permute.xlu0 %3000
        %3002 = vrot.lane.b32.xlu0 %v2879, 32
        %v3003 = vpop.permute.xlu0 %3002
        %3004 = vrot.lane.b32.xlu0 %v2880, 32
        %v3005 = vpop.permute.xlu0 %3004
        %3006 = vrot.lane.b32.xlu0 %v2881, 32
        %v3007 = vpop.permute.xlu0 %3006
        %3008 = vrot.lane.b32.xlu0 %v2882, 32
        %v3009 = vpop.permute.xlu0 %3008
        %3010 = vrot.lane.b32.xlu0 %v2883, 32
        %v3011 = vpop.permute.xlu0 %3010
        %3076 = vrot.lane.b32.xlu0 %v2884, 64
        %v3077 = vpop.permute.xlu0 %3076
        %3078 = vrot.lane.b32.xlu0 %v2885, 64
        %v3079 = vpop.permute.xlu0 %3078
        %3080 = vrot.lane.b32.xlu0 %v2886, 64
        %v3081 = vpop.permute.xlu0 %3080
        %3082 = vrot.lane.b32.xlu0 %v2887, 64
        %v3083 = vpop.permute.xlu0 %3082
        %3084 = vrot.lane.b32.xlu0 %v2888, 64
        %v3085 = vpop.permute.xlu0 %3084
        %3086 = vrot.lane.b32.xlu0 %v2889, 64
        %v3087 = vpop.permute.xlu0 %3086
        %3088 = vrot.lane.b32.xlu0 %v2890, 64
        %v3089 = vpop.permute.xlu0 %3088
        %3090 = vrot.lane.b32.xlu0 %v2891, 64
        %v3091 = vpop.permute.xlu0 %3090
        %3092 = vrot.lane.b32.xlu0 %v2892, 64
        %v3093 = vpop.permute.xlu0 %3092
        %3094 = vrot.lane.b32.xlu0 %v2893, 64
        %v3095 = vpop.permute.xlu0 %3094
        %3096 = vrot.lane.b32.xlu0 %v2894, 64
        %v3097 = vpop.permute.xlu0 %3096
        %3098 = vrot.lane.b32.xlu0 %v2895, 64
        %v3099 = vpop.permute.xlu0 %3098
        %3100 = vrot.lane.b32.xlu0 %v2896, 64
        %v3101 = vpop.permute.xlu0 %3100
        %3102 = vrot.lane.b32.xlu0 %v2897, 64
        %v3103 = vpop.permute.xlu0 %3102
        %3104 = vrot.lane.b32.xlu0 %v2898, 64
        %v3105 = vpop.permute.xlu0 %3104
        %3106 = vrot.lane.b32.xlu0 %v2899, 64
        %v3107 = vpop.permute.xlu0 %3106
        %3108 = vrot.lane.b32.xlu0 %v2900, 64
        %v3109 = vpop.permute.xlu0 %3108
        %3110 = vrot.lane.b32.xlu0 %v2901, 64
        %v3111 = vpop.permute.xlu0 %3110
        %3112 = vrot.lane.b32.xlu0 %v2902, 64
        %v3113 = vpop.permute.xlu0 %3112
        %3114 = vrot.lane.b32.xlu0 %v2903, 64
        %v3115 = vpop.permute.xlu0 %3114
        %3116 = vrot.lane.b32.xlu0 %v2904, 64
        %v3117 = vpop.permute.xlu0 %3116
        %3118 = vrot.lane.b32.xlu0 %v2905, 64
        %v3119 = vpop.permute.xlu0 %3118
        %3120 = vrot.lane.b32.xlu0 %v2906, 64
        %v3121 = vpop.permute.xlu0 %3120
        %3122 = vrot.lane.b32.xlu0 %v2907, 64
        %v3123 = vpop.permute.xlu0 %3122
        %3124 = vrot.lane.b32.xlu0 %v2908, 64
        %v3125 = vpop.permute.xlu0 %3124
        %3126 = vrot.lane.b32.xlu0 %v2909, 64
        %v3127 = vpop.permute.xlu0 %3126
        %3128 = vrot.lane.b32.xlu0 %v2910, 64
        %v3129 = vpop.permute.xlu0 %3128
        %3130 = vrot.lane.b32.xlu0 %v2911, 64
        %v3131 = vpop.permute.xlu0 %3130
        %3132 = vrot.lane.b32.xlu0 %v2912, 64
        %v3133 = vpop.permute.xlu0 %3132
        %3134 = vrot.lane.b32.xlu0 %v2913, 64
        %v3135 = vpop.permute.xlu0 %3134
        %3136 = vrot.lane.b32.xlu0 %v2914, 64
        %v3137 = vpop.permute.xlu0 %3136
        %3138 = vrot.lane.b32.xlu0 %v2915, 64
        %v3139 = vpop.permute.xlu0 %3138
        %v3172 = vsel %vm508, %v2820, %v2949
        %v3173 = vsel %vm508, %v2821, %v2951
        %v3174 = vsel %vm508, %v2822, %v2953
        %v3175 = vsel %vm508, %v2823, %v2955
        %v3176 = vsel %vm508, %v2824, %v2957
        %v3177 = vsel %vm508, %v2825, %v2959
        %v3178 = vsel %vm508, %v2826, %v2961
        %v3179 = vsel %vm508, %v2827, %v2963
        %v3180 = vsel %vm508, %v2828, %v2965
        %v3181 = vsel %vm508, %v2829, %v2967
        %v3182 = vsel %vm508, %v2830, %v2969
        %v3183 = vsel %vm508, %v2831, %v2971
        %v3184 = vsel %vm508, %v2832, %v2973
        %v3185 = vsel %vm508, %v2833, %v2975
        %v3186 = vsel %vm508, %v2834, %v2977
        %v3187 = vsel %vm508, %v2835, %v2979
        %v3188 = vsel %vm508, %v2836, %v2981
        %v3189 = vsel %vm508, %v2837, %v2983
        %v3190 = vsel %vm508, %v2838, %v2985
        %v3191 = vsel %vm508, %v2839, %v2987
        %v3192 = vsel %vm508, %v2840, %v2989
        %v3193 = vsel %vm508, %v2841, %v2991
        %v3194 = vsel %vm508, %v2842, %v2993
        %v3195 = vsel %vm508, %v2843, %v2995
        %v3196 = vsel %vm508, %v2844, %v2997
        %v3197 = vsel %vm508, %v2845, %v2999
        %v3198 = vsel %vm508, %v2846, %v3001
        %v3199 = vsel %vm508, %v2847, %v3003
        %v3200 = vsel %vm508, %v2848, %v3005
        %v3201 = vsel %vm508, %v2849, %v3007
        %v3202 = vsel %vm508, %v2850, %v3009
        %v3203 = vsel %vm508, %v2851, %v3011
        %v3204 = vsel %vm1822, %v3172, %v3077
        %v3205 = vsel %vm1822, %v3173, %v3079
        %v3206 = vsel %vm1822, %v3174, %v3081
        %v3207 = vsel %vm1822, %v3175, %v3083
        %v3208 = vsel %vm1822, %v3176, %v3085
        %v3209 = vsel %vm1822, %v3177, %v3087
        %v3210 = vsel %vm1822, %v3178, %v3089
        %v3211 = vsel %vm1822, %v3179, %v3091
        %v3212 = vsel %vm1822, %v3180, %v3093
        %v3213 = vsel %vm1822, %v3181, %v3095
        %v3214 = vsel %vm1822, %v3182, %v3097
        %v3215 = vsel %vm1822, %v3183, %v3099
        %v3216 = vsel %vm1822, %v3184, %v3101
        %v3217 = vsel %vm1822, %v3185, %v3103
        %v3218 = vsel %vm1822, %v3186, %v3105
        %v3219 = vsel %vm1822, %v3187, %v3107
        %v3220 = vsel %vm1822, %v3188, %v3109
        %v3221 = vsel %vm1822, %v3189, %v3111
        %v3222 = vsel %vm1822, %v3190, %v3113
        %v3223 = vsel %vm1822, %v3191, %v3115
        %v3224 = vsel %vm1822, %v3192, %v3117
        %v3225 = vsel %vm1822, %v3193, %v3119
        %v3226 = vsel %vm1822, %v3194, %v3121
        %v3227 = vsel %vm1822, %v3195, %v3123
        %v3228 = vsel %vm1822, %v3196, %v3125
        %v3229 = vsel %vm1822, %v3197, %v3127
        %v3230 = vsel %vm1822, %v3198, %v3129
        %v3231 = vsel %vm1822, %v3199, %v3131
        %v3232 = vsel %vm1822, %v3200, %v3133
        %v3233 = vsel %vm1822, %v3201, %v3135
        %v3234 = vsel %vm1822, %v3202, %v3137
        %v3235 = vsel %vm1822, %v3203, %v3139
        %v3236 = vpack.c.bf16 %v3205, %v3204
        %v3237 = vpack.c.bf16 %v3207, %v3206
        %v3238 = vpack.c.bf16 %v3209, %v3208
        %v3239 = vpack.c.bf16 %v3211, %v3210
        %v3240 = vpack.c.bf16 %v3213, %v3212
        %v3241 = vpack.c.bf16 %v3215, %v3214
        %v3242 = vpack.c.bf16 %v3217, %v3216
        %v3243 = vpack.c.bf16 %v3219, %v3218
        %v3244 = vpack.c.bf16 %v3221, %v3220
        %v3245 = vpack.c.bf16 %v3223, %v3222
        %v3246 = vpack.c.bf16 %v3225, %v3224
        %v3247 = vpack.c.bf16 %v3227, %v3226
        %v3248 = vpack.c.bf16 %v3229, %v3228
        %v3249 = vpack.c.bf16 %v3231, %v3230
        %v3250 = vpack.c.bf16 %v3233, %v3232
        %v3251 = vpack.c.bf16 %v3235, %v3234
        %s3252 = scalar_lea.vmem %s5, 96
        %v3253 = vld [vmem:[%s3252] sm:$0xf]
        %v3254 = vld [vmem:[%s3252 + $0x4] sm:$0xf]
        %v3255 = vld [vmem:[%s3252 + $0x8] sm:$0xf]
        %v3256 = vld [vmem:[%s3252 + $0xc] sm:$0xf]
        %v3257 = vld [vmem:[%s3252 + $0x10] sm:$0xf]
        %v3258 = vld [vmem:[%s3252 + $0x14] sm:$0xf]
        %v3259 = vld [vmem:[%s3252 + $0x18] sm:$0xf]
        %v3260 = vld [vmem:[%s3252 + $0x1c] sm:$0xf]
        %v3261 = vld [vmem:[%s3252 + $0x20] sm:$0xf]
        %v3262 = vld [vmem:[%s3252 + $0x24] sm:$0xf]
        %v3263 = vld [vmem:[%s3252 + $0x28] sm:$0xf]
        %v3264 = vld [vmem:[%s3252 + $0x2c] sm:$0xf]
        %v3277 = vunpack.c.l.b16 %v3253
        %v3278 = vunpack.c.l.b16 %v3254
        %v3279 = vunpack.c.l.b16 %v3255
        %v3280 = vunpack.c.l.b16 %v3256
        %v3281 = vunpack.c.l.b16 %v3257
        %v3282 = vunpack.c.l.b16 %v3258
        %v3283 = vunpack.c.l.b16 %v3259
        %v3284 = vunpack.c.l.b16 %v3260
        %v3285 = vunpack.c.l.b16 %v3261
        %v3286 = vunpack.c.l.b16 %v3262
        %v3287 = vunpack.c.l.b16 %v3263
        %v3288 = vunpack.c.l.b16 %v3264
        %v3289 = vpack.c.b16 %v3278, %v3277
        %v3290 = vpack.c.b16 %v3280, %v3279
        %v3291 = vpack.c.b16 %v3282, %v3281
        %v3292 = vpack.c.b16 %v3284, %v3283
        %v3293 = vpack.c.b16 %v3286, %v3285
        %v3294 = vpack.c.b16 %v3288, %v3287
        %v3302 = vsel %vm2364, %v3236, 0
        %v3305 = vsel %vm2364, %v3237, 0
        %v3308 = vsel %vm2364, %v3238, 0
        %v3311 = vsel %vm2364, %v3239, 0
        %v3314 = vsel %vm2364, %v3240, 0
        %v3317 = vsel %vm2364, %v3241, 0
        %v3320 = vsel %vm2364, %v3242, 0
        %v3323 = vsel %vm2364, %v3243, 0
        %v3326 = vsel %vm2364, %v3244, 0
        %v3329 = vsel %vm2364, %v3245, 0
        %v3332 = vsel %vm2364, %v3246, 0
        %v3335 = vsel %vm2364, %v3247, 0
        %v3338 = vsel %vm2364, %v3248, 0
        %v3341 = vsel %vm2364, %v3249, 0
        %v3344 = vsel %vm2364, %v3250, 0
        %v3347 = vsel %vm2364, %v3251, 0
        %3349 = vmatprep.subr.bf16.mxu0 0
        %3350 = vmatpush1.bf16.msra.mxu0 %v3289
        %3351 = vmatprep.subr.bf16.mxu0 0
        %3352 = vmatpush1.bf16.msra.mxu0 %v3290
        %3353 = vmatprep.subr.bf16.mxu0 0
        %3354 = vmatpush1.bf16.msra.mxu0 %v3291
        %3355 = vmatprep.subr.bf16.mxu0 0
        %3356 = vmatpush1.bf16.msra.mxu0 %v3292
        %3357 = vmatprep.subr.bf16.mxu0 0
        %3358 = vmatpush1.bf16.msra.mxu0 %v3293
        %3359 = vmatprep.subr.bf16.mxu0 0
        %3360 = vmatpush1.bf16.msra.mxu0 %v3294
        %3361 = vmatprep.subr.bf16.mxu0 0
        %3362 = vmatpush1.bf16.msra.mxu0 0
        %3363 = vmatprep.subr.bf16.mxu0 0
        %3364 = vmatpush1.bf16.msra.mxu0 0
        %3365 = vmatprep.subr.bf16.mxu0 0
        %3366 = vmatpush1.bf16.msra.mxu0 0
        %3367 = vmatprep.subr.bf16.mxu0 0
        %3368 = vmatpush1.bf16.msra.mxu0 0
        %3369 = vmatprep.subr.bf16.mxu0 0
        %3370 = vmatpush1.bf16.msra.mxu0 0
        %3371 = vmatprep.subr.bf16.mxu0 0
        %3372 = vmatpush1.bf16.msra.mxu0 0
        %3373 = vmatprep.subr.bf16.mxu0 0
        %3374 = vmatpush1.bf16.msra.mxu0 0
        %3375 = vmatprep.subr.bf16.mxu0 0
        %3376 = vmatpush1.bf16.msra.mxu0 0
        %3377 = vmatprep.subr.bf16.mxu0 0
        %3378 = vmatpush1.bf16.msra.mxu0 0
        %3379 = vmatprep.subr.bf16.mxu0 0
        %3380 = vmatpush1.bf16.msra.mxu0 0
        %3381 = vmatprep.mubr.bf16.mxu0 0
        %3382 = vmatmul.mubr.bf16.gmra.mrb[0].mxu0 %v3302
        %v3383 = vpop.f32.mrb[0].mxu0
        %v3384 = vadd.f32 0.0, %v3383
        %v3385 = vpop.f32.mrb[0].mxu0
        %v3386 = vpop.f32.mrb[0].mxu0
        %v3387 = vadd.f32 0.0, %v3386
        %v3388 = vpop.f32.mrb[0].mxu0
        %3389 = vmatprep.mubr.bf16.mxu0 0
        %3390 = vmatmul.mubr.bf16.gmra.mrb[0].mxu0 %v3305
        %v3391 = vpop.f32.mrb[0].mxu0
        %v3392 = vadd.f32 0.0, %v3391
        %v3393 = vpop.f32.mrb[0].mxu0
        %v3394 = vpop.f32.mrb[0].mxu0
        %v3395 = vadd.f32 0.0, %v3394
        %v3396 = vpop.f32.mrb[0].mxu0
        %3397 = vmatprep.mubr.bf16.mxu0 0
        %3398 = vmatmul.mubr.bf16.gmra.mrb[0].mxu0 %v3308
        %v3399 = vpop.f32.mrb[0].mxu0
        %v3400 = vadd.f32 0.0, %v3399
        %v3401 = vpop.f32.mrb[0].mxu0
        %v3402 = vpop.f32.mrb[0].mxu0
        %v3403 = vadd.f32 0.0, %v3402
        %v3404 = vpop.f32.mrb[0].mxu0
        %3405 = vmatprep.mubr.bf16.mxu0 0
        %3406 = vmatmul.mubr.bf16.gmra.mrb[0].mxu0 %v3311
        %v3407 = vpop.f32.mrb[0].mxu0
        %v3408 = vadd.f32 0.0, %v3407
        %v3409 = vpop.f32.mrb[0].mxu0
        %v3410 = vpop.f32.mrb[0].mxu0
        %v3411 = vadd.f32 0.0, %v3410
        %v3412 = vpop.f32.mrb[0].mxu0
        %3413 = vmatprep.mubr.bf16.mxu0 0
        %3414 = vmatmul.mubr.bf16.gmra.mrb[0].mxu0 %v3314
        %v3415 = vpop.f32.mrb[0].mxu0
        %v3416 = vadd.f32 0.0, %v3415
        %v3417 = vpop.f32.mrb[0].mxu0
        %v3418 = vpop.f32.mrb[0].mxu0
        %v3419 = vadd.f32 0.0, %v3418
        %v3420 = vpop.f32.mrb[0].mxu0
        %3421 = vmatprep.mubr.bf16.mxu0 0
        %3422 = vmatmul.mubr.bf16.gmra.mrb[0].mxu0 %v3317
        %v3423 = vpop.f32.mrb[0].mxu0
        %v3424 = vadd.f32 0.0, %v3423
        %v3425 = vpop.f32.mrb[0].mxu0
        %v3426 = vpop.f32.mrb[0].mxu0
        %v3427 = vadd.f32 0.0, %v3426
        %v3428 = vpop.f32.mrb[0].mxu0
        %3429 = vmatprep.mubr.bf16.mxu0 0
        %3430 = vmatmul.mubr.bf16.gmra.mrb[0].mxu0 %v3320
        %v3431 = vpop.f32.mrb[0].mxu0
        %v3432 = vadd.f32 0.0, %v3431
        %v3433 = vpop.f32.mrb[0].mxu0
        %v3434 = vpop.f32.mrb[0].mxu0
        %v3435 = vadd.f32 0.0, %v3434
        %v3436 = vpop.f32.mrb[0].mxu0
        %3437 = vmatprep.mubr.bf16.mxu0 0
        %3438 = vmatmul.mubr.bf16.gmra.mrb[0].mxu0 %v3323
        %v3439 = vpop.f32.mrb[0].mxu0
        %v3440 = vadd.f32 0.0, %v3439
        %v3441 = vpop.f32.mrb[0].mxu0
        %v3442 = vpop.f32.mrb[0].mxu0
        %v3443 = vadd.f32 0.0, %v3442
        %v3444 = vpop.f32.mrb[0].mxu0
        %3445 = vmatprep.mubr.bf16.mxu0 0
        %3446 = vmatmul.mubr.bf16.gmra.mrb[0].mxu0 %v3326
        %v3447 = vpop.f32.mrb[0].mxu0
        %v3448 = vadd.f32 0.0, %v3447
        %v3449 = vpop.f32.mrb[0].mxu0
        %v3450 = vpop.f32.mrb[0].mxu0
        %v3451 = vadd.f32 0.0, %v3450
        %v3452 = vpop.f32.mrb[0].mxu0
        %3453 = vmatprep.mubr.bf16.mxu0 0
        %3454 = vmatmul.mubr.bf16.gmra.mrb[0].mxu0 %v3329
        %v3455 = vpop.f32.mrb[0].mxu0
        %v3456 = vadd.f32 0.0, %v3455
        %v3457 = vpop.f32.mrb[0].mxu0
        %v3458 = vpop.f32.mrb[0].mxu0
        %v3459 = vadd.f32 0.0, %v3458
        %v3460 = vpop.f32.mrb[0].mxu0
        %3461 = vmatprep.mubr.bf16.mxu0 0
        %3462 = vmatmul.mubr.bf16.gmra.mrb[0].mxu0 %v3332
        %v3463 = vpop.f32.mrb[0].mxu0
        %v3464 = vadd.f32 0.0, %v3463
        %v3465 = vpop.f32.mrb[0].mxu0
        %v3466 = vpop.f32.mrb[0].mxu0
        %v3467 = vadd.f32 0.0, %v3466
        %v3468 = vpop.f32.mrb[0].mxu0
        %3469 = vmatprep.mubr.bf16.mxu0 0
        %3470 = vmatmul.mubr.bf16.gmra.mrb[0].mxu0 %v3335
        %v3471 = vpop.f32.mrb[0].mxu0
        %v3472 = vadd.f32 0.0, %v3471
        %v3473 = vpop.f32.mrb[0].mxu0
        %v3474 = vpop.f32.mrb[0].mxu0
        %v3475 = vadd.f32 0.0, %v3474
        %v3476 = vpop.f32.mrb[0].mxu0
        %3477 = vmatprep.mubr.bf16.mxu0 0
        %3478 = vmatmul.mubr.bf16.gmra.mrb[0].mxu0 %v3338
        %v3479 = vpop.f32.mrb[0].mxu0
        %v3480 = vadd.f32 0.0, %v3479
        %v3481 = vpop.f32.mrb[0].mxu0
        %v3482 = vpop.f32.mrb[0].mxu0
        %v3483 = vadd.f32 0.0, %v3482
        %v3484 = vpop.f32.mrb[0].mxu0
        %3485 = vmatprep.mubr.bf16.mxu0 0
        %3486 = vmatmul.mubr.bf16.gmra.mrb[0].mxu0 %v3341
        %v3487 = vpop.f32.mrb[0].mxu0
        %v3488 = vadd.f32 0.0, %v3487
        %v3489 = vpop.f32.mrb[0].mxu0
        %v3490 = vpop.f32.mrb[0].mxu0
        %v3491 = vadd.f32 0.0, %v3490
        %v3492 = vpop.f32.mrb[0].mxu0
        %3493 = vmatprep.mubr.bf16.mxu0 0
        %3494 = vmatmul.mubr.bf16.gmra.mrb[0].mxu0 %v3344
        %v3495 = vpop.f32.mrb[0].mxu0
        %v3496 = vadd.f32 0.0, %v3495
        %v3497 = vpop.f32.mrb[0].mxu0
        %v3498 = vpop.f32.mrb[0].mxu0
        %v3499 = vadd.f32 0.0, %v3498
        %v3500 = vpop.f32.mrb[0].mxu0
        %3501 = vmatprep.mubr.bf16.mxu0 0
        %3502 = vmatmul.mubr.bf16.gmra.mrb[0].mxu0 %v3347
        %v3503 = vpop.f32.mrb[0].mxu0
        %v3504 = vadd.f32 0.0, %v3503
        %v3505 = vpop.f32.mrb[0].mxu0
        %v3506 = vpop.f32.mrb[0].mxu0
        %v3507 = vadd.f32 0.0, %v3506
        %v3508 = vpop.f32.mrb[0].mxu0
        %3509 = vdwg.mxu0
        %v3510 = vadd.f32 %v2693, %v3384
        %v3511 = vadd.f32 %v2696, %v3387
        %v3512 = vadd.f32 %v2701, %v3392
        %v3513 = vadd.f32 %v2704, %v3395
        %v3514 = vadd.f32 %v2709, %v3400
        %v3515 = vadd.f32 %v2712, %v3403
        %v3516 = vadd.f32 %v2717, %v3408
        %v3517 = vadd.f32 %v2720, %v3411
        %v3518 = vadd.f32 %v2725, %v3416
        %v3519 = vadd.f32 %v2728, %v3419
        %v3520 = vadd.f32 %v2733, %v3424
        %v3521 = vadd.f32 %v2736, %v3427
        %v3522 = vadd.f32 %v2741, %v3432
        %v3523 = vadd.f32 %v2744, %v3435
        %v3524 = vadd.f32 %v2749, %v3440
        %v3525 = vadd.f32 %v2752, %v3443
        %v3526 = vadd.f32 %v2757, %v3448
        %v3527 = vadd.f32 %v2760, %v3451
        %v3528 = vadd.f32 %v2765, %v3456
        %v3529 = vadd.f32 %v2768, %v3459
        %v3530 = vadd.f32 %v2773, %v3464
        %v3531 = vadd.f32 %v2776, %v3467
        %v3532 = vadd.f32 %v2781, %v3472
        %v3533 = vadd.f32 %v2784, %v3475
        %v3534 = vadd.f32 %v2789, %v3480
        %v3535 = vadd.f32 %v2792, %v3483
        %v3536 = vadd.f32 %v2797, %v3488
        %v3537 = vadd.f32 %v2800, %v3491
        %v3538 = vadd.f32 %v2805, %v3496
        %v3539 = vadd.f32 %v2808, %v3499
        %v3540 = vadd.f32 %v2813, %v3504
        %v3541 = vadd.f32 %v2816, %v3507
        %v3543 = vlaneseq
        %v3544 = vshrl.u32 %v3543, 7
        %v3545 = vsub.s32 0, %v3544
        %v3546 = vrot.slane %v714, %v3545
        %v3548 = vadd.f32 %v3510, %v3546
        %v3549 = vadd.f32 %v3511, %v3546
        %v3550 = vadd.f32 %v3512, %v3546
        %v3551 = vadd.f32 %v3513, %v3546
        %v3552 = vadd.f32 %v3514, %v3546
        %v3553 = vadd.f32 %v3515, %v3546
        %v3554 = vadd.f32 %v3516, %v3546
        %v3555 = vadd.f32 %v3517, %v3546
        %v3556 = vadd.f32 %v3518, %v3546
        %v3557 = vadd.f32 %v3519, %v3546
        %v3558 = vadd.f32 %v3520, %v3546
        %v3559 = vadd.f32 %v3521, %v3546
        %v3560 = vadd.f32 %v3522, %v3546
        %v3561 = vadd.f32 %v3523, %v3546
        %v3562 = vadd.f32 %v3524, %v3546
        %v3563 = vadd.f32 %v3525, %v3546
        %v3564 = vadd.f32 %v3526, %v3546
        %v3565 = vadd.f32 %v3527, %v3546
        %v3566 = vadd.f32 %v3528, %v3546
        %v3567 = vadd.f32 %v3529, %v3546
        %v3568 = vadd.f32 %v3530, %v3546
        %v3569 = vadd.f32 %v3531, %v3546
        %v3570 = vadd.f32 %v3532, %v3546
        %v3571 = vadd.f32 %v3533, %v3546
        %v3572 = vadd.f32 %v3534, %v3546
        %v3573 = vadd.f32 %v3535, %v3546
        %v3574 = vadd.f32 %v3536, %v3546
        %v3575 = vadd.f32 %v3537, %v3546
        %v3576 = vadd.f32 %v3538, %v3546
        %v3577 = vadd.f32 %v3539, %v3546
        %v3578 = vadd.f32 %v3540, %v3546
        %v3579 = vadd.f32 %v3541, %v3546
        %v3580 = vld [vmem:[%s9] sm:$0x1]
        %v3581 = vld [vmem:[%s10] sm:$0x1]
        %v3582 = vsel %vm508, %v3548, 0.0
        %v3583 = vsel %vm508, %v3549, 0.0
        %v3584 = vadd.f32 %v3582, %v3583
        %v3585 = vsel %vm508, %v3550, 0.0
        %v3586 = vadd.f32 %v3584, %v3585
        %v3587 = vsel %vm508, %v3551, 0.0
        %v3588 = vadd.f32 %v3586, %v3587
        %v3589 = vsel %vm508, %v3552, 0.0
        %v3590 = vadd.f32 %v3588, %v3589
        %v3591 = vsel %vm508, %v3553, 0.0
        %v3592 = vadd.f32 %v3590, %v3591
        %v3593 = vsel %vm508, %v3554, 0.0
        %v3594 = vadd.f32 %v3592, %v3593
        %v3595 = vsel %vm508, %v3555, 0.0
        %v3596 = vadd.f32 %v3594, %v3595
        %v3597 = vsel %vm508, %v3556, 0.0
        %v3598 = vadd.f32 %v3596, %v3597
        %v3599 = vsel %vm508, %v3557, 0.0
        %v3600 = vadd.f32 %v3598, %v3599
        %v3601 = vsel %vm508, %v3558, 0.0
        %v3602 = vadd.f32 %v3600, %v3601
        %v3603 = vsel %vm508, %v3559, 0.0
        %v3604 = vadd.f32 %v3602, %v3603
        %v3605 = vsel %vm508, %v3560, 0.0
        %v3606 = vadd.f32 %v3604, %v3605
        %v3607 = vsel %vm508, %v3561, 0.0
        %v3608 = vadd.f32 %v3606, %v3607
        %v3609 = vsel %vm508, %v3562, 0.0
        %v3610 = vadd.f32 %v3608, %v3609
        %v3611 = vsel %vm508, %v3563, 0.0
        %v3612 = vadd.f32 %v3610, %v3611
        %v3613 = vsel %vm508, %v3564, 0.0
        %v3614 = vadd.f32 %v3612, %v3613
        %v3615 = vsel %vm508, %v3565, 0.0
        %v3616 = vadd.f32 %v3614, %v3615
        %v3617 = vsel %vm508, %v3566, 0.0
        %v3618 = vadd.f32 %v3616, %v3617
        %v3619 = vsel %vm508, %v3567, 0.0
        %v3620 = vadd.f32 %v3618, %v3619
        %v3621 = vsel %vm508, %v3568, 0.0
        %v3622 = vadd.f32 %v3620, %v3621
        %v3623 = vsel %vm508, %v3569, 0.0
        %v3624 = vadd.f32 %v3622, %v3623
        %v3625 = vsel %vm508, %v3570, 0.0
        %v3626 = vadd.f32 %v3624, %v3625
        %v3627 = vsel %vm508, %v3571, 0.0
        %v3628 = vadd.f32 %v3626, %v3627
        %v3629 = vsel %vm508, %v3572, 0.0
        %v3630 = vadd.f32 %v3628, %v3629
        %v3631 = vsel %vm508, %v3573, 0.0
        %v3632 = vadd.f32 %v3630, %v3631
        %v3633 = vsel %vm508, %v3574, 0.0
        %v3634 = vadd.f32 %v3632, %v3633
        %v3635 = vsel %vm508, %v3575, 0.0
        %v3636 = vadd.f32 %v3634, %v3635
        %v3637 = vsel %vm508, %v3576, 0.0
        %v3638 = vadd.f32 %v3636, %v3637
        %v3639 = vsel %vm508, %v3577, 0.0
        %v3640 = vadd.f32 %v3638, %v3639
        %v3641 = vsel %vm508, %v3578, 0.0
        %v3642 = vadd.f32 %v3640, %v3641
        %v3643 = vsel %vm508, %v3579, 0.0
        %v3644 = vadd.f32 %v3642, %v3643
        %v3645 = vrot.slane %v3644, 4
        %v3646 = vadd.f32 %v3644, %v3645
        %v3647 = vrot.slane %v3646, 2
        %v3648 = vadd.f32 %v3646, %v3647
        %v3649 = vrot.slane %v3648, 1
        %v3650 = vadd.f32 %v3648, %v3649
        %v3652 = vsel %vm508, %v3650, 0
        %3654 = vmatprep.subr.mxu0 0.0
        %3655 = vmatpush1.msra.mxu0 %v551
        %3656 = vmatprep.subr.mxu0 0.0
        %3657 = vmatpush1.msra.mxu0 %v552
        %3658 = vmatprep.subr.mxu0 0.0
        %3659 = vmatpush1.msra.mxu0 %v553
        %3660 = vmatprep.subr.mxu0 0.0
        %3661 = vmatpush1.msra.mxu0 %v554
        %3662 = vmatprep.subr.mxu0 0.0
        %3663 = vmatpush1.msra.mxu0 0.0
        %3664 = vmatprep.subr.mxu0 0.0
        %3665 = vmatpush1.msra.mxu0 0.0
        %3666 = vmatprep.subr.mxu0 0.0
        %3667 = vmatpush1.msra.mxu0 0.0
        %3668 = vmatprep.subr.mxu0 0.0
        %3669 = vmatpush1.msra.mxu0 0.0
        %3670 = vmatprep.subr.mxu0 0.0
        %3671 = vmatpush1.msra.mxu0 0.0
        %3672 = vmatprep.subr.mxu0 0.0
        %3673 = vmatpush1.msra.mxu0 0.0
        %3674 = vmatprep.subr.mxu0 0.0
        %3675 = vmatpush1.msra.mxu0 0.0
        %3676 = vmatprep.subr.mxu0 0.0
        %3677 = vmatpush1.msra.mxu0 0.0
        %3678 = vmatprep.subr.mxu0 0.0
        %3679 = vmatpush1.msra.mxu0 0.0
        %3680 = vmatprep.subr.mxu0 0.0
        %3681 = vmatpush1.msra.mxu0 0.0
        %3682 = vmatprep.subr.mxu0 0.0
        %3683 = vmatpush1.msra.mxu0 0.0
        %3684 = vmatprep.subr.mxu0 0.0
        %3685 = vmatpush1.msra.mxu0 0.0
        %3686 = vmatprep.subr.mxu0 0.0
        %3687 = vmatpush1.msra.mxu0 0.0
        %3688 = vmatprep.subr.mxu0 0.0
        %3689 = vmatpush1.msra.mxu0 0.0
        %3690 = vmatprep.subr.mxu0 0.0
        %3691 = vmatpush1.msra.mxu0 0.0
        %3692 = vmatprep.subr.mxu0 0.0
        %3693 = vmatpush1.msra.mxu0 0.0
        %3694 = vmatprep.subr.mxu0 0.0
        %3695 = vmatpush1.msra.mxu0 0.0
        %3696 = vmatprep.subr.mxu0 0.0
        %3697 = vmatpush1.msra.mxu0 0.0
        %3698 = vmatprep.subr.mxu0 0.0
        %3699 = vmatpush1.msra.mxu0 0.0
        %3700 = vmatprep.subr.mxu0 0.0
        %3701 = vmatpush1.msra.mxu0 0.0
        %3702 = vmatprep.subr.mxu0 0.0
        %3703 = vmatpush1.msra.mxu0 0.0
        %3704 = vmatprep.subr.mxu0 0.0
        %3705 = vmatpush1.msra.mxu0 0.0
        %3706 = vmatprep.subr.mxu0 0.0
        %3707 = vmatpush1.msra.mxu0 0.0
        %3708 = vmatprep.subr.mxu0 0.0
        %3709 = vmatpush1.msra.mxu0 0.0
        %3710 = vmatprep.subr.mxu0 0.0
        %3711 = vmatpush1.msra.mxu0 0.0
        %3712 = vmatprep.subr.mxu0 0.0
        %3713 = vmatpush1.msra.mxu0 0.0
        %3714 = vmatprep.subr.mxu0 0.0
        %3715 = vmatpush1.msra.mxu0 0.0
        %3716 = vmatprep.subr.mxu0 0.0
        %3717 = vmatpush1.msra.mxu0 0.0
        %3718 = vmatprep.mubr.f32.mxu0 0.0
        %3719 = vmatmul.mubr.f32.gmra.mrb[0].mxu0 %v3652
        %v3720 = vpop.f32.mrb[0].mxu0
        %v3721 = vadd.f32 0.0, %v3720
        %v3722 = vpop.f32.mrb[0].mxu0
        %3723 = vdwg.mxu0
        %v3724 = vlaneseq
        %v3725 = vshrl.u32 %v3724, 7
        %v3726 = vsub.s32 0, %v3725
        %v3727 = vrot.slane %v3721, %v3726
        %v3728 = vsub.f32 %v3548, %v3727
        %v3729 = vsub.f32 %v3549, %v3727
        %v3730 = vsub.f32 %v3550, %v3727
        %v3731 = vsub.f32 %v3551, %v3727
        %v3732 = vsub.f32 %v3552, %v3727
        %v3733 = vsub.f32 %v3553, %v3727
        %v3734 = vsub.f32 %v3554, %v3727
        %v3735 = vsub.f32 %v3555, %v3727
        %v3736 = vsub.f32 %v3556, %v3727
        %v3737 = vsub.f32 %v3557, %v3727
        %v3738 = vsub.f32 %v3558, %v3727
        %v3739 = vsub.f32 %v3559, %v3727
        %v3740 = vsub.f32 %v3560, %v3727
        %v3741 = vsub.f32 %v3561, %v3727
        %v3742 = vsub.f32 %v3562, %v3727
        %v3743 = vsub.f32 %v3563, %v3727
        %v3744 = vsub.f32 %v3564, %v3727
        %v3745 = vsub.f32 %v3565, %v3727
        %v3746 = vsub.f32 %v3566, %v3727
        %v3747 = vsub.f32 %v3567, %v3727
        %v3748 = vsub.f32 %v3568, %v3727
        %v3749 = vsub.f32 %v3569, %v3727
        %v3750 = vsub.f32 %v3570, %v3727
        %v3751 = vsub.f32 %v3571, %v3727
        %v3752 = vsub.f32 %v3572, %v3727
        %v3753 = vsub.f32 %v3573, %v3727
        %v3754 = vsub.f32 %v3574, %v3727
        %v3755 = vsub.f32 %v3575, %v3727
        %v3756 = vsub.f32 %v3576, %v3727
        %v3757 = vsub.f32 %v3577, %v3727
        %v3758 = vsub.f32 %v3578, %v3727
        %v3759 = vsub.f32 %v3579, %v3727
        %v3760 = vmul.f32 %v3728, %v3728
        %v3761 = vmul.f32 %v3729, %v3729
        %v3762 = vmul.f32 %v3730, %v3730
        %v3763 = vmul.f32 %v3731, %v3731
        %v3764 = vmul.f32 %v3732, %v3732
        %v3765 = vmul.f32 %v3733, %v3733
        %v3766 = vmul.f32 %v3734, %v3734
        %v3767 = vmul.f32 %v3735, %v3735
        %v3768 = vmul.f32 %v3736, %v3736
        %v3769 = vmul.f32 %v3737, %v3737
        %v3770 = vmul.f32 %v3738, %v3738
        %v3771 = vmul.f32 %v3739, %v3739
        %v3772 = vmul.f32 %v3740, %v3740
        %v3773 = vmul.f32 %v3741, %v3741
        %v3774 = vmul.f32 %v3742, %v3742
        %v3775 = vmul.f32 %v3743, %v3743
        %v3776 = vmul.f32 %v3744, %v3744
        %v3777 = vmul.f32 %v3745, %v3745
        %v3778 = vmul.f32 %v3746, %v3746
        %v3779 = vmul.f32 %v3747, %v3747
        %v3780 = vmul.f32 %v3748, %v3748
        %v3781 = vmul.f32 %v3749, %v3749
        %v3782 = vmul.f32 %v3750, %v3750
        %v3783 = vmul.f32 %v3751, %v3751
        %v3784 = vmul.f32 %v3752, %v3752
        %v3785 = vmul.f32 %v3753, %v3753
        %v3786 = vmul.f32 %v3754, %v3754
        %v3787 = vmul.f32 %v3755, %v3755
        %v3788 = vmul.f32 %v3756, %v3756
        %v3789 = vmul.f32 %v3757, %v3757
        %v3790 = vmul.f32 %v3758, %v3758
        %v3791 = vmul.f32 %v3759, %v3759
        %v3792 = vsel %vm508, %v3760, 0.0
        %v3793 = vsel %vm508, %v3761, 0.0
        %v3794 = vadd.f32 %v3792, %v3793
        %v3795 = vsel %vm508, %v3762, 0.0
        %v3796 = vadd.f32 %v3794, %v3795
        %v3797 = vsel %vm508, %v3763, 0.0
        %v3798 = vadd.f32 %v3796, %v3797
        %v3799 = vsel %vm508, %v3764, 0.0
        %v3800 = vadd.f32 %v3798, %v3799
        %v3801 = vsel %vm508, %v3765, 0.0
        %v3802 = vadd.f32 %v3800, %v3801
        %v3803 = vsel %vm508, %v3766, 0.0
        %v3804 = vadd.f32 %v3802, %v3803
        %v3805 = vsel %vm508, %v3767, 0.0
        %v3806 = vadd.f32 %v3804, %v3805
        %v3807 = vsel %vm508, %v3768, 0.0
        %v3808 = vadd.f32 %v3806, %v3807
        %v3809 = vsel %vm508, %v3769, 0.0
        %v3810 = vadd.f32 %v3808, %v3809
        %v3811 = vsel %vm508, %v3770, 0.0
        %v3812 = vadd.f32 %v3810, %v3811
        %v3813 = vsel %vm508, %v3771, 0.0
        %v3814 = vadd.f32 %v3812, %v3813
        %v3815 = vsel %vm508, %v3772, 0.0
        %v3816 = vadd.f32 %v3814, %v3815
        %v3817 = vsel %vm508, %v3773, 0.0
        %v3818 = vadd.f32 %v3816, %v3817
        %v3819 = vsel %vm508, %v3774, 0.0
        %v3820 = vadd.f32 %v3818, %v3819
        %v3821 = vsel %vm508, %v3775, 0.0
        %v3822 = vadd.f32 %v3820, %v3821
        %v3823 = vsel %vm508, %v3776, 0.0
        %v3824 = vadd.f32 %v3822, %v3823
        %v3825 = vsel %vm508, %v3777, 0.0
        %v3826 = vadd.f32 %v3824, %v3825
        %v3827 = vsel %vm508, %v3778, 0.0
        %v3828 = vadd.f32 %v3826, %v3827
        %v3829 = vsel %vm508, %v3779, 0.0
        %v3830 = vadd.f32 %v3828, %v3829
        %v3831 = vsel %vm508, %v3780, 0.0
        %v3832 = vadd.f32 %v3830, %v3831
        %v3833 = vsel %vm508, %v3781, 0.0
        %v3834 = vadd.f32 %v3832, %v3833
        %v3835 = vsel %vm508, %v3782, 0.0
        %v3836 = vadd.f32 %v3834, %v3835
        %v3837 = vsel %vm508, %v3783, 0.0
        %v3838 = vadd.f32 %v3836, %v3837
        %v3839 = vsel %vm508, %v3784, 0.0
        %v3840 = vadd.f32 %v3838, %v3839
        %v3841 = vsel %vm508, %v3785, 0.0
        %v3842 = vadd.f32 %v3840, %v3841
        %v3843 = vsel %vm508, %v3786, 0.0
        %v3844 = vadd.f32 %v3842, %v3843
        %v3845 = vsel %vm508, %v3787, 0.0
        %v3846 = vadd.f32 %v3844, %v3845
        %v3847 = vsel %vm508, %v3788, 0.0
        %v3848 = vadd.f32 %v3846, %v3847
        %v3849 = vsel %vm508, %v3789, 0.0
        %v3850 = vadd.f32 %v3848, %v3849
        %v3851 = vsel %vm508, %v3790, 0.0
        %v3852 = vadd.f32 %v3850, %v3851
        %v3853 = vsel %vm508, %v3791, 0.0
        %v3854 = vadd.f32 %v3852, %v3853
        %v3855 = vrot.slane %v3854, 4
        %v3856 = vadd.f32 %v3854, %v3855
        %v3857 = vrot.slane %v3856, 2
        %v3858 = vadd.f32 %v3856, %v3857
        %v3859 = vrot.slane %v3858, 1
        %v3860 = vadd.f32 %v3858, %v3859
        %v3862 = vsel %vm508, %v3860, 0
        %3864 = vmatprep.subr.mxu0 0.0
        %3865 = vmatpush1.msra.mxu0 %v551
        %3866 = vmatprep.subr.mxu0 0.0
        %3867 = vmatpush1.msra.mxu0 %v552
        %3868 = vmatprep.subr.mxu0 0.0
        %3869 = vmatpush1.msra.mxu0 %v553
        %3870 = vmatprep.subr.mxu0 0.0
        %3871 = vmatpush1.msra.mxu0 %v554
        %3872 = vmatprep.subr.mxu0 0.0
        %3873 = vmatpush1.msra.mxu0 0.0
        %3874 = vmatprep.subr.mxu0 0.0
        %3875 = vmatpush1.msra.mxu0 0.0
        %3876 = vmatprep.subr.mxu0 0.0
        %3877 = vmatpush1.msra.mxu0 0.0
        %3878 = vmatprep.subr.mxu0 0.0
        %3879 = vmatpush1.msra.mxu0 0.0
        %3880 = vmatprep.subr.mxu0 0.0
        %3881 = vmatpush1.msra.mxu0 0.0
        %3882 = vmatprep.subr.mxu0 0.0
        %3883 = vmatpush1.msra.mxu0 0.0
        %3884 = vmatprep.subr.mxu0 0.0
        %3885 = vmatpush1.msra.mxu0 0.0
        %3886 = vmatprep.subr.mxu0 0.0
        %3887 = vmatpush1.msra.mxu0 0.0
        %3888 = vmatprep.subr.mxu0 0.0
        %3889 = vmatpush1.msra.mxu0 0.0
        %3890 = vmatprep.subr.mxu0 0.0
        %3891 = vmatpush1.msra.mxu0 0.0
        %3892 = vmatprep.subr.mxu0 0.0
        %3893 = vmatpush1.msra.mxu0 0.0
        %3894 = vmatprep.subr.mxu0 0.0
        %3895 = vmatpush1.msra.mxu0 0.0
        %3896 = vmatprep.subr.mxu0 0.0
        %3897 = vmatpush1.msra.mxu0 0.0
        %3898 = vmatprep.subr.mxu0 0.0
        %3899 = vmatpush1.msra.mxu0 0.0
        %3900 = vmatprep.subr.mxu0 0.0
        %3901 = vmatpush1.msra.mxu0 0.0
        %3902 = vmatprep.subr.mxu0 0.0
        %3903 = vmatpush1.msra.mxu0 0.0
        %3904 = vmatprep.subr.mxu0 0.0
        %3905 = vmatpush1.msra.mxu0 0.0
        %3906 = vmatprep.subr.mxu0 0.0
        %3907 = vmatpush1.msra.mxu0 0.0
        %3908 = vmatprep.subr.mxu0 0.0
        %3909 = vmatpush1.msra.mxu0 0.0
        %3910 = vmatprep.subr.mxu0 0.0
        %3911 = vmatpush1.msra.mxu0 0.0
        %3912 = vmatprep.subr.mxu0 0.0
        %3913 = vmatpush1.msra.mxu0 0.0
        %3914 = vmatprep.subr.mxu0 0.0
        %3915 = vmatpush1.msra.mxu0 0.0
        %3916 = vmatprep.subr.mxu0 0.0
        %3917 = vmatpush1.msra.mxu0 0.0
        %3918 = vmatprep.subr.mxu0 0.0
        %3919 = vmatpush1.msra.mxu0 0.0
        %3920 = vmatprep.subr.mxu0 0.0
        %3921 = vmatpush1.msra.mxu0 0.0
        %3922 = vmatprep.subr.mxu0 0.0
        %3923 = vmatpush1.msra.mxu0 0.0
        %3924 = vmatprep.subr.mxu0 0.0
        %3925 = vmatpush1.msra.mxu0 0.0
        %3926 = vmatprep.subr.mxu0 0.0
        %3927 = vmatpush1.msra.mxu0 0.0
        %3928 = vmatprep.mubr.f32.mxu0 0.0
        %3929 = vmatmul.mubr.f32.gmra.mrb[0].mxu0 %v3862
        %v3930 = vpop.f32.mrb[0].mxu0
        %v3931 = vadd.f32 1e-06, %v3930
        %v3932 = vpop.f32.mrb[0].mxu0
        %3933 = vdwg.mxu0
        %v3934 = vrsqrt.pop %v3931
        %v3935 = vlaneseq
        %v3936 = vshrl.u32 %v3935, 7
        %v3937 = vsub.s32 0, %v3936
        %v3938 = vrot.slane %v3934, %v3937
        %v3939 = vmul.f32 %v3728, %v3938
        %v3940 = vmul.f32 %v3729, %v3938
        %v3941 = vmul.f32 %v3730, %v3938
        %v3942 = vmul.f32 %v3731, %v3938
        %v3943 = vmul.f32 %v3732, %v3938
        %v3944 = vmul.f32 %v3733, %v3938
        %v3945 = vmul.f32 %v3734, %v3938
        %v3946 = vmul.f32 %v3735, %v3938
        %v3947 = vmul.f32 %v3736, %v3938
        %v3948 = vmul.f32 %v3737, %v3938
        %v3949 = vmul.f32 %v3738, %v3938
        %v3950 = vmul.f32 %v3739, %v3938
        %v3951 = vmul.f32 %v3740, %v3938
        %v3952 = vmul.f32 %v3741, %v3938
        %v3953 = vmul.f32 %v3742, %v3938
        %v3954 = vmul.f32 %v3743, %v3938
        %v3955 = vmul.f32 %v3744, %v3938
        %v3956 = vmul.f32 %v3745, %v3938
        %v3957 = vmul.f32 %v3746, %v3938
        %v3958 = vmul.f32 %v3747, %v3938
        %v3959 = vmul.f32 %v3748, %v3938
        %v3960 = vmul.f32 %v3749, %v3938
        %v3961 = vmul.f32 %v3750, %v3938
        %v3962 = vmul.f32 %v3751, %v3938
        %v3963 = vmul.f32 %v3752, %v3938
        %v3964 = vmul.f32 %v3753, %v3938
        %v3965 = vmul.f32 %v3754, %v3938
        %v3966 = vmul.f32 %v3755, %v3938
        %v3967 = vmul.f32 %v3756, %v3938
        %v3968 = vmul.f32 %v3757, %v3938
        %v3969 = vmul.f32 %v3758, %v3938
        %v3970 = vmul.f32 %v3759, %v3938
        %v3972 = vlaneseq
        %v3973 = vshrl.u32 %v3972, 7
        %v3974 = vsub.s32 0, %v3973
        %v3975 = vrot.slane %v3580, %v3974
        %v3977 = vmul.f32 %v3939, %v3975
        %v3978 = vmul.f32 %v3940, %v3975
        %v3979 = vmul.f32 %v3941, %v3975
        %v3980 = vmul.f32 %v3942, %v3975
        %v3981 = vmul.f32 %v3943, %v3975
        %v3982 = vmul.f32 %v3944, %v3975
        %v3983 = vmul.f32 %v3945, %v3975
        %v3984 = vmul.f32 %v3946, %v3975
        %v3985 = vmul.f32 %v3947, %v3975
        %v3986 = vmul.f32 %v3948, %v3975
        %v3987 = vmul.f32 %v3949, %v3975
        %v3988 = vmul.f32 %v3950, %v3975
        %v3989 = vmul.f32 %v3951, %v3975
        %v3990 = vmul.f32 %v3952, %v3975
        %v3991 = vmul.f32 %v3953, %v3975
        %v3992 = vmul.f32 %v3954, %v3975
        %v3993 = vmul.f32 %v3955, %v3975
        %v3994 = vmul.f32 %v3956, %v3975
        %v3995 = vmul.f32 %v3957, %v3975
        %v3996 = vmul.f32 %v3958, %v3975
        %v3997 = vmul.f32 %v3959, %v3975
        %v3998 = vmul.f32 %v3960, %v3975
        %v3999 = vmul.f32 %v3961, %v3975
        %v4000 = vmul.f32 %v3962, %v3975
        %v4001 = vmul.f32 %v3963, %v3975
        %v4002 = vmul.f32 %v3964, %v3975
        %v4003 = vmul.f32 %v3965, %v3975
        %v4004 = vmul.f32 %v3966, %v3975
        %v4005 = vmul.f32 %v3967, %v3975
        %v4006 = vmul.f32 %v3968, %v3975
        %v4007 = vmul.f32 %v3969, %v3975
        %v4008 = vmul.f32 %v3970, %v3975
        %v4010 = vlaneseq
        %v4011 = vshrl.u32 %v4010, 7
        %v4012 = vsub.s32 0, %v4011
        %v4013 = vrot.slane %v3581, %v4012
        %v4015 = vadd.f32 %v3977, %v4013
        %v4016 = vadd.f32 %v3978, %v4013
        %v4017 = vadd.f32 %v3979, %v4013
        %v4018 = vadd.f32 %v3980, %v4013
        %v4019 = vadd.f32 %v3981, %v4013
        %v4020 = vadd.f32 %v3982, %v4013
        %v4021 = vadd.f32 %v3983, %v4013
        %v4022 = vadd.f32 %v3984, %v4013
        %v4023 = vadd.f32 %v3985, %v4013
        %v4024 = vadd.f32 %v3986, %v4013
        %v4025 = vadd.f32 %v3987, %v4013
        %v4026 = vadd.f32 %v3988, %v4013
        %v4027 = vadd.f32 %v3989, %v4013
        %v4028 = vadd.f32 %v3990, %v4013
        %v4029 = vadd.f32 %v3991, %v4013
        %v4030 = vadd.f32 %v3992, %v4013
        %v4031 = vadd.f32 %v3993, %v4013
        %v4032 = vadd.f32 %v3994, %v4013
        %v4033 = vadd.f32 %v3995, %v4013
        %v4034 = vadd.f32 %v3996, %v4013
        %v4035 = vadd.f32 %v3997, %v4013
        %v4036 = vadd.f32 %v3998, %v4013
        %v4037 = vadd.f32 %v3999, %v4013
        %v4038 = vadd.f32 %v4000, %v4013
        %v4039 = vadd.f32 %v4001, %v4013
        %v4040 = vadd.f32 %v4002, %v4013
        %v4041 = vadd.f32 %v4003, %v4013
        %v4042 = vadd.f32 %v4004, %v4013
        %v4043 = vadd.f32 %v4005, %v4013
        %v4044 = vadd.f32 %v4006, %v4013
        %v4045 = vadd.f32 %v4007, %v4013
        %v4046 = vadd.f32 %v4008, %v4013
        %v4047 = vxor.u32 %v4015, 2147483648
        %v4048 = vxor.u32 %v4016, 2147483648
        %v4049 = vxor.u32 %v4017, 2147483648
        %v4050 = vxor.u32 %v4018, 2147483648
        %v4051 = vxor.u32 %v4019, 2147483648
        %v4052 = vxor.u32 %v4020, 2147483648
        %v4053 = vxor.u32 %v4021, 2147483648
        %v4054 = vxor.u32 %v4022, 2147483648
        %v4055 = vxor.u32 %v4023, 2147483648
        %v4056 = vxor.u32 %v4024, 2147483648
        %v4057 = vxor.u32 %v4025, 2147483648
        %v4058 = vxor.u32 %v4026, 2147483648
        %v4059 = vxor.u32 %v4027, 2147483648
        %v4060 = vxor.u32 %v4028, 2147483648
        %v4061 = vxor.u32 %v4029, 2147483648
        %v4062 = vxor.u32 %v4030, 2147483648
        %v4063 = vxor.u32 %v4031, 2147483648
        %v4064 = vxor.u32 %v4032, 2147483648
        %v4065 = vxor.u32 %v4033, 2147483648
        %v4066 = vxor.u32 %v4034, 2147483648
        %v4067 = vxor.u32 %v4035, 2147483648
        %v4068 = vxor.u32 %v4036, 2147483648
        %v4069 = vxor.u32 %v4037, 2147483648
        %v4070 = vxor.u32 %v4038, 2147483648
        %v4071 = vxor.u32 %v4039, 2147483648
        %v4072 = vxor.u32 %v4040, 2147483648
        %v4073 = vxor.u32 %v4041, 2147483648
        %v4074 = vxor.u32 %v4042, 2147483648
        %v4075 = vxor.u32 %v4043, 2147483648
        %v4076 = vxor.u32 %v4044, 2147483648
        %v4077 = vxor.u32 %v4045, 2147483648
        %v4078 = vxor.u32 %v4046, 2147483648
        %v4079 = vmul.f32 %v4047, 1.442695
        %v4080 = vpow.pop %v4079
        %v4081 = vmul.f32 %v4048, 1.442695
        %v4082 = vpow.pop %v4081
        %v4083 = vmul.f32 %v4049, 1.442695
        %v4084 = vpow.pop %v4083
        %v4085 = vmul.f32 %v4050, 1.442695
        %v4086 = vpow.pop %v4085
        %v4087 = vmul.f32 %v4051, 1.442695
        %v4088 = vpow.pop %v4087
        %v4089 = vmul.f32 %v4052, 1.442695
        %v4090 = vpow.pop %v4089
        %v4091 = vmul.f32 %v4053, 1.442695
        %v4092 = vpow.pop %v4091
        %v4093 = vmul.f32 %v4054, 1.442695
        %v4094 = vpow.pop %v4093
        %v4095 = vmul.f32 %v4055, 1.442695
        %v4096 = vpow.pop %v4095
        %v4097 = vmul.f32 %v4056, 1.442695
        %v4098 = vpow.pop %v4097
        %v4099 = vmul.f32 %v4057, 1.442695
        %v4100 = vpow.pop %v4099
        %v4101 = vmul.f32 %v4058, 1.442695
        %v4102 = vpow.pop %v4101
        %v4103 = vmul.f32 %v4059, 1.442695
        %v4104 = vpow.pop %v4103
        %v4105 = vmul.f32 %v4060, 1.442695
        %v4106 = vpow.pop %v4105
        %v4107 = vmul.f32 %v4061, 1.442695
        %v4108 = vpow.pop %v4107
        %v4109 = vmul.f32 %v4062, 1.442695
        %v4110 = vpow.pop %v4109
        %v4111 = vmul.f32 %v4063, 1.442695
        %v4112 = vpow.pop %v4111
        %v4113 = vmul.f32 %v4064, 1.442695
        %v4114 = vpow.pop %v4113
        %v4115 = vmul.f32 %v4065, 1.442695
        %v4116 = vpow.pop %v4115
        %v4117 = vmul.f32 %v4066, 1.442695
        %v4118 = vpow.pop %v4117
        %v4119 = vmul.f32 %v4067, 1.442695
        %v4120 = vpow.pop %v4119
        %v4121 = vmul.f32 %v4068, 1.442695
        %v4122 = vpow.pop %v4121
        %v4123 = vmul.f32 %v4069, 1.442695
        %v4124 = vpow.pop %v4123
        %v4125 = vmul.f32 %v4070, 1.442695
        %v4126 = vpow.pop %v4125
        %v4127 = vmul.f32 %v4071, 1.442695
        %v4128 = vpow.pop %v4127
        %v4129 = vmul.f32 %v4072, 1.442695
        %v4130 = vpow.pop %v4129
        %v4131 = vmul.f32 %v4073, 1.442695
        %v4132 = vpow.pop %v4131
        %v4133 = vmul.f32 %v4074, 1.442695
        %v4134 = vpow.pop %v4133
        %v4135 = vmul.f32 %v4075, 1.442695
        %v4136 = vpow.pop %v4135
        %v4137 = vmul.f32 %v4076, 1.442695
        %v4138 = vpow.pop %v4137
        %v4139 = vmul.f32 %v4077, 1.442695
        %v4140 = vpow.pop %v4139
        %v4141 = vmul.f32 %v4078, 1.442695
        %v4142 = vpow.pop %v4141
        %v4143 = vadd.f32 %v4080, 1.0
        %v4144 = vadd.f32 %v4082, 1.0
        %v4145 = vadd.f32 %v4084, 1.0
        %v4146 = vadd.f32 %v4086, 1.0
        %v4147 = vadd.f32 %v4088, 1.0
        %v4148 = vadd.f32 %v4090, 1.0
        %v4149 = vadd.f32 %v4092, 1.0
        %v4150 = vadd.f32 %v4094, 1.0
        %v4151 = vadd.f32 %v4096, 1.0
        %v4152 = vadd.f32 %v4098, 1.0
        %v4153 = vadd.f32 %v4100, 1.0
        %v4154 = vadd.f32 %v4102, 1.0
        %v4155 = vadd.f32 %v4104, 1.0
        %v4156 = vadd.f32 %v4106, 1.0
        %v4157 = vadd.f32 %v4108, 1.0
        %v4158 = vadd.f32 %v4110, 1.0
        %v4159 = vadd.f32 %v4112, 1.0
        %v4160 = vadd.f32 %v4114, 1.0
        %v4161 = vadd.f32 %v4116, 1.0
        %v4162 = vadd.f32 %v4118, 1.0
        %v4163 = vadd.f32 %v4120, 1.0
        %v4164 = vadd.f32 %v4122, 1.0
        %v4165 = vadd.f32 %v4124, 1.0
        %v4166 = vadd.f32 %v4126, 1.0
        %v4167 = vadd.f32 %v4128, 1.0
        %v4168 = vadd.f32 %v4130, 1.0
        %v4169 = vadd.f32 %v4132, 1.0
        %v4170 = vadd.f32 %v4134, 1.0
        %v4171 = vadd.f32 %v4136, 1.0
        %v4172 = vadd.f32 %v4138, 1.0
        %v4173 = vadd.f32 %v4140, 1.0
        %v4174 = vadd.f32 %v4142, 1.0
        %v4175 = vrcp.pop %v4143
        %v4176 = vmul.f32 1.0, %v4175
        %v4177 = vrcp.pop %v4144
        %v4178 = vmul.f32 1.0, %v4177
        %v4179 = vrcp.pop %v4145
        %v4180 = vmul.f32 1.0, %v4179
        %v4181 = vrcp.pop %v4146
        %v4182 = vmul.f32 1.0, %v4181
        %v4183 = vrcp.pop %v4147
        %v4184 = vmul.f32 1.0, %v4183
        %v4185 = vrcp.pop %v4148
        %v4186 = vmul.f32 1.0, %v4185
        %v4187 = vrcp.pop %v4149
        %v4188 = vmul.f32 1.0, %v4187
        %v4189 = vrcp.pop %v4150
        %v4190 = vmul.f32 1.0, %v4189
        %v4191 = vrcp.pop %v4151
        %v4192 = vmul.f32 1.0, %v4191
        %v4193 = vrcp.pop %v4152
        %v4194 = vmul.f32 1.0, %v4193
        %v4195 = vrcp.pop %v4153
        %v4196 = vmul.f32 1.0, %v4195
        %v4197 = vrcp.pop %v4154
        %v4198 = vmul.f32 1.0, %v4197
        %v4199 = vrcp.pop %v4155
        %v4200 = vmul.f32 1.0, %v4199
        %v4201 = vrcp.pop %v4156
        %v4202 = vmul.f32 1.0, %v4201
        %v4203 = vrcp.pop %v4157
        %v4204 = vmul.f32 1.0, %v4203
        %v4205 = vrcp.pop %v4158
        %v4206 = vmul.f32 1.0, %v4205
        %v4207 = vrcp.pop %v4159
        %v4208 = vmul.f32 1.0, %v4207
        %v4209 = vrcp.pop %v4160
        %v4210 = vmul.f32 1.0, %v4209
        %v4211 = vrcp.pop %v4161
        %v4212 = vmul.f32 1.0, %v4211
        %v4213 = vrcp.pop %v4162
        %v4214 = vmul.f32 1.0, %v4213
        %v4215 = vrcp.pop %v4163
        %v4216 = vmul.f32 1.0, %v4215
        %v4217 = vrcp.pop %v4164
        %v4218 = vmul.f32 1.0, %v4217
        %v4219 = vrcp.pop %v4165
        %v4220 = vmul.f32 1.0, %v4219
        %v4221 = vrcp.pop %v4166
        %v4222 = vmul.f32 1.0, %v4221
        %v4223 = vrcp.pop %v4167
        %v4224 = vmul.f32 1.0, %v4223
        %v4225 = vrcp.pop %v4168
        %v4226 = vmul.f32 1.0, %v4225
        %v4227 = vrcp.pop %v4169
        %v4228 = vmul.f32 1.0, %v4227
        %v4229 = vrcp.pop %v4170
        %v4230 = vmul.f32 1.0, %v4229
        %v4231 = vrcp.pop %v4171
        %v4232 = vmul.f32 1.0, %v4231
        %v4233 = vrcp.pop %v4172
        %v4234 = vmul.f32 1.0, %v4233
        %v4235 = vrcp.pop %v4173
        %v4236 = vmul.f32 1.0, %v4235
        %v4237 = vrcp.pop %v4174
        %v4238 = vmul.f32 1.0, %v4237
        %v4239 = vmul.f32 %v4015, %v4176
        %v4240 = vmul.f32 %v4016, %v4178
        %v4241 = vmul.f32 %v4017, %v4180
        %v4242 = vmul.f32 %v4018, %v4182
        %v4243 = vmul.f32 %v4019, %v4184
        %v4244 = vmul.f32 %v4020, %v4186
        %v4245 = vmul.f32 %v4021, %v4188
        %v4246 = vmul.f32 %v4022, %v4190
        %v4247 = vmul.f32 %v4023, %v4192
        %v4248 = vmul.f32 %v4024, %v4194
        %v4249 = vmul.f32 %v4025, %v4196
        %v4250 = vmul.f32 %v4026, %v4198
        %v4251 = vmul.f32 %v4027, %v4200
        %v4252 = vmul.f32 %v4028, %v4202
        %v4253 = vmul.f32 %v4029, %v4204
        %v4254 = vmul.f32 %v4030, %v4206
        %v4255 = vmul.f32 %v4031, %v4208
        %v4256 = vmul.f32 %v4032, %v4210
        %v4257 = vmul.f32 %v4033, %v4212
        %v4258 = vmul.f32 %v4034, %v4214
        %v4259 = vmul.f32 %v4035, %v4216
        %v4260 = vmul.f32 %v4036, %v4218
        %v4261 = vmul.f32 %v4037, %v4220
        %v4262 = vmul.f32 %v4038, %v4222
        %v4263 = vmul.f32 %v4039, %v4224
        %v4264 = vmul.f32 %v4040, %v4226
        %v4265 = vmul.f32 %v4041, %v4228
        %v4266 = vmul.f32 %v4042, %v4230
        %v4267 = vmul.f32 %v4043, %v4232
        %v4268 = vmul.f32 %v4044, %v4234
        %v4269 = vmul.f32 %v4045, %v4236
        %v4270 = vmul.f32 %v4046, %v4238
        %v4271 = vld [vmem:[%s12] sm:$0x1]
        %4272 = vst.msk [vmem:[%s517 + $0x1] sm:$0xff] %vm508, %v4239
        %4273 = vst.msk [vmem:[%s517 + $0x9] sm:$0xff] %vm508, %v4240
        %4274 = vst.msk [vmem:[%s517 + $0x19] sm:$0xff] %vm508, %v4241
        %4275 = vst.msk [vmem:[%s517 + $0x21] sm:$0xff] %vm508, %v4242
        %4276 = vst.msk [vmem:[%s517 + $0x31] sm:$0xff] %vm508, %v4243
        %4277 = vst.msk [vmem:[%s517 + $0x39] sm:$0xff] %vm508, %v4244
        %4278 = vst.msk [vmem:[%s517 + $0x49] sm:$0xff] %vm508, %v4245
        %4279 = vst.msk [vmem:[%s517 + $0x51] sm:$0xff] %vm508, %v4246
        %4280 = vst.msk [vmem:[%s517 + $0x61] sm:$0xff] %vm508, %v4247
        %4281 = vst.msk [vmem:[%s517 + $0x69] sm:$0xff] %vm508, %v4248
        %4282 = vst.msk [vmem:[%s517 + $0x79] sm:$0xff] %vm508, %v4249
        %4283 = vst.msk [vmem:[%s517 + $0x81] sm:$0xff] %vm508, %v4250
        %4284 = vst.msk [vmem:[%s517 + $0x91] sm:$0xff] %vm508, %v4251
        %4285 = vst.msk [vmem:[%s517 + $0x99] sm:$0xff] %vm508, %v4252
        %4286 = vst.msk [vmem:[%s517 + $0xa9] sm:$0xff] %vm508, %v4253
        %4287 = vst.msk [vmem:[%s517 + $0xb1] sm:$0xff] %vm508, %v4254
        %4288 = vst.msk [vmem:[%s517 + $0xc1] sm:$0xff] %vm508, %v4255
        %4289 = vst.msk [vmem:[%s517 + $0xc9] sm:$0xff] %vm508, %v4256
        %4290 = vst.msk [vmem:[%s517 + $0xd9] sm:$0xff] %vm508, %v4257
        %4291 = vst.msk [vmem:[%s517 + $0xe1] sm:$0xff] %vm508, %v4258
        %4292 = vst.msk [vmem:[%s517 + $0xf1] sm:$0xff] %vm508, %v4259
        %4293 = vst.msk [vmem:[%s517 + $0xf9] sm:$0xff] %vm508, %v4260
        %4294 = vst.msk [vmem:[%s517 + $0x109] sm:$0xff] %vm508, %v4261
        %4295 = vst.msk [vmem:[%s517 + $0x111] sm:$0xff] %vm508, %v4262
        %4296 = vst.msk [vmem:[%s517 + $0x121] sm:$0xff] %vm508, %v4263
        %4297 = vst.msk [vmem:[%s517 + $0x129] sm:$0xff] %vm508, %v4264
        %4298 = vst.msk [vmem:[%s517 + $0x139] sm:$0xff] %vm508, %v4265
        %4299 = vst.msk [vmem:[%s517 + $0x141] sm:$0xff] %vm508, %v4266
        %4300 = vst.msk [vmem:[%s517 + $0x151] sm:$0xff] %vm508, %v4267
        %4301 = vst.msk [vmem:[%s517 + $0x159] sm:$0xff] %vm508, %v4268
        %4302 = vst.msk [vmem:[%s517 + $0x169] sm:$0xff] %vm508, %v4269
        %4303 = vst.msk [vmem:[%s517 + $0x171] sm:$0xff] %vm508, %v4270
        %v4304 = vld [vmem:[#allocation2] sm:$0xff]
        %v4305 = vld [vmem:[#allocation2 + $0x8] sm:$0xff]
        %v4306 = vld [vmem:[#allocation2 + $0x18] sm:$0xff]
        %v4307 = vld [vmem:[#allocation2 + $0x20] sm:$0xff]
        %v4308 = vld [vmem:[#allocation2 + $0x30] sm:$0xff]
        %v4309 = vld [vmem:[#allocation2 + $0x38] sm:$0xff]
        %v4310 = vld [vmem:[#allocation2 + $0x48] sm:$0xff]
        %v4311 = vld [vmem:[#allocation2 + $0x50] sm:$0xff]
        %v4312 = vld [vmem:[#allocation2 + $0x60] sm:$0xff]
        %v4313 = vld [vmem:[#allocation2 + $0x68] sm:$0xff]
        %v4314 = vld [vmem:[#allocation2 + $0x78] sm:$0xff]
        %v4315 = vld [vmem:[#allocation2 + $0x80] sm:$0xff]
        %v4316 = vld [vmem:[#allocation2 + $0x90] sm:$0xff]
        %v4317 = vld [vmem:[#allocation2 + $0x98] sm:$0xff]
        %v4318 = vld [vmem:[#allocation2 + $0xa8] sm:$0xff]
        %v4319 = vld [vmem:[#allocation2 + $0xb0] sm:$0xff]
        %v4320 = vld [vmem:[#allocation2 + $0xc0] sm:$0xff]
        %v4321 = vld [vmem:[#allocation2 + $0xc8] sm:$0xff]
        %v4322 = vld [vmem:[#allocation2 + $0xd8] sm:$0xff]
        %v4323 = vld [vmem:[#allocation2 + $0xe0] sm:$0xff]
        %v4324 = vld [vmem:[#allocation2 + $0xf0] sm:$0xff]
        %v4325 = vld [vmem:[#allocation2 + $0xf8] sm:$0xff]
        %v4326 = vld [vmem:[#allocation2 + $0x108] sm:$0xff]
        %v4327 = vld [vmem:[#allocation2 + $0x110] sm:$0xff]
        %v4328 = vld [vmem:[#allocation2 + $0x120] sm:$0xff]
        %v4329 = vld [vmem:[#allocation2 + $0x128] sm:$0xff]
        %v4330 = vld [vmem:[#allocation2 + $0x138] sm:$0xff]
        %v4331 = vld [vmem:[#allocation2 + $0x140] sm:$0xff]
        %v4332 = vld [vmem:[#allocation2 + $0x150] sm:$0xff]
        %v4333 = vld [vmem:[#allocation2 + $0x158] sm:$0xff]
        %v4334 = vld [vmem:[#allocation2 + $0x168] sm:$0xff]
        %v4335 = vld [vmem:[#allocation2 + $0x170] sm:$0xff]
        %v4336 = vld [vmem:[#allocation2 + $0x1] sm:$0xff]
        %v4337 = vld [vmem:[#allocation2 + $0x9] sm:$0xff]
        %v4338 = vld [vmem:[#allocation2 + $0x19] sm:$0xff]
        %v4339 = vld [vmem:[#allocation2 + $0x21] sm:$0xff]
        %v4340 = vld [vmem:[#allocation2 + $0x31] sm:$0xff]
        %v4341 = vld [vmem:[#allocation2 + $0x39] sm:$0xff]
        %v4342 = vld [vmem:[#allocation2 + $0x49] sm:$0xff]
        %v4343 = vld [vmem:[#allocation2 + $0x51] sm:$0xff]
        %v4344 = vld [vmem:[#allocation2 + $0x61] sm:$0xff]
        %v4345 = vld [vmem:[#allocation2 + $0x69] sm:$0xff]
        %v4346 = vld [vmem:[#allocation2 + $0x79] sm:$0xff]
        %v4347 = vld [vmem:[#allocation2 + $0x81] sm:$0xff]
        %v4348 = vld [vmem:[#allocation2 + $0x91] sm:$0xff]
        %v4349 = vld [vmem:[#allocation2 + $0x99] sm:$0xff]
        %v4350 = vld [vmem:[#allocation2 + $0xa9] sm:$0xff]
        %v4351 = vld [vmem:[#allocation2 + $0xb1] sm:$0xff]
        %v4352 = vld [vmem:[#allocation2 + $0xc1] sm:$0xff]
        %v4353 = vld [vmem:[#allocation2 + $0xc9] sm:$0xff]
        %v4354 = vld [vmem:[#allocation2 + $0xd9] sm:$0xff]
        %v4355 = vld [vmem:[#allocation2 + $0xe1] sm:$0xff]
        %v4356 = vld [vmem:[#allocation2 + $0xf1] sm:$0xff]
        %v4357 = vld [vmem:[#allocation2 + $0xf9] sm:$0xff]
        %v4358 = vld [vmem:[#allocation2 + $0x109] sm:$0xff]
        %v4359 = vld [vmem:[#allocation2 + $0x111] sm:$0xff]
        %v4360 = vld [vmem:[#allocation2 + $0x121] sm:$0xff]
        %v4361 = vld [vmem:[#allocation2 + $0x129] sm:$0xff]
        %v4362 = vld [vmem:[#allocation2 + $0x139] sm:$0xff]
        %v4363 = vld [vmem:[#allocation2 + $0x141] sm:$0xff]
        %v4364 = vld [vmem:[#allocation2 + $0x151] sm:$0xff]
        %v4365 = vld [vmem:[#allocation2 + $0x159] sm:$0xff]
        %v4366 = vld [vmem:[#allocation2 + $0x169] sm:$0xff]
        %v4367 = vld [vmem:[#allocation2 + $0x171] sm:$0xff]
        %v4368 = vld [vmem:[#allocation2 + $0x2] sm:$0xff]
        %v4369 = vld [vmem:[#allocation2 + $0xa] sm:$0xff]
        %v4370 = vld [vmem:[#allocation2 + $0x1a] sm:$0xff]
        %v4371 = vld [vmem:[#allocation2 + $0x22] sm:$0xff]
        %v4372 = vld [vmem:[#allocation2 + $0x32] sm:$0xff]
        %v4373 = vld [vmem:[#allocation2 + $0x3a] sm:$0xff]
        %v4374 = vld [vmem:[#allocation2 + $0x4a] sm:$0xff]
        %v4375 = vld [vmem:[#allocation2 + $0x52] sm:$0xff]
        %v4376 = vld [vmem:[#allocation2 + $0x62] sm:$0xff]
        %v4377 = vld [vmem:[#allocation2 + $0x6a] sm:$0xff]
        %v4378 = vld [vmem:[#allocation2 + $0x7a] sm:$0xff]
        %v4379 = vld [vmem:[#allocation2 + $0x82] sm:$0xff]
        %v4380 = vld [vmem:[#allocation2 + $0x92] sm:$0xff]
        %v4381 = vld [vmem:[#allocation2 + $0x9a] sm:$0xff]
        %v4382 = vld [vmem:[#allocation2 + $0xaa] sm:$0xff]
        %v4383 = vld [vmem:[#allocation2 + $0xb2] sm:$0xff]
        %v4384 = vld [vmem:[#allocation2 + $0xc2] sm:$0xff]
        %v4385 = vld [vmem:[#allocation2 + $0xca] sm:$0xff]
        %v4386 = vld [vmem:[#allocation2 + $0xda] sm:$0xff]
        %v4387 = vld [vmem:[#allocation2 + $0xe2] sm:$0xff]
        %v4388 = vld [vmem:[#allocation2 + $0xf2] sm:$0xff]
        %v4389 = vld [vmem:[#allocation2 + $0xfa] sm:$0xff]
        %v4390 = vld [vmem:[#allocation2 + $0x10a] sm:$0xff]
        %v4391 = vld [vmem:[#allocation2 + $0x112] sm:$0xff]
        %v4392 = vld [vmem:[#allocation2 + $0x122] sm:$0xff]
        %v4393 = vld [vmem:[#allocation2 + $0x12a] sm:$0xff]
        %v4394 = vld [vmem:[#allocation2 + $0x13a] sm:$0xff]
        %v4395 = vld [vmem:[#allocation2 + $0x142] sm:$0xff]
        %v4396 = vld [vmem:[#allocation2 + $0x152] sm:$0xff]
        %v4397 = vld [vmem:[#allocation2 + $0x15a] sm:$0xff]
        %v4398 = vld [vmem:[#allocation2 + $0x16a] sm:$0xff]
        %v4399 = vld [vmem:[#allocation2 + $0x172] sm:$0xff]
        %4432 = vrot.lane.b32.xlu0 %v4336, 32
        %v4433 = vpop.permute.xlu0 %4432
        %4434 = vrot.lane.b32.xlu0 %v4337, 32
        %v4435 = vpop.permute.xlu0 %4434
        %4436 = vrot.lane.b32.xlu0 %v4338, 32
        %v4437 = vpop.permute.xlu0 %4436
        %4438 = vrot.lane.b32.xlu0 %v4339, 32
        %v4439 = vpop.permute.xlu0 %4438
        %4440 = vrot.lane.b32.xlu0 %v4340, 32
        %v4441 = vpop.permute.xlu0 %4440
        %4442 = vrot.lane.b32.xlu0 %v4341, 32
        %v4443 = vpop.permute.xlu0 %4442
        %4444 = vrot.lane.b32.xlu0 %v4342, 32
        %v4445 = vpop.permute.xlu0 %4444
        %4446 = vrot.lane.b32.xlu0 %v4343, 32
        %v4447 = vpop.permute.xlu0 %4446
        %4448 = vrot.lane.b32.xlu0 %v4344, 32
        %v4449 = vpop.permute.xlu0 %4448
        %4450 = vrot.lane.b32.xlu0 %v4345, 32
        %v4451 = vpop.permute.xlu0 %4450
        %4452 = vrot.lane.b32.xlu0 %v4346, 32
        %v4453 = vpop.permute.xlu0 %4452
        %4454 = vrot.lane.b32.xlu0 %v4347, 32
        %v4455 = vpop.permute.xlu0 %4454
        %4456 = vrot.lane.b32.xlu0 %v4348, 32
        %v4457 = vpop.permute.xlu0 %4456
        %4458 = vrot.lane.b32.xlu0 %v4349, 32
        %v4459 = vpop.permute.xlu0 %4458
        %4460 = vrot.lane.b32.xlu0 %v4350, 32
        %v4461 = vpop.permute.xlu0 %4460
        %4462 = vrot.lane.b32.xlu0 %v4351, 32
        %v4463 = vpop.permute.xlu0 %4462
        %4464 = vrot.lane.b32.xlu0 %v4352, 32
        %v4465 = vpop.permute.xlu0 %4464
        %4466 = vrot.lane.b32.xlu0 %v4353, 32
        %v4467 = vpop.permute.xlu0 %4466
        %4468 = vrot.lane.b32.xlu0 %v4354, 32
        %v4469 = vpop.permute.xlu0 %4468
        %4470 = vrot.lane.b32.xlu0 %v4355, 32
        %v4471 = vpop.permute.xlu0 %4470
        %4472 = vrot.lane.b32.xlu0 %v4356, 32
        %v4473 = vpop.permute.xlu0 %4472
        %4474 = vrot.lane.b32.xlu0 %v4357, 32
        %v4475 = vpop.permute.xlu0 %4474
        %4476 = vrot.lane.b32.xlu0 %v4358, 32
        %v4477 = vpop.permute.xlu0 %4476
        %4478 = vrot.lane.b32.xlu0 %v4359, 32
        %v4479 = vpop.permute.xlu0 %4478
        %4480 = vrot.lane.b32.xlu0 %v4360, 32
        %v4481 = vpop.permute.xlu0 %4480
        %4482 = vrot.lane.b32.xlu0 %v4361, 32
        %v4483 = vpop.permute.xlu0 %4482
        %4484 = vrot.lane.b32.xlu0 %v4362, 32
        %v4485 = vpop.permute.xlu0 %4484
        %4486 = vrot.lane.b32.xlu0 %v4363, 32
        %v4487 = vpop.permute.xlu0 %4486
        %4488 = vrot.lane.b32.xlu0 %v4364, 32
        %v4489 = vpop.permute.xlu0 %4488
        %4490 = vrot.lane.b32.xlu0 %v4365, 32
        %v4491 = vpop.permute.xlu0 %4490
        %4492 = vrot.lane.b32.xlu0 %v4366, 32
        %v4493 = vpop.permute.xlu0 %4492
        %4494 = vrot.lane.b32.xlu0 %v4367, 32
        %v4495 = vpop.permute.xlu0 %4494
        %4560 = vrot.lane.b32.xlu0 %v4368, 64
        %v4561 = vpop.permute.xlu0 %4560
        %4562 = vrot.lane.b32.xlu0 %v4369, 64
        %v4563 = vpop.permute.xlu0 %4562
        %4564 = vrot.lane.b32.xlu0 %v4370, 64
        %v4565 = vpop.permute.xlu0 %4564
        %4566 = vrot.lane.b32.xlu0 %v4371, 64
        %v4567 = vpop.permute.xlu0 %4566
        %4568 = vrot.lane.b32.xlu0 %v4372, 64
        %v4569 = vpop.permute.xlu0 %4568
        %4570 = vrot.lane.b32.xlu0 %v4373, 64
        %v4571 = vpop.permute.xlu0 %4570
        %4572 = vrot.lane.b32.xlu0 %v4374, 64
        %v4573 = vpop.permute.xlu0 %4572
        %4574 = vrot.lane.b32.xlu0 %v4375, 64
        %v4575 = vpop.permute.xlu0 %4574
        %4576 = vrot.lane.b32.xlu0 %v4376, 64
        %v4577 = vpop.permute.xlu0 %4576
        %4578 = vrot.lane.b32.xlu0 %v4377, 64
        %v4579 = vpop.permute.xlu0 %4578
        %4580 = vrot.lane.b32.xlu0 %v4378, 64
        %v4581 = vpop.permute.xlu0 %4580
        %4582 = vrot.lane.b32.xlu0 %v4379, 64
        %v4583 = vpop.permute.xlu0 %4582
        %4584 = vrot.lane.b32.xlu0 %v4380, 64
        %v4585 = vpop.permute.xlu0 %4584
        %4586 = vrot.lane.b32.xlu0 %v4381, 64
        %v4587 = vpop.permute.xlu0 %4586
        %4588 = vrot.lane.b32.xlu0 %v4382, 64
        %v4589 = vpop.permute.xlu0 %4588
        %4590 = vrot.lane.b32.xlu0 %v4383, 64
        %v4591 = vpop.permute.xlu0 %4590
        %4592 = vrot.lane.b32.xlu0 %v4384, 64
        %v4593 = vpop.permute.xlu0 %4592
        %4594 = vrot.lane.b32.xlu0 %v4385, 64
        %v4595 = vpop.permute.xlu0 %4594
        %4596 = vrot.lane.b32.xlu0 %v4386, 64
        %v4597 = vpop.permute.xlu0 %4596
        %4598 = vrot.lane.b32.xlu0 %v4387, 64
        %v4599 = vpop.permute.xlu0 %4598
        %4600 = vrot.lane.b32.xlu0 %v4388, 64
        %v4601 = vpop.permute.xlu0 %4600
        %4602 = vrot.lane.b32.xlu0 %v4389, 64
        %v4603 = vpop.permute.xlu0 %4602
        %4604 = vrot.lane.b32.xlu0 %v4390, 64
        %v4605 = vpop.permute.xlu0 %4604
        %4606 = vrot.lane.b32.xlu0 %v4391, 64
        %v4607 = vpop.permute.xlu0 %4606
        %4608 = vrot.lane.b32.xlu0 %v4392, 64
        %v4609 = vpop.permute.xlu0 %4608
        %4610 = vrot.lane.b32.xlu0 %v4393, 64
        %v4611 = vpop.permute.xlu0 %4610
        %4612 = vrot.lane.b32.xlu0 %v4394, 64
        %v4613 = vpop.permute.xlu0 %4612
        %4614 = vrot.lane.b32.xlu0 %v4395, 64
        %v4615 = vpop.permute.xlu0 %4614
        %4616 = vrot.lane.b32.xlu0 %v4396, 64
        %v4617 = vpop.permute.xlu0 %4616
        %4618 = vrot.lane.b32.xlu0 %v4397, 64
        %v4619 = vpop.permute.xlu0 %4618
        %4620 = vrot.lane.b32.xlu0 %v4398, 64
        %v4621 = vpop.permute.xlu0 %4620
        %4622 = vrot.lane.b32.xlu0 %v4399, 64
        %v4623 = vpop.permute.xlu0 %4622
        %v4656 = vsel %vm508, %v4304, %v4433
        %v4657 = vsel %vm508, %v4305, %v4435
        %v4658 = vsel %vm508, %v4306, %v4437
        %v4659 = vsel %vm508, %v4307, %v4439
        %v4660 = vsel %vm508, %v4308, %v4441
        %v4661 = vsel %vm508, %v4309, %v4443
        %v4662 = vsel %vm508, %v4310, %v4445
        %v4663 = vsel %vm508, %v4311, %v4447
        %v4664 = vsel %vm508, %v4312, %v4449
        %v4665 = vsel %vm508, %v4313, %v4451
        %v4666 = vsel %vm508, %v4314, %v4453
        %v4667 = vsel %vm508, %v4315, %v4455
        %v4668 = vsel %vm508, %v4316, %v4457
        %v4669 = vsel %vm508, %v4317, %v4459
        %v4670 = vsel %vm508, %v4318, %v4461
        %v4671 = vsel %vm508, %v4319, %v4463
        %v4672 = vsel %vm508, %v4320, %v4465
        %v4673 = vsel %vm508, %v4321, %v4467
        %v4674 = vsel %vm508, %v4322, %v4469
        %v4675 = vsel %vm508, %v4323, %v4471
        %v4676 = vsel %vm508, %v4324, %v4473
        %v4677 = vsel %vm508, %v4325, %v4475
        %v4678 = vsel %vm508, %v4326, %v4477
        %v4679 = vsel %vm508, %v4327, %v4479
        %v4680 = vsel %vm508, %v4328, %v4481
        %v4681 = vsel %vm508, %v4329, %v4483
        %v4682 = vsel %vm508, %v4330, %v4485
        %v4683 = vsel %vm508, %v4331, %v4487
        %v4684 = vsel %vm508, %v4332, %v4489
        %v4685 = vsel %vm508, %v4333, %v4491
        %v4686 = vsel %vm508, %v4334, %v4493
        %v4687 = vsel %vm508, %v4335, %v4495
        %v4688 = vsel %vm1822, %v4656, %v4561
        %v4689 = vsel %vm1822, %v4657, %v4563
        %v4690 = vsel %vm1822, %v4658, %v4565
        %v4691 = vsel %vm1822, %v4659, %v4567
        %v4692 = vsel %vm1822, %v4660, %v4569
        %v4693 = vsel %vm1822, %v4661, %v4571
        %v4694 = vsel %vm1822, %v4662, %v4573
        %v4695 = vsel %vm1822, %v4663, %v4575
        %v4696 = vsel %vm1822, %v4664, %v4577
        %v4697 = vsel %vm1822, %v4665, %v4579
        %v4698 = vsel %vm1822, %v4666, %v4581
        %v4699 = vsel %vm1822, %v4667, %v4583
        %v4700 = vsel %vm1822, %v4668, %v4585
        %v4701 = vsel %vm1822, %v4669, %v4587
        %v4702 = vsel %vm1822, %v4670, %v4589
        %v4703 = vsel %vm1822, %v4671, %v4591
        %v4704 = vsel %vm1822, %v4672, %v4593
        %v4705 = vsel %vm1822, %v4673, %v4595
        %v4706 = vsel %vm1822, %v4674, %v4597
        %v4707 = vsel %vm1822, %v4675, %v4599
        %v4708 = vsel %vm1822, %v4676, %v4601
        %v4709 = vsel %vm1822, %v4677, %v4603
        %v4710 = vsel %vm1822, %v4678, %v4605
        %v4711 = vsel %vm1822, %v4679, %v4607
        %v4712 = vsel %vm1822, %v4680, %v4609
        %v4713 = vsel %vm1822, %v4681, %v4611
        %v4714 = vsel %vm1822, %v4682, %v4613
        %v4715 = vsel %vm1822, %v4683, %v4615
        %v4716 = vsel %vm1822, %v4684, %v4617
        %v4717 = vsel %vm1822, %v4685, %v4619
        %v4718 = vsel %vm1822, %v4686, %v4621
        %v4719 = vsel %vm1822, %v4687, %v4623
        %v4720 = vpack.c.bf16 %v4689, %v4688
        %v4721 = vpack.c.bf16 %v4691, %v4690
        %v4722 = vpack.c.bf16 %v4693, %v4692
        %v4723 = vpack.c.bf16 %v4695, %v4694
        %v4724 = vpack.c.bf16 %v4697, %v4696
        %v4725 = vpack.c.bf16 %v4699, %v4698
        %v4726 = vpack.c.bf16 %v4701, %v4700
        %v4727 = vpack.c.bf16 %v4703, %v4702
        %v4728 = vpack.c.bf16 %v4705, %v4704
        %v4729 = vpack.c.bf16 %v4707, %v4706
        %v4730 = vpack.c.bf16 %v4709, %v4708
        %v4731 = vpack.c.bf16 %v4711, %v4710
        %v4732 = vpack.c.bf16 %v4713, %v4712
        %v4733 = vpack.c.bf16 %v4715, %v4714
        %v4734 = vpack.c.bf16 %v4717, %v4716
        %v4735 = vpack.c.bf16 %v4719, %v4718
        %v4736 = vld [vmem:[%s11] sm:$0xf]
        %v4737 = vld [vmem:[%s11 + $0x4] sm:$0xf]
        %v4738 = vld [vmem:[%s11 + $0x8] sm:$0xf]
        %v4739 = vld [vmem:[%s11 + $0xc] sm:$0xf]
        %v4740 = vld [vmem:[%s11 + $0x10] sm:$0xf]
        %v4741 = vld [vmem:[%s11 + $0x14] sm:$0xf]
        %v4742 = vld [vmem:[%s11 + $0x18] sm:$0xf]
        %v4743 = vld [vmem:[%s11 + $0x1c] sm:$0xf]
        %v4744 = vld [vmem:[%s11 + $0x20] sm:$0xf]
        %v4745 = vld [vmem:[%s11 + $0x24] sm:$0xf]
        %v4746 = vld [vmem:[%s11 + $0x28] sm:$0xf]
        %v4747 = vld [vmem:[%s11 + $0x2c] sm:$0xf]
        %v4748 = vld [vmem:[%s517] sm:$0xff]
        %v4749 = vld [vmem:[%s517 + $0x8] sm:$0xff]
        %v4750 = vld [vmem:[%s517 + $0x18] sm:$0xff]
        %v4751 = vld [vmem:[%s517 + $0x20] sm:$0xff]
        %v4752 = vld [vmem:[%s517 + $0x30] sm:$0xff]
        %v4753 = vld [vmem:[%s517 + $0x38] sm:$0xff]
        %v4754 = vld [vmem:[%s517 + $0x48] sm:$0xff]
        %v4755 = vld [vmem:[%s517 + $0x50] sm:$0xff]
        %v4756 = vld [vmem:[%s517 + $0x60] sm:$0xff]
        %v4757 = vld [vmem:[%s517 + $0x68] sm:$0xff]
        %v4758 = vld [vmem:[%s517 + $0x78] sm:$0xff]
        %v4759 = vld [vmem:[%s517 + $0x80] sm:$0xff]
        %v4760 = vld [vmem:[%s517 + $0x90] sm:$0xff]
        %v4761 = vld [vmem:[%s517 + $0x98] sm:$0xff]
        %v4762 = vld [vmem:[%s517 + $0xa8] sm:$0xff]
        %v4763 = vld [vmem:[%s517 + $0xb0] sm:$0xff]
        %v4764 = vld [vmem:[%s517 + $0xc0] sm:$0xff]
        %v4765 = vld [vmem:[%s517 + $0xc8] sm:$0xff]
        %v4766 = vld [vmem:[%s517 + $0xd8] sm:$0xff]
        %v4767 = vld [vmem:[%s517 + $0xe0] sm:$0xff]
        %v4768 = vld [vmem:[%s517 + $0xf0] sm:$0xff]
        %v4769 = vld [vmem:[%s517 + $0xf8] sm:$0xff]
        %v4770 = vld [vmem:[%s517 + $0x108] sm:$0xff]
        %v4771 = vld [vmem:[%s517 + $0x110] sm:$0xff]
        %v4772 = vld [vmem:[%s517 + $0x120] sm:$0xff]
        %v4773 = vld [vmem:[%s517 + $0x128] sm:$0xff]
        %v4774 = vld [vmem:[%s517 + $0x138] sm:$0xff]
        %v4775 = vld [vmem:[%s517 + $0x140] sm:$0xff]
        %v4776 = vld [vmem:[%s517 + $0x150] sm:$0xff]
        %v4777 = vld [vmem:[%s517 + $0x158] sm:$0xff]
        %v4778 = vld [vmem:[%s517 + $0x168] sm:$0xff]
        %v4779 = vld [vmem:[%s517 + $0x170] sm:$0xff]
        %v4780 = vld [vmem:[%s517 + $0x1] sm:$0xff]
        %v4781 = vld [vmem:[%s517 + $0x9] sm:$0xff]
        %v4782 = vld [vmem:[%s517 + $0x19] sm:$0xff]
        %v4783 = vld [vmem:[%s517 + $0x21] sm:$0xff]
        %v4784 = vld [vmem:[%s517 + $0x31] sm:$0xff]
        %v4785 = vld [vmem:[%s517 + $0x39] sm:$0xff]
        %v4786 = vld [vmem:[%s517 + $0x49] sm:$0xff]
        %v4787 = vld [vmem:[%s517 + $0x51] sm:$0xff]
        %v4788 = vld [vmem:[%s517 + $0x61] sm:$0xff]
        %v4789 = vld [vmem:[%s517 + $0x69] sm:$0xff]
        %v4790 = vld [vmem:[%s517 + $0x79] sm:$0xff]
        %v4791 = vld [vmem:[%s517 + $0x81] sm:$0xff]
        %v4792 = vld [vmem:[%s517 + $0x91] sm:$0xff]
        %v4793 = vld [vmem:[%s517 + $0x99] sm:$0xff]
        %v4794 = vld [vmem:[%s517 + $0xa9] sm:$0xff]
        %v4795 = vld [vmem:[%s517 + $0xb1] sm:$0xff]
        %v4796 = vld [vmem:[%s517 + $0xc1] sm:$0xff]
        %v4797 = vld [vmem:[%s517 + $0xc9] sm:$0xff]
        %v4798 = vld [vmem:[%s517 + $0xd9] sm:$0xff]
        %v4799 = vld [vmem:[%s517 + $0xe1] sm:$0xff]
        %v4800 = vld [vmem:[%s517 + $0xf1] sm:$0xff]
        %v4801 = vld [vmem:[%s517 + $0xf9] sm:$0xff]
        %v4802 = vld [vmem:[%s517 + $0x109] sm:$0xff]
        %v4803 = vld [vmem:[%s517 + $0x111] sm:$0xff]
        %v4804 = vld [vmem:[%s517 + $0x121] sm:$0xff]
        %v4805 = vld [vmem:[%s517 + $0x129] sm:$0xff]
        %v4806 = vld [vmem:[%s517 + $0x139] sm:$0xff]
        %v4807 = vld [vmem:[%s517 + $0x141] sm:$0xff]
        %v4808 = vld [vmem:[%s517 + $0x151] sm:$0xff]
        %v4809 = vld [vmem:[%s517 + $0x159] sm:$0xff]
        %v4810 = vld [vmem:[%s517 + $0x169] sm:$0xff]
        %v4811 = vld [vmem:[%s517 + $0x171] sm:$0xff]
        %v4812 = vld [vmem:[%s517 + $0x2] sm:$0xff]
        %v4813 = vld [vmem:[%s517 + $0xa] sm:$0xff]
        %v4814 = vld [vmem:[%s517 + $0x1a] sm:$0xff]
        %v4815 = vld [vmem:[%s517 + $0x22] sm:$0xff]
        %v4816 = vld [vmem:[%s517 + $0x32] sm:$0xff]
        %v4817 = vld [vmem:[%s517 + $0x3a] sm:$0xff]
        %v4818 = vld [vmem:[%s517 + $0x4a] sm:$0xff]
        %v4819 = vld [vmem:[%s517 + $0x52] sm:$0xff]
        %v4820 = vld [vmem:[%s517 + $0x62] sm:$0xff]
        %v4821 = vld [vmem:[%s517 + $0x6a] sm:$0xff]
        %v4822 = vld [vmem:[%s517 + $0x7a] sm:$0xff]
        %v4823 = vld [vmem:[%s517 + $0x82] sm:$0xff]
        %v4824 = vld [vmem:[%s517 + $0x92] sm:$0xff]
        %v4825 = vld [vmem:[%s517 + $0x9a] sm:$0xff]
        %v4826 = vld [vmem:[%s517 + $0xaa] sm:$0xff]
        %v4827 = vld [vmem:[%s517 + $0xb2] sm:$0xff]
        %v4828 = vld [vmem:[%s517 + $0xc2] sm:$0xff]
        %v4829 = vld [vmem:[%s517 + $0xca] sm:$0xff]
        %v4830 = vld [vmem:[%s517 + $0xda] sm:$0xff]
        %v4831 = vld [vmem:[%s517 + $0xe2] sm:$0xff]
        %v4832 = vld [vmem:[%s517 + $0xf2] sm:$0xff]
        %v4833 = vld [vmem:[%s517 + $0xfa] sm:$0xff]
        %v4834 = vld [vmem:[%s517 + $0x10a] sm:$0xff]
        %v4835 = vld [vmem:[%s517 + $0x112] sm:$0xff]
        %v4836 = vld [vmem:[%s517 + $0x122] sm:$0xff]
        %v4837 = vld [vmem:[%s517 + $0x12a] sm:$0xff]
        %v4838 = vld [vmem:[%s517 + $0x13a] sm:$0xff]
        %v4839 = vld [vmem:[%s517 + $0x142] sm:$0xff]
        %v4840 = vld [vmem:[%s517 + $0x152] sm:$0xff]
        %v4841 = vld [vmem:[%s517 + $0x15a] sm:$0xff]
        %v4842 = vld [vmem:[%s517 + $0x16a] sm:$0xff]
        %v4843 = vld [vmem:[%s517 + $0x172] sm:$0xff]
        %4876 = vrot.lane.b32.xlu0 %v4780, 32
        %v4877 = vpop.permute.xlu0 %4876
        %4878 = vrot.lane.b32.xlu0 %v4781, 32
        %v4879 = vpop.permute.xlu0 %4878
        %4880 = vrot.lane.b32.xlu0 %v4782, 32
        %v4881 = vpop.permute.xlu0 %4880
        %4882 = vrot.lane.b32.xlu0 %v4783, 32
        %v4883 = vpop.permute.xlu0 %4882
        %4884 = vrot.lane.b32.xlu0 %v4784, 32
        %v4885 = vpop.permute.xlu0 %4884
        %4886 = vrot.lane.b32.xlu0 %v4785, 32
        %v4887 = vpop.permute.xlu0 %4886
        %4888 = vrot.lane.b32.xlu0 %v4786, 32
        %v4889 = vpop.permute.xlu0 %4888
        %4890 = vrot.lane.b32.xlu0 %v4787, 32
        %v4891 = vpop.permute.xlu0 %4890
        %4892 = vrot.lane.b32.xlu0 %v4788, 32
        %v4893 = vpop.permute.xlu0 %4892
        %4894 = vrot.lane.b32.xlu0 %v4789, 32
        %v4895 = vpop.permute.xlu0 %4894
        %4896 = vrot.lane.b32.xlu0 %v4790, 32
        %v4897 = vpop.permute.xlu0 %4896
        %4898 = vrot.lane.b32.xlu0 %v4791, 32
        %v4899 = vpop.permute.xlu0 %4898
        %4900 = vrot.lane.b32.xlu0 %v4792, 32
        %v4901 = vpop.permute.xlu0 %4900
        %4902 = vrot.lane.b32.xlu0 %v4793, 32
        %v4903 = vpop.permute.xlu0 %4902
        %4904 = vrot.lane.b32.xlu0 %v4794, 32
        %v4905 = vpop.permute.xlu0 %4904
        %4906 = vrot.lane.b32.xlu0 %v4795, 32
        %v4907 = vpop.permute.xlu0 %4906
        %4908 = vrot.lane.b32.xlu0 %v4796, 32
        %v4909 = vpop.permute.xlu0 %4908
        %4910 = vrot.lane.b32.xlu0 %v4797, 32
        %v4911 = vpop.permute.xlu0 %4910
        %4912 = vrot.lane.b32.xlu0 %v4798, 32
        %v4913 = vpop.permute.xlu0 %4912
        %4914 = vrot.lane.b32.xlu0 %v4799, 32
        %v4915 = vpop.permute.xlu0 %4914
        %4916 = vrot.lane.b32.xlu0 %v4800, 32
        %v4917 = vpop.permute.xlu0 %4916
        %4918 = vrot.lane.b32.xlu0 %v4801, 32
        %v4919 = vpop.permute.xlu0 %4918
        %4920 = vrot.lane.b32.xlu0 %v4802, 32
        %v4921 = vpop.permute.xlu0 %4920
        %4922 = vrot.lane.b32.xlu0 %v4803, 32
        %v4923 = vpop.permute.xlu0 %4922
        %4924 = vrot.lane.b32.xlu0 %v4804, 32
        %v4925 = vpop.permute.xlu0 %4924
        %4926 = vrot.lane.b32.xlu0 %v4805, 32
        %v4927 = vpop.permute.xlu0 %4926
        %4928 = vrot.lane.b32.xlu0 %v4806, 32
        %v4929 = vpop.permute.xlu0 %4928
        %4930 = vrot.lane.b32.xlu0 %v4807, 32
        %v4931 = vpop.permute.xlu0 %4930
        %4932 = vrot.lane.b32.xlu0 %v4808, 32
        %v4933 = vpop.permute.xlu0 %4932
        %4934 = vrot.lane.b32.xlu0 %v4809, 32
        %v4935 = vpop.permute.xlu0 %4934
        %4936 = vrot.lane.b32.xlu0 %v4810, 32
        %v4937 = vpop.permute.xlu0 %4936
        %4938 = vrot.lane.b32.xlu0 %v4811, 32
        %v4939 = vpop.permute.xlu0 %4938
        %5004 = vrot.lane.b32.xlu0 %v4812, 64
        %v5005 = vpop.permute.xlu0 %5004
        %5006 = vrot.lane.b32.xlu0 %v4813, 64
        %v5007 = vpop.permute.xlu0 %5006
        %5008 = vrot.lane.b32.xlu0 %v4814, 64
        %v5009 = vpop.permute.xlu0 %5008
        %5010 = vrot.lane.b32.xlu0 %v4815, 64
        %v5011 = vpop.permute.xlu0 %5010
        %5012 = vrot.lane.b32.xlu0 %v4816, 64
        %v5013 = vpop.permute.xlu0 %5012
        %5014 = vrot.lane.b32.xlu0 %v4817, 64
        %v5015 = vpop.permute.xlu0 %5014
        %5016 = vrot.lane.b32.xlu0 %v4818, 64
        %v5017 = vpop.permute.xlu0 %5016
        %5018 = vrot.lane.b32.xlu0 %v4819, 64
        %v5019 = vpop.permute.xlu0 %5018
        %5020 = vrot.lane.b32.xlu0 %v4820, 64
        %v5021 = vpop.permute.xlu0 %5020
        %5022 = vrot.lane.b32.xlu0 %v4821, 64
        %v5023 = vpop.permute.xlu0 %5022
        %5024 = vrot.lane.b32.xlu0 %v4822, 64
        %v5025 = vpop.permute.xlu0 %5024
        %5026 = vrot.lane.b32.xlu0 %v4823, 64
        %v5027 = vpop.permute.xlu0 %5026
        %5028 = vrot.lane.b32.xlu0 %v4824, 64
        %v5029 = vpop.permute.xlu0 %5028
        %5030 = vrot.lane.b32.xlu0 %v4825, 64
        %v5031 = vpop.permute.xlu0 %5030
        %5032 = vrot.lane.b32.xlu0 %v4826, 64
        %v5033 = vpop.permute.xlu0 %5032
        %5034 = vrot.lane.b32.xlu0 %v4827, 64
        %v5035 = vpop.permute.xlu0 %5034
        %5036 = vrot.lane.b32.xlu0 %v4828, 64
        %v5037 = vpop.permute.xlu0 %5036
        %5038 = vrot.lane.b32.xlu0 %v4829, 64
        %v5039 = vpop.permute.xlu0 %5038
        %5040 = vrot.lane.b32.xlu0 %v4830, 64
        %v5041 = vpop.permute.xlu0 %5040
        %5042 = vrot.lane.b32.xlu0 %v4831, 64
        %v5043 = vpop.permute.xlu0 %5042
        %5044 = vrot.lane.b32.xlu0 %v4832, 64
        %v5045 = vpop.permute.xlu0 %5044
        %5046 = vrot.lane.b32.xlu0 %v4833, 64
        %v5047 = vpop.permute.xlu0 %5046
        %5048 = vrot.lane.b32.xlu0 %v4834, 64
        %v5049 = vpop.permute.xlu0 %5048
        %5050 = vrot.lane.b32.xlu0 %v4835, 64
        %v5051 = vpop.permute.xlu0 %5050
        %5052 = vrot.lane.b32.xlu0 %v4836, 64
        %v5053 = vpop.permute.xlu0 %5052
        %5054 = vrot.lane.b32.xlu0 %v4837, 64
        %v5055 = vpop.permute.xlu0 %5054
        %5056 = vrot.lane.b32.xlu0 %v4838, 64
        %v5057 = vpop.permute.xlu0 %5056
        %5058 = vrot.lane.b32.xlu0 %v4839, 64
        %v5059 = vpop.permute.xlu0 %5058
        %5060 = vrot.lane.b32.xlu0 %v4840, 64
        %v5061 = vpop.permute.xlu0 %5060
        %5062 = vrot.lane.b32.xlu0 %v4841, 64
        %v5063 = vpop.permute.xlu0 %5062
        %5064 = vrot.lane.b32.xlu0 %v4842, 64
        %v5065 = vpop.permute.xlu0 %5064
        %5066 = vrot.lane.b32.xlu0 %v4843, 64
        %v5067 = vpop.permute.xlu0 %5066
        %v5100 = vsel %vm508, %v4748, %v4877
        %v5101 = vsel %vm508, %v4749, %v4879
        %v5102 = vsel %vm508, %v4750, %v4881
        %v5103 = vsel %vm508, %v4751, %v4883
        %v5104 = vsel %vm508, %v4752, %v4885
        %v5105 = vsel %vm508, %v4753, %v4887
        %v5106 = vsel %vm508, %v4754, %v4889
        %v5107 = vsel %vm508, %v4755, %v4891
        %v5108 = vsel %vm508, %v4756, %v4893
        %v5109 = vsel %vm508, %v4757, %v4895
        %v5110 = vsel %vm508, %v4758, %v4897
        %v5111 = vsel %vm508, %v4759, %v4899
        %v5112 = vsel %vm508, %v4760, %v4901
        %v5113 = vsel %vm508, %v4761, %v4903
        %v5114 = vsel %vm508, %v4762, %v4905
        %v5115 = vsel %vm508, %v4763, %v4907
        %v5116 = vsel %vm508, %v4764, %v4909
        %v5117 = vsel %vm508, %v4765, %v4911
        %v5118 = vsel %vm508, %v4766, %v4913
        %v5119 = vsel %vm508, %v4767, %v4915
        %v5120 = vsel %vm508, %v4768, %v4917
        %v5121 = vsel %vm508, %v4769, %v4919
        %v5122 = vsel %vm508, %v4770, %v4921
        %v5123 = vsel %vm508, %v4771, %v4923
        %v5124 = vsel %vm508, %v4772, %v4925
        %v5125 = vsel %vm508, %v4773, %v4927
        %v5126 = vsel %vm508, %v4774, %v4929
        %v5127 = vsel %vm508, %v4775, %v4931
        %v5128 = vsel %vm508, %v4776, %v4933
        %v5129 = vsel %vm508, %v4777, %v4935
        %v5130 = vsel %vm508, %v4778, %v4937
        %v5131 = vsel %vm508, %v4779, %v4939
        %v5132 = vsel %vm1822, %v5100, %v5005
        %v5133 = vsel %vm1822, %v5101, %v5007
        %v5134 = vsel %vm1822, %v5102, %v5009
        %v5135 = vsel %vm1822, %v5103, %v5011
        %v5136 = vsel %vm1822, %v5104, %v5013
        %v5137 = vsel %vm1822, %v5105, %v5015
        %v5138 = vsel %vm1822, %v5106, %v5017
        %v5139 = vsel %vm1822, %v5107, %v5019
        %v5140 = vsel %vm1822, %v5108, %v5021
        %v5141 = vsel %vm1822, %v5109, %v5023
        %v5142 = vsel %vm1822, %v5110, %v5025
        %v5143 = vsel %vm1822, %v5111, %v5027
        %v5144 = vsel %vm1822, %v5112, %v5029
        %v5145 = vsel %vm1822, %v5113, %v5031
        %v5146 = vsel %vm1822, %v5114, %v5033
        %v5147 = vsel %vm1822, %v5115, %v5035
        %v5148 = vsel %vm1822, %v5116, %v5037
        %v5149 = vsel %vm1822, %v5117, %v5039
        %v5150 = vsel %vm1822, %v5118, %v5041
        %v5151 = vsel %vm1822, %v5119, %v5043
        %v5152 = vsel %vm1822, %v5120, %v5045
        %v5153 = vsel %vm1822, %v5121, %v5047
        %v5154 = vsel %vm1822, %v5122, %v5049
        %v5155 = vsel %vm1822, %v5123, %v5051
        %v5156 = vsel %vm1822, %v5124, %v5053
        %v5157 = vsel %vm1822, %v5125, %v5055
        %v5158 = vsel %vm1822, %v5126, %v5057
        %v5159 = vsel %vm1822, %v5127, %v5059
        %v5160 = vsel %vm1822, %v5128, %v5061
        %v5161 = vsel %vm1822, %v5129, %v5063
        %v5162 = vsel %vm1822, %v5130, %v5065
        %v5163 = vsel %vm1822, %v5131, %v5067
        %v5164 = vpack.c.bf16 %v5133, %v5132
        %v5165 = vpack.c.bf16 %v5135, %v5134
        %v5166 = vpack.c.bf16 %v5137, %v5136
        %v5167 = vpack.c.bf16 %v5139, %v5138
        %v5168 = vpack.c.bf16 %v5141, %v5140
        %v5169 = vpack.c.bf16 %v5143, %v5142
        %v5170 = vpack.c.bf16 %v5145, %v5144
        %v5171 = vpack.c.bf16 %v5147, %v5146
        %v5172 = vpack.c.bf16 %v5149, %v5148
        %v5173 = vpack.c.bf16 %v5151, %v5150
        %v5174 = vpack.c.bf16 %v5153, %v5152
        %v5175 = vpack.c.bf16 %v5155, %v5154
        %v5176 = vpack.c.bf16 %v5157, %v5156
        %v5177 = vpack.c.bf16 %v5159, %v5158
        %v5178 = vpack.c.bf16 %v5161, %v5160
        %v5179 = vpack.c.bf16 %v5163, %v5162
        %s5180 = scalar_lea.vmem %s11, 48
        %v5181 = vld [vmem:[%s5180] sm:$0xf]
        %v5182 = vld [vmem:[%s5180 + $0x4] sm:$0xf]
        %v5183 = vld [vmem:[%s5180 + $0x8] sm:$0xf]
        %v5184 = vld [vmem:[%s5180 + $0xc] sm:$0xf]
        %v5185 = vld [vmem:[%s5180 + $0x10] sm:$0xf]
        %v5186 = vld [vmem:[%s5180 + $0x14] sm:$0xf]
        %v5187 = vld [vmem:[%s5180 + $0x18] sm:$0xf]
        %v5188 = vld [vmem:[%s5180 + $0x1c] sm:$0xf]
        %v5189 = vld [vmem:[%s5180 + $0x20] sm:$0xf]
        %v5190 = vld [vmem:[%s5180 + $0x24] sm:$0xf]
        %v5191 = vld [vmem:[%s5180 + $0x28] sm:$0xf]
        %v5192 = vld [vmem:[%s5180 + $0x2c] sm:$0xf]
        %v5205 = vunpack.c.l.b16 %v5181
        %v5206 = vunpack.c.l.b16 %v5182
        %v5207 = vunpack.c.l.b16 %v5183
        %v5208 = vunpack.c.l.b16 %v5184
        %v5209 = vunpack.c.l.b16 %v5185
        %v5210 = vunpack.c.l.b16 %v5186
        %v5211 = vunpack.c.l.b16 %v5187
        %v5212 = vunpack.c.l.b16 %v5188
        %v5213 = vunpack.c.l.b16 %v5189
        %v5214 = vunpack.c.l.b16 %v5190
        %v5215 = vunpack.c.l.b16 %v5191
        %v5216 = vunpack.c.l.b16 %v5192
        %v5217 = vpack.c.b16 %v5206, %v5205
        %v5218 = vpack.c.b16 %v5208, %v5207
        %v5219 = vpack.c.b16 %v5210, %v5209
        %v5220 = vpack.c.b16 %v5212, %v5211
        %v5221 = vpack.c.b16 %v5214, %v5213
        %v5222 = vpack.c.b16 %v5216, %v5215
        %v5230 = vsel %vm2364, %v5164, 0
        %v5233 = vsel %vm2364, %v5165, 0
        %v5236 = vsel %vm2364, %v5166, 0
        %v5239 = vsel %vm2364, %v5167, 0
        %v5242 = vsel %vm2364, %v5168, 0
        %v5245 = vsel %vm2364, %v5169, 0
        %v5248 = vsel %vm2364, %v5170, 0
        %v5251 = vsel %vm2364, %v5171, 0
        %v5254 = vsel %vm2364, %v5172, 0
        %v5257 = vsel %vm2364, %v5173, 0
        %v5260 = vsel %vm2364, %v5174, 0
        %v5263 = vsel %vm2364, %v5175, 0
        %v5266 = vsel %vm2364, %v5176, 0
        %v5269 = vsel %vm2364, %v5177, 0
        %v5272 = vsel %vm2364, %v5178, 0
        %v5275 = vsel %vm2364, %v5179, 0
        %5277 = vmatprep.subr.bf16.mxu0 0
        %5278 = vmatpush1.bf16.msra.mxu0 %v5217
        %5279 = vmatprep.subr.bf16.mxu0 0
        %5280 = vmatpush1.bf16.msra.mxu0 %v5218
        %5281 = vmatprep.subr.bf16.mxu0 0
        %5282 = vmatpush1.bf16.msra.mxu0 %v5219
        %5283 = vmatprep.subr.bf16.mxu0 0
        %5284 = vmatpush1.bf16.msra.mxu0 %v5220
        %5285 = vmatprep.subr.bf16.mxu0 0
        %5286 = vmatpush1.bf16.msra.mxu0 %v5221
        %5287 = vmatprep.subr.bf16.mxu0 0
        %5288 = vmatpush1.bf16.msra.mxu0 %v5222
        %5289 = vmatprep.subr.bf16.mxu0 0
        %5290 = vmatpush1.bf16.msra.mxu0 0
        %5291 = vmatprep.subr.bf16.mxu0 0
        %5292 = vmatpush1.bf16.msra.mxu0 0
        %5293 = vmatprep.subr.bf16.mxu0 0
        %5294 = vmatpush1.bf16.msra.mxu0 0
        %5295 = vmatprep.subr.bf16.mxu0 0
        %5296 = vmatpush1.bf16.msra.mxu0 0
        %5297 = vmatprep.subr.bf16.mxu0 0
        %5298 = vmatpush1.bf16.msra.mxu0 0
        %5299 = vmatprep.subr.bf16.mxu0 0
        %5300 = vmatpush1.bf16.msra.mxu0 0
        %5301 = vmatprep.subr.bf16.mxu0 0
        %5302 = vmatpush1.bf16.msra.mxu0 0
        %5303 = vmatprep.subr.bf16.mxu0 0
        %5304 = vmatpush1.bf16.msra.mxu0 0
        %5305 = vmatprep.subr.bf16.mxu0 0
        %5306 = vmatpush1.bf16.msra.mxu0 0
        %5307 = vmatprep.subr.bf16.mxu0 0
        %5308 = vmatpush1.bf16.msra.mxu0 0
        %5309 = vmatprep.mubr.bf16.mxu0 0
        %5310 = vmatmul.mubr.bf16.gmra.mrb[0].mxu0 %v5230
        %v5311 = vpop.f32.mrb[0].mxu0
        %v5312 = vadd.f32 0.0, %v5311
        %v5313 = vpop.f32.mrb[0].mxu0
        %v5314 = vpop.f32.mrb[0].mxu0
        %v5315 = vadd.f32 0.0, %v5314
        %v5316 = vpop.f32.mrb[0].mxu0
        %5317 = vmatprep.mubr.bf16.mxu0 0
        %5318 = vmatmul.mubr.bf16.gmra.mrb[0].mxu0 %v5233
        %v5319 = vpop.f32.mrb[0].mxu0
        %v5320 = vadd.f32 0.0, %v5319
        %v5321 = vpop.f32.mrb[0].mxu0
        %v5322 = vpop.f32.mrb[0].mxu0
        %v5323 = vadd.f32 0.0, %v5322
        %v5324 = vpop.f32.mrb[0].mxu0
        %5325 = vmatprep.mubr.bf16.mxu0 0
        %5326 = vmatmul.mubr.bf16.gmra.mrb[0].mxu0 %v5236
        %v5327 = vpop.f32.mrb[0].mxu0
        %v5328 = vadd.f32 0.0, %v5327
        %v5329 = vpop.f32.mrb[0].mxu0
        %v5330 = vpop.f32.mrb[0].mxu0
        %v5331 = vadd.f32 0.0, %v5330
        %v5332 = vpop.f32.mrb[0].mxu0
        %5333 = vmatprep.mubr.bf16.mxu0 0
        %5334 = vmatmul.mubr.bf16.gmra.mrb[0].mxu0 %v5239
        %v5335 = vpop.f32.mrb[0].mxu0
        %v5336 = vadd.f32 0.0, %v5335
        %v5337 = vpop.f32.mrb[0].mxu0
        %v5338 = vpop.f32.mrb[0].mxu0
        %v5339 = vadd.f32 0.0, %v5338
        %v5340 = vpop.f32.mrb[0].mxu0
        %5341 = vmatprep.mubr.bf16.mxu0 0
        %5342 = vmatmul.mubr.bf16.gmra.mrb[0].mxu0 %v5242
        %v5343 = vpop.f32.mrb[0].mxu0
        %v5344 = vadd.f32 0.0, %v5343
        %v5345 = vpop.f32.mrb[0].mxu0
        %v5346 = vpop.f32.mrb[0].mxu0
        %v5347 = vadd.f32 0.0, %v5346
        %v5348 = vpop.f32.mrb[0].mxu0
        %5349 = vmatprep.mubr.bf16.mxu0 0
        %5350 = vmatmul.mubr.bf16.gmra.mrb[0].mxu0 %v5245
        %v5351 = vpop.f32.mrb[0].mxu0
        %v5352 = vadd.f32 0.0, %v5351
        %v5353 = vpop.f32.mrb[0].mxu0
        %v5354 = vpop.f32.mrb[0].mxu0
        %v5355 = vadd.f32 0.0, %v5354
        %v5356 = vpop.f32.mrb[0].mxu0
        %5357 = vmatprep.mubr.bf16.mxu0 0
        %5358 = vmatmul.mubr.bf16.gmra.mrb[0].mxu0 %v5248
        %v5359 = vpop.f32.mrb[0].mxu0
        %v5360 = vadd.f32 0.0, %v5359
        %v5361 = vpop.f32.mrb[0].mxu0
        %v5362 = vpop.f32.mrb[0].mxu0
        %v5363 = vadd.f32 0.0, %v5362
        %v5364 = vpop.f32.mrb[0].mxu0
        %5365 = vmatprep.mubr.bf16.mxu0 0
        %5366 = vmatmul.mubr.bf16.gmra.mrb[0].mxu0 %v5251
        %v5367 = vpop.f32.mrb[0].mxu0
        %v5368 = vadd.f32 0.0, %v5367
        %v5369 = vpop.f32.mrb[0].mxu0
        %v5370 = vpop.f32.mrb[0].mxu0
        %v5371 = vadd.f32 0.0, %v5370
        %v5372 = vpop.f32.mrb[0].mxu0
        %5373 = vmatprep.mubr.bf16.mxu0 0
        %5374 = vmatmul.mubr.bf16.gmra.mrb[0].mxu0 %v5254
        %v5375 = vpop.f32.mrb[0].mxu0
        %v5376 = vadd.f32 0.0, %v5375
        %v5377 = vpop.f32.mrb[0].mxu0
        %v5378 = vpop.f32.mrb[0].mxu0
        %v5379 = vadd.f32 0.0, %v5378
        %v5380 = vpop.f32.mrb[0].mxu0
        %5381 = vmatprep.mubr.bf16.mxu0 0
        %5382 = vmatmul.mubr.bf16.gmra.mrb[0].mxu0 %v5257
        %v5383 = vpop.f32.mrb[0].mxu0
        %v5384 = vadd.f32 0.0, %v5383
        %v5385 = vpop.f32.mrb[0].mxu0
        %v5386 = vpop.f32.mrb[0].mxu0
        %v5387 = vadd.f32 0.0, %v5386
        %v5388 = vpop.f32.mrb[0].mxu0
        %5389 = vmatprep.mubr.bf16.mxu0 0
        %5390 = vmatmul.mubr.bf16.gmra.mrb[0].mxu0 %v5260
        %v5391 = vpop.f32.mrb[0].mxu0
        %v5392 = vadd.f32 0.0, %v5391
        %v5393 = vpop.f32.mrb[0].mxu0
        %v5394 = vpop.f32.mrb[0].mxu0
        %v5395 = vadd.f32 0.0, %v5394
        %v5396 = vpop.f32.mrb[0].mxu0
        %5397 = vmatprep.mubr.bf16.mxu0 0
        %5398 = vmatmul.mubr.bf16.gmra.mrb[0].mxu0 %v5263
        %v5399 = vpop.f32.mrb[0].mxu0
        %v5400 = vadd.f32 0.0, %v5399
        %v5401 = vpop.f32.mrb[0].mxu0
        %v5402 = vpop.f32.mrb[0].mxu0
        %v5403 = vadd.f32 0.0, %v5402
        %v5404 = vpop.f32.mrb[0].mxu0
        %5405 = vmatprep.mubr.bf16.mxu0 0
        %5406 = vmatmul.mubr.bf16.gmra.mrb[0].mxu0 %v5266
        %v5407 = vpop.f32.mrb[0].mxu0
        %v5408 = vadd.f32 0.0, %v5407
        %v5409 = vpop.f32.mrb[0].mxu0
        %v5410 = vpop.f32.mrb[0].mxu0
        %v5411 = vadd.f32 0.0, %v5410
        %v5412 = vpop.f32.mrb[0].mxu0
        %5413 = vmatprep.mubr.bf16.mxu0 0
        %5414 = vmatmul.mubr.bf16.gmra.mrb[0].mxu0 %v5269
        %v5415 = vpop.f32.mrb[0].mxu0
        %v5416 = vadd.f32 0.0, %v5415
        %v5417 = vpop.f32.mrb[0].mxu0
        %v5418 = vpop.f32.mrb[0].mxu0
        %v5419 = vadd.f32 0.0, %v5418
        %v5420 = vpop.f32.mrb[0].mxu0
        %5421 = vmatprep.mubr.bf16.mxu0 0
        %5422 = vmatmul.mubr.bf16.gmra.mrb[0].mxu0 %v5272
        %v5423 = vpop.f32.mrb[0].mxu0
        %v5424 = vadd.f32 0.0, %v5423
        %v5425 = vpop.f32.mrb[0].mxu0
        %v5426 = vpop.f32.mrb[0].mxu0
        %v5427 = vadd.f32 0.0, %v5426
        %v5428 = vpop.f32.mrb[0].mxu0
        %5429 = vmatprep.mubr.bf16.mxu0 0
        %5430 = vmatmul.mubr.bf16.gmra.mrb[0].mxu0 %v5275
        %v5431 = vpop.f32.mrb[0].mxu0
        %v5432 = vadd.f32 0.0, %v5431
        %v5433 = vpop.f32.mrb[0].mxu0
        %v5434 = vpop.f32.mrb[0].mxu0
        %v5435 = vadd.f32 0.0, %v5434
        %v5436 = vpop.f32.mrb[0].mxu0
        %5437 = vdwg.mxu0
        %v5450 = vunpack.c.l.b16 %v4736
        %v5451 = vunpack.c.l.b16 %v4737
        %v5452 = vunpack.c.l.b16 %v4738
        %v5453 = vunpack.c.l.b16 %v4739
        %v5454 = vunpack.c.l.b16 %v4740
        %v5455 = vunpack.c.l.b16 %v4741
        %v5456 = vunpack.c.l.b16 %v4742
        %v5457 = vunpack.c.l.b16 %v4743
        %v5458 = vunpack.c.l.b16 %v4744
        %v5459 = vunpack.c.l.b16 %v4745
        %v5460 = vunpack.c.l.b16 %v4746
        %v5461 = vunpack.c.l.b16 %v4747
        %v5462 = vpack.c.b16 %v5451, %v5450
        %v5463 = vpack.c.b16 %v5453, %v5452
        %v5464 = vpack.c.b16 %v5455, %v5454
        %v5465 = vpack.c.b16 %v5457, %v5456
        %v5466 = vpack.c.b16 %v5459, %v5458
        %v5467 = vpack.c.b16 %v5461, %v5460
        %v5475 = vsel %vm2364, %v4720, 0
        %v5478 = vsel %vm2364, %v4721, 0
        %v5481 = vsel %vm2364, %v4722, 0
        %v5484 = vsel %vm2364, %v4723, 0
        %v5487 = vsel %vm2364, %v4724, 0
        %v5490 = vsel %vm2364, %v4725, 0
        %v5493 = vsel %vm2364, %v4726, 0
        %v5496 = vsel %vm2364, %v4727, 0
        %v5499 = vsel %vm2364, %v4728, 0
        %v5502 = vsel %vm2364, %v4729, 0
        %v5505 = vsel %vm2364, %v4730, 0
        %v5508 = vsel %vm2364, %v4731, 0
        %v5511 = vsel %vm2364, %v4732, 0
        %v5514 = vsel %vm2364, %v4733, 0
        %v5517 = vsel %vm2364, %v4734, 0
        %v5520 = vsel %vm2364, %v4735, 0
        %5522 = vmatprep.subr.bf16.mxu0 0
        %5523 = vmatpush1.bf16.msra.mxu0 %v5462
        %5524 = vmatprep.subr.bf16.mxu0 0
        %5525 = vmatpush1.bf16.msra.mxu0 %v5463
        %5526 = vmatprep.subr.bf16.mxu0 0
        %5527 = vmatpush1.bf16.msra.mxu0 %v5464
        %5528 = vmatprep.subr.bf16.mxu0 0
        %5529 = vmatpush1.bf16.msra.mxu0 %v5465
        %5530 = vmatprep.subr.bf16.mxu0 0
        %5531 = vmatpush1.bf16.msra.mxu0 %v5466
        %5532 = vmatprep.subr.bf16.mxu0 0
        %5533 = vmatpush1.bf16.msra.mxu0 %v5467
        %5534 = vmatprep.subr.bf16.mxu0 0
        %5535 = vmatpush1.bf16.msra.mxu0 0
        %5536 = vmatprep.subr.bf16.mxu0 0
        %5537 = vmatpush1.bf16.msra.mxu0 0
        %5538 = vmatprep.subr.bf16.mxu0 0
        %5539 = vmatpush1.bf16.msra.mxu0 0
        %5540 = vmatprep.subr.bf16.mxu0 0
        %5541 = vmatpush1.bf16.msra.mxu0 0
        %5542 = vmatprep.subr.bf16.mxu0 0
        %5543 = vmatpush1.bf16.msra.mxu0 0
        %5544 = vmatprep.subr.bf16.mxu0 0
        %5545 = vmatpush1.bf16.msra.mxu0 0
        %5546 = vmatprep.subr.bf16.mxu0 0
        %5547 = vmatpush1.bf16.msra.mxu0 0
        %5548 = vmatprep.subr.bf16.mxu0 0
        %5549 = vmatpush1.bf16.msra.mxu0 0
        %5550 = vmatprep.subr.bf16.mxu0 0
        %5551 = vmatpush1.bf16.msra.mxu0 0
        %5552 = vmatprep.subr.bf16.mxu0 0
        %5553 = vmatpush1.bf16.msra.mxu0 0
        %5554 = vmatprep.mubr.bf16.mxu0 0
        %5555 = vmatmul.mubr.bf16.gmra.mrb[0].mxu0 %v5475
        %v5556 = vpop.f32.mrb[0].mxu0
        %v5557 = vadd.f32 %v5312, %v5556
        %v5558 = vpop.f32.mrb[0].mxu0
        %v5559 = vpop.f32.mrb[0].mxu0
        %v5560 = vadd.f32 %v5315, %v5559
        %v5561 = vpop.f32.mrb[0].mxu0
        %5562 = vmatprep.mubr.bf16.mxu0 0
        %5563 = vmatmul.mubr.bf16.gmra.mrb[0].mxu0 %v5478
        %v5564 = vpop.f32.mrb[0].mxu0
        %v5565 = vadd.f32 %v5320, %v5564
        %v5566 = vpop.f32.mrb[0].mxu0
        %v5567 = vpop.f32.mrb[0].mxu0
        %v5568 = vadd.f32 %v5323, %v5567
        %v5569 = vpop.f32.mrb[0].mxu0
        %5570 = vmatprep.mubr.bf16.mxu0 0
        %5571 = vmatmul.mubr.bf16.gmra.mrb[0].mxu0 %v5481
        %v5572 = vpop.f32.mrb[0].mxu0
        %v5573 = vadd.f32 %v5328, %v5572
        %v5574 = vpop.f32.mrb[0].mxu0
        %v5575 = vpop.f32.mrb[0].mxu0
        %v5576 = vadd.f32 %v5331, %v5575
        %v5577 = vpop.f32.mrb[0].mxu0
        %5578 = vmatprep.mubr.bf16.mxu0 0
        %5579 = vmatmul.mubr.bf16.gmra.mrb[0].mxu0 %v5484
        %v5580 = vpop.f32.mrb[0].mxu0
        %v5581 = vadd.f32 %v5336, %v5580
        %v5582 = vpop.f32.mrb[0].mxu0
        %v5583 = vpop.f32.mrb[0].mxu0
        %v5584 = vadd.f32 %v5339, %v5583
        %v5585 = vpop.f32.mrb[0].mxu0
        %5586 = vmatprep.mubr.bf16.mxu0 0
        %5587 = vmatmul.mubr.bf16.gmra.mrb[0].mxu0 %v5487
        %v5588 = vpop.f32.mrb[0].mxu0
        %v5589 = vadd.f32 %v5344, %v5588
        %v5590 = vpop.f32.mrb[0].mxu0
        %v5591 = vpop.f32.mrb[0].mxu0
        %v5592 = vadd.f32 %v5347, %v5591
        %v5593 = vpop.f32.mrb[0].mxu0
        %5594 = vmatprep.mubr.bf16.mxu0 0
        %5595 = vmatmul.mubr.bf16.gmra.mrb[0].mxu0 %v5490
        %v5596 = vpop.f32.mrb[0].mxu0
        %v5597 = vadd.f32 %v5352, %v5596
        %v5598 = vpop.f32.mrb[0].mxu0
        %v5599 = vpop.f32.mrb[0].mxu0
        %v5600 = vadd.f32 %v5355, %v5599
        %v5601 = vpop.f32.mrb[0].mxu0
        %5602 = vmatprep.mubr.bf16.mxu0 0
        %5603 = vmatmul.mubr.bf16.gmra.mrb[0].mxu0 %v5493
        %v5604 = vpop.f32.mrb[0].mxu0
        %v5605 = vadd.f32 %v5360, %v5604
        %v5606 = vpop.f32.mrb[0].mxu0
        %v5607 = vpop.f32.mrb[0].mxu0
        %v5608 = vadd.f32 %v5363, %v5607
        %v5609 = vpop.f32.mrb[0].mxu0
        %5610 = vmatprep.mubr.bf16.mxu0 0
        %5611 = vmatmul.mubr.bf16.gmra.mrb[0].mxu0 %v5496
        %v5612 = vpop.f32.mrb[0].mxu0
        %v5613 = vadd.f32 %v5368, %v5612
        %v5614 = vpop.f32.mrb[0].mxu0
        %v5615 = vpop.f32.mrb[0].mxu0
        %v5616 = vadd.f32 %v5371, %v5615
        %v5617 = vpop.f32.mrb[0].mxu0
        %5618 = vmatprep.mubr.bf16.mxu0 0
        %5619 = vmatmul.mubr.bf16.gmra.mrb[0].mxu0 %v5499
        %v5620 = vpop.f32.mrb[0].mxu0
        %v5621 = vadd.f32 %v5376, %v5620
        %v5622 = vpop.f32.mrb[0].mxu0
        %v5623 = vpop.f32.mrb[0].mxu0
        %v5624 = vadd.f32 %v5379, %v5623
        %v5625 = vpop.f32.mrb[0].mxu0
        %5626 = vmatprep.mubr.bf16.mxu0 0
        %5627 = vmatmul.mubr.bf16.gmra.mrb[0].mxu0 %v5502
        %v5628 = vpop.f32.mrb[0].mxu0
        %v5629 = vadd.f32 %v5384, %v5628
        %v5630 = vpop.f32.mrb[0].mxu0
        %v5631 = vpop.f32.mrb[0].mxu0
        %v5632 = vadd.f32 %v5387, %v5631
        %v5633 = vpop.f32.mrb[0].mxu0
        %5634 = vmatprep.mubr.bf16.mxu0 0
        %5635 = vmatmul.mubr.bf16.gmra.mrb[0].mxu0 %v5505
        %v5636 = vpop.f32.mrb[0].mxu0
        %v5637 = vadd.f32 %v5392, %v5636
        %v5638 = vpop.f32.mrb[0].mxu0
        %v5639 = vpop.f32.mrb[0].mxu0
        %v5640 = vadd.f32 %v5395, %v5639
        %v5641 = vpop.f32.mrb[0].mxu0
        %5642 = vmatprep.mubr.bf16.mxu0 0
        %5643 = vmatmul.mubr.bf16.gmra.mrb[0].mxu0 %v5508
        %v5644 = vpop.f32.mrb[0].mxu0
        %v5645 = vadd.f32 %v5400, %v5644
        %v5646 = vpop.f32.mrb[0].mxu0
        %v5647 = vpop.f32.mrb[0].mxu0
        %v5648 = vadd.f32 %v5403, %v5647
        %v5649 = vpop.f32.mrb[0].mxu0
        %5650 = vmatprep.mubr.bf16.mxu0 0
        %5651 = vmatmul.mubr.bf16.gmra.mrb[0].mxu0 %v5511
        %v5652 = vpop.f32.mrb[0].mxu0
        %v5653 = vadd.f32 %v5408, %v5652
        %v5654 = vpop.f32.mrb[0].mxu0
        %v5655 = vpop.f32.mrb[0].mxu0
        %v5656 = vadd.f32 %v5411, %v5655
        %v5657 = vpop.f32.mrb[0].mxu0
        %5658 = vmatprep.mubr.bf16.mxu0 0
        %5659 = vmatmul.mubr.bf16.gmra.mrb[0].mxu0 %v5514
        %v5660 = vpop.f32.mrb[0].mxu0
        %v5661 = vadd.f32 %v5416, %v5660
        %v5662 = vpop.f32.mrb[0].mxu0
        %v5663 = vpop.f32.mrb[0].mxu0
        %v5664 = vadd.f32 %v5419, %v5663
        %v5665 = vpop.f32.mrb[0].mxu0
        %5666 = vmatprep.mubr.bf16.mxu0 0
        %5667 = vmatmul.mubr.bf16.gmra.mrb[0].mxu0 %v5517
        %v5668 = vpop.f32.mrb[0].mxu0
        %v5669 = vadd.f32 %v5424, %v5668
        %v5670 = vpop.f32.mrb[0].mxu0
        %v5671 = vpop.f32.mrb[0].mxu0
        %v5672 = vadd.f32 %v5427, %v5671
        %v5673 = vpop.f32.mrb[0].mxu0
        %5674 = vmatprep.mubr.bf16.mxu0 0
        %5675 = vmatmul.mubr.bf16.gmra.mrb[0].mxu0 %v5520
        %v5676 = vpop.f32.mrb[0].mxu0
        %v5677 = vadd.f32 %v5432, %v5676
        %v5678 = vpop.f32.mrb[0].mxu0
        %v5679 = vpop.f32.mrb[0].mxu0
        %v5680 = vadd.f32 %v5435, %v5679
        %v5681 = vpop.f32.mrb[0].mxu0
        %5682 = vdwg.mxu0
        %v5683 = vld [vmem:[%s2819] sm:$0xff]
        %v5684 = vld [vmem:[%s2819 + $0x8] sm:$0xff]
        %v5685 = vld [vmem:[%s2819 + $0x18] sm:$0xff]
        %v5686 = vld [vmem:[%s2819 + $0x20] sm:$0xff]
        %v5687 = vld [vmem:[%s2819 + $0x30] sm:$0xff]
        %v5688 = vld [vmem:[%s2819 + $0x38] sm:$0xff]
        %v5689 = vld [vmem:[%s2819 + $0x48] sm:$0xff]
        %v5690 = vld [vmem:[%s2819 + $0x50] sm:$0xff]
        %v5691 = vld [vmem:[%s2819 + $0x60] sm:$0xff]
        %v5692 = vld [vmem:[%s2819 + $0x68] sm:$0xff]
        %v5693 = vld [vmem:[%s2819 + $0x78] sm:$0xff]
        %v5694 = vld [vmem:[%s2819 + $0x80] sm:$0xff]
        %v5695 = vld [vmem:[%s2819 + $0x90] sm:$0xff]
        %v5696 = vld [vmem:[%s2819 + $0x98] sm:$0xff]
        %v5697 = vld [vmem:[%s2819 + $0xa8] sm:$0xff]
        %v5698 = vld [vmem:[%s2819 + $0xb0] sm:$0xff]
        %v5699 = vld [vmem:[%s2819 + $0xc0] sm:$0xff]
        %v5700 = vld [vmem:[%s2819 + $0xc8] sm:$0xff]
        %v5701 = vld [vmem:[%s2819 + $0xd8] sm:$0xff]
        %v5702 = vld [vmem:[%s2819 + $0xe0] sm:$0xff]
        %v5703 = vld [vmem:[%s2819 + $0xf0] sm:$0xff]
        %v5704 = vld [vmem:[%s2819 + $0xf8] sm:$0xff]
        %v5705 = vld [vmem:[%s2819 + $0x108] sm:$0xff]
        %v5706 = vld [vmem:[%s2819 + $0x110] sm:$0xff]
        %v5707 = vld [vmem:[%s2819 + $0x120] sm:$0xff]
        %v5708 = vld [vmem:[%s2819 + $0x128] sm:$0xff]
        %v5709 = vld [vmem:[%s2819 + $0x138] sm:$0xff]
        %v5710 = vld [vmem:[%s2819 + $0x140] sm:$0xff]
        %v5711 = vld [vmem:[%s2819 + $0x150] sm:$0xff]
        %v5712 = vld [vmem:[%s2819 + $0x158] sm:$0xff]
        %v5713 = vld [vmem:[%s2819 + $0x168] sm:$0xff]
        %v5714 = vld [vmem:[%s2819 + $0x170] sm:$0xff]
        %v5715 = vld [vmem:[%s2819 + $0x1] sm:$0xff]
        %v5716 = vld [vmem:[%s2819 + $0x9] sm:$0xff]
        %v5717 = vld [vmem:[%s2819 + $0x19] sm:$0xff]
        %v5718 = vld [vmem:[%s2819 + $0x21] sm:$0xff]
        %v5719 = vld [vmem:[%s2819 + $0x31] sm:$0xff]
        %v5720 = vld [vmem:[%s2819 + $0x39] sm:$0xff]
        %v5721 = vld [vmem:[%s2819 + $0x49] sm:$0xff]
        %v5722 = vld [vmem:[%s2819 + $0x51] sm:$0xff]
        %v5723 = vld [vmem:[%s2819 + $0x61] sm:$0xff]
        %v5724 = vld [vmem:[%s2819 + $0x69] sm:$0xff]
        %v5725 = vld [vmem:[%s2819 + $0x79] sm:$0xff]
        %v5726 = vld [vmem:[%s2819 + $0x81] sm:$0xff]
        %v5727 = vld [vmem:[%s2819 + $0x91] sm:$0xff]
        %v5728 = vld [vmem:[%s2819 + $0x99] sm:$0xff]
        %v5729 = vld [vmem:[%s2819 + $0xa9] sm:$0xff]
        %v5730 = vld [vmem:[%s2819 + $0xb1] sm:$0xff]
        %v5731 = vld [vmem:[%s2819 + $0xc1] sm:$0xff]
        %v5732 = vld [vmem:[%s2819 + $0xc9] sm:$0xff]
        %v5733 = vld [vmem:[%s2819 + $0xd9] sm:$0xff]
        %v5734 = vld [vmem:[%s2819 + $0xe1] sm:$0xff]
        %v5735 = vld [vmem:[%s2819 + $0xf1] sm:$0xff]
        %v5736 = vld [vmem:[%s2819 + $0xf9] sm:$0xff]
        %v5737 = vld [vmem:[%s2819 + $0x109] sm:$0xff]
        %v5738 = vld [vmem:[%s2819 + $0x111] sm:$0xff]
        %v5739 = vld [vmem:[%s2819 + $0x121] sm:$0xff]
        %v5740 = vld [vmem:[%s2819 + $0x129] sm:$0xff]
        %v5741 = vld [vmem:[%s2819 + $0x139] sm:$0xff]
        %v5742 = vld [vmem:[%s2819 + $0x141] sm:$0xff]
        %v5743 = vld [vmem:[%s2819 + $0x151] sm:$0xff]
        %v5744 = vld [vmem:[%s2819 + $0x159] sm:$0xff]
        %v5745 = vld [vmem:[%s2819 + $0x169] sm:$0xff]
        %v5746 = vld [vmem:[%s2819 + $0x171] sm:$0xff]
        %v5747 = vld [vmem:[%s2819 + $0x2] sm:$0xff]
        %v5748 = vld [vmem:[%s2819 + $0xa] sm:$0xff]
        %v5749 = vld [vmem:[%s2819 + $0x1a] sm:$0xff]
        %v5750 = vld [vmem:[%s2819 + $0x22] sm:$0xff]
        %v5751 = vld [vmem:[%s2819 + $0x32] sm:$0xff]
        %v5752 = vld [vmem:[%s2819 + $0x3a] sm:$0xff]
        %v5753 = vld [vmem:[%s2819 + $0x4a] sm:$0xff]
        %v5754 = vld [vmem:[%s2819 + $0x52] sm:$0xff]
        %v5755 = vld [vmem:[%s2819 + $0x62] sm:$0xff]
        %v5756 = vld [vmem:[%s2819 + $0x6a] sm:$0xff]
        %v5757 = vld [vmem:[%s2819 + $0x7a] sm:$0xff]
        %v5758 = vld [vmem:[%s2819 + $0x82] sm:$0xff]
        %v5759 = vld [vmem:[%s2819 + $0x92] sm:$0xff]
        %v5760 = vld [vmem:[%s2819 + $0x9a] sm:$0xff]
        %v5761 = vld [vmem:[%s2819 + $0xaa] sm:$0xff]
        %v5762 = vld [vmem:[%s2819 + $0xb2] sm:$0xff]
        %v5763 = vld [vmem:[%s2819 + $0xc2] sm:$0xff]
        %v5764 = vld [vmem:[%s2819 + $0xca] sm:$0xff]
        %v5765 = vld [vmem:[%s2819 + $0xda] sm:$0xff]
        %v5766 = vld [vmem:[%s2819 + $0xe2] sm:$0xff]
        %v5767 = vld [vmem:[%s2819 + $0xf2] sm:$0xff]
        %v5768 = vld [vmem:[%s2819 + $0xfa] sm:$0xff]
        %v5769 = vld [vmem:[%s2819 + $0x10a] sm:$0xff]
        %v5770 = vld [vmem:[%s2819 + $0x112] sm:$0xff]
        %v5771 = vld [vmem:[%s2819 + $0x122] sm:$0xff]
        %v5772 = vld [vmem:[%s2819 + $0x12a] sm:$0xff]
        %v5773 = vld [vmem:[%s2819 + $0x13a] sm:$0xff]
        %v5774 = vld [vmem:[%s2819 + $0x142] sm:$0xff]
        %v5775 = vld [vmem:[%s2819 + $0x152] sm:$0xff]
        %v5776 = vld [vmem:[%s2819 + $0x15a] sm:$0xff]
        %v5777 = vld [vmem:[%s2819 + $0x16a] sm:$0xff]
        %v5778 = vld [vmem:[%s2819 + $0x172] sm:$0xff]
        %5811 = vrot.lane.b32.xlu0 %v5715, 32
        %v5812 = vpop.permute.xlu0 %5811
        %5813 = vrot.lane.b32.xlu0 %v5716, 32
        %v5814 = vpop.permute.xlu0 %5813
        %5815 = vrot.lane.b32.xlu0 %v5717, 32
        %v5816 = vpop.permute.xlu0 %5815
        %5817 = vrot.lane.b32.xlu0 %v5718, 32
        %v5818 = vpop.permute.xlu0 %5817
        %5819 = vrot.lane.b32.xlu0 %v5719, 32
        %v5820 = vpop.permute.xlu0 %5819
        %5821 = vrot.lane.b32.xlu0 %v5720, 32
        %v5822 = vpop.permute.xlu0 %5821
        %5823 = vrot.lane.b32.xlu0 %v5721, 32
        %v5824 = vpop.permute.xlu0 %5823
        %5825 = vrot.lane.b32.xlu0 %v5722, 32
        %v5826 = vpop.permute.xlu0 %5825
        %5827 = vrot.lane.b32.xlu0 %v5723, 32
        %v5828 = vpop.permute.xlu0 %5827
        %5829 = vrot.lane.b32.xlu0 %v5724, 32
        %v5830 = vpop.permute.xlu0 %5829
        %5831 = vrot.lane.b32.xlu0 %v5725, 32
        %v5832 = vpop.permute.xlu0 %5831
        %5833 = vrot.lane.b32.xlu0 %v5726, 32
        %v5834 = vpop.permute.xlu0 %5833
        %5835 = vrot.lane.b32.xlu0 %v5727, 32
        %v5836 = vpop.permute.xlu0 %5835
        %5837 = vrot.lane.b32.xlu0 %v5728, 32
        %v5838 = vpop.permute.xlu0 %5837
        %5839 = vrot.lane.b32.xlu0 %v5729, 32
        %v5840 = vpop.permute.xlu0 %5839
        %5841 = vrot.lane.b32.xlu0 %v5730, 32
        %v5842 = vpop.permute.xlu0 %5841
        %5843 = vrot.lane.b32.xlu0 %v5731, 32
        %v5844 = vpop.permute.xlu0 %5843
        %5845 = vrot.lane.b32.xlu0 %v5732, 32
        %v5846 = vpop.permute.xlu0 %5845
        %5847 = vrot.lane.b32.xlu0 %v5733, 32
        %v5848 = vpop.permute.xlu0 %5847
        %5849 = vrot.lane.b32.xlu0 %v5734, 32
        %v5850 = vpop.permute.xlu0 %5849
        %5851 = vrot.lane.b32.xlu0 %v5735, 32
        %v5852 = vpop.permute.xlu0 %5851
        %5853 = vrot.lane.b32.xlu0 %v5736, 32
        %v5854 = vpop.permute.xlu0 %5853
        %5855 = vrot.lane.b32.xlu0 %v5737, 32
        %v5856 = vpop.permute.xlu0 %5855
        %5857 = vrot.lane.b32.xlu0 %v5738, 32
        %v5858 = vpop.permute.xlu0 %5857
        %5859 = vrot.lane.b32.xlu0 %v5739, 32
        %v5860 = vpop.permute.xlu0 %5859
        %5861 = vrot.lane.b32.xlu0 %v5740, 32
        %v5862 = vpop.permute.xlu0 %5861
        %5863 = vrot.lane.b32.xlu0 %v5741, 32
        %v5864 = vpop.permute.xlu0 %5863
        %5865 = vrot.lane.b32.xlu0 %v5742, 32
        %v5866 = vpop.permute.xlu0 %5865
        %5867 = vrot.lane.b32.xlu0 %v5743, 32
        %v5868 = vpop.permute.xlu0 %5867
        %5869 = vrot.lane.b32.xlu0 %v5744, 32
        %v5870 = vpop.permute.xlu0 %5869
        %5871 = vrot.lane.b32.xlu0 %v5745, 32
        %v5872 = vpop.permute.xlu0 %5871
        %5873 = vrot.lane.b32.xlu0 %v5746, 32
        %v5874 = vpop.permute.xlu0 %5873
        %5939 = vrot.lane.b32.xlu0 %v5747, 64
        %v5940 = vpop.permute.xlu0 %5939
        %5941 = vrot.lane.b32.xlu0 %v5748, 64
        %v5942 = vpop.permute.xlu0 %5941
        %5943 = vrot.lane.b32.xlu0 %v5749, 64
        %v5944 = vpop.permute.xlu0 %5943
        %5945 = vrot.lane.b32.xlu0 %v5750, 64
        %v5946 = vpop.permute.xlu0 %5945
        %5947 = vrot.lane.b32.xlu0 %v5751, 64
        %v5948 = vpop.permute.xlu0 %5947
        %5949 = vrot.lane.b32.xlu0 %v5752, 64
        %v5950 = vpop.permute.xlu0 %5949
        %5951 = vrot.lane.b32.xlu0 %v5753, 64
        %v5952 = vpop.permute.xlu0 %5951
        %5953 = vrot.lane.b32.xlu0 %v5754, 64
        %v5954 = vpop.permute.xlu0 %5953
        %5955 = vrot.lane.b32.xlu0 %v5755, 64
        %v5956 = vpop.permute.xlu0 %5955
        %5957 = vrot.lane.b32.xlu0 %v5756, 64
        %v5958 = vpop.permute.xlu0 %5957
        %5959 = vrot.lane.b32.xlu0 %v5757, 64
        %v5960 = vpop.permute.xlu0 %5959
        %5961 = vrot.lane.b32.xlu0 %v5758, 64
        %v5962 = vpop.permute.xlu0 %5961
        %5963 = vrot.lane.b32.xlu0 %v5759, 64
        %v5964 = vpop.permute.xlu0 %5963
        %5965 = vrot.lane.b32.xlu0 %v5760, 64
        %v5966 = vpop.permute.xlu0 %5965
        %5967 = vrot.lane.b32.xlu0 %v5761, 64
        %v5968 = vpop.permute.xlu0 %5967
        %5969 = vrot.lane.b32.xlu0 %v5762, 64
        %v5970 = vpop.permute.xlu0 %5969
        %5971 = vrot.lane.b32.xlu0 %v5763, 64
        %v5972 = vpop.permute.xlu0 %5971
        %5973 = vrot.lane.b32.xlu0 %v5764, 64
        %v5974 = vpop.permute.xlu0 %5973
        %5975 = vrot.lane.b32.xlu0 %v5765, 64
        %v5976 = vpop.permute.xlu0 %5975
        %5977 = vrot.lane.b32.xlu0 %v5766, 64
        %v5978 = vpop.permute.xlu0 %5977
        %5979 = vrot.lane.b32.xlu0 %v5767, 64
        %v5980 = vpop.permute.xlu0 %5979
        %5981 = vrot.lane.b32.xlu0 %v5768, 64
        %v5982 = vpop.permute.xlu0 %5981
        %5983 = vrot.lane.b32.xlu0 %v5769, 64
        %v5984 = vpop.permute.xlu0 %5983
        %5985 = vrot.lane.b32.xlu0 %v5770, 64
        %v5986 = vpop.permute.xlu0 %5985
        %5987 = vrot.lane.b32.xlu0 %v5771, 64
        %v5988 = vpop.permute.xlu0 %5987
        %5989 = vrot.lane.b32.xlu0 %v5772, 64
        %v5990 = vpop.permute.xlu0 %5989
        %5991 = vrot.lane.b32.xlu0 %v5773, 64
        %v5992 = vpop.permute.xlu0 %5991
        %5993 = vrot.lane.b32.xlu0 %v5774, 64
        %v5994 = vpop.permute.xlu0 %5993
        %5995 = vrot.lane.b32.xlu0 %v5775, 64
        %v5996 = vpop.permute.xlu0 %5995
        %5997 = vrot.lane.b32.xlu0 %v5776, 64
        %v5998 = vpop.permute.xlu0 %5997
        %5999 = vrot.lane.b32.xlu0 %v5777, 64
        %v6000 = vpop.permute.xlu0 %5999
        %6001 = vrot.lane.b32.xlu0 %v5778, 64
        %v6002 = vpop.permute.xlu0 %6001
        %v6035 = vsel %vm508, %v5683, %v5812
        %v6036 = vsel %vm508, %v5684, %v5814
        %v6037 = vsel %vm508, %v5685, %v5816
        %v6038 = vsel %vm508, %v5686, %v5818
        %v6039 = vsel %vm508, %v5687, %v5820
        %v6040 = vsel %vm508, %v5688, %v5822
        %v6041 = vsel %vm508, %v5689, %v5824
        %v6042 = vsel %vm508, %v5690, %v5826
        %v6043 = vsel %vm508, %v5691, %v5828
        %v6044 = vsel %vm508, %v5692, %v5830
        %v6045 = vsel %vm508, %v5693, %v5832
        %v6046 = vsel %vm508, %v5694, %v5834
        %v6047 = vsel %vm508, %v5695, %v5836
        %v6048 = vsel %vm508, %v5696, %v5838
        %v6049 = vsel %vm508, %v5697, %v5840
        %v6050 = vsel %vm508, %v5698, %v5842
        %v6051 = vsel %vm508, %v5699, %v5844
        %v6052 = vsel %vm508, %v5700, %v5846
        %v6053 = vsel %vm508, %v5701, %v5848
        %v6054 = vsel %vm508, %v5702, %v5850
        %v6055 = vsel %vm508, %v5703, %v5852
        %v6056 = vsel %vm508, %v5704, %v5854
        %v6057 = vsel %vm508, %v5705, %v5856
        %v6058 = vsel %vm508, %v5706, %v5858
        %v6059 = vsel %vm508, %v5707, %v5860
        %v6060 = vsel %vm508, %v5708, %v5862
        %v6061 = vsel %vm508, %v5709, %v5864
        %v6062 = vsel %vm508, %v5710, %v5866
        %v6063 = vsel %vm508, %v5711, %v5868
        %v6064 = vsel %vm508, %v5712, %v5870
        %v6065 = vsel %vm508, %v5713, %v5872
        %v6066 = vsel %vm508, %v5714, %v5874
        %v6067 = vsel %vm1822, %v6035, %v5940
        %v6068 = vsel %vm1822, %v6036, %v5942
        %v6069 = vsel %vm1822, %v6037, %v5944
        %v6070 = vsel %vm1822, %v6038, %v5946
        %v6071 = vsel %vm1822, %v6039, %v5948
        %v6072 = vsel %vm1822, %v6040, %v5950
        %v6073 = vsel %vm1822, %v6041, %v5952
        %v6074 = vsel %vm1822, %v6042, %v5954
        %v6075 = vsel %vm1822, %v6043, %v5956
        %v6076 = vsel %vm1822, %v6044, %v5958
        %v6077 = vsel %vm1822, %v6045, %v5960
        %v6078 = vsel %vm1822, %v6046, %v5962
        %v6079 = vsel %vm1822, %v6047, %v5964
        %v6080 = vsel %vm1822, %v6048, %v5966
        %v6081 = vsel %vm1822, %v6049, %v5968
        %v6082 = vsel %vm1822, %v6050, %v5970
        %v6083 = vsel %vm1822, %v6051, %v5972
        %v6084 = vsel %vm1822, %v6052, %v5974
        %v6085 = vsel %vm1822, %v6053, %v5976
        %v6086 = vsel %vm1822, %v6054, %v5978
        %v6087 = vsel %vm1822, %v6055, %v5980
        %v6088 = vsel %vm1822, %v6056, %v5982
        %v6089 = vsel %vm1822, %v6057, %v5984
        %v6090 = vsel %vm1822, %v6058, %v5986
        %v6091 = vsel %vm1822, %v6059, %v5988
        %v6092 = vsel %vm1822, %v6060, %v5990
        %v6093 = vsel %vm1822, %v6061, %v5992
        %v6094 = vsel %vm1822, %v6062, %v5994
        %v6095 = vsel %vm1822, %v6063, %v5996
        %v6096 = vsel %vm1822, %v6064, %v5998
        %v6097 = vsel %vm1822, %v6065, %v6000
        %v6098 = vsel %vm1822, %v6066, %v6002
        %v6099 = vpack.c.bf16 %v6068, %v6067
        %v6100 = vpack.c.bf16 %v6070, %v6069
        %v6101 = vpack.c.bf16 %v6072, %v6071
        %v6102 = vpack.c.bf16 %v6074, %v6073
        %v6103 = vpack.c.bf16 %v6076, %v6075
        %v6104 = vpack.c.bf16 %v6078, %v6077
        %v6105 = vpack.c.bf16 %v6080, %v6079
        %v6106 = vpack.c.bf16 %v6082, %v6081
        %v6107 = vpack.c.bf16 %v6084, %v6083
        %v6108 = vpack.c.bf16 %v6086, %v6085
        %v6109 = vpack.c.bf16 %v6088, %v6087
        %v6110 = vpack.c.bf16 %v6090, %v6089
        %v6111 = vpack.c.bf16 %v6092, %v6091
        %v6112 = vpack.c.bf16 %v6094, %v6093
        %v6113 = vpack.c.bf16 %v6096, %v6095
        %v6114 = vpack.c.bf16 %v6098, %v6097
        %s6115 = scalar_lea.vmem %s11, 96
        %v6116 = vld [vmem:[%s6115] sm:$0xf]
        %v6117 = vld [vmem:[%s6115 + $0x4] sm:$0xf]
        %v6118 = vld [vmem:[%s6115 + $0x8] sm:$0xf]
        %v6119 = vld [vmem:[%s6115 + $0xc] sm:$0xf]
        %v6120 = vld [vmem:[%s6115 + $0x10] sm:$0xf]
        %v6121 = vld [vmem:[%s6115 + $0x14] sm:$0xf]
        %v6122 = vld [vmem:[%s6115 + $0x18] sm:$0xf]
        %v6123 = vld [vmem:[%s6115 + $0x1c] sm:$0xf]
        %v6124 = vld [vmem:[%s6115 + $0x20] sm:$0xf]
        %v6125 = vld [vmem:[%s6115 + $0x24] sm:$0xf]
        %v6126 = vld [vmem:[%s6115 + $0x28] sm:$0xf]
        %v6127 = vld [vmem:[%s6115 + $0x2c] sm:$0xf]
        %v6140 = vunpack.c.l.b16 %v6116
        %v6141 = vunpack.c.l.b16 %v6117
        %v6142 = vunpack.c.l.b16 %v6118
        %v6143 = vunpack.c.l.b16 %v6119
        %v6144 = vunpack.c.l.b16 %v6120
        %v6145 = vunpack.c.l.b16 %v6121
        %v6146 = vunpack.c.l.b16 %v6122
        %v6147 = vunpack.c.l.b16 %v6123
        %v6148 = vunpack.c.l.b16 %v6124
        %v6149 = vunpack.c.l.b16 %v6125
        %v6150 = vunpack.c.l.b16 %v6126
        %v6151 = vunpack.c.l.b16 %v6127
        %v6152 = vpack.c.b16 %v6141, %v6140
        %v6153 = vpack.c.b16 %v6143, %v6142
        %v6154 = vpack.c.b16 %v6145, %v6144
        %v6155 = vpack.c.b16 %v6147, %v6146
        %v6156 = vpack.c.b16 %v6149, %v6148
        %v6157 = vpack.c.b16 %v6151, %v6150
        %v6165 = vsel %vm2364, %v6099, 0
        %v6168 = vsel %vm2364, %v6100, 0
        %v6171 = vsel %vm2364, %v6101, 0
        %v6174 = vsel %vm2364, %v6102, 0
        %v6177 = vsel %vm2364, %v6103, 0
        %v6180 = vsel %vm2364, %v6104, 0
        %v6183 = vsel %vm2364, %v6105, 0
        %v6186 = vsel %vm2364, %v6106, 0
        %v6189 = vsel %vm2364, %v6107, 0
        %v6192 = vsel %vm2364, %v6108, 0
        %v6195 = vsel %vm2364, %v6109, 0
        %v6198 = vsel %vm2364, %v6110, 0
        %v6201 = vsel %vm2364, %v6111, 0
        %v6204 = vsel %vm2364, %v6112, 0
        %v6207 = vsel %vm2364, %v6113, 0
        %v6210 = vsel %vm2364, %v6114, 0
        %6212 = vmatprep.subr.bf16.mxu0 0
        %6213 = vmatpush1.bf16.msra.mxu0 %v6152
        %6214 = vmatprep.subr.bf16.mxu0 0
        %6215 = vmatpush1.bf16.msra.mxu0 %v6153
        %6216 = vmatprep.subr.bf16.mxu0 0
        %6217 = vmatpush1.bf16.msra.mxu0 %v6154
        %6218 = vmatprep.subr.bf16.mxu0 0
        %6219 = vmatpush1.bf16.msra.mxu0 %v6155
        %6220 = vmatprep.subr.bf16.mxu0 0
        %6221 = vmatpush1.bf16.msra.mxu0 %v6156
        %6222 = vmatprep.subr.bf16.mxu0 0
        %6223 = vmatpush1.bf16.msra.mxu0 %v6157
        %6224 = vmatprep.subr.bf16.mxu0 0
        %6225 = vmatpush1.bf16.msra.mxu0 0
        %6226 = vmatprep.subr.bf16.mxu0 0
        %6227 = vmatpush1.bf16.msra.mxu0 0
        %6228 = vmatprep.subr.bf16.mxu0 0
        %6229 = vmatpush1.bf16.msra.mxu0 0
        %6230 = vmatprep.subr.bf16.mxu0 0
        %6231 = vmatpush1.bf16.msra.mxu0 0
        %6232 = vmatprep.subr.bf16.mxu0 0
        %6233 = vmatpush1.bf16.msra.mxu0 0
        %6234 = vmatprep.subr.bf16.mxu0 0
        %6235 = vmatpush1.bf16.msra.mxu0 0
        %6236 = vmatprep.subr.bf16.mxu0 0
        %6237 = vmatpush1.bf16.msra.mxu0 0
        %6238 = vmatprep.subr.bf16.mxu0 0
        %6239 = vmatpush1.bf16.msra.mxu0 0
        %6240 = vmatprep.subr.bf16.mxu0 0
        %6241 = vmatpush1.bf16.msra.mxu0 0
        %6242 = vmatprep.subr.bf16.mxu0 0
        %6243 = vmatpush1.bf16.msra.mxu0 0
        %6244 = vmatprep.mubr.bf16.mxu0 0
        %6245 = vmatmul.mubr.bf16.gmra.mrb[0].mxu0 %v6165
        %v6246 = vpop.f32.mrb[0].mxu0
        %v6247 = vadd.f32 0.0, %v6246
        %v6248 = vpop.f32.mrb[0].mxu0
        %v6249 = vpop.f32.mrb[0].mxu0
        %v6250 = vadd.f32 0.0, %v6249
        %v6251 = vpop.f32.mrb[0].mxu0
        %6252 = vmatprep.mubr.bf16.mxu0 0
        %6253 = vmatmul.mubr.bf16.gmra.mrb[0].mxu0 %v6168
        %v6254 = vpop.f32.mrb[0].mxu0
        %v6255 = vadd.f32 0.0, %v6254
        %v6256 = vpop.f32.mrb[0].mxu0
        %v6257 = vpop.f32.mrb[0].mxu0
        %v6258 = vadd.f32 0.0, %v6257
        %v6259 = vpop.f32.mrb[0].mxu0
        %6260 = vmatprep.mubr.bf16.mxu0 0
        %6261 = vmatmul.mubr.bf16.gmra.mrb[0].mxu0 %v6171
        %v6262 = vpop.f32.mrb[0].mxu0
        %v6263 = vadd.f32 0.0, %v6262
        %v6264 = vpop.f32.mrb[0].mxu0
        %v6265 = vpop.f32.mrb[0].mxu0
        %v6266 = vadd.f32 0.0, %v6265
        %v6267 = vpop.f32.mrb[0].mxu0
        %6268 = vmatprep.mubr.bf16.mxu0 0
        %6269 = vmatmul.mubr.bf16.gmra.mrb[0].mxu0 %v6174
        %v6270 = vpop.f32.mrb[0].mxu0
        %v6271 = vadd.f32 0.0, %v6270
        %v6272 = vpop.f32.mrb[0].mxu0
        %v6273 = vpop.f32.mrb[0].mxu0
        %v6274 = vadd.f32 0.0, %v6273
        %v6275 = vpop.f32.mrb[0].mxu0
        %6276 = vmatprep.mubr.bf16.mxu0 0
        %6277 = vmatmul.mubr.bf16.gmra.mrb[0].mxu0 %v6177
        %v6278 = vpop.f32.mrb[0].mxu0
        %v6279 = vadd.f32 0.0, %v6278
        %v6280 = vpop.f32.mrb[0].mxu0
        %v6281 = vpop.f32.mrb[0].mxu0
        %v6282 = vadd.f32 0.0, %v6281
        %v6283 = vpop.f32.mrb[0].mxu0
        %6284 = vmatprep.mubr.bf16.mxu0 0
        %6285 = vmatmul.mubr.bf16.gmra.mrb[0].mxu0 %v6180
        %v6286 = vpop.f32.mrb[0].mxu0
        %v6287 = vadd.f32 0.0, %v6286
        %v6288 = vpop.f32.mrb[0].mxu0
        %v6289 = vpop.f32.mrb[0].mxu0
        %v6290 = vadd.f32 0.0, %v6289
        %v6291 = vpop.f32.mrb[0].mxu0
        %6292 = vmatprep.mubr.bf16.mxu0 0
        %6293 = vmatmul.mubr.bf16.gmra.mrb[0].mxu0 %v6183
        %v6294 = vpop.f32.mrb[0].mxu0
        %v6295 = vadd.f32 0.0, %v6294
        %v6296 = vpop.f32.mrb[0].mxu0
        %v6297 = vpop.f32.mrb[0].mxu0
        %v6298 = vadd.f32 0.0, %v6297
        %v6299 = vpop.f32.mrb[0].mxu0
        %6300 = vmatprep.mubr.bf16.mxu0 0
        %6301 = vmatmul.mubr.bf16.gmra.mrb[0].mxu0 %v6186
        %v6302 = vpop.f32.mrb[0].mxu0
        %v6303 = vadd.f32 0.0, %v6302
        %v6304 = vpop.f32.mrb[0].mxu0
        %v6305 = vpop.f32.mrb[0].mxu0
        %v6306 = vadd.f32 0.0, %v6305
        %v6307 = vpop.f32.mrb[0].mxu0
        %6308 = vmatprep.mubr.bf16.mxu0 0
        %6309 = vmatmul.mubr.bf16.gmra.mrb[0].mxu0 %v6189
        %v6310 = vpop.f32.mrb[0].mxu0
        %v6311 = vadd.f32 0.0, %v6310
        %v6312 = vpop.f32.mrb[0].mxu0
        %v6313 = vpop.f32.mrb[0].mxu0
        %v6314 = vadd.f32 0.0, %v6313
        %v6315 = vpop.f32.mrb[0].mxu0
        %6316 = vmatprep.mubr.bf16.mxu0 0
        %6317 = vmatmul.mubr.bf16.gmra.mrb[0].mxu0 %v6192
        %v6318 = vpop.f32.mrb[0].mxu0
        %v6319 = vadd.f32 0.0, %v6318
        %v6320 = vpop.f32.mrb[0].mxu0
        %v6321 = vpop.f32.mrb[0].mxu0
        %v6322 = vadd.f32 0.0, %v6321
        %v6323 = vpop.f32.mrb[0].mxu0
        %6324 = vmatprep.mubr.bf16.mxu0 0
        %6325 = vmatmul.mubr.bf16.gmra.mrb[0].mxu0 %v6195
        %v6326 = vpop.f32.mrb[0].mxu0
        %v6327 = vadd.f32 0.0, %v6326
        %v6328 = vpop.f32.mrb[0].mxu0
        %v6329 = vpop.f32.mrb[0].mxu0
        %v6330 = vadd.f32 0.0, %v6329
        %v6331 = vpop.f32.mrb[0].mxu0
        %6332 = vmatprep.mubr.bf16.mxu0 0
        %6333 = vmatmul.mubr.bf16.gmra.mrb[0].mxu0 %v6198
        %v6334 = vpop.f32.mrb[0].mxu0
        %v6335 = vadd.f32 0.0, %v6334
        %v6336 = vpop.f32.mrb[0].mxu0
        %v6337 = vpop.f32.mrb[0].mxu0
        %v6338 = vadd.f32 0.0, %v6337
        %v6339 = vpop.f32.mrb[0].mxu0
        %6340 = vmatprep.mubr.bf16.mxu0 0
        %6341 = vmatmul.mubr.bf16.gmra.mrb[0].mxu0 %v6201
        %v6342 = vpop.f32.mrb[0].mxu0
        %v6343 = vadd.f32 0.0, %v6342
        %v6344 = vpop.f32.mrb[0].mxu0
        %v6345 = vpop.f32.mrb[0].mxu0
        %v6346 = vadd.f32 0.0, %v6345
        %v6347 = vpop.f32.mrb[0].mxu0
        %6348 = vmatprep.mubr.bf16.mxu0 0
        %6349 = vmatmul.mubr.bf16.gmra.mrb[0].mxu0 %v6204
        %v6350 = vpop.f32.mrb[0].mxu0
        %v6351 = vadd.f32 0.0, %v6350
        %v6352 = vpop.f32.mrb[0].mxu0
        %v6353 = vpop.f32.mrb[0].mxu0
        %v6354 = vadd.f32 0.0, %v6353
        %v6355 = vpop.f32.mrb[0].mxu0
        %6356 = vmatprep.mubr.bf16.mxu0 0
        %6357 = vmatmul.mubr.bf16.gmra.mrb[0].mxu0 %v6207
        %v6358 = vpop.f32.mrb[0].mxu0
        %v6359 = vadd.f32 0.0, %v6358
        %v6360 = vpop.f32.mrb[0].mxu0
        %v6361 = vpop.f32.mrb[0].mxu0
        %v6362 = vadd.f32 0.0, %v6361
        %v6363 = vpop.f32.mrb[0].mxu0
        %6364 = vmatprep.mubr.bf16.mxu0 0
        %6365 = vmatmul.mubr.bf16.gmra.mrb[0].mxu0 %v6210
        %v6366 = vpop.f32.mrb[0].mxu0
        %v6367 = vadd.f32 0.0, %v6366
        %v6368 = vpop.f32.mrb[0].mxu0
        %v6369 = vpop.f32.mrb[0].mxu0
        %v6370 = vadd.f32 0.0, %v6369
        %v6371 = vpop.f32.mrb[0].mxu0
        %6372 = vdwg.mxu0
        %v6373 = vadd.f32 %v5557, %v6247
        %v6374 = vadd.f32 %v5560, %v6250
        %v6375 = vadd.f32 %v5565, %v6255
        %v6376 = vadd.f32 %v5568, %v6258
        %v6377 = vadd.f32 %v5573, %v6263
        %v6378 = vadd.f32 %v5576, %v6266
        %v6379 = vadd.f32 %v5581, %v6271
        %v6380 = vadd.f32 %v5584, %v6274
        %v6381 = vadd.f32 %v5589, %v6279
        %v6382 = vadd.f32 %v5592, %v6282
        %v6383 = vadd.f32 %v5597, %v6287
        %v6384 = vadd.f32 %v5600, %v6290
        %v6385 = vadd.f32 %v5605, %v6295
        %v6386 = vadd.f32 %v5608, %v6298
        %v6387 = vadd.f32 %v5613, %v6303
        %v6388 = vadd.f32 %v5616, %v6306
        %v6389 = vadd.f32 %v5621, %v6311
        %v6390 = vadd.f32 %v5624, %v6314
        %v6391 = vadd.f32 %v5629, %v6319
        %v6392 = vadd.f32 %v5632, %v6322
        %v6393 = vadd.f32 %v5637, %v6327
        %v6394 = vadd.f32 %v5640, %v6330
        %v6395 = vadd.f32 %v5645, %v6335
        %v6396 = vadd.f32 %v5648, %v6338
        %v6397 = vadd.f32 %v5653, %v6343
        %v6398 = vadd.f32 %v5656, %v6346
        %v6399 = vadd.f32 %v5661, %v6351
        %v6400 = vadd.f32 %v5664, %v6354
        %v6401 = vadd.f32 %v5669, %v6359
        %v6402 = vadd.f32 %v5672, %v6362
        %v6403 = vadd.f32 %v5677, %v6367
        %v6404 = vadd.f32 %v5680, %v6370
        %v6406 = vlaneseq
        %v6407 = vshrl.u32 %v6406, 7
        %v6408 = vsub.s32 0, %v6407
        %v6409 = vrot.slane %v4271, %v6408
        %v6411 = vadd.f32 %v6373, %v6409
        %v6412 = vadd.f32 %v6374, %v6409
        %v6413 = vadd.f32 %v6375, %v6409
        %v6414 = vadd.f32 %v6376, %v6409
        %v6415 = vadd.f32 %v6377, %v6409
        %v6416 = vadd.f32 %v6378, %v6409
        %v6417 = vadd.f32 %v6379, %v6409
        %v6418 = vadd.f32 %v6380, %v6409
        %v6419 = vadd.f32 %v6381, %v6409
        %v6420 = vadd.f32 %v6382, %v6409
        %v6421 = vadd.f32 %v6383, %v6409
        %v6422 = vadd.f32 %v6384, %v6409
        %v6423 = vadd.f32 %v6385, %v6409
        %v6424 = vadd.f32 %v6386, %v6409
        %v6425 = vadd.f32 %v6387, %v6409
        %v6426 = vadd.f32 %v6388, %v6409
        %v6427 = vadd.f32 %v6389, %v6409
        %v6428 = vadd.f32 %v6390, %v6409
        %v6429 = vadd.f32 %v6391, %v6409
        %v6430 = vadd.f32 %v6392, %v6409
        %v6431 = vadd.f32 %v6393, %v6409
        %v6432 = vadd.f32 %v6394, %v6409
        %v6433 = vadd.f32 %v6395, %v6409
        %v6434 = vadd.f32 %v6396, %v6409
        %v6435 = vadd.f32 %v6397, %v6409
        %v6436 = vadd.f32 %v6398, %v6409
        %v6437 = vadd.f32 %v6399, %v6409
        %v6438 = vadd.f32 %v6400, %v6409
        %v6439 = vadd.f32 %v6401, %v6409
        %v6440 = vadd.f32 %v6402, %v6409
        %v6441 = vadd.f32 %v6403, %v6409
        %v6442 = vadd.f32 %v6404, %v6409
        %v6443 = vadd.f32 %v6411, %v579
        %v6444 = vadd.f32 %v6412, %v580
        %v6445 = vadd.f32 %v6413, %v581
        %v6446 = vadd.f32 %v6414, %v582
        %v6447 = vadd.f32 %v6415, %v583
        %v6448 = vadd.f32 %v6416, %v584
        %v6449 = vadd.f32 %v6417, %v585
        %v6450 = vadd.f32 %v6418, %v586
        %v6451 = vadd.f32 %v6419, %v587
        %v6452 = vadd.f32 %v6420, %v588
        %v6453 = vadd.f32 %v6421, %v589
        %v6454 = vadd.f32 %v6422, %v590
        %v6455 = vadd.f32 %v6423, %v591
        %v6456 = vadd.f32 %v6424, %v592
        %v6457 = vadd.f32 %v6425, %v593
        %v6458 = vadd.f32 %v6426, %v594
        %v6459 = vadd.f32 %v6427, %v611
        %v6460 = vadd.f32 %v6428, %v612
        %v6461 = vadd.f32 %v6429, %v613
        %v6462 = vadd.f32 %v6430, %v614
        %v6463 = vadd.f32 %v6431, %v615
        %v6464 = vadd.f32 %v6432, %v616
        %v6465 = vadd.f32 %v6433, %v617
        %v6466 = vadd.f32 %v6434, %v618
        %v6467 = vadd.f32 %v6435, %v619
        %v6468 = vadd.f32 %v6436, %v620
        %v6469 = vadd.f32 %v6437, %v621
        %v6470 = vadd.f32 %v6438, %v622
        %v6471 = vadd.f32 %v6439, %v623
        %v6472 = vadd.f32 %v6440, %v624
        %v6473 = vadd.f32 %v6441, %v625
        %v6474 = vadd.f32 %v6442, %v626
        %v6475 = vld [vmem:[%s14] sm:$0x1]
        %6476 = vst.msk [vmem:[%s517 + $0x1] sm:$0xff] %vm508, %v6443
        %6477 = vst.msk [vmem:[%s517 + $0x9] sm:$0xff] %vm508, %v6444
        %6478 = vst.msk [vmem:[%s517 + $0x19] sm:$0xff] %vm508, %v6445
        %6479 = vst.msk [vmem:[%s517 + $0x21] sm:$0xff] %vm508, %v6446
        %6480 = vst.msk [vmem:[%s517 + $0x31] sm:$0xff] %vm508, %v6447
        %6481 = vst.msk [vmem:[%s517 + $0x39] sm:$0xff] %vm508, %v6448
        %6482 = vst.msk [vmem:[%s517 + $0x49] sm:$0xff] %vm508, %v6449
        %6483 = vst.msk [vmem:[%s517 + $0x51] sm:$0xff] %vm508, %v6450
        %6484 = vst.msk [vmem:[%s517 + $0x61] sm:$0xff] %vm508, %v6451
        %6485 = vst.msk [vmem:[%s517 + $0x69] sm:$0xff] %vm508, %v6452
        %6486 = vst.msk [vmem:[%s517 + $0x79] sm:$0xff] %vm508, %v6453
        %6487 = vst.msk [vmem:[%s517 + $0x81] sm:$0xff] %vm508, %v6454
        %6488 = vst.msk [vmem:[%s517 + $0x91] sm:$0xff] %vm508, %v6455
        %6489 = vst.msk [vmem:[%s517 + $0x99] sm:$0xff] %vm508, %v6456
        %6490 = vst.msk [vmem:[%s517 + $0xa9] sm:$0xff] %vm508, %v6457
        %6491 = vst.msk [vmem:[%s517 + $0xb1] sm:$0xff] %vm508, %v6458
        %6492 = vst.msk [vmem:[%s517 + $0xc1] sm:$0xff] %vm508, %v6459
        %6493 = vst.msk [vmem:[%s517 + $0xc9] sm:$0xff] %vm508, %v6460
        %6494 = vst.msk [vmem:[%s517 + $0xd9] sm:$0xff] %vm508, %v6461
        %6495 = vst.msk [vmem:[%s517 + $0xe1] sm:$0xff] %vm508, %v6462
        %6496 = vst.msk [vmem:[%s517 + $0xf1] sm:$0xff] %vm508, %v6463
        %6497 = vst.msk [vmem:[%s517 + $0xf9] sm:$0xff] %vm508, %v6464
        %6498 = vst.msk [vmem:[%s517 + $0x109] sm:$0xff] %vm508, %v6465
        %6499 = vst.msk [vmem:[%s517 + $0x111] sm:$0xff] %vm508, %v6466
        %6500 = vst.msk [vmem:[%s517 + $0x121] sm:$0xff] %vm508, %v6467
        %6501 = vst.msk [vmem:[%s517 + $0x129] sm:$0xff] %vm508, %v6468
        %6502 = vst.msk [vmem:[%s517 + $0x139] sm:$0xff] %vm508, %v6469
        %6503 = vst.msk [vmem:[%s517 + $0x141] sm:$0xff] %vm508, %v6470
        %6504 = vst.msk [vmem:[%s517 + $0x151] sm:$0xff] %vm508, %v6471
        %6505 = vst.msk [vmem:[%s517 + $0x159] sm:$0xff] %vm508, %v6472
        %6506 = vst.msk [vmem:[%s517 + $0x169] sm:$0xff] %vm508, %v6473
        %6507 = vst.msk [vmem:[%s517 + $0x171] sm:$0xff] %vm508, %v6474
        %v6508 = vld [vmem:[#allocation2] ss:$2 sm:$0xff]
        %s6509 = scalar_lea.vmem [#allocation2], 48
        %v6510 = vld [vmem:[%s6509] ss:$2 sm:$0xff]
        %s6511 = scalar_lea.vmem [#allocation2], 96
        %v6512 = vld [vmem:[%s6511] ss:$2 sm:$0xff]
        %s6513 = scalar_lea.vmem [#allocation2], 144
        %v6514 = vld [vmem:[%s6513] ss:$2 sm:$0xff]
        %s6515 = scalar_lea.vmem [#allocation2], 192
        %v6516 = vld [vmem:[%s6515] ss:$2 sm:$0xff]
        %s6517 = scalar_lea.vmem [#allocation2], 240
        %v6518 = vld [vmem:[%s6517] ss:$2 sm:$0xff]
        %s6519 = scalar_lea.vmem [#allocation2], 288
        %v6520 = vld [vmem:[%s6519] ss:$2 sm:$0xff]
        %s6521 = scalar_lea.vmem [#allocation2], 336
        %v6522 = vld [vmem:[%s6521] ss:$2 sm:$0xff]
        %s6523 = scalar_lea.vmem [#allocation2], 1
        %v6524 = vld [vmem:[%s6523] ss:$2 sm:$0xff]
        %s6525 = scalar_lea.vmem [#allocation2], 49
        %v6526 = vld [vmem:[%s6525] ss:$2 sm:$0xff]
        %s6527 = scalar_lea.vmem [#allocation2], 97
        %v6528 = vld [vmem:[%s6527] ss:$2 sm:$0xff]
        %s6529 = scalar_lea.vmem [#allocation2], 145
        %v6530 = vld [vmem:[%s6529] ss:$2 sm:$0xff]
        %s6531 = scalar_lea.vmem [#allocation2], 193
        %v6532 = vld [vmem:[%s6531] ss:$2 sm:$0xff]
        %s6533 = scalar_lea.vmem [#allocation2], 241
        %v6534 = vld [vmem:[%s6533] ss:$2 sm:$0xff]
        %s6535 = scalar_lea.vmem [#allocation2], 289
        %v6536 = vld [vmem:[%s6535] ss:$2 sm:$0xff]
        %s6537 = scalar_lea.vmem [#allocation2], 337
        %v6538 = vld [vmem:[%s6537] ss:$2 sm:$0xff]
        %s6539 = scalar_lea.vmem [#allocation2], 2
        %v6540 = vld [vmem:[%s6539] ss:$2 sm:$0xff]
        %s6541 = scalar_lea.vmem [#allocation2], 50
        %v6542 = vld [vmem:[%s6541] ss:$2 sm:$0xff]
        %s6543 = scalar_lea.vmem [#allocation2], 98
        %v6544 = vld [vmem:[%s6543] ss:$2 sm:$0xff]
        %s6545 = scalar_lea.vmem [#allocation2], 146
        %v6546 = vld [vmem:[%s6545] ss:$2 sm:$0xff]
        %s6547 = scalar_lea.vmem [#allocation2], 194
        %v6548 = vld [vmem:[%s6547] ss:$2 sm:$0xff]
        %s6549 = scalar_lea.vmem [#allocation2], 242
        %v6550 = vld [vmem:[%s6549] ss:$2 sm:$0xff]
        %s6551 = scalar_lea.vmem [#allocation2], 290
        %v6552 = vld [vmem:[%s6551] ss:$2 sm:$0xff]
        %s6553 = scalar_lea.vmem [#allocation2], 338
        %v6554 = vld [vmem:[%s6553] ss:$2 sm:$0xff]
        %6563 = vrot.lane.b32.xlu0 %v6524, 32
        %v6564 = vpop.permute.xlu0 %6563
        %6565 = vrot.lane.b32.xlu0 %v6526, 32
        %v6566 = vpop.permute.xlu0 %6565
        %6567 = vrot.lane.b32.xlu0 %v6528, 32
        %v6568 = vpop.permute.xlu0 %6567
        %6569 = vrot.lane.b32.xlu0 %v6530, 32
        %v6570 = vpop.permute.xlu0 %6569
        %6571 = vrot.lane.b32.xlu0 %v6532, 32
        %v6572 = vpop.permute.xlu0 %6571
        %6573 = vrot.lane.b32.xlu0 %v6534, 32
        %v6574 = vpop.permute.xlu0 %6573
        %6575 = vrot.lane.b32.xlu0 %v6536, 32
        %v6576 = vpop.permute.xlu0 %6575
        %6577 = vrot.lane.b32.xlu0 %v6538, 32
        %v6578 = vpop.permute.xlu0 %6577
        %6595 = vrot.lane.b32.xlu0 %v6540, 64
        %v6596 = vpop.permute.xlu0 %6595
        %6597 = vrot.lane.b32.xlu0 %v6542, 64
        %v6598 = vpop.permute.xlu0 %6597
        %6599 = vrot.lane.b32.xlu0 %v6544, 64
        %v6600 = vpop.permute.xlu0 %6599
        %6601 = vrot.lane.b32.xlu0 %v6546, 64
        %v6602 = vpop.permute.xlu0 %6601
        %6603 = vrot.lane.b32.xlu0 %v6548, 64
        %v6604 = vpop.permute.xlu0 %6603
        %6605 = vrot.lane.b32.xlu0 %v6550, 64
        %v6606 = vpop.permute.xlu0 %6605
        %6607 = vrot.lane.b32.xlu0 %v6552, 64
        %v6608 = vpop.permute.xlu0 %6607
        %6609 = vrot.lane.b32.xlu0 %v6554, 64
        %v6610 = vpop.permute.xlu0 %6609
        %v6619 = vsel %vm508, %v6508, %v6564
        %v6620 = vsel %vm508, %v6510, %v6566
        %v6621 = vsel %vm508, %v6512, %v6568
        %v6622 = vsel %vm508, %v6514, %v6570
        %v6623 = vsel %vm508, %v6516, %v6572
        %v6624 = vsel %vm508, %v6518, %v6574
        %v6625 = vsel %vm508, %v6520, %v6576
        %v6626 = vsel %vm508, %v6522, %v6578
        %v6627 = vsel %vm1822, %v6619, %v6596
        %v6628 = vsel %vm1822, %v6620, %v6598
        %v6629 = vsel %vm1822, %v6621, %v6600
        %v6630 = vsel %vm1822, %v6622, %v6602
        %v6631 = vsel %vm1822, %v6623, %v6604
        %v6632 = vsel %vm1822, %v6624, %v6606
        %v6633 = vsel %vm1822, %v6625, %v6608
        %v6634 = vsel %vm1822, %v6626, %v6610
        %v6635 = vpack.c.bf16 %v6628, %v6627
        %v6636 = vpack.c.bf16 %v6630, %v6629
        %v6637 = vpack.c.bf16 %v6632, %v6631
        %v6638 = vpack.c.bf16 %v6634, %v6633
        %v6639 = vld [vmem:[%s13] sm:$0xf]
        %v6640 = vld [vmem:[%s13 + $0x4] sm:$0xf]
        %v6641 = vld [vmem:[%s13 + $0x8] sm:$0xf]
        %v6642 = vld [vmem:[%s13 + $0xc] sm:$0xf]
        %v6643 = vld [vmem:[%s13 + $0x10] sm:$0xf]
        %v6644 = vld [vmem:[%s13 + $0x14] sm:$0xf]
        %v6645 = vld [vmem:[%s13 + $0x18] sm:$0xf]
        %v6646 = vld [vmem:[%s13 + $0x1c] sm:$0xf]
        %v6647 = vld [vmem:[%s13 + $0x20] sm:$0xf]
        %v6648 = vld [vmem:[%s13 + $0x24] sm:$0xf]
        %v6649 = vld [vmem:[%s13 + $0x28] sm:$0xf]
        %v6650 = vld [vmem:[%s13 + $0x2c] sm:$0xf]
        %v6651 = vld [vmem:[%s517] ss:$2 sm:$0xff]
        %s6652 = scalar_lea.vmem %s517, 48 [#allocation2]
        %v6653 = vld [vmem:[%s6652] ss:$2 sm:$0xff]
        %s6654 = scalar_lea.vmem %s517, 96 [#allocation2]
        %v6655 = vld [vmem:[%s6654] ss:$2 sm:$0xff]
        %s6656 = scalar_lea.vmem %s517, 144 [#allocation2]
        %v6657 = vld [vmem:[%s6656] ss:$2 sm:$0xff]
        %s6658 = scalar_lea.vmem %s517, 192 [#allocation2]
        %v6659 = vld [vmem:[%s6658] ss:$2 sm:$0xff]
        %s6660 = scalar_lea.vmem %s517, 240 [#allocation2]
        %v6661 = vld [vmem:[%s6660] ss:$2 sm:$0xff]
        %s6662 = scalar_lea.vmem %s517, 288 [#allocation2]
        %v6663 = vld [vmem:[%s6662] ss:$2 sm:$0xff]
        %s6664 = scalar_lea.vmem %s517, 336 [#allocation2]
        %v6665 = vld [vmem:[%s6664] ss:$2 sm:$0xff]
        %s6666 = scalar_lea.vmem %s517, 1 [#allocation2]
        %v6667 = vld [vmem:[%s6666] ss:$2 sm:$0xff]
        %s6668 = scalar_lea.vmem %s517, 49 [#allocation2]
        %v6669 = vld [vmem:[%s6668] ss:$2 sm:$0xff]
        %s6670 = scalar_lea.vmem %s517, 97 [#allocation2]
        %v6671 = vld [vmem:[%s6670] ss:$2 sm:$0xff]
        %s6672 = scalar_lea.vmem %s517, 145 [#allocation2]
        %v6673 = vld [vmem:[%s6672] ss:$2 sm:$0xff]
        %s6674 = scalar_lea.vmem %s517, 193 [#allocation2]
        %v6675 = vld [vmem:[%s6674] ss:$2 sm:$0xff]
        %s6676 = scalar_lea.vmem %s517, 241 [#allocation2]
        %v6677 = vld [vmem:[%s6676] ss:$2 sm:$0xff]
        %s6678 = scalar_lea.vmem %s517, 289 [#allocation2]
        %v6679 = vld [vmem:[%s6678] ss:$2 sm:$0xff]
        %s6680 = scalar_lea.vmem %s517, 337 [#allocation2]
        %v6681 = vld [vmem:[%s6680] ss:$2 sm:$0xff]
        %s6682 = scalar_lea.vmem %s517, 2 [#allocation2]
        %v6683 = vld [vmem:[%s6682] ss:$2 sm:$0xff]
        %s6684 = scalar_lea.vmem %s517, 50 [#allocation2]
        %v6685 = vld [vmem:[%s6684] ss:$2 sm:$0xff]
        %s6686 = scalar_lea.vmem %s517, 98 [#allocation2]
        %v6687 = vld [vmem:[%s6686] ss:$2 sm:$0xff]
        %s6688 = scalar_lea.vmem %s517, 146 [#allocation2]
        %v6689 = vld [vmem:[%s6688] ss:$2 sm:$0xff]
        %s6690 = scalar_lea.vmem %s517, 194 [#allocation2]
        %v6691 = vld [vmem:[%s6690] ss:$2 sm:$0xff]
        %s6692 = scalar_lea.vmem %s517, 242 [#allocation2]
        %v6693 = vld [vmem:[%s6692] ss:$2 sm:$0xff]
        %s6694 = scalar_lea.vmem %s517, 290 [#allocation2]
        %v6695 = vld [vmem:[%s6694] ss:$2 sm:$0xff]
        %s6696 = scalar_lea.vmem %s517, 338 [#allocation2]
        %v6697 = vld [vmem:[%s6696] ss:$2 sm:$0xff]
        %6706 = vrot.lane.b32.xlu0 %v6667, 32
        %v6707 = vpop.permute.xlu0 %6706
        %6708 = vrot.lane.b32.xlu0 %v6669, 32
        %v6709 = vpop.permute.xlu0 %6708
        %6710 = vrot.lane.b32.xlu0 %v6671, 32
        %v6711 = vpop.permute.xlu0 %6710
        %6712 = vrot.lane.b32.xlu0 %v6673, 32
        %v6713 = vpop.permute.xlu0 %6712
        %6714 = vrot.lane.b32.xlu0 %v6675, 32
        %v6715 = vpop.permute.xlu0 %6714
        %6716 = vrot.lane.b32.xlu0 %v6677, 32
        %v6717 = vpop.permute.xlu0 %6716
        %6718 = vrot.lane.b32.xlu0 %v6679, 32
        %v6719 = vpop.permute.xlu0 %6718
        %6720 = vrot.lane.b32.xlu0 %v6681, 32
        %v6721 = vpop.permute.xlu0 %6720
        %6738 = vrot.lane.b32.xlu0 %v6683, 64
        %v6739 = vpop.permute.xlu0 %6738
        %6740 = vrot.lane.b32.xlu0 %v6685, 64
        %v6741 = vpop.permute.xlu0 %6740
        %6742 = vrot.lane.b32.xlu0 %v6687, 64
        %v6743 = vpop.permute.xlu0 %6742
        %6744 = vrot.lane.b32.xlu0 %v6689, 64
        %v6745 = vpop.permute.xlu0 %6744
        %6746 = vrot.lane.b32.xlu0 %v6691, 64
        %v6747 = vpop.permute.xlu0 %6746
        %6748 = vrot.lane.b32.xlu0 %v6693, 64
        %v6749 = vpop.permute.xlu0 %6748
        %6750 = vrot.lane.b32.xlu0 %v6695, 64
        %v6751 = vpop.permute.xlu0 %6750
        %6752 = vrot.lane.b32.xlu0 %v6697, 64
        %v6753 = vpop.permute.xlu0 %6752
        %v6762 = vsel %vm508, %v6651, %v6707
        %v6763 = vsel %vm508, %v6653, %v6709
        %v6764 = vsel %vm508, %v6655, %v6711
        %v6765 = vsel %vm508, %v6657, %v6713
        %v6766 = vsel %vm508, %v6659, %v6715
        %v6767 = vsel %vm508, %v6661, %v6717
        %v6768 = vsel %vm508, %v6663, %v6719
        %v6769 = vsel %vm508, %v6665, %v6721
        %v6770 = vsel %vm1822, %v6762, %v6739
        %v6771 = vsel %vm1822, %v6763, %v6741
        %v6772 = vsel %vm1822, %v6764, %v6743
        %v6773 = vsel %vm1822, %v6765, %v6745
        %v6774 = vsel %vm1822, %v6766, %v6747
        %v6775 = vsel %vm1822, %v6767, %v6749
        %v6776 = vsel %vm1822, %v6768, %v6751
        %v6777 = vsel %vm1822, %v6769, %v6753
        %v6778 = vpack.c.bf16 %v6771, %v6770
        %v6779 = vpack.c.bf16 %v6773, %v6772
        %v6780 = vpack.c.bf16 %v6775, %v6774
        %v6781 = vpack.c.bf16 %v6777, %v6776
        %s6782 = scalar_lea.vmem %s13, 48
        %v6783 = vld [vmem:[%s6782] sm:$0xf]
        %v6784 = vld [vmem:[%s6782 + $0x4] sm:$0xf]
        %v6785 = vld [vmem:[%s6782 + $0x8] sm:$0xf]
        %v6786 = vld [vmem:[%s6782 + $0xc] sm:$0xf]
        %v6787 = vld [vmem:[%s6782 + $0x10] sm:$0xf]
        %v6788 = vld [vmem:[%s6782 + $0x14] sm:$0xf]
        %v6789 = vld [vmem:[%s6782 + $0x18] sm:$0xf]
        %v6790 = vld [vmem:[%s6782 + $0x1c] sm:$0xf]
        %v6791 = vld [vmem:[%s6782 + $0x20] sm:$0xf]
        %v6792 = vld [vmem:[%s6782 + $0x24] sm:$0xf]
        %v6793 = vld [vmem:[%s6782 + $0x28] sm:$0xf]
        %v6794 = vld [vmem:[%s6782 + $0x2c] sm:$0xf]
        %v6807 = vunpack.c.l.b16 %v6783
        %v6808 = vunpack.c.l.b16 %v6784
        %v6809 = vunpack.c.l.b16 %v6785
        %v6810 = vunpack.c.l.b16 %v6786
        %v6811 = vunpack.c.l.b16 %v6787
        %v6812 = vunpack.c.l.b16 %v6788
        %v6813 = vunpack.c.l.b16 %v6789
        %v6814 = vunpack.c.l.b16 %v6790
        %v6815 = vunpack.c.l.b16 %v6791
        %v6816 = vunpack.c.l.b16 %v6792
        %v6817 = vunpack.c.l.b16 %v6793
        %v6818 = vunpack.c.l.b16 %v6794
        %v6819 = vpack.c.b16 %v6808, %v6807
        %v6820 = vpack.c.b16 %v6810, %v6809
        %v6821 = vpack.c.b16 %v6812, %v6811
        %v6822 = vpack.c.b16 %v6814, %v6813
        %v6823 = vpack.c.b16 %v6816, %v6815
        %v6824 = vpack.c.b16 %v6818, %v6817
        %v6832 = vsel %vm2364, %v6778, 0
        %v6835 = vsel %vm2364, %v6779, 0
        %v6838 = vsel %vm2364, %v6780, 0
        %v6841 = vsel %vm2364, %v6781, 0
        %6843 = vmatprep.subr.bf16.mxu0 0
        %6844 = vmatpush1.bf16.msra.mxu0 %v6819
        %6845 = vmatprep.subr.bf16.mxu0 0
        %6846 = vmatpush1.bf16.msra.mxu0 %v6820
        %6847 = vmatprep.subr.bf16.mxu0 0
        %6848 = vmatpush1.bf16.msra.mxu0 %v6821
        %6849 = vmatprep.subr.bf16.mxu0 0
        %6850 = vmatpush1.bf16.msra.mxu0 %v6822
        %6851 = vmatprep.subr.bf16.mxu0 0
        %6852 = vmatpush1.bf16.msra.mxu0 %v6823
        %6853 = vmatprep.subr.bf16.mxu0 0
        %6854 = vmatpush1.bf16.msra.mxu0 %v6824
        %6855 = vmatprep.subr.bf16.mxu0 0
        %6856 = vmatpush1.bf16.msra.mxu0 0
        %6857 = vmatprep.subr.bf16.mxu0 0
        %6858 = vmatpush1.bf16.msra.mxu0 0
        %6859 = vmatprep.subr.bf16.mxu0 0
        %6860 = vmatpush1.bf16.msra.mxu0 0
        %6861 = vmatprep.subr.bf16.mxu0 0
        %6862 = vmatpush1.bf16.msra.mxu0 0
        %6863 = vmatprep.subr.bf16.mxu0 0
        %6864 = vmatpush1.bf16.msra.mxu0 0
        %6865 = vmatprep.subr.bf16.mxu0 0
        %6866 = vmatpush1.bf16.msra.mxu0 0
        %6867 = vmatprep.subr.bf16.mxu0 0
        %6868 = vmatpush1.bf16.msra.mxu0 0
        %6869 = vmatprep.subr.bf16.mxu0 0
        %6870 = vmatpush1.bf16.msra.mxu0 0
        %6871 = vmatprep.subr.bf16.mxu0 0
        %6872 = vmatpush1.bf16.msra.mxu0 0
        %6873 = vmatprep.subr.bf16.mxu0 0
        %6874 = vmatpush1.bf16.msra.mxu0 0
        %6875 = vmatprep.mubr.bf16.mxu0 0
        %6876 = vmatmul.mubr.bf16.gmra.mrb[0].mxu0 %v6832
        %v6877 = vpop.f32.mrb[0].mxu0
        %v6878 = vadd.f32 0.0, %v6877
        %v6879 = vpop.f32.mrb[0].mxu0
        %v6880 = vpop.f32.mrb[0].mxu0
        %v6881 = vadd.f32 0.0, %v6880
        %v6882 = vpop.f32.mrb[0].mxu0
        %6883 = vmatprep.mubr.bf16.mxu0 0
        %6884 = vmatmul.mubr.bf16.gmra.mrb[0].mxu0 %v6835
        %v6885 = vpop.f32.mrb[0].mxu0
        %v6886 = vadd.f32 0.0, %v6885
        %v6887 = vpop.f32.mrb[0].mxu0
        %v6888 = vpop.f32.mrb[0].mxu0
        %v6889 = vadd.f32 0.0, %v6888
        %v6890 = vpop.f32.mrb[0].mxu0
        %6891 = vmatprep.mubr.bf16.mxu0 0
        %6892 = vmatmul.mubr.bf16.gmra.mrb[0].mxu0 %v6838
        %v6893 = vpop.f32.mrb[0].mxu0
        %v6894 = vadd.f32 0.0, %v6893
        %v6895 = vpop.f32.mrb[0].mxu0
        %v6896 = vpop.f32.mrb[0].mxu0
        %v6897 = vadd.f32 0.0, %v6896
        %v6898 = vpop.f32.mrb[0].mxu0
        %6899 = vmatprep.mubr.bf16.mxu0 0
        %6900 = vmatmul.mubr.bf16.gmra.mrb[0].mxu0 %v6841
        %v6901 = vpop.f32.mrb[0].mxu0
        %v6902 = vadd.f32 0.0, %v6901
        %v6903 = vpop.f32.mrb[0].mxu0
        %v6904 = vpop.f32.mrb[0].mxu0
        %v6905 = vadd.f32 0.0, %v6904
        %v6906 = vpop.f32.mrb[0].mxu0
        %6907 = vdwg.mxu0
        %v6920 = vunpack.c.l.b16 %v6639
        %v6921 = vunpack.c.l.b16 %v6640
        %v6922 = vunpack.c.l.b16 %v6641
        %v6923 = vunpack.c.l.b16 %v6642
        %v6924 = vunpack.c.l.b16 %v6643
        %v6925 = vunpack.c.l.b16 %v6644
        %v6926 = vunpack.c.l.b16 %v6645
        %v6927 = vunpack.c.l.b16 %v6646
        %v6928 = vunpack.c.l.b16 %v6647
        %v6929 = vunpack.c.l.b16 %v6648
        %v6930 = vunpack.c.l.b16 %v6649
        %v6931 = vunpack.c.l.b16 %v6650
        %v6932 = vpack.c.b16 %v6921, %v6920
        %v6933 = vpack.c.b16 %v6923, %v6922
        %v6934 = vpack.c.b16 %v6925, %v6924
        %v6935 = vpack.c.b16 %v6927, %v6926
        %v6936 = vpack.c.b16 %v6929, %v6928
        %v6937 = vpack.c.b16 %v6931, %v6930
        %v6945 = vsel %vm2364, %v6635, 0
        %v6948 = vsel %vm2364, %v6636, 0
        %v6951 = vsel %vm2364, %v6637, 0
        %v6954 = vsel %vm2364, %v6638, 0
        %6956 = vmatprep.subr.bf16.mxu0 0
        %6957 = vmatpush1.bf16.msra.mxu0 %v6932
        %6958 = vmatprep.subr.bf16.mxu0 0
        %6959 = vmatpush1.bf16.msra.mxu0 %v6933
        %6960 = vmatprep.subr.bf16.mxu0 0
        %6961 = vmatpush1.bf16.msra.mxu0 %v6934
        %6962 = vmatprep.subr.bf16.mxu0 0
        %6963 = vmatpush1.bf16.msra.mxu0 %v6935
        %6964 = vmatprep.subr.bf16.mxu0 0
        %6965 = vmatpush1.bf16.msra.mxu0 %v6936
        %6966 = vmatprep.subr.bf16.mxu0 0
        %6967 = vmatpush1.bf16.msra.mxu0 %v6937
        %6968 = vmatprep.subr.bf16.mxu0 0
        %6969 = vmatpush1.bf16.msra.mxu0 0
        %6970 = vmatprep.subr.bf16.mxu0 0
        %6971 = vmatpush1.bf16.msra.mxu0 0
        %6972 = vmatprep.subr.bf16.mxu0 0
        %6973 = vmatpush1.bf16.msra.mxu0 0
        %6974 = vmatprep.subr.bf16.mxu0 0
        %6975 = vmatpush1.bf16.msra.mxu0 0
        %6976 = vmatprep.subr.bf16.mxu0 0
        %6977 = vmatpush1.bf16.msra.mxu0 0
        %6978 = vmatprep.subr.bf16.mxu0 0
        %6979 = vmatpush1.bf16.msra.mxu0 0
        %6980 = vmatprep.subr.bf16.mxu0 0
        %6981 = vmatpush1.bf16.msra.mxu0 0
        %6982 = vmatprep.subr.bf16.mxu0 0
        %6983 = vmatpush1.bf16.msra.mxu0 0
        %6984 = vmatprep.subr.bf16.mxu0 0
        %6985 = vmatpush1.bf16.msra.mxu0 0
        %6986 = vmatprep.subr.bf16.mxu0 0
        %6987 = vmatpush1.bf16.msra.mxu0 0
        %6988 = vmatprep.mubr.bf16.mxu0 0
        %6989 = vmatmul.mubr.bf16.gmra.mrb[0].mxu0 %v6945
        %v6990 = vpop.f32.mrb[0].mxu0
        %v6991 = vadd.f32 %v6878, %v6990
        %v6992 = vpop.f32.mrb[0].mxu0
        %v6993 = vpop.f32.mrb[0].mxu0
        %v6994 = vadd.f32 %v6881, %v6993
        %v6995 = vpop.f32.mrb[0].mxu0
        %6996 = vmatprep.mubr.bf16.mxu0 0
        %6997 = vmatmul.mubr.bf16.gmra.mrb[0].mxu0 %v6948
        %v6998 = vpop.f32.mrb[0].mxu0
        %v6999 = vadd.f32 %v6886, %v6998
        %v7000 = vpop.f32.mrb[0].mxu0
        %v7001 = vpop.f32.mrb[0].mxu0
        %v7002 = vadd.f32 %v6889, %v7001
        %v7003 = vpop.f32.mrb[0].mxu0
        %7004 = vmatprep.mubr.bf16.mxu0 0
        %7005 = vmatmul.mubr.bf16.gmra.mrb[0].mxu0 %v6951
        %v7006 = vpop.f32.mrb[0].mxu0
        %v7007 = vadd.f32 %v6894, %v7006
        %v7008 = vpop.f32.mrb[0].mxu0
        %v7009 = vpop.f32.mrb[0].mxu0
        %v7010 = vadd.f32 %v6897, %v7009
        %v7011 = vpop.f32.mrb[0].mxu0
        %7012 = vmatprep.mubr.bf16.mxu0 0
        %7013 = vmatmul.mubr.bf16.gmra.mrb[0].mxu0 %v6954
        %v7014 = vpop.f32.mrb[0].mxu0
        %v7015 = vadd.f32 %v6902, %v7014
        %v7016 = vpop.f32.mrb[0].mxu0
        %v7017 = vpop.f32.mrb[0].mxu0
        %v7018 = vadd.f32 %v6905, %v7017
        %v7019 = vpop.f32.mrb[0].mxu0
        %7020 = vdwg.mxu0
        %v7021 = vld [vmem:[%s2819] ss:$2 sm:$0xff]
        %s7022 = scalar_lea.vmem %s2819, 48 [#allocation2]
        %v7023 = vld [vmem:[%s7022] ss:$2 sm:$0xff]
        %s7024 = scalar_lea.vmem %s2819, 96 [#allocation2]
        %v7025 = vld [vmem:[%s7024] ss:$2 sm:$0xff]
        %s7026 = scalar_lea.vmem %s2819, 144 [#allocation2]
        %v7027 = vld [vmem:[%s7026] ss:$2 sm:$0xff]
        %s7028 = scalar_lea.vmem %s2819, 192 [#allocation2]
        %v7029 = vld [vmem:[%s7028] ss:$2 sm:$0xff]
        %s7030 = scalar_lea.vmem %s2819, 240 [#allocation2]
        %v7031 = vld [vmem:[%s7030] ss:$2 sm:$0xff]
        %s7032 = scalar_lea.vmem %s2819, 288 [#allocation2]
        %v7033 = vld [vmem:[%s7032] ss:$2 sm:$0xff]
        %s7034 = scalar_lea.vmem %s2819, 336 [#allocation2]
        %v7035 = vld [vmem:[%s7034] ss:$2 sm:$0xff]
        %s7036 = scalar_lea.vmem %s2819, 1 [#allocation2]
        %v7037 = vld [vmem:[%s7036] ss:$2 sm:$0xff]
        %s7038 = scalar_lea.vmem %s2819, 49 [#allocation2]
        %v7039 = vld [vmem:[%s7038] ss:$2 sm:$0xff]
        %s7040 = scalar_lea.vmem %s2819, 97 [#allocation2]
        %v7041 = vld [vmem:[%s7040] ss:$2 sm:$0xff]
        %s7042 = scalar_lea.vmem %s2819, 145 [#allocation2]
        %v7043 = vld [vmem:[%s7042] ss:$2 sm:$0xff]
        %s7044 = scalar_lea.vmem %s2819, 193 [#allocation2]
        %v7045 = vld [vmem:[%s7044] ss:$2 sm:$0xff]
        %s7046 = scalar_lea.vmem %s2819, 241 [#allocation2]
        %v7047 = vld [vmem:[%s7046] ss:$2 sm:$0xff]
        %s7048 = scalar_lea.vmem %s2819, 289 [#allocation2]
        %v7049 = vld [vmem:[%s7048] ss:$2 sm:$0xff]
        %s7050 = scalar_lea.vmem %s2819, 337 [#allocation2]
        %v7051 = vld [vmem:[%s7050] ss:$2 sm:$0xff]
        %s7052 = scalar_lea.vmem %s2819, 2 [#allocation2]
        %v7053 = vld [vmem:[%s7052] ss:$2 sm:$0xff]
        %s7054 = scalar_lea.vmem %s2819, 50 [#allocation2]
        %v7055 = vld [vmem:[%s7054] ss:$2 sm:$0xff]
        %s7056 = scalar_lea.vmem %s2819, 98 [#allocation2]
        %v7057 = vld [vmem:[%s7056] ss:$2 sm:$0xff]
        %s7058 = scalar_lea.vmem %s2819, 146 [#allocation2]
        %v7059 = vld [vmem:[%s7058] ss:$2 sm:$0xff]
        %s7060 = scalar_lea.vmem %s2819, 194 [#allocation2]
        %v7061 = vld [vmem:[%s7060] ss:$2 sm:$0xff]
        %s7062 = scalar_lea.vmem %s2819, 242 [#allocation2]
        %v7063 = vld [vmem:[%s7062] ss:$2 sm:$0xff]
        %s7064 = scalar_lea.vmem %s2819, 290 [#allocation2]
        %v7065 = vld [vmem:[%s7064] ss:$2 sm:$0xff]
        %s7066 = scalar_lea.vmem %s2819, 338 [#allocation2]
        %v7067 = vld [vmem:[%s7066] ss:$2 sm:$0xff]
        %7076 = vrot.lane.b32.xlu0 %v7037, 32
        %v7077 = vpop.permute.xlu0 %7076
        %7078 = vrot.lane.b32.xlu0 %v7039, 32
        %v7079 = vpop.permute.xlu0 %7078
        %7080 = vrot.lane.b32.xlu0 %v7041, 32
        %v7081 = vpop.permute.xlu0 %7080
        %7082 = vrot.lane.b32.xlu0 %v7043, 32
        %v7083 = vpop.permute.xlu0 %7082
        %7084 = vrot.lane.b32.xlu0 %v7045, 32
        %v7085 = vpop.permute.xlu0 %7084
        %7086 = vrot.lane.b32.xlu0 %v7047, 32
        %v7087 = vpop.permute.xlu0 %7086
        %7088 = vrot.lane.b32.xlu0 %v7049, 32
        %v7089 = vpop.permute.xlu0 %7088
        %7090 = vrot.lane.b32.xlu0 %v7051, 32
        %v7091 = vpop.permute.xlu0 %7090
        %7108 = vrot.lane.b32.xlu0 %v7053, 64
        %v7109 = vpop.permute.xlu0 %7108
        %7110 = vrot.lane.b32.xlu0 %v7055, 64
        %v7111 = vpop.permute.xlu0 %7110
        %7112 = vrot.lane.b32.xlu0 %v7057, 64
        %v7113 = vpop.permute.xlu0 %7112
        %7114 = vrot.lane.b32.xlu0 %v7059, 64
        %v7115 = vpop.permute.xlu0 %7114
        %7116 = vrot.lane.b32.xlu0 %v7061, 64
        %v7117 = vpop.permute.xlu0 %7116
        %7118 = vrot.lane.b32.xlu0 %v7063, 64
        %v7119 = vpop.permute.xlu0 %7118
        %7120 = vrot.lane.b32.xlu0 %v7065, 64
        %v7121 = vpop.permute.xlu0 %7120
        %7122 = vrot.lane.b32.xlu0 %v7067, 64
        %v7123 = vpop.permute.xlu0 %7122
        %v7132 = vsel %vm508, %v7021, %v7077
        %v7133 = vsel %vm508, %v7023, %v7079
        %v7134 = vsel %vm508, %v7025, %v7081
        %v7135 = vsel %vm508, %v7027, %v7083
        %v7136 = vsel %vm508, %v7029, %v7085
        %v7137 = vsel %vm508, %v7031, %v7087
        %v7138 = vsel %vm508, %v7033, %v7089
        %v7139 = vsel %vm508, %v7035, %v7091
        %v7140 = vsel %vm1822, %v7132, %v7109
        %v7141 = vsel %vm1822, %v7133, %v7111
        %v7142 = vsel %vm1822, %v7134, %v7113
        %v7143 = vsel %vm1822, %v7135, %v7115
        %v7144 = vsel %vm1822, %v7136, %v7117
        %v7145 = vsel %vm1822, %v7137, %v7119
        %v7146 = vsel %vm1822, %v7138, %v7121
        %v7147 = vsel %vm1822, %v7139, %v7123
        %v7148 = vpack.c.bf16 %v7141, %v7140
        %v7149 = vpack.c.bf16 %v7143, %v7142
        %v7150 = vpack.c.bf16 %v7145, %v7144
        %v7151 = vpack.c.bf16 %v7147, %v7146
        %s7152 = scalar_lea.vmem %s13, 96
        %v7153 = vld [vmem:[%s7152] sm:$0xf]
        %v7154 = vld [vmem:[%s7152 + $0x4] sm:$0xf]
        %v7155 = vld [vmem:[%s7152 + $0x8] sm:$0xf]
        %v7156 = vld [vmem:[%s7152 + $0xc] sm:$0xf]
        %v7157 = vld [vmem:[%s7152 + $0x10] sm:$0xf]
        %v7158 = vld [vmem:[%s7152 + $0x14] sm:$0xf]
        %v7159 = vld [vmem:[%s7152 + $0x18] sm:$0xf]
        %v7160 = vld [vmem:[%s7152 + $0x1c] sm:$0xf]
        %v7161 = vld [vmem:[%s7152 + $0x20] sm:$0xf]
        %v7162 = vld [vmem:[%s7152 + $0x24] sm:$0xf]
        %v7163 = vld [vmem:[%s7152 + $0x28] sm:$0xf]
        %v7164 = vld [vmem:[%s7152 + $0x2c] sm:$0xf]
        %v7177 = vunpack.c.l.b16 %v7153
        %v7178 = vunpack.c.l.b16 %v7154
        %v7179 = vunpack.c.l.b16 %v7155
        %v7180 = vunpack.c.l.b16 %v7156
        %v7181 = vunpack.c.l.b16 %v7157
        %v7182 = vunpack.c.l.b16 %v7158
        %v7183 = vunpack.c.l.b16 %v7159
        %v7184 = vunpack.c.l.b16 %v7160
        %v7185 = vunpack.c.l.b16 %v7161
        %v7186 = vunpack.c.l.b16 %v7162
        %v7187 = vunpack.c.l.b16 %v7163
        %v7188 = vunpack.c.l.b16 %v7164
        %v7189 = vpack.c.b16 %v7178, %v7177
        %v7190 = vpack.c.b16 %v7180, %v7179
        %v7191 = vpack.c.b16 %v7182, %v7181
        %v7192 = vpack.c.b16 %v7184, %v7183
        %v7193 = vpack.c.b16 %v7186, %v7185
        %v7194 = vpack.c.b16 %v7188, %v7187
        %v7202 = vsel %vm2364, %v7148, 0
        %v7205 = vsel %vm2364, %v7149, 0
        %v7208 = vsel %vm2364, %v7150, 0
        %v7211 = vsel %vm2364, %v7151, 0
        %7213 = vmatprep.subr.bf16.mxu0 0
        %7214 = vmatpush1.bf16.msra.mxu0 %v7189
        %7215 = vmatprep.subr.bf16.mxu0 0
        %7216 = vmatpush1.bf16.msra.mxu0 %v7190
        %7217 = vmatprep.subr.bf16.mxu0 0
        %7218 = vmatpush1.bf16.msra.mxu0 %v7191
        %7219 = vmatprep.subr.bf16.mxu0 0
        %7220 = vmatpush1.bf16.msra.mxu0 %v7192
        %7221 = vmatprep.subr.bf16.mxu0 0
        %7222 = vmatpush1.bf16.msra.mxu0 %v7193
        %7223 = vmatprep.subr.bf16.mxu0 0
        %7224 = vmatpush1.bf16.msra.mxu0 %v7194
        %7225 = vmatprep.subr.bf16.mxu0 0
        %7226 = vmatpush1.bf16.msra.mxu0 0
        %7227 = vmatprep.subr.bf16.mxu0 0
        %7228 = vmatpush1.bf16.msra.mxu0 0
        %7229 = vmatprep.subr.bf16.mxu0 0
        %7230 = vmatpush1.bf16.msra.mxu0 0
        %7231 = vmatprep.subr.bf16.mxu0 0
        %7232 = vmatpush1.bf16.msra.mxu0 0
        %7233 = vmatprep.subr.bf16.mxu0 0
        %7234 = vmatpush1.bf16.msra.mxu0 0
        %7235 = vmatprep.subr.bf16.mxu0 0
        %7236 = vmatpush1.bf16.msra.mxu0 0
        %7237 = vmatprep.subr.bf16.mxu0 0
        %7238 = vmatpush1.bf16.msra.mxu0 0
        %7239 = vmatprep.subr.bf16.mxu0 0
        %7240 = vmatpush1.bf16.msra.mxu0 0
        %7241 = vmatprep.subr.bf16.mxu0 0
        %7242 = vmatpush1.bf16.msra.mxu0 0
        %7243 = vmatprep.subr.bf16.mxu0 0
        %7244 = vmatpush1.bf16.msra.mxu0 0
        %7245 = vmatprep.mubr.bf16.mxu0 0
        %7246 = vmatmul.mubr.bf16.gmra.mrb[0].mxu0 %v7202
        %v7247 = vpop.f32.mrb[0].mxu0
        %v7248 = vadd.f32 0.0, %v7247
        %v7249 = vpop.f32.mrb[0].mxu0
        %v7250 = vpop.f32.mrb[0].mxu0
        %v7251 = vadd.f32 0.0, %v7250
        %v7252 = vpop.f32.mrb[0].mxu0
        %7253 = vmatprep.mubr.bf16.mxu0 0
        %7254 = vmatmul.mubr.bf16.gmra.mrb[0].mxu0 %v7205
        %v7255 = vpop.f32.mrb[0].mxu0
        %v7256 = vadd.f32 0.0, %v7255
        %v7257 = vpop.f32.mrb[0].mxu0
        %v7258 = vpop.f32.mrb[0].mxu0
        %v7259 = vadd.f32 0.0, %v7258
        %v7260 = vpop.f32.mrb[0].mxu0
        %7261 = vmatprep.mubr.bf16.mxu0 0
        %7262 = vmatmul.mubr.bf16.gmra.mrb[0].mxu0 %v7208
        %v7263 = vpop.f32.mrb[0].mxu0
        %v7264 = vadd.f32 0.0, %v7263
        %v7265 = vpop.f32.mrb[0].mxu0
        %v7266 = vpop.f32.mrb[0].mxu0
        %v7267 = vadd.f32 0.0, %v7266
        %v7268 = vpop.f32.mrb[0].mxu0
        %7269 = vmatprep.mubr.bf16.mxu0 0
        %7270 = vmatmul.mubr.bf16.gmra.mrb[0].mxu0 %v7211
        %v7271 = vpop.f32.mrb[0].mxu0
        %v7272 = vadd.f32 0.0, %v7271
        %v7273 = vpop.f32.mrb[0].mxu0
        %v7274 = vpop.f32.mrb[0].mxu0
        %v7275 = vadd.f32 0.0, %v7274
        %v7276 = vpop.f32.mrb[0].mxu0
        %7277 = vdwg.mxu0
        %v7278 = vadd.f32 %v6991, %v7248
        %v7279 = vadd.f32 %v6994, %v7251
        %v7280 = vadd.f32 %v6999, %v7256
        %v7281 = vadd.f32 %v7002, %v7259
        %v7282 = vadd.f32 %v7007, %v7264
        %v7283 = vadd.f32 %v7010, %v7267
        %v7284 = vadd.f32 %v7015, %v7272
        %v7285 = vadd.f32 %v7018, %v7275
        %v7287 = vlaneseq
        %v7288 = vshrl.u32 %v7287, 7
        %v7289 = vsub.s32 0, %v7288
        %v7290 = vrot.slane %v6475, %v7289
        %v7292 = vadd.f32 %v7278, %v7290
        %v7293 = vadd.f32 %v7279, %v7290
        %v7294 = vadd.f32 %v7280, %v7290
        %v7295 = vadd.f32 %v7281, %v7290
        %v7296 = vadd.f32 %v7282, %v7290
        %v7297 = vadd.f32 %v7283, %v7290
        %v7298 = vadd.f32 %v7284, %v7290
        %v7299 = vadd.f32 %v7285, %v7290
        %7300 = vxpose.xlu0.b32.start [1/16] %v7292, 128
        %7301 = vxpose.xlu0.b32.cont [2/16] %v7293, 128
        %7302 = vxpose.xlu0.b32.cont [3/16] %v7294, 128
        %7303 = vxpose.xlu0.b32.cont [4/16] %v7295, 128
        %7304 = vxpose.xlu0.b32.cont [5/16] %v7296, 128
        %7305 = vxpose.xlu0.b32.cont [6/16] %v7297, 128
        %7306 = vxpose.xlu0.b32.cont [7/16] %v7298, 128
        %7307 = vxpose.xlu0.b32.cont [8/16] %v7299, 128
        %7308 = vxpose.xlu0.b32.cont [9/16] 0.0, 128
        %7309 = vxpose.xlu0.b32.cont [10/16] 0.0, 128
        %7310 = vxpose.xlu0.b32.cont [11/16] 0.0, 128
        %7311 = vxpose.xlu0.b32.cont [12/16] 0.0, 128
        %7312 = vxpose.xlu0.b32.cont [13/16] 0.0, 128
        %7313 = vxpose.xlu0.b32.cont [14/16] 0.0, 128
        %7314 = vxpose.xlu0.b32.cont [15/16] 0.0, 128
        %7315 = vxpose.xlu0.b32.end [16/16] 0.0, 128
        %v7316 = vpop.trf.xlu0
        %v7317 = vpop.trf.xlu0
        %v7318 = vpop.trf.xlu0
        %v7319 = vpop.trf.xlu0
        %v7320 = vpop.trf.xlu0
        %v7321 = vpop.trf.xlu0
        %v7322 = vpop.trf.xlu0
        %v7323 = vpop.trf.xlu0
        %v7324 = vpop.trf.xlu0
        %v7325 = vpop.trf.xlu0
        %v7326 = vpop.trf.xlu0
        %v7327 = vpop.trf.xlu0
        %v7328 = vpop.trf.xlu0
        %v7329 = vpop.trf.xlu0
        %v7330 = vpop.trf.xlu0
        %v7331 = vpop.trf.xlu0
        %7332 = vst.msk [vmem:[%s498] sm:$0xff] %vm1822, %v7316
        %7333 = vst.msk [vmem:[%s498 + $0x8] sm:$0xff] %vm1822, %v7317
        %7334 = vst.msk [vmem:[%s498 + $0x10] sm:$0xff] %vm1822, %v7318
        %7335 = vst.msk [vmem:[%s498 + $0x18] sm:$0xff] %vm1822, %v7319
        %s7336 = sand.u32 %s362, 1
        %s7337 = scalar_lea.sflag [#allocation4], %s7336
        %s7338 = sand.u32 %s362, 1
        %s7339 = smul.addr %s7338, 32
        %s7340 = scalar_lea.vmem [#allocation3], %s7339
        // Predicated region
        $region81: #{tpu_custom_call.1} parent=79 // pred_check
          %p7341 = pneg %p372
        $region82: #{tpu_custom_call.1} parent=79 // pred_check_branch
          %7343 = sbr.rel (%p7341) target = $region84
        $region83: #{tpu_custom_call.1} parent=79 // pred_region
          %s7345 = ssub.s32 512, 512
          %7346 = vsyncadd %s7337, %s7345
          %s7347 = smul.addr %s29, 4
          %s7348 = smul.addr %s7347, 128
          %s7349 = scalar_lea.hbm %s15, %s7348
          %s7350 = sshll.u32 %s7340, 4
          %s7351 = int_to_ptr.vmem [resolvable:$true] %s7350
          %7356 = dma.vmem_to_hbm [thread:$0]  %s7351, 512, %s7349, %s7337, 128, 128, 8
        $region84: #{tpu_custom_call.1} parent=79 // pred_fallthru
          _
      $region80: #{tpu_custom_call.1} parent=5 // pred_fallthru
        _
      %p7357 = scmp.le.s32.totalorder 2, %s24
      // Predicated region
      $region85: #{tpu_custom_call.1} parent=5 // pred_check
        %p7358 = pneg %p7357
      $region86: #{tpu_custom_call.1} parent=5 // pred_check_branch
        %7360 = sbr.rel (%p7358) target = $region88
      $region87: #{tpu_custom_call.1} parent=5 // pred_region
        %s7361 = ssub.s32 %s24, 2
        // Predicated region
        $region89: #{tpu_custom_call.1} parent=87 // pred_check
          %p7362 = pneg %p378
        $region90: #{tpu_custom_call.1} parent=87 // pred_check_branch
          %7364 = sbr.rel (%p7362) target = $region92
        $region91: #{tpu_custom_call.1} parent=87 // pred_region
          %s7365 = sand.u32 %s363, 1
          %s7366 = scalar_lea.sflag [#allocation4], %s7365
          %s7367 = sand.u32 %s363, 1
          %s7368 = smul.addr %s7367, 32
          %s7369 = scalar_lea.vmem [#allocation3], %s7368
          %7370 = dma.done %s7366, 512
        $region92: #{tpu_custom_call.1} parent=87 // pred_fallthru
          _
      $region88: #{tpu_custom_call.1} parent=5 // pred_fallthru
        _
    $region6: #{tpu_custom_call.1} parent=1 // loop_footer
      %s28 = sadd.s32 1, %s24
    $region7: #{tpu_custom_call.1} parent=1 // loop_footer_branch
      %23 = sbr.rel target = $region3
    $region8: #{tpu_custom_call.1} parent=1 // loop_exit
      _
    %7371 = vsyncpa [#allocation4], 1
    %s7372 = scalar_lea.sflag [#allocation4], 1
    %7373 = vsyncpa %s7372, 1

</llo_original>
